<compile_context>
chip_gen: v6e
topology: v6e:2x2x1
jax: 0.10.0
libtpu: 0.0.40
codegen_flags: <defaults>
</compile_context>

<pallas_src>
import functools

import jax
import jax.numpy as jnp
from jax import lax
from jax.experimental import pallas as pl
from jax.experimental.pallas import tpu as pltpu

KH = KW = 3      # 3x3 convs throughout
N_LAYERS = 6
C = 3            # inplanes = out channels = 3 for every layer


def _adapter_kernel(w_ref, b_ref, x_ref, o_ref, buf_a, buf_b, *,
                    h, w, c, n_layers):
    """Fused 6-layer convbn+activation stack for one batch element.

    w_ref:  (n_layers*KH*KW*c*c,) f32 in SMEM -- BN-folded weights, layout
            (layer, dy, dx, cin, cout) flattened row-major.
    b_ref:  (n_layers*c,)         f32 in SMEM -- BN-folded biases.
    x_ref:  (1, c, h, w) input block (NCHW -> lanes = W).
    o_ref:  (1, c, h, w) output block.
    buf_a/buf_b: (c, h, w) f32 VMEM ping-pong activation buffers.
    """
    f32 = jnp.float32

    # Boundary masks: computed once per grid step, shared by all layers and
    # input channels.  They zero the single row/column that pltpu.roll wraps
    # around -- exactly the conv's zero padding.
    row_ids = lax.broadcasted_iota(jnp.int32, (h, w), 0)
    col_ids = lax.broadcasted_iota(jnp.int32, (h, w), 1)
    not_first_row = row_ids > 0          # zeroes row 0    (tap dy=0, sy=-1)
    not_last_row = row_ids < h - 1       # zeroes row h-1  (tap dy=2, sy=+1)
    not_first_col = col_ids > 0          # zeroes col 0    (tap dx=0, sx=-1)
    not_last_col = col_ids < w - 1       # zeroes col w-1  (tap dx=2, sx=+1)

    bufs = (buf_a, buf_b)

    for l in range(n_layers):
        last = l == n_layers - 1
        src = None if l == 0 else bufs[(l - 1) % 2]   # read side
        dst = bufs[l % 2]                             # write side (non-last)

        # Per-output-channel accumulators, initialised with the folded bias.
        # At strip/test-sized planes these stay register-resident across all
        # 27 taps and are stored exactly once per layer.
        accs = [jnp.full((h, w), b_ref[l * c + co], f32) for co in range(c)]

        for ci in range(c):
            p = x_ref[0, ci].astype(f32) if l == 0 else src[ci]
            for dy in range(KH):
                sy = dy - 1
                if sy == 0:
                    p_row = p
                else:
                    rolled = pltpu.roll(p, (-sy) % h, 0)       # XLU sublane rotate
                    mask = not_first_row if sy < 0 else not_last_row
                    p_row = jnp.where(mask, rolled, 0.0)
                for dx in range(KW):
                    sx = dx - 1
                    if sx == 0:
                        tap = p_row
                    else:
                        rolled = pltpu.roll(p_row, (-sx) % w, 1)  # XLU lane rotate
                        mask = not_first_col if sx < 0 else not_last_col
                        tap = jnp.where(mask, rolled, 0.0)
                    # Shifted plane is reused for all 3 output channels:
                    # scalar-broadcast VPU FMAs with SMEM-resident weights.
                    for co in range(c):
                        wi = (((l * KH + dy) * KW + dx) * c + ci) * c + co
                        accs[co] = accs[co] + w_ref[wi] * tap

        for co in range(c):
            acc = accs[co]
            if last:
                o_ref[0, co] = jnp.tanh(acc).astype(o_ref.dtype)
            else:
                # sigmoid(x) == 0.5*tanh(0.5*x) + 0.5 : transcendental on the
                # EUP slot, exact numerics (no approximate reciprocal).
                dst[co] = 0.5 * jnp.tanh(0.5 * acc) + 0.5


def adapter_stack(x_nchw, w_flat, b_flat, *, n_layers=N_LAYERS):
    """Run the fused 6-layer stack over a batch of NCHW images."""
    nb, c, h, w = x_nchw.shape
    kern = functools.partial(_adapter_kernel, h=h, w=w, c=c, n_layers=n_layers)
    return pl.pallas_call(
        kern,
        out_shape=jax.ShapeDtypeStruct((nb, c, h, w), x_nchw.dtype),
        grid_spec=pltpu.PrefetchScalarGridSpec(
            # Weights + biases are scalar-prefetched into SMEM once and read
            # scalar-wise inside the kernel (no per-layer weight DMAs).
            num_scalar_prefetch=2,
            grid=(nb,),
            in_specs=[
                pl.BlockSpec((1, c, h, w), lambda i, wf, bf: (i, 0, 0, 0)),
            ],
            out_specs=pl.BlockSpec((1, c, h, w), lambda i, wf, bf: (i, 0, 0, 0)),
            scratch_shapes=[
                pltpu.VMEM((c, h, w), jnp.float32),   # ping buffer
                pltpu.VMEM((c, h, w), jnp.float32),   # pong buffer
            ],
        ),
        compiler_params=pltpu.CompilerParams(
            dimension_semantics=("parallel",)),
    )(w_flat, b_flat, x_nchw)


@jax.jit
def adapter_forward(img_L_nchw, img_R_nchw, w_flat, b_flat):
    """Matches Adapter.forward: same conv stack applied to both images,
    both images processed in a single pallas_call."""
    n = img_L_nchw.shape[0]
    x_both = jnp.concatenate([img_L_nchw, img_R_nchw], axis=0)
    out = adapter_stack(x_both, w_flat, b_flat)
    return out[:n], out[n:]


def make_adapter_params(key, inplanes=3, eps=1e-5):
    """Deterministic conv + BN params for the 6 convbn blocks, BN folded in.

    Returns (w_flat, b_flat) with w laid out as (layer, dy, dx, cin, cout)
    flattened row-major, matching the kernel's SMEM indexing.
    """
    assert inplanes == C, "kernel assumes 3 input channels (module default)"
    ws, bs = [], []
    for _ in range(N_LAYERS):
        key, k1, k2, k3, k4, k5 = jax.random.split(key, 6)
        wconv = jax.random.normal(k1, (KH, KW, C, C), jnp.float32) * 0.2  # HWIO
        gamma = 1.0 + 0.1 * jax.random.normal(k2, (C,), jnp.float32)
        beta = 0.1 * jax.random.normal(k3, (C,), jnp.float32)
        rmean = 0.1 * jax.random.normal(k4, (C,), jnp.float32)
        rvar = jnp.abs(1.0 + 0.1 * jax.random.normal(k5, (C,), jnp.float32))
        scale = gamma / jnp.sqrt(rvar + eps)                 # (cout,)
        ws.append((wconv * scale).reshape(-1))               # fold BN scale
        bs.append(beta - rmean * scale)                      # fold BN bias
    return jnp.concatenate(ws), jnp.concatenate(bs)          # (486,), (18,)


def _reference_forward(img_nchw, w_flat, b_flat):
    """Pure-JAX reference (lax.conv) for correctness checking."""
    x = jnp.transpose(img_nchw, (0, 2, 3, 1))                # NCHW -> NHWC
    per_layer = KH * KW * C * C
    for l in range(N_LAYERS):
        w_hwio = w_flat[l * per_layer:(l + 1) * per_layer].reshape(KH, KW, C, C)
        b = b_flat[l * C:(l + 1) * C]
        y = lax.conv_general_dilated(
            x, w_hwio, window_strides=(1, 1), padding=((1, 1), (1, 1)),
            dimension_numbers=("NHWC", "HWIO", "NHWC")) + b
        x = jnp.tanh(y) if l == N_LAYERS - 1 else jax.nn.sigmoid(y)
    return jnp.transpose(x, (0, 3, 1, 2))                    # NHWC -> NCHW


if __name__ == "__main__":
    key = jax.random.PRNGKey(0)
    kp, kl, kr = jax.random.split(key, 3)

    w_flat, b_flat = make_adapter_params(kp, inplanes=3)

    # W=128 keeps the lane axis full (per review: do not tune/validate at
    # 16-wide lanes); still a small, fast test shape.
    N, Cin, H, W = 2, 3, 16, 128
    img_L = jax.random.normal(kl, (N, Cin, H, W), jnp.float32)
    img_R = jax.random.normal(kr, (N, Cin, H, W), jnp.float32)

    out_L, out_R = adapter_forward(img_L, img_R, w_flat, b_flat)
    jax.block_until_ready((out_L, out_R))

    ref_L = _reference_forward(img_L, w_flat, b_flat)
    ref_R = _reference_forward(img_R, w_flat, b_flat)
    assert out_L.shape == (N, 3, H, W) and out_R.shape == (N, 3, H, W)
    assert jnp.allclose(out_L, ref_L, atol=1e-4, rtol=1e-4)
    assert jnp.allclose(out_R, ref_R, atol=1e-4, rtol=1e-4)

    print("KERNEL_OK")
</pallas_src>

<mosaic_0001>
module attributes {stable_mosaic.version = 11 : i64} {
  func.func @_adapter_kernel(%arg0: i32, %arg1: memref<486xf32, #tpu.memory_space<smem>>, %arg2: memref<18xf32, #tpu.memory_space<smem>>, %arg3: memref<1x3x16x128xf32, #tpu.memory_space<vmem>>, %arg4: memref<1x3x16x128xf32, #tpu.memory_space<vmem>>, %arg5: memref<3x16x128xf32, #tpu.memory_space<vmem>>, %arg6: memref<3x16x128xf32, #tpu.memory_space<vmem>>) attributes {dimension_semantics = [#tpu.dimension_semantics<parallel>], iteration_bounds = array<i64: 4>, scalar_prefetch = 2 : i64, scratch_operands = 2 : i64, tpu.core_type = #tpu.core_type<tc>, window_params = [{transform_indices = @transform_0, window_bounds = array<i64: 1, 3, 16, 128>}, {transform_indices = @transform_1, window_bounds = array<i64: 1, 3, 16, 128>}]} {
    %0 = tpu.iota {dimensions = array<i32: 0>} : vector<16x128xi32>
    %1 = tpu.iota {dimensions = array<i32: 1>} : vector<16x128xi32>
    %c0_i32 = arith.constant 0 : i32
    %2 = vector.broadcast %c0_i32 : i32 to vector<16x128xi32>
    %3 = arith.cmpi sgt, %0, %2 : vector<16x128xi32>
    %c15_i32 = arith.constant 15 : i32
    %4 = vector.broadcast %c15_i32 : i32 to vector<16x128xi32>
    %5 = arith.cmpi slt, %0, %4 : vector<16x128xi32>
    %c0_i32_0 = arith.constant 0 : i32
    %6 = vector.broadcast %c0_i32_0 : i32 to vector<16x128xi32>
    %7 = arith.cmpi sgt, %1, %6 : vector<16x128xi32>
    %c127_i32 = arith.constant 127 : i32
    %8 = vector.broadcast %c127_i32 : i32 to vector<16x128xi32>
    %9 = arith.cmpi slt, %1, %8 : vector<16x128xi32>
    %c0 = arith.constant 0 : index
    %10 = memref.load %arg2[%c0] : memref<18xf32, #tpu.memory_space<smem>>
    %11 = vector.broadcast %10 : f32 to vector<16x128xf32>
    %c1 = arith.constant 1 : index
    %12 = memref.load %arg2[%c1] : memref<18xf32, #tpu.memory_space<smem>>
    %13 = vector.broadcast %12 : f32 to vector<16x128xf32>
    %c2 = arith.constant 2 : index
    %14 = memref.load %arg2[%c2] : memref<18xf32, #tpu.memory_space<smem>>
    %15 = vector.broadcast %14 : f32 to vector<16x128xf32>
    %c0_1 = arith.constant 0 : index
    %c0_2 = arith.constant 0 : index
    %c0_3 = arith.constant 0 : index
    %c0_4 = arith.constant 0 : index
    %16 = vector.load %arg3[%c0_1, %c0_2, %c0_3, %c0_4] : memref<1x3x16x128xf32, #tpu.memory_space<vmem>>, vector<1x1x16x128xf32>
    %17 = vector.shape_cast %16 : vector<1x1x16x128xf32> to vector<16x128xf32>
    %c1_i32 = arith.constant 1 : i32
    %18 = tpu.dynamic_rotate %17 by %c1_i32 dim 0 : vector<16x128xf32>, i32 -> vector<16x128xf32>
    %cst = arith.constant 0.000000e+00 : f32
    %19 = vector.broadcast %cst : f32 to vector<16x128xf32>
    %20 = arith.select %3, %18, %19 : vector<16x128xi1>, vector<16x128xf32>
    %c1_i32_5 = arith.constant 1 : i32
    %21 = tpu.dynamic_rotate %20 by %c1_i32_5 dim 1 : vector<16x128xf32>, i32 -> vector<16x128xf32>
    %cst_6 = arith.constant 0.000000e+00 : f32
    %22 = vector.broadcast %cst_6 : f32 to vector<16x128xf32>
    %23 = arith.select %7, %21, %22 : vector<16x128xi1>, vector<16x128xf32>
    %c0_7 = arith.constant 0 : index
    %24 = memref.load %arg1[%c0_7] : memref<486xf32, #tpu.memory_space<smem>>
    %25 = vector.broadcast %24 : f32 to vector<16x128xf32>
    %26 = arith.mulf %25, %23 : vector<16x128xf32>
    %27 = arith.addf %11, %26 : vector<16x128xf32>
    %c1_8 = arith.constant 1 : index
    %28 = memref.load %arg1[%c1_8] : memref<486xf32, #tpu.memory_space<smem>>
    %29 = vector.broadcast %28 : f32 to vector<16x128xf32>
    %30 = arith.mulf %29, %23 : vector<16x128xf32>
    %31 = arith.addf %13, %30 : vector<16x128xf32>
    %c2_9 = arith.constant 2 : index
    %32 = memref.load %arg1[%c2_9] : memref<486xf32, #tpu.memory_space<smem>>
    %33 = vector.broadcast %32 : f32 to vector<16x128xf32>
    %34 = arith.mulf %33, %23 : vector<16x128xf32>
    %35 = arith.addf %15, %34 : vector<16x128xf32>
    %c9 = arith.constant 9 : index
    %36 = memref.load %arg1[%c9] : memref<486xf32, #tpu.memory_space<smem>>
    %37 = vector.broadcast %36 : f32 to vector<16x128xf32>
    %38 = arith.mulf %37, %20 : vector<16x128xf32>
    %39 = arith.addf %27, %38 : vector<16x128xf32>
    %c10 = arith.constant 10 : index
    %40 = memref.load %arg1[%c10] : memref<486xf32, #tpu.memory_space<smem>>
    %41 = vector.broadcast %40 : f32 to vector<16x128xf32>
    %42 = arith.mulf %41, %20 : vector<16x128xf32>
    %43 = arith.addf %31, %42 : vector<16x128xf32>
    %c11 = arith.constant 11 : index
    %44 = memref.load %arg1[%c11] : memref<486xf32, #tpu.memory_space<smem>>
    %45 = vector.broadcast %44 : f32 to vector<16x128xf32>
    %46 = arith.mulf %45, %20 : vector<16x128xf32>
    %47 = arith.addf %35, %46 : vector<16x128xf32>
    %c127_i32_10 = arith.constant 127 : i32
    %48 = tpu.dynamic_rotate %20 by %c127_i32_10 dim 1 : vector<16x128xf32>, i32 -> vector<16x128xf32>
    %cst_11 = arith.constant 0.000000e+00 : f32
    %49 = vector.broadcast %cst_11 : f32 to vector<16x128xf32>
    %50 = arith.select %9, %48, %49 : vector<16x128xi1>, vector<16x128xf32>
    %c18 = arith.constant 18 : index
    %51 = memref.load %arg1[%c18] : memref<486xf32, #tpu.memory_space<smem>>
    %52 = vector.broadcast %51 : f32 to vector<16x128xf32>
    %53 = arith.mulf %52, %50 : vector<16x128xf32>
    %54 = arith.addf %39, %53 : vector<16x128xf32>
    %c19 = arith.constant 19 : index
    %55 = memref.load %arg1[%c19] : memref<486xf32, #tpu.memory_space<smem>>
    %56 = vector.broadcast %55 : f32 to vector<16x128xf32>
    %57 = arith.mulf %56, %50 : vector<16x128xf32>
    %58 = arith.addf %43, %57 : vector<16x128xf32>
    %c20 = arith.constant 20 : index
    %59 = memref.load %arg1[%c20] : memref<486xf32, #tpu.memory_space<smem>>
    %60 = vector.broadcast %59 : f32 to vector<16x128xf32>
    %61 = arith.mulf %60, %50 : vector<16x128xf32>
    %62 = arith.addf %47, %61 : vector<16x128xf32>
    %c1_i32_12 = arith.constant 1 : i32
    %63 = tpu.dynamic_rotate %17 by %c1_i32_12 dim 1 : vector<16x128xf32>, i32 -> vector<16x128xf32>
    %cst_13 = arith.constant 0.000000e+00 : f32
    %64 = vector.broadcast %cst_13 : f32 to vector<16x128xf32>
    %65 = arith.select %7, %63, %64 : vector<16x128xi1>, vector<16x128xf32>
    %c27 = arith.constant 27 : index
    %66 = memref.load %arg1[%c27] : memref<486xf32, #tpu.memory_space<smem>>
    %67 = vector.broadcast %66 : f32 to vector<16x128xf32>
    %68 = arith.mulf %67, %65 : vector<16x128xf32>
    %69 = arith.addf %54, %68 : vector<16x128xf32>
    %c28 = arith.constant 28 : index
    %70 = memref.load %arg1[%c28] : memref<486xf32, #tpu.memory_space<smem>>
    %71 = vector.broadcast %70 : f32 to vector<16x128xf32>
    %72 = arith.mulf %71, %65 : vector<16x128xf32>
    %73 = arith.addf %58, %72 : vector<16x128xf32>
    %c29 = arith.constant 29 : index
    %74 = memref.load %arg1[%c29] : memref<486xf32, #tpu.memory_space<smem>>
    %75 = vector.broadcast %74 : f32 to vector<16x128xf32>
    %76 = arith.mulf %75, %65 : vector<16x128xf32>
    %77 = arith.addf %62, %76 : vector<16x128xf32>
    %c36 = arith.constant 36 : index
    %78 = memref.load %arg1[%c36] : memref<486xf32, #tpu.memory_space<smem>>
    %79 = vector.broadcast %78 : f32 to vector<16x128xf32>
    %80 = arith.mulf %79, %17 : vector<16x128xf32>
    %81 = arith.addf %69, %80 : vector<16x128xf32>
    %c37 = arith.constant 37 : index
    %82 = memref.load %arg1[%c37] : memref<486xf32, #tpu.memory_space<smem>>
    %83 = vector.broadcast %82 : f32 to vector<16x128xf32>
    %84 = arith.mulf %83, %17 : vector<16x128xf32>
    %85 = arith.addf %73, %84 : vector<16x128xf32>
    %c38 = arith.constant 38 : index
    %86 = memref.load %arg1[%c38] : memref<486xf32, #tpu.memory_space<smem>>
    %87 = vector.broadcast %86 : f32 to vector<16x128xf32>
    %88 = arith.mulf %87, %17 : vector<16x128xf32>
    %89 = arith.addf %77, %88 : vector<16x128xf32>
    %c127_i32_14 = arith.constant 127 : i32
    %90 = tpu.dynamic_rotate %17 by %c127_i32_14 dim 1 : vector<16x128xf32>, i32 -> vector<16x128xf32>
    %cst_15 = arith.constant 0.000000e+00 : f32
    %91 = vector.broadcast %cst_15 : f32 to vector<16x128xf32>
    %92 = arith.select %9, %90, %91 : vector<16x128xi1>, vector<16x128xf32>
    %c45 = arith.constant 45 : index
    %93 = memref.load %arg1[%c45] : memref<486xf32, #tpu.memory_space<smem>>
    %94 = vector.broadcast %93 : f32 to vector<16x128xf32>
    %95 = arith.mulf %94, %92 : vector<16x128xf32>
    %96 = arith.addf %81, %95 : vector<16x128xf32>
    %c46 = arith.constant 46 : index
    %97 = memref.load %arg1[%c46] : memref<486xf32, #tpu.memory_space<smem>>
    %98 = vector.broadcast %97 : f32 to vector<16x128xf32>
    %99 = arith.mulf %98, %92 : vector<16x128xf32>
    %100 = arith.addf %85, %99 : vector<16x128xf32>
    %c47 = arith.constant 47 : index
    %101 = memref.load %arg1[%c47] : memref<486xf32, #tpu.memory_space<smem>>
    %102 = vector.broadcast %101 : f32 to vector<16x128xf32>
    %103 = arith.mulf %102, %92 : vector<16x128xf32>
    %104 = arith.addf %89, %103 : vector<16x128xf32>
    %c15_i32_16 = arith.constant 15 : i32
    %105 = tpu.dynamic_rotate %17 by %c15_i32_16 dim 0 : vector<16x128xf32>, i32 -> vector<16x128xf32>
    %cst_17 = arith.constant 0.000000e+00 : f32
    %106 = vector.broadcast %cst_17 : f32 to vector<16x128xf32>
    %107 = arith.select %5, %105, %106 : vector<16x128xi1>, vector<16x128xf32>
    %c1_i32_18 = arith.constant 1 : i32
    %108 = tpu.dynamic_rotate %107 by %c1_i32_18 dim 1 : vector<16x128xf32>, i32 -> vector<16x128xf32>
    %cst_19 = arith.constant 0.000000e+00 : f32
    %109 = vector.broadcast %cst_19 : f32 to vector<16x128xf32>
    %110 = arith.select %7, %108, %109 : vector<16x128xi1>, vector<16x128xf32>
    %c54 = arith.constant 54 : index
    %111 = memref.load %arg1[%c54] : memref<486xf32, #tpu.memory_space<smem>>
    %112 = vector.broadcast %111 : f32 to vector<16x128xf32>
    %113 = arith.mulf %112, %110 : vector<16x128xf32>
    %114 = arith.addf %96, %113 : vector<16x128xf32>
    %c55 = arith.constant 55 : index
    %115 = memref.load %arg1[%c55] : memref<486xf32, #tpu.memory_space<smem>>
    %116 = vector.broadcast %115 : f32 to vector<16x128xf32>
    %117 = arith.mulf %116, %110 : vector<16x128xf32>
    %118 = arith.addf %100, %117 : vector<16x128xf32>
    %c56 = arith.constant 56 : index
    %119 = memref.load %arg1[%c56] : memref<486xf32, #tpu.memory_space<smem>>
    %120 = vector.broadcast %119 : f32 to vector<16x128xf32>
    %121 = arith.mulf %120, %110 : vector<16x128xf32>
    %122 = arith.addf %104, %121 : vector<16x128xf32>
    %c63 = arith.constant 63 : index
    %123 = memref.load %arg1[%c63] : memref<486xf32, #tpu.memory_space<smem>>
    %124 = vector.broadcast %123 : f32 to vector<16x128xf32>
    %125 = arith.mulf %124, %107 : vector<16x128xf32>
    %126 = arith.addf %114, %125 : vector<16x128xf32>
    %c64 = arith.constant 64 : index
    %127 = memref.load %arg1[%c64] : memref<486xf32, #tpu.memory_space<smem>>
    %128 = vector.broadcast %127 : f32 to vector<16x128xf32>
    %129 = arith.mulf %128, %107 : vector<16x128xf32>
    %130 = arith.addf %118, %129 : vector<16x128xf32>
    %c65 = arith.constant 65 : index
    %131 = memref.load %arg1[%c65] : memref<486xf32, #tpu.memory_space<smem>>
    %132 = vector.broadcast %131 : f32 to vector<16x128xf32>
    %133 = arith.mulf %132, %107 : vector<16x128xf32>
    %134 = arith.addf %122, %133 : vector<16x128xf32>
    %c127_i32_20 = arith.constant 127 : i32
    %135 = tpu.dynamic_rotate %107 by %c127_i32_20 dim 1 : vector<16x128xf32>, i32 -> vector<16x128xf32>
    %cst_21 = arith.constant 0.000000e+00 : f32
    %136 = vector.broadcast %cst_21 : f32 to vector<16x128xf32>
    %137 = arith.select %9, %135, %136 : vector<16x128xi1>, vector<16x128xf32>
    %c72 = arith.constant 72 : index
    %138 = memref.load %arg1[%c72] : memref<486xf32, #tpu.memory_space<smem>>
    %139 = vector.broadcast %138 : f32 to vector<16x128xf32>
    %140 = arith.mulf %139, %137 : vector<16x128xf32>
    %141 = arith.addf %126, %140 : vector<16x128xf32>
    %c73 = arith.constant 73 : index
    %142 = memref.load %arg1[%c73] : memref<486xf32, #tpu.memory_space<smem>>
    %143 = vector.broadcast %142 : f32 to vector<16x128xf32>
    %144 = arith.mulf %143, %137 : vector<16x128xf32>
    %145 = arith.addf %130, %144 : vector<16x128xf32>
    %c74 = arith.constant 74 : index
    %146 = memref.load %arg1[%c74] : memref<486xf32, #tpu.memory_space<smem>>
    %147 = vector.broadcast %146 : f32 to vector<16x128xf32>
    %148 = arith.mulf %147, %137 : vector<16x128xf32>
    %149 = arith.addf %134, %148 : vector<16x128xf32>
    %c0_22 = arith.constant 0 : index
    %c1_23 = arith.constant 1 : index
    %c0_24 = arith.constant 0 : index
    %c0_25 = arith.constant 0 : index
    %150 = vector.load %arg3[%c0_22, %c1_23, %c0_24, %c0_25] : memref<1x3x16x128xf32, #tpu.memory_space<vmem>>, vector<1x1x16x128xf32>
    %151 = vector.shape_cast %150 : vector<1x1x16x128xf32> to vector<16x128xf32>
    %c1_i32_26 = arith.constant 1 : i32
    %152 = tpu.dynamic_rotate %151 by %c1_i32_26 dim 0 : vector<16x128xf32>, i32 -> vector<16x128xf32>
    %cst_27 = arith.constant 0.000000e+00 : f32
    %153 = vector.broadcast %cst_27 : f32 to vector<16x128xf32>
    %154 = arith.select %3, %152, %153 : vector<16x128xi1>, vector<16x128xf32>
    %c1_i32_28 = arith.constant 1 : i32
    %155 = tpu.dynamic_rotate %154 by %c1_i32_28 dim 1 : vector<16x128xf32>, i32 -> vector<16x128xf32>
    %cst_29 = arith.constant 0.000000e+00 : f32
    %156 = vector.broadcast %cst_29 : f32 to vector<16x128xf32>
    %157 = arith.select %7, %155, %156 : vector<16x128xi1>, vector<16x128xf32>
    %c3 = arith.constant 3 : index
    %158 = memref.load %arg1[%c3] : memref<486xf32, #tpu.memory_space<smem>>
    %159 = vector.broadcast %158 : f32 to vector<16x128xf32>
    %160 = arith.mulf %159, %157 : vector<16x128xf32>
    %161 = arith.addf %141, %160 : vector<16x128xf32>
    %c4 = arith.constant 4 : index
    %162 = memref.load %arg1[%c4] : memref<486xf32, #tpu.memory_space<smem>>
    %163 = vector.broadcast %162 : f32 to vector<16x128xf32>
    %164 = arith.mulf %163, %157 : vector<16x128xf32>
    %165 = arith.addf %145, %164 : vector<16x128xf32>
    %c5 = arith.constant 5 : index
    %166 = memref.load %arg1[%c5] : memref<486xf32, #tpu.memory_space<smem>>
    %167 = vector.broadcast %166 : f32 to vector<16x128xf32>
    %168 = arith.mulf %167, %157 : vector<16x128xf32>
    %169 = arith.addf %149, %168 : vector<16x128xf32>
    %c12 = arith.constant 12 : index
    %170 = memref.load %arg1[%c12] : memref<486xf32, #tpu.memory_space<smem>>
    %171 = vector.broadcast %170 : f32 to vector<16x128xf32>
    %172 = arith.mulf %171, %154 : vector<16x128xf32>
    %173 = arith.addf %161, %172 : vector<16x128xf32>
    %c13 = arith.constant 13 : index
    %174 = memref.load %arg1[%c13] : memref<486xf32, #tpu.memory_space<smem>>
    %175 = vector.broadcast %174 : f32 to vector<16x128xf32>
    %176 = arith.mulf %175, %154 : vector<16x128xf32>
    %177 = arith.addf %165, %176 : vector<16x128xf32>
    %c14 = arith.constant 14 : index
    %178 = memref.load %arg1[%c14] : memref<486xf32, #tpu.memory_space<smem>>
    %179 = vector.broadcast %178 : f32 to vector<16x128xf32>
    %180 = arith.mulf %179, %154 : vector<16x128xf32>
    %181 = arith.addf %169, %180 : vector<16x128xf32>
    %c127_i32_30 = arith.constant 127 : i32
    %182 = tpu.dynamic_rotate %154 by %c127_i32_30 dim 1 : vector<16x128xf32>, i32 -> vector<16x128xf32>
    %cst_31 = arith.constant 0.000000e+00 : f32
    %183 = vector.broadcast %cst_31 : f32 to vector<16x128xf32>
    %184 = arith.select %9, %182, %183 : vector<16x128xi1>, vector<16x128xf32>
    %c21 = arith.constant 21 : index
    %185 = memref.load %arg1[%c21] : memref<486xf32, #tpu.memory_space<smem>>
    %186 = vector.broadcast %185 : f32 to vector<16x128xf32>
    %187 = arith.mulf %186, %184 : vector<16x128xf32>
    %188 = arith.addf %173, %187 : vector<16x128xf32>
    %c22 = arith.constant 22 : index
    %189 = memref.load %arg1[%c22] : memref<486xf32, #tpu.memory_space<smem>>
    %190 = vector.broadcast %189 : f32 to vector<16x128xf32>
    %191 = arith.mulf %190, %184 : vector<16x128xf32>
    %192 = arith.addf %177, %191 : vector<16x128xf32>
    %c23 = arith.constant 23 : index
    %193 = memref.load %arg1[%c23] : memref<486xf32, #tpu.memory_space<smem>>
    %194 = vector.broadcast %193 : f32 to vector<16x128xf32>
    %195 = arith.mulf %194, %184 : vector<16x128xf32>
    %196 = arith.addf %181, %195 : vector<16x128xf32>
    %c1_i32_32 = arith.constant 1 : i32
    %197 = tpu.dynamic_rotate %151 by %c1_i32_32 dim 1 : vector<16x128xf32>, i32 -> vector<16x128xf32>
    %cst_33 = arith.constant 0.000000e+00 : f32
    %198 = vector.broadcast %cst_33 : f32 to vector<16x128xf32>
    %199 = arith.select %7, %197, %198 : vector<16x128xi1>, vector<16x128xf32>
    %c30 = arith.constant 30 : index
    %200 = memref.load %arg1[%c30] : memref<486xf32, #tpu.memory_space<smem>>
    %201 = vector.broadcast %200 : f32 to vector<16x128xf32>
    %202 = arith.mulf %201, %199 : vector<16x128xf32>
    %203 = arith.addf %188, %202 : vector<16x128xf32>
    %c31 = arith.constant 31 : index
    %204 = memref.load %arg1[%c31] : memref<486xf32, #tpu.memory_space<smem>>
    %205 = vector.broadcast %204 : f32 to vector<16x128xf32>
    %206 = arith.mulf %205, %199 : vector<16x128xf32>
    %207 = arith.addf %192, %206 : vector<16x128xf32>
    %c32 = arith.constant 32 : index
    %208 = memref.load %arg1[%c32] : memref<486xf32, #tpu.memory_space<smem>>
    %209 = vector.broadcast %208 : f32 to vector<16x128xf32>
    %210 = arith.mulf %209, %199 : vector<16x128xf32>
    %211 = arith.addf %196, %210 : vector<16x128xf32>
    %c39 = arith.constant 39 : index
    %212 = memref.load %arg1[%c39] : memref<486xf32, #tpu.memory_space<smem>>
    %213 = vector.broadcast %212 : f32 to vector<16x128xf32>
    %214 = arith.mulf %213, %151 : vector<16x128xf32>
    %215 = arith.addf %203, %214 : vector<16x128xf32>
    %c40 = arith.constant 40 : index
    %216 = memref.load %arg1[%c40] : memref<486xf32, #tpu.memory_space<smem>>
    %217 = vector.broadcast %216 : f32 to vector<16x128xf32>
    %218 = arith.mulf %217, %151 : vector<16x128xf32>
    %219 = arith.addf %207, %218 : vector<16x128xf32>
    %c41 = arith.constant 41 : index
    %220 = memref.load %arg1[%c41] : memref<486xf32, #tpu.memory_space<smem>>
    %221 = vector.broadcast %220 : f32 to vector<16x128xf32>
    %222 = arith.mulf %221, %151 : vector<16x128xf32>
    %223 = arith.addf %211, %222 : vector<16x128xf32>
    %c127_i32_34 = arith.constant 127 : i32
    %224 = tpu.dynamic_rotate %151 by %c127_i32_34 dim 1 : vector<16x128xf32>, i32 -> vector<16x128xf32>
    %cst_35 = arith.constant 0.000000e+00 : f32
    %225 = vector.broadcast %cst_35 : f32 to vector<16x128xf32>
    %226 = arith.select %9, %224, %225 : vector<16x128xi1>, vector<16x128xf32>
    %c48 = arith.constant 48 : index
    %227 = memref.load %arg1[%c48] : memref<486xf32, #tpu.memory_space<smem>>
    %228 = vector.broadcast %227 : f32 to vector<16x128xf32>
    %229 = arith.mulf %228, %226 : vector<16x128xf32>
    %230 = arith.addf %215, %229 : vector<16x128xf32>
    %c49 = arith.constant 49 : index
    %231 = memref.load %arg1[%c49] : memref<486xf32, #tpu.memory_space<smem>>
    %232 = vector.broadcast %231 : f32 to vector<16x128xf32>
    %233 = arith.mulf %232, %226 : vector<16x128xf32>
    %234 = arith.addf %219, %233 : vector<16x128xf32>
    %c50 = arith.constant 50 : index
    %235 = memref.load %arg1[%c50] : memref<486xf32, #tpu.memory_space<smem>>
    %236 = vector.broadcast %235 : f32 to vector<16x128xf32>
    %237 = arith.mulf %236, %226 : vector<16x128xf32>
    %238 = arith.addf %223, %237 : vector<16x128xf32>
    %c15_i32_36 = arith.constant 15 : i32
    %239 = tpu.dynamic_rotate %151 by %c15_i32_36 dim 0 : vector<16x128xf32>, i32 -> vector<16x128xf32>
    %cst_37 = arith.constant 0.000000e+00 : f32
    %240 = vector.broadcast %cst_37 : f32 to vector<16x128xf32>
    %241 = arith.select %5, %239, %240 : vector<16x128xi1>, vector<16x128xf32>
    %c1_i32_38 = arith.constant 1 : i32
    %242 = tpu.dynamic_rotate %241 by %c1_i32_38 dim 1 : vector<16x128xf32>, i32 -> vector<16x128xf32>
    %cst_39 = arith.constant 0.000000e+00 : f32
    %243 = vector.broadcast %cst_39 : f32 to vector<16x128xf32>
    %244 = arith.select %7, %242, %243 : vector<16x128xi1>, vector<16x128xf32>
    %c57 = arith.constant 57 : index
    %245 = memref.load %arg1[%c57] : memref<486xf32, #tpu.memory_space<smem>>
    %246 = vector.broadcast %245 : f32 to vector<16x128xf32>
    %247 = arith.mulf %246, %244 : vector<16x128xf32>
    %248 = arith.addf %230, %247 : vector<16x128xf32>
    %c58 = arith.constant 58 : index
    %249 = memref.load %arg1[%c58] : memref<486xf32, #tpu.memory_space<smem>>
    %250 = vector.broadcast %249 : f32 to vector<16x128xf32>
    %251 = arith.mulf %250, %244 : vector<16x128xf32>
    %252 = arith.addf %234, %251 : vector<16x128xf32>
    %c59 = arith.constant 59 : index
    %253 = memref.load %arg1[%c59] : memref<486xf32, #tpu.memory_space<smem>>
    %254 = vector.broadcast %253 : f32 to vector<16x128xf32>
    %255 = arith.mulf %254, %244 : vector<16x128xf32>
    %256 = arith.addf %238, %255 : vector<16x128xf32>
    %c66 = arith.constant 66 : index
    %257 = memref.load %arg1[%c66] : memref<486xf32, #tpu.memory_space<smem>>
    %258 = vector.broadcast %257 : f32 to vector<16x128xf32>
    %259 = arith.mulf %258, %241 : vector<16x128xf32>
    %260 = arith.addf %248, %259 : vector<16x128xf32>
    %c67 = arith.constant 67 : index
    %261 = memref.load %arg1[%c67] : memref<486xf32, #tpu.memory_space<smem>>
    %262 = vector.broadcast %261 : f32 to vector<16x128xf32>
    %263 = arith.mulf %262, %241 : vector<16x128xf32>
    %264 = arith.addf %252, %263 : vector<16x128xf32>
    %c68 = arith.constant 68 : index
    %265 = memref.load %arg1[%c68] : memref<486xf32, #tpu.memory_space<smem>>
    %266 = vector.broadcast %265 : f32 to vector<16x128xf32>
    %267 = arith.mulf %266, %241 : vector<16x128xf32>
    %268 = arith.addf %256, %267 : vector<16x128xf32>
    %c127_i32_40 = arith.constant 127 : i32
    %269 = tpu.dynamic_rotate %241 by %c127_i32_40 dim 1 : vector<16x128xf32>, i32 -> vector<16x128xf32>
    %cst_41 = arith.constant 0.000000e+00 : f32
    %270 = vector.broadcast %cst_41 : f32 to vector<16x128xf32>
    %271 = arith.select %9, %269, %270 : vector<16x128xi1>, vector<16x128xf32>
    %c75 = arith.constant 75 : index
    %272 = memref.load %arg1[%c75] : memref<486xf32, #tpu.memory_space<smem>>
    %273 = vector.broadcast %272 : f32 to vector<16x128xf32>
    %274 = arith.mulf %273, %271 : vector<16x128xf32>
    %275 = arith.addf %260, %274 : vector<16x128xf32>
    %c76 = arith.constant 76 : index
    %276 = memref.load %arg1[%c76] : memref<486xf32, #tpu.memory_space<smem>>
    %277 = vector.broadcast %276 : f32 to vector<16x128xf32>
    %278 = arith.mulf %277, %271 : vector<16x128xf32>
    %279 = arith.addf %264, %278 : vector<16x128xf32>
    %c77 = arith.constant 77 : index
    %280 = memref.load %arg1[%c77] : memref<486xf32, #tpu.memory_space<smem>>
    %281 = vector.broadcast %280 : f32 to vector<16x128xf32>
    %282 = arith.mulf %281, %271 : vector<16x128xf32>
    %283 = arith.addf %268, %282 : vector<16x128xf32>
    %c0_42 = arith.constant 0 : index
    %c2_43 = arith.constant 2 : index
    %c0_44 = arith.constant 0 : index
    %c0_45 = arith.constant 0 : index
    %284 = vector.load %arg3[%c0_42, %c2_43, %c0_44, %c0_45] : memref<1x3x16x128xf32, #tpu.memory_space<vmem>>, vector<1x1x16x128xf32>
    %285 = vector.shape_cast %284 : vector<1x1x16x128xf32> to vector<16x128xf32>
    %c1_i32_46 = arith.constant 1 : i32
    %286 = tpu.dynamic_rotate %285 by %c1_i32_46 dim 0 : vector<16x128xf32>, i32 -> vector<16x128xf32>
    %cst_47 = arith.constant 0.000000e+00 : f32
    %287 = vector.broadcast %cst_47 : f32 to vector<16x128xf32>
    %288 = arith.select %3, %286, %287 : vector<16x128xi1>, vector<16x128xf32>
    %c1_i32_48 = arith.constant 1 : i32
    %289 = tpu.dynamic_rotate %288 by %c1_i32_48 dim 1 : vector<16x128xf32>, i32 -> vector<16x128xf32>
    %cst_49 = arith.constant 0.000000e+00 : f32
    %290 = vector.broadcast %cst_49 : f32 to vector<16x128xf32>
    %291 = arith.select %7, %289, %290 : vector<16x128xi1>, vector<16x128xf32>
    %c6 = arith.constant 6 : index
    %292 = memref.load %arg1[%c6] : memref<486xf32, #tpu.memory_space<smem>>
    %293 = vector.broadcast %292 : f32 to vector<16x128xf32>
    %294 = arith.mulf %293, %291 : vector<16x128xf32>
    %295 = arith.addf %275, %294 : vector<16x128xf32>
    %c7 = arith.constant 7 : index
    %296 = memref.load %arg1[%c7] : memref<486xf32, #tpu.memory_space<smem>>
    %297 = vector.broadcast %296 : f32 to vector<16x128xf32>
    %298 = arith.mulf %297, %291 : vector<16x128xf32>
    %299 = arith.addf %279, %298 : vector<16x128xf32>
    %c8 = arith.constant 8 : index
    %300 = memref.load %arg1[%c8] : memref<486xf32, #tpu.memory_space<smem>>
    %301 = vector.broadcast %300 : f32 to vector<16x128xf32>
    %302 = arith.mulf %301, %291 : vector<16x128xf32>
    %303 = arith.addf %283, %302 : vector<16x128xf32>
    %c15 = arith.constant 15 : index
    %304 = memref.load %arg1[%c15] : memref<486xf32, #tpu.memory_space<smem>>
    %305 = vector.broadcast %304 : f32 to vector<16x128xf32>
    %306 = arith.mulf %305, %288 : vector<16x128xf32>
    %307 = arith.addf %295, %306 : vector<16x128xf32>
    %c16 = arith.constant 16 : index
    %308 = memref.load %arg1[%c16] : memref<486xf32, #tpu.memory_space<smem>>
    %309 = vector.broadcast %308 : f32 to vector<16x128xf32>
    %310 = arith.mulf %309, %288 : vector<16x128xf32>
    %311 = arith.addf %299, %310 : vector<16x128xf32>
    %c17 = arith.constant 17 : index
    %312 = memref.load %arg1[%c17] : memref<486xf32, #tpu.memory_space<smem>>
    %313 = vector.broadcast %312 : f32 to vector<16x128xf32>
    %314 = arith.mulf %313, %288 : vector<16x128xf32>
    %315 = arith.addf %303, %314 : vector<16x128xf32>
    %c127_i32_50 = arith.constant 127 : i32
    %316 = tpu.dynamic_rotate %288 by %c127_i32_50 dim 1 : vector<16x128xf32>, i32 -> vector<16x128xf32>
    %cst_51 = arith.constant 0.000000e+00 : f32
    %317 = vector.broadcast %cst_51 : f32 to vector<16x128xf32>
    %318 = arith.select %9, %316, %317 : vector<16x128xi1>, vector<16x128xf32>
    %c24 = arith.constant 24 : index
    %319 = memref.load %arg1[%c24] : memref<486xf32, #tpu.memory_space<smem>>
    %320 = vector.broadcast %319 : f32 to vector<16x128xf32>
    %321 = arith.mulf %320, %318 : vector<16x128xf32>
    %322 = arith.addf %307, %321 : vector<16x128xf32>
    %c25 = arith.constant 25 : index
    %323 = memref.load %arg1[%c25] : memref<486xf32, #tpu.memory_space<smem>>
    %324 = vector.broadcast %323 : f32 to vector<16x128xf32>
    %325 = arith.mulf %324, %318 : vector<16x128xf32>
    %326 = arith.addf %311, %325 : vector<16x128xf32>
    %c26 = arith.constant 26 : index
    %327 = memref.load %arg1[%c26] : memref<486xf32, #tpu.memory_space<smem>>
    %328 = vector.broadcast %327 : f32 to vector<16x128xf32>
    %329 = arith.mulf %328, %318 : vector<16x128xf32>
    %330 = arith.addf %315, %329 : vector<16x128xf32>
    %c1_i32_52 = arith.constant 1 : i32
    %331 = tpu.dynamic_rotate %285 by %c1_i32_52 dim 1 : vector<16x128xf32>, i32 -> vector<16x128xf32>
    %cst_53 = arith.constant 0.000000e+00 : f32
    %332 = vector.broadcast %cst_53 : f32 to vector<16x128xf32>
    %333 = arith.select %7, %331, %332 : vector<16x128xi1>, vector<16x128xf32>
    %c33 = arith.constant 33 : index
    %334 = memref.load %arg1[%c33] : memref<486xf32, #tpu.memory_space<smem>>
    %335 = vector.broadcast %334 : f32 to vector<16x128xf32>
    %336 = arith.mulf %335, %333 : vector<16x128xf32>
    %337 = arith.addf %322, %336 : vector<16x128xf32>
    %c34 = arith.constant 34 : index
    %338 = memref.load %arg1[%c34] : memref<486xf32, #tpu.memory_space<smem>>
    %339 = vector.broadcast %338 : f32 to vector<16x128xf32>
    %340 = arith.mulf %339, %333 : vector<16x128xf32>
    %341 = arith.addf %326, %340 : vector<16x128xf32>
    %c35 = arith.constant 35 : index
    %342 = memref.load %arg1[%c35] : memref<486xf32, #tpu.memory_space<smem>>
    %343 = vector.broadcast %342 : f32 to vector<16x128xf32>
    %344 = arith.mulf %343, %333 : vector<16x128xf32>
    %345 = arith.addf %330, %344 : vector<16x128xf32>
    %c42 = arith.constant 42 : index
    %346 = memref.load %arg1[%c42] : memref<486xf32, #tpu.memory_space<smem>>
    %347 = vector.broadcast %346 : f32 to vector<16x128xf32>
    %348 = arith.mulf %347, %285 : vector<16x128xf32>
    %349 = arith.addf %337, %348 : vector<16x128xf32>
    %c43 = arith.constant 43 : index
    %350 = memref.load %arg1[%c43] : memref<486xf32, #tpu.memory_space<smem>>
    %351 = vector.broadcast %350 : f32 to vector<16x128xf32>
    %352 = arith.mulf %351, %285 : vector<16x128xf32>
    %353 = arith.addf %341, %352 : vector<16x128xf32>
    %c44 = arith.constant 44 : index
    %354 = memref.load %arg1[%c44] : memref<486xf32, #tpu.memory_space<smem>>
    %355 = vector.broadcast %354 : f32 to vector<16x128xf32>
    %356 = arith.mulf %355, %285 : vector<16x128xf32>
    %357 = arith.addf %345, %356 : vector<16x128xf32>
    %c127_i32_54 = arith.constant 127 : i32
    %358 = tpu.dynamic_rotate %285 by %c127_i32_54 dim 1 : vector<16x128xf32>, i32 -> vector<16x128xf32>
    %cst_55 = arith.constant 0.000000e+00 : f32
    %359 = vector.broadcast %cst_55 : f32 to vector<16x128xf32>
    %360 = arith.select %9, %358, %359 : vector<16x128xi1>, vector<16x128xf32>
    %c51 = arith.constant 51 : index
    %361 = memref.load %arg1[%c51] : memref<486xf32, #tpu.memory_space<smem>>
    %362 = vector.broadcast %361 : f32 to vector<16x128xf32>
    %363 = arith.mulf %362, %360 : vector<16x128xf32>
    %364 = arith.addf %349, %363 : vector<16x128xf32>
    %c52 = arith.constant 52 : index
    %365 = memref.load %arg1[%c52] : memref<486xf32, #tpu.memory_space<smem>>
    %366 = vector.broadcast %365 : f32 to vector<16x128xf32>
    %367 = arith.mulf %366, %360 : vector<16x128xf32>
    %368 = arith.addf %353, %367 : vector<16x128xf32>
    %c53 = arith.constant 53 : index
    %369 = memref.load %arg1[%c53] : memref<486xf32, #tpu.memory_space<smem>>
    %370 = vector.broadcast %369 : f32 to vector<16x128xf32>
    %371 = arith.mulf %370, %360 : vector<16x128xf32>
    %372 = arith.addf %357, %371 : vector<16x128xf32>
    %c15_i32_56 = arith.constant 15 : i32
    %373 = tpu.dynamic_rotate %285 by %c15_i32_56 dim 0 : vector<16x128xf32>, i32 -> vector<16x128xf32>
    %cst_57 = arith.constant 0.000000e+00 : f32
    %374 = vector.broadcast %cst_57 : f32 to vector<16x128xf32>
    %375 = arith.select %5, %373, %374 : vector<16x128xi1>, vector<16x128xf32>
    %c1_i32_58 = arith.constant 1 : i32
    %376 = tpu.dynamic_rotate %375 by %c1_i32_58 dim 1 : vector<16x128xf32>, i32 -> vector<16x128xf32>
    %cst_59 = arith.constant 0.000000e+00 : f32
    %377 = vector.broadcast %cst_59 : f32 to vector<16x128xf32>
    %378 = arith.select %7, %376, %377 : vector<16x128xi1>, vector<16x128xf32>
    %c60 = arith.constant 60 : index
    %379 = memref.load %arg1[%c60] : memref<486xf32, #tpu.memory_space<smem>>
    %380 = vector.broadcast %379 : f32 to vector<16x128xf32>
    %381 = arith.mulf %380, %378 : vector<16x128xf32>
    %382 = arith.addf %364, %381 : vector<16x128xf32>
    %c61 = arith.constant 61 : index
    %383 = memref.load %arg1[%c61] : memref<486xf32, #tpu.memory_space<smem>>
    %384 = vector.broadcast %383 : f32 to vector<16x128xf32>
    %385 = arith.mulf %384, %378 : vector<16x128xf32>
    %386 = arith.addf %368, %385 : vector<16x128xf32>
    %c62 = arith.constant 62 : index
    %387 = memref.load %arg1[%c62] : memref<486xf32, #tpu.memory_space<smem>>
    %388 = vector.broadcast %387 : f32 to vector<16x128xf32>
    %389 = arith.mulf %388, %378 : vector<16x128xf32>
    %390 = arith.addf %372, %389 : vector<16x128xf32>
    %c69 = arith.constant 69 : index
    %391 = memref.load %arg1[%c69] : memref<486xf32, #tpu.memory_space<smem>>
    %392 = vector.broadcast %391 : f32 to vector<16x128xf32>
    %393 = arith.mulf %392, %375 : vector<16x128xf32>
    %394 = arith.addf %382, %393 : vector<16x128xf32>
    %c70 = arith.constant 70 : index
    %395 = memref.load %arg1[%c70] : memref<486xf32, #tpu.memory_space<smem>>
    %396 = vector.broadcast %395 : f32 to vector<16x128xf32>
    %397 = arith.mulf %396, %375 : vector<16x128xf32>
    %398 = arith.addf %386, %397 : vector<16x128xf32>
    %c71 = arith.constant 71 : index
    %399 = memref.load %arg1[%c71] : memref<486xf32, #tpu.memory_space<smem>>
    %400 = vector.broadcast %399 : f32 to vector<16x128xf32>
    %401 = arith.mulf %400, %375 : vector<16x128xf32>
    %402 = arith.addf %390, %401 : vector<16x128xf32>
    %c127_i32_60 = arith.constant 127 : i32
    %403 = tpu.dynamic_rotate %375 by %c127_i32_60 dim 1 : vector<16x128xf32>, i32 -> vector<16x128xf32>
    %cst_61 = arith.constant 0.000000e+00 : f32
    %404 = vector.broadcast %cst_61 : f32 to vector<16x128xf32>
    %405 = arith.select %9, %403, %404 : vector<16x128xi1>, vector<16x128xf32>
    %c78 = arith.constant 78 : index
    %406 = memref.load %arg1[%c78] : memref<486xf32, #tpu.memory_space<smem>>
    %407 = vector.broadcast %406 : f32 to vector<16x128xf32>
    %408 = arith.mulf %407, %405 : vector<16x128xf32>
    %409 = arith.addf %394, %408 : vector<16x128xf32>
    %c79 = arith.constant 79 : index
    %410 = memref.load %arg1[%c79] : memref<486xf32, #tpu.memory_space<smem>>
    %411 = vector.broadcast %410 : f32 to vector<16x128xf32>
    %412 = arith.mulf %411, %405 : vector<16x128xf32>
    %413 = arith.addf %398, %412 : vector<16x128xf32>
    %c80 = arith.constant 80 : index
    %414 = memref.load %arg1[%c80] : memref<486xf32, #tpu.memory_space<smem>>
    %415 = vector.broadcast %414 : f32 to vector<16x128xf32>
    %416 = arith.mulf %415, %405 : vector<16x128xf32>
    %417 = arith.addf %402, %416 : vector<16x128xf32>
    %cst_62 = arith.constant 5.000000e-01 : f32
    %418 = vector.broadcast %cst_62 : f32 to vector<16x128xf32>
    %419 = arith.mulf %418, %409 : vector<16x128xf32>
    %420 = math.tanh %419 : vector<16x128xf32>
    %cst_63 = arith.constant 5.000000e-01 : f32
    %421 = vector.broadcast %cst_63 : f32 to vector<16x128xf32>
    %422 = arith.mulf %421, %420 : vector<16x128xf32>
    %cst_64 = arith.constant 5.000000e-01 : f32
    %423 = vector.broadcast %cst_64 : f32 to vector<16x128xf32>
    %424 = arith.addf %422, %423 : vector<16x128xf32>
    %c0_65 = arith.constant 0 : index
    %c0_66 = arith.constant 0 : index
    %c0_67 = arith.constant 0 : index
    %425 = vector.load %arg5[%c0_65, %c0_66, %c0_67] : memref<3x16x128xf32, #tpu.memory_space<vmem>>, vector<1x16x128xf32>
    %426 = vector.shape_cast %425 : vector<1x16x128xf32> to vector<16x128xf32>
    %427 = vector.shape_cast %424 : vector<16x128xf32> to vector<1x16x128xf32>
    tpu.vector_store %arg5[%c0_65, %c0_66, %c0_67], %427 {strides = array<i32>} : memref<3x16x128xf32, #tpu.memory_space<vmem>>, vector<1x16x128xf32>,
    %cst_68 = arith.constant 5.000000e-01 : f32
    %428 = vector.broadcast %cst_68 : f32 to vector<16x128xf32>
    %429 = arith.mulf %428, %413 : vector<16x128xf32>
    %430 = math.tanh %429 : vector<16x128xf32>
    %cst_69 = arith.constant 5.000000e-01 : f32
    %431 = vector.broadcast %cst_69 : f32 to vector<16x128xf32>
    %432 = arith.mulf %431, %430 : vector<16x128xf32>
    %cst_70 = arith.constant 5.000000e-01 : f32
    %433 = vector.broadcast %cst_70 : f32 to vector<16x128xf32>
    %434 = arith.addf %432, %433 : vector<16x128xf32>
    %c1_71 = arith.constant 1 : index
    %c0_72 = arith.constant 0 : index
    %c0_73 = arith.constant 0 : index
    %435 = vector.load %arg5[%c1_71, %c0_72, %c0_73] : memref<3x16x128xf32, #tpu.memory_space<vmem>>, vector<1x16x128xf32>
    %436 = vector.shape_cast %435 : vector<1x16x128xf32> to vector<16x128xf32>
    %437 = vector.shape_cast %434 : vector<16x128xf32> to vector<1x16x128xf32>
    tpu.vector_store %arg5[%c1_71, %c0_72, %c0_73], %437 {strides = array<i32>} : memref<3x16x128xf32, #tpu.memory_space<vmem>>, vector<1x16x128xf32>,
    %cst_74 = arith.constant 5.000000e-01 : f32
    %438 = vector.broadcast %cst_74 : f32 to vector<16x128xf32>
    %439 = arith.mulf %438, %417 : vector<16x128xf32>
    %440 = math.tanh %439 : vector<16x128xf32>
    %cst_75 = arith.constant 5.000000e-01 : f32
    %441 = vector.broadcast %cst_75 : f32 to vector<16x128xf32>
    %442 = arith.mulf %441, %440 : vector<16x128xf32>
    %cst_76 = arith.constant 5.000000e-01 : f32
    %443 = vector.broadcast %cst_76 : f32 to vector<16x128xf32>
    %444 = arith.addf %442, %443 : vector<16x128xf32>
    %c2_77 = arith.constant 2 : index
    %c0_78 = arith.constant 0 : index
    %c0_79 = arith.constant 0 : index
    %445 = vector.load %arg5[%c2_77, %c0_78, %c0_79] : memref<3x16x128xf32, #tpu.memory_space<vmem>>, vector<1x16x128xf32>
    %446 = vector.shape_cast %445 : vector<1x16x128xf32> to vector<16x128xf32>
    %447 = vector.shape_cast %444 : vector<16x128xf32> to vector<1x16x128xf32>
    tpu.vector_store %arg5[%c2_77, %c0_78, %c0_79], %447 {strides = array<i32>} : memref<3x16x128xf32, #tpu.memory_space<vmem>>, vector<1x16x128xf32>,
    %c3_80 = arith.constant 3 : index
    %448 = memref.load %arg2[%c3_80] : memref<18xf32, #tpu.memory_space<smem>>
    %449 = vector.broadcast %448 : f32 to vector<16x128xf32>
    %c4_81 = arith.constant 4 : index
    %450 = memref.load %arg2[%c4_81] : memref<18xf32, #tpu.memory_space<smem>>
    %451 = vector.broadcast %450 : f32 to vector<16x128xf32>
    %c5_82 = arith.constant 5 : index
    %452 = memref.load %arg2[%c5_82] : memref<18xf32, #tpu.memory_space<smem>>
    %453 = vector.broadcast %452 : f32 to vector<16x128xf32>
    %c0_83 = arith.constant 0 : index
    %c0_84 = arith.constant 0 : index
    %c0_85 = arith.constant 0 : index
    %454 = vector.load %arg5[%c0_83, %c0_84, %c0_85] : memref<3x16x128xf32, #tpu.memory_space<vmem>>, vector<1x16x128xf32>
    %455 = vector.shape_cast %454 : vector<1x16x128xf32> to vector<16x128xf32>
    %c1_i32_86 = arith.constant 1 : i32
    %456 = tpu.dynamic_rotate %455 by %c1_i32_86 dim 0 : vector<16x128xf32>, i32 -> vector<16x128xf32>
    %cst_87 = arith.constant 0.000000e+00 : f32
    %457 = vector.broadcast %cst_87 : f32 to vector<16x128xf32>
    %458 = arith.select %3, %456, %457 : vector<16x128xi1>, vector<16x128xf32>
    %c1_i32_88 = arith.constant 1 : i32
    %459 = tpu.dynamic_rotate %458 by %c1_i32_88 dim 1 : vector<16x128xf32>, i32 -> vector<16x128xf32>
    %cst_89 = arith.constant 0.000000e+00 : f32
    %460 = vector.broadcast %cst_89 : f32 to vector<16x128xf32>
    %461 = arith.select %7, %459, %460 : vector<16x128xi1>, vector<16x128xf32>
    %c81 = arith.constant 81 : index
    %462 = memref.load %arg1[%c81] : memref<486xf32, #tpu.memory_space<smem>>
    %463 = vector.broadcast %462 : f32 to vector<16x128xf32>
    %464 = arith.mulf %463, %461 : vector<16x128xf32>
    %465 = arith.addf %449, %464 : vector<16x128xf32>
    %c82 = arith.constant 82 : index
    %466 = memref.load %arg1[%c82] : memref<486xf32, #tpu.memory_space<smem>>
    %467 = vector.broadcast %466 : f32 to vector<16x128xf32>
    %468 = arith.mulf %467, %461 : vector<16x128xf32>
    %469 = arith.addf %451, %468 : vector<16x128xf32>
    %c83 = arith.constant 83 : index
    %470 = memref.load %arg1[%c83] : memref<486xf32, #tpu.memory_space<smem>>
    %471 = vector.broadcast %470 : f32 to vector<16x128xf32>
    %472 = arith.mulf %471, %461 : vector<16x128xf32>
    %473 = arith.addf %453, %472 : vector<16x128xf32>
    %c90 = arith.constant 90 : index
    %474 = memref.load %arg1[%c90] : memref<486xf32, #tpu.memory_space<smem>>
    %475 = vector.broadcast %474 : f32 to vector<16x128xf32>
    %476 = arith.mulf %475, %458 : vector<16x128xf32>
    %477 = arith.addf %465, %476 : vector<16x128xf32>
    %c91 = arith.constant 91 : index
    %478 = memref.load %arg1[%c91] : memref<486xf32, #tpu.memory_space<smem>>
    %479 = vector.broadcast %478 : f32 to vector<16x128xf32>
    %480 = arith.mulf %479, %458 : vector<16x128xf32>
    %481 = arith.addf %469, %480 : vector<16x128xf32>
    %c92 = arith.constant 92 : index
    %482 = memref.load %arg1[%c92] : memref<486xf32, #tpu.memory_space<smem>>
    %483 = vector.broadcast %482 : f32 to vector<16x128xf32>
    %484 = arith.mulf %483, %458 : vector<16x128xf32>
    %485 = arith.addf %473, %484 : vector<16x128xf32>
    %c127_i32_90 = arith.constant 127 : i32
    %486 = tpu.dynamic_rotate %458 by %c127_i32_90 dim 1 : vector<16x128xf32>, i32 -> vector<16x128xf32>
    %cst_91 = arith.constant 0.000000e+00 : f32
    %487 = vector.broadcast %cst_91 : f32 to vector<16x128xf32>
    %488 = arith.select %9, %486, %487 : vector<16x128xi1>, vector<16x128xf32>
    %c99 = arith.constant 99 : index
    %489 = memref.load %arg1[%c99] : memref<486xf32, #tpu.memory_space<smem>>
    %490 = vector.broadcast %489 : f32 to vector<16x128xf32>
    %491 = arith.mulf %490, %488 : vector<16x128xf32>
    %492 = arith.addf %477, %491 : vector<16x128xf32>
    %c100 = arith.constant 100 : index
    %493 = memref.load %arg1[%c100] : memref<486xf32, #tpu.memory_space<smem>>
    %494 = vector.broadcast %493 : f32 to vector<16x128xf32>
    %495 = arith.mulf %494, %488 : vector<16x128xf32>
    %496 = arith.addf %481, %495 : vector<16x128xf32>
    %c101 = arith.constant 101 : index
    %497 = memref.load %arg1[%c101] : memref<486xf32, #tpu.memory_space<smem>>
    %498 = vector.broadcast %497 : f32 to vector<16x128xf32>
    %499 = arith.mulf %498, %488 : vector<16x128xf32>
    %500 = arith.addf %485, %499 : vector<16x128xf32>
    %c1_i32_92 = arith.constant 1 : i32
    %501 = tpu.dynamic_rotate %455 by %c1_i32_92 dim 1 : vector<16x128xf32>, i32 -> vector<16x128xf32>
    %cst_93 = arith.constant 0.000000e+00 : f32
    %502 = vector.broadcast %cst_93 : f32 to vector<16x128xf32>
    %503 = arith.select %7, %501, %502 : vector<16x128xi1>, vector<16x128xf32>
    %c108 = arith.constant 108 : index
    %504 = memref.load %arg1[%c108] : memref<486xf32, #tpu.memory_space<smem>>
    %505 = vector.broadcast %504 : f32 to vector<16x128xf32>
    %506 = arith.mulf %505, %503 : vector<16x128xf32>
    %507 = arith.addf %492, %506 : vector<16x128xf32>
    %c109 = arith.constant 109 : index
    %508 = memref.load %arg1[%c109] : memref<486xf32, #tpu.memory_space<smem>>
    %509 = vector.broadcast %508 : f32 to vector<16x128xf32>
    %510 = arith.mulf %509, %503 : vector<16x128xf32>
    %511 = arith.addf %496, %510 : vector<16x128xf32>
    %c110 = arith.constant 110 : index
    %512 = memref.load %arg1[%c110] : memref<486xf32, #tpu.memory_space<smem>>
    %513 = vector.broadcast %512 : f32 to vector<16x128xf32>
    %514 = arith.mulf %513, %503 : vector<16x128xf32>
    %515 = arith.addf %500, %514 : vector<16x128xf32>
    %c117 = arith.constant 117 : index
    %516 = memref.load %arg1[%c117] : memref<486xf32, #tpu.memory_space<smem>>
    %517 = vector.broadcast %516 : f32 to vector<16x128xf32>
    %518 = arith.mulf %517, %455 : vector<16x128xf32>
    %519 = arith.addf %507, %518 : vector<16x128xf32>
    %c118 = arith.constant 118 : index
    %520 = memref.load %arg1[%c118] : memref<486xf32, #tpu.memory_space<smem>>
    %521 = vector.broadcast %520 : f32 to vector<16x128xf32>
    %522 = arith.mulf %521, %455 : vector<16x128xf32>
    %523 = arith.addf %511, %522 : vector<16x128xf32>
    %c119 = arith.constant 119 : index
    %524 = memref.load %arg1[%c119] : memref<486xf32, #tpu.memory_space<smem>>
    %525 = vector.broadcast %524 : f32 to vector<16x128xf32>
    %526 = arith.mulf %525, %455 : vector<16x128xf32>
    %527 = arith.addf %515, %526 : vector<16x128xf32>
    %c127_i32_94 = arith.constant 127 : i32
    %528 = tpu.dynamic_rotate %455 by %c127_i32_94 dim 1 : vector<16x128xf32>, i32 -> vector<16x128xf32>
    %cst_95 = arith.constant 0.000000e+00 : f32
    %529 = vector.broadcast %cst_95 : f32 to vector<16x128xf32>
    %530 = arith.select %9, %528, %529 : vector<16x128xi1>, vector<16x128xf32>
    %c126 = arith.constant 126 : index
    %531 = memref.load %arg1[%c126] : memref<486xf32, #tpu.memory_space<smem>>
    %532 = vector.broadcast %531 : f32 to vector<16x128xf32>
    %533 = arith.mulf %532, %530 : vector<16x128xf32>
    %534 = arith.addf %519, %533 : vector<16x128xf32>
    %c127 = arith.constant 127 : index
    %535 = memref.load %arg1[%c127] : memref<486xf32, #tpu.memory_space<smem>>
    %536 = vector.broadcast %535 : f32 to vector<16x128xf32>
    %537 = arith.mulf %536, %530 : vector<16x128xf32>
    %538 = arith.addf %523, %537 : vector<16x128xf32>
    %c128 = arith.constant 128 : index
    %539 = memref.load %arg1[%c128] : memref<486xf32, #tpu.memory_space<smem>>
    %540 = vector.broadcast %539 : f32 to vector<16x128xf32>
    %541 = arith.mulf %540, %530 : vector<16x128xf32>
    %542 = arith.addf %527, %541 : vector<16x128xf32>
    %c15_i32_96 = arith.constant 15 : i32
    %543 = tpu.dynamic_rotate %455 by %c15_i32_96 dim 0 : vector<16x128xf32>, i32 -> vector<16x128xf32>
    %cst_97 = arith.constant 0.000000e+00 : f32
    %544 = vector.broadcast %cst_97 : f32 to vector<16x128xf32>
    %545 = arith.select %5, %543, %544 : vector<16x128xi1>, vector<16x128xf32>
    %c1_i32_98 = arith.constant 1 : i32
    %546 = tpu.dynamic_rotate %545 by %c1_i32_98 dim 1 : vector<16x128xf32>, i32 -> vector<16x128xf32>
    %cst_99 = arith.constant 0.000000e+00 : f32
    %547 = vector.broadcast %cst_99 : f32 to vector<16x128xf32>
    %548 = arith.select %7, %546, %547 : vector<16x128xi1>, vector<16x128xf32>
    %c135 = arith.constant 135 : index
    %549 = memref.load %arg1[%c135] : memref<486xf32, #tpu.memory_space<smem>>
    %550 = vector.broadcast %549 : f32 to vector<16x128xf32>
    %551 = arith.mulf %550, %548 : vector<16x128xf32>
    %552 = arith.addf %534, %551 : vector<16x128xf32>
    %c136 = arith.constant 136 : index
    %553 = memref.load %arg1[%c136] : memref<486xf32, #tpu.memory_space<smem>>
    %554 = vector.broadcast %553 : f32 to vector<16x128xf32>
    %555 = arith.mulf %554, %548 : vector<16x128xf32>
    %556 = arith.addf %538, %555 : vector<16x128xf32>
    %c137 = arith.constant 137 : index
    %557 = memref.load %arg1[%c137] : memref<486xf32, #tpu.memory_space<smem>>
    %558 = vector.broadcast %557 : f32 to vector<16x128xf32>
    %559 = arith.mulf %558, %548 : vector<16x128xf32>
    %560 = arith.addf %542, %559 : vector<16x128xf32>
    %c144 = arith.constant 144 : index
    %561 = memref.load %arg1[%c144] : memref<486xf32, #tpu.memory_space<smem>>
    %562 = vector.broadcast %561 : f32 to vector<16x128xf32>
    %563 = arith.mulf %562, %545 : vector<16x128xf32>
    %564 = arith.addf %552, %563 : vector<16x128xf32>
    %c145 = arith.constant 145 : index
    %565 = memref.load %arg1[%c145] : memref<486xf32, #tpu.memory_space<smem>>
    %566 = vector.broadcast %565 : f32 to vector<16x128xf32>
    %567 = arith.mulf %566, %545 : vector<16x128xf32>
    %568 = arith.addf %556, %567 : vector<16x128xf32>
    %c146 = arith.constant 146 : index
    %569 = memref.load %arg1[%c146] : memref<486xf32, #tpu.memory_space<smem>>
    %570 = vector.broadcast %569 : f32 to vector<16x128xf32>
    %571 = arith.mulf %570, %545 : vector<16x128xf32>
    %572 = arith.addf %560, %571 : vector<16x128xf32>
    %c127_i32_100 = arith.constant 127 : i32
    %573 = tpu.dynamic_rotate %545 by %c127_i32_100 dim 1 : vector<16x128xf32>, i32 -> vector<16x128xf32>
    %cst_101 = arith.constant 0.000000e+00 : f32
    %574 = vector.broadcast %cst_101 : f32 to vector<16x128xf32>
    %575 = arith.select %9, %573, %574 : vector<16x128xi1>, vector<16x128xf32>
    %c153 = arith.constant 153 : index
    %576 = memref.load %arg1[%c153] : memref<486xf32, #tpu.memory_space<smem>>
    %577 = vector.broadcast %576 : f32 to vector<16x128xf32>
    %578 = arith.mulf %577, %575 : vector<16x128xf32>
    %579 = arith.addf %564, %578 : vector<16x128xf32>
    %c154 = arith.constant 154 : index
    %580 = memref.load %arg1[%c154] : memref<486xf32, #tpu.memory_space<smem>>
    %581 = vector.broadcast %580 : f32 to vector<16x128xf32>
    %582 = arith.mulf %581, %575 : vector<16x128xf32>
    %583 = arith.addf %568, %582 : vector<16x128xf32>
    %c155 = arith.constant 155 : index
    %584 = memref.load %arg1[%c155] : memref<486xf32, #tpu.memory_space<smem>>
    %585 = vector.broadcast %584 : f32 to vector<16x128xf32>
    %586 = arith.mulf %585, %575 : vector<16x128xf32>
    %587 = arith.addf %572, %586 : vector<16x128xf32>
    %c1_102 = arith.constant 1 : index
    %c0_103 = arith.constant 0 : index
    %c0_104 = arith.constant 0 : index
    %588 = vector.load %arg5[%c1_102, %c0_103, %c0_104] : memref<3x16x128xf32, #tpu.memory_space<vmem>>, vector<1x16x128xf32>
    %589 = vector.shape_cast %588 : vector<1x16x128xf32> to vector<16x128xf32>
    %c1_i32_105 = arith.constant 1 : i32
    %590 = tpu.dynamic_rotate %589 by %c1_i32_105 dim 0 : vector<16x128xf32>, i32 -> vector<16x128xf32>
    %cst_106 = arith.constant 0.000000e+00 : f32
    %591 = vector.broadcast %cst_106 : f32 to vector<16x128xf32>
    %592 = arith.select %3, %590, %591 : vector<16x128xi1>, vector<16x128xf32>
    %c1_i32_107 = arith.constant 1 : i32
    %593 = tpu.dynamic_rotate %592 by %c1_i32_107 dim 1 : vector<16x128xf32>, i32 -> vector<16x128xf32>
    %cst_108 = arith.constant 0.000000e+00 : f32
    %594 = vector.broadcast %cst_108 : f32 to vector<16x128xf32>
    %595 = arith.select %7, %593, %594 : vector<16x128xi1>, vector<16x128xf32>
    %c84 = arith.constant 84 : index
    %596 = memref.load %arg1[%c84] : memref<486xf32, #tpu.memory_space<smem>>
    %597 = vector.broadcast %596 : f32 to vector<16x128xf32>
    %598 = arith.mulf %597, %595 : vector<16x128xf32>
    %599 = arith.addf %579, %598 : vector<16x128xf32>
    %c85 = arith.constant 85 : index
    %600 = memref.load %arg1[%c85] : memref<486xf32, #tpu.memory_space<smem>>
    %601 = vector.broadcast %600 : f32 to vector<16x128xf32>
    %602 = arith.mulf %601, %595 : vector<16x128xf32>
    %603 = arith.addf %583, %602 : vector<16x128xf32>
    %c86 = arith.constant 86 : index
    %604 = memref.load %arg1[%c86] : memref<486xf32, #tpu.memory_space<smem>>
    %605 = vector.broadcast %604 : f32 to vector<16x128xf32>
    %606 = arith.mulf %605, %595 : vector<16x128xf32>
    %607 = arith.addf %587, %606 : vector<16x128xf32>
    %c93 = arith.constant 93 : index
    %608 = memref.load %arg1[%c93] : memref<486xf32, #tpu.memory_space<smem>>
    %609 = vector.broadcast %608 : f32 to vector<16x128xf32>
    %610 = arith.mulf %609, %592 : vector<16x128xf32>
    %611 = arith.addf %599, %610 : vector<16x128xf32>
    %c94 = arith.constant 94 : index
    %612 = memref.load %arg1[%c94] : memref<486xf32, #tpu.memory_space<smem>>
    %613 = vector.broadcast %612 : f32 to vector<16x128xf32>
    %614 = arith.mulf %613, %592 : vector<16x128xf32>
    %615 = arith.addf %603, %614 : vector<16x128xf32>
    %c95 = arith.constant 95 : index
    %616 = memref.load %arg1[%c95] : memref<486xf32, #tpu.memory_space<smem>>
    %617 = vector.broadcast %616 : f32 to vector<16x128xf32>
    %618 = arith.mulf %617, %592 : vector<16x128xf32>
    %619 = arith.addf %607, %618 : vector<16x128xf32>
    %c127_i32_109 = arith.constant 127 : i32
    %620 = tpu.dynamic_rotate %592 by %c127_i32_109 dim 1 : vector<16x128xf32>, i32 -> vector<16x128xf32>
    %cst_110 = arith.constant 0.000000e+00 : f32
    %621 = vector.broadcast %cst_110 : f32 to vector<16x128xf32>
    %622 = arith.select %9, %620, %621 : vector<16x128xi1>, vector<16x128xf32>
    %c102 = arith.constant 102 : index
    %623 = memref.load %arg1[%c102] : memref<486xf32, #tpu.memory_space<smem>>
    %624 = vector.broadcast %623 : f32 to vector<16x128xf32>
    %625 = arith.mulf %624, %622 : vector<16x128xf32>
    %626 = arith.addf %611, %625 : vector<16x128xf32>
    %c103 = arith.constant 103 : index
    %627 = memref.load %arg1[%c103] : memref<486xf32, #tpu.memory_space<smem>>
    %628 = vector.broadcast %627 : f32 to vector<16x128xf32>
    %629 = arith.mulf %628, %622 : vector<16x128xf32>
    %630 = arith.addf %615, %629 : vector<16x128xf32>
    %c104 = arith.constant 104 : index
    %631 = memref.load %arg1[%c104] : memref<486xf32, #tpu.memory_space<smem>>
    %632 = vector.broadcast %631 : f32 to vector<16x128xf32>
    %633 = arith.mulf %632, %622 : vector<16x128xf32>
    %634 = arith.addf %619, %633 : vector<16x128xf32>
    %c1_i32_111 = arith.constant 1 : i32
    %635 = tpu.dynamic_rotate %589 by %c1_i32_111 dim 1 : vector<16x128xf32>, i32 -> vector<16x128xf32>
    %cst_112 = arith.constant 0.000000e+00 : f32
    %636 = vector.broadcast %cst_112 : f32 to vector<16x128xf32>
    %637 = arith.select %7, %635, %636 : vector<16x128xi1>, vector<16x128xf32>
    %c111 = arith.constant 111 : index
    %638 = memref.load %arg1[%c111] : memref<486xf32, #tpu.memory_space<smem>>
    %639 = vector.broadcast %638 : f32 to vector<16x128xf32>
    %640 = arith.mulf %639, %637 : vector<16x128xf32>
    %641 = arith.addf %626, %640 : vector<16x128xf32>
    %c112 = arith.constant 112 : index
    %642 = memref.load %arg1[%c112] : memref<486xf32, #tpu.memory_space<smem>>
    %643 = vector.broadcast %642 : f32 to vector<16x128xf32>
    %644 = arith.mulf %643, %637 : vector<16x128xf32>
    %645 = arith.addf %630, %644 : vector<16x128xf32>
    %c113 = arith.constant 113 : index
    %646 = memref.load %arg1[%c113] : memref<486xf32, #tpu.memory_space<smem>>
    %647 = vector.broadcast %646 : f32 to vector<16x128xf32>
    %648 = arith.mulf %647, %637 : vector<16x128xf32>
    %649 = arith.addf %634, %648 : vector<16x128xf32>
    %c120 = arith.constant 120 : index
    %650 = memref.load %arg1[%c120] : memref<486xf32, #tpu.memory_space<smem>>
    %651 = vector.broadcast %650 : f32 to vector<16x128xf32>
    %652 = arith.mulf %651, %589 : vector<16x128xf32>
    %653 = arith.addf %641, %652 : vector<16x128xf32>
    %c121 = arith.constant 121 : index
    %654 = memref.load %arg1[%c121] : memref<486xf32, #tpu.memory_space<smem>>
    %655 = vector.broadcast %654 : f32 to vector<16x128xf32>
    %656 = arith.mulf %655, %589 : vector<16x128xf32>
    %657 = arith.addf %645, %656 : vector<16x128xf32>
    %c122 = arith.constant 122 : index
    %658 = memref.load %arg1[%c122] : memref<486xf32, #tpu.memory_space<smem>>
    %659 = vector.broadcast %658 : f32 to vector<16x128xf32>
    %660 = arith.mulf %659, %589 : vector<16x128xf32>
    %661 = arith.addf %649, %660 : vector<16x128xf32>
    %c127_i32_113 = arith.constant 127 : i32
    %662 = tpu.dynamic_rotate %589 by %c127_i32_113 dim 1 : vector<16x128xf32>, i32 -> vector<16x128xf32>
    %cst_114 = arith.constant 0.000000e+00 : f32
    %663 = vector.broadcast %cst_114 : f32 to vector<16x128xf32>
    %664 = arith.select %9, %662, %663 : vector<16x128xi1>, vector<16x128xf32>
    %c129 = arith.constant 129 : index
    %665 = memref.load %arg1[%c129] : memref<486xf32, #tpu.memory_space<smem>>
    %666 = vector.broadcast %665 : f32 to vector<16x128xf32>
    %667 = arith.mulf %666, %664 : vector<16x128xf32>
    %668 = arith.addf %653, %667 : vector<16x128xf32>
    %c130 = arith.constant 130 : index
    %669 = memref.load %arg1[%c130] : memref<486xf32, #tpu.memory_space<smem>>
    %670 = vector.broadcast %669 : f32 to vector<16x128xf32>
    %671 = arith.mulf %670, %664 : vector<16x128xf32>
    %672 = arith.addf %657, %671 : vector<16x128xf32>
    %c131 = arith.constant 131 : index
    %673 = memref.load %arg1[%c131] : memref<486xf32, #tpu.memory_space<smem>>
    %674 = vector.broadcast %673 : f32 to vector<16x128xf32>
    %675 = arith.mulf %674, %664 : vector<16x128xf32>
    %676 = arith.addf %661, %675 : vector<16x128xf32>
    %c15_i32_115 = arith.constant 15 : i32
    %677 = tpu.dynamic_rotate %589 by %c15_i32_115 dim 0 : vector<16x128xf32>, i32 -> vector<16x128xf32>
    %cst_116 = arith.constant 0.000000e+00 : f32
    %678 = vector.broadcast %cst_116 : f32 to vector<16x128xf32>
    %679 = arith.select %5, %677, %678 : vector<16x128xi1>, vector<16x128xf32>
    %c1_i32_117 = arith.constant 1 : i32
    %680 = tpu.dynamic_rotate %679 by %c1_i32_117 dim 1 : vector<16x128xf32>, i32 -> vector<16x128xf32>
    %cst_118 = arith.constant 0.000000e+00 : f32
    %681 = vector.broadcast %cst_118 : f32 to vector<16x128xf32>
    %682 = arith.select %7, %680, %681 : vector<16x128xi1>, vector<16x128xf32>
    %c138 = arith.constant 138 : index
    %683 = memref.load %arg1[%c138] : memref<486xf32, #tpu.memory_space<smem>>
    %684 = vector.broadcast %683 : f32 to vector<16x128xf32>
    %685 = arith.mulf %684, %682 : vector<16x128xf32>
    %686 = arith.addf %668, %685 : vector<16x128xf32>
    %c139 = arith.constant 139 : index
    %687 = memref.load %arg1[%c139] : memref<486xf32, #tpu.memory_space<smem>>
    %688 = vector.broadcast %687 : f32 to vector<16x128xf32>
    %689 = arith.mulf %688, %682 : vector<16x128xf32>
    %690 = arith.addf %672, %689 : vector<16x128xf32>
    %c140 = arith.constant 140 : index
    %691 = memref.load %arg1[%c140] : memref<486xf32, #tpu.memory_space<smem>>
    %692 = vector.broadcast %691 : f32 to vector<16x128xf32>
    %693 = arith.mulf %692, %682 : vector<16x128xf32>
    %694 = arith.addf %676, %693 : vector<16x128xf32>
    %c147 = arith.constant 147 : index
    %695 = memref.load %arg1[%c147] : memref<486xf32, #tpu.memory_space<smem>>
    %696 = vector.broadcast %695 : f32 to vector<16x128xf32>
    %697 = arith.mulf %696, %679 : vector<16x128xf32>
    %698 = arith.addf %686, %697 : vector<16x128xf32>
    %c148 = arith.constant 148 : index
    %699 = memref.load %arg1[%c148] : memref<486xf32, #tpu.memory_space<smem>>
    %700 = vector.broadcast %699 : f32 to vector<16x128xf32>
    %701 = arith.mulf %700, %679 : vector<16x128xf32>
    %702 = arith.addf %690, %701 : vector<16x128xf32>
    %c149 = arith.constant 149 : index
    %703 = memref.load %arg1[%c149] : memref<486xf32, #tpu.memory_space<smem>>
    %704 = vector.broadcast %703 : f32 to vector<16x128xf32>
    %705 = arith.mulf %704, %679 : vector<16x128xf32>
    %706 = arith.addf %694, %705 : vector<16x128xf32>
    %c127_i32_119 = arith.constant 127 : i32
    %707 = tpu.dynamic_rotate %679 by %c127_i32_119 dim 1 : vector<16x128xf32>, i32 -> vector<16x128xf32>
    %cst_120 = arith.constant 0.000000e+00 : f32
    %708 = vector.broadcast %cst_120 : f32 to vector<16x128xf32>
    %709 = arith.select %9, %707, %708 : vector<16x128xi1>, vector<16x128xf32>
    %c156 = arith.constant 156 : index
    %710 = memref.load %arg1[%c156] : memref<486xf32, #tpu.memory_space<smem>>
    %711 = vector.broadcast %710 : f32 to vector<16x128xf32>
    %712 = arith.mulf %711, %709 : vector<16x128xf32>
    %713 = arith.addf %698, %712 : vector<16x128xf32>
    %c157 = arith.constant 157 : index
    %714 = memref.load %arg1[%c157] : memref<486xf32, #tpu.memory_space<smem>>
    %715 = vector.broadcast %714 : f32 to vector<16x128xf32>
    %716 = arith.mulf %715, %709 : vector<16x128xf32>
    %717 = arith.addf %702, %716 : vector<16x128xf32>
    %c158 = arith.constant 158 : index
    %718 = memref.load %arg1[%c158] : memref<486xf32, #tpu.memory_space<smem>>
    %719 = vector.broadcast %718 : f32 to vector<16x128xf32>
    %720 = arith.mulf %719, %709 : vector<16x128xf32>
    %721 = arith.addf %706, %720 : vector<16x128xf32>
    %c2_121 = arith.constant 2 : index
    %c0_122 = arith.constant 0 : index
    %c0_123 = arith.constant 0 : index
    %722 = vector.load %arg5[%c2_121, %c0_122, %c0_123] : memref<3x16x128xf32, #tpu.memory_space<vmem>>, vector<1x16x128xf32>
    %723 = vector.shape_cast %722 : vector<1x16x128xf32> to vector<16x128xf32>
    %c1_i32_124 = arith.constant 1 : i32
    %724 = tpu.dynamic_rotate %723 by %c1_i32_124 dim 0 : vector<16x128xf32>, i32 -> vector<16x128xf32>
    %cst_125 = arith.constant 0.000000e+00 : f32
    %725 = vector.broadcast %cst_125 : f32 to vector<16x128xf32>
    %726 = arith.select %3, %724, %725 : vector<16x128xi1>, vector<16x128xf32>
    %c1_i32_126 = arith.constant 1 : i32
    %727 = tpu.dynamic_rotate %726 by %c1_i32_126 dim 1 : vector<16x128xf32>, i32 -> vector<16x128xf32>
    %cst_127 = arith.constant 0.000000e+00 : f32
    %728 = vector.broadcast %cst_127 : f32 to vector<16x128xf32>
    %729 = arith.select %7, %727, %728 : vector<16x128xi1>, vector<16x128xf32>
    %c87 = arith.constant 87 : index
    %730 = memref.load %arg1[%c87] : memref<486xf32, #tpu.memory_space<smem>>
    %731 = vector.broadcast %730 : f32 to vector<16x128xf32>
    %732 = arith.mulf %731, %729 : vector<16x128xf32>
    %733 = arith.addf %713, %732 : vector<16x128xf32>
    %c88 = arith.constant 88 : index
    %734 = memref.load %arg1[%c88] : memref<486xf32, #tpu.memory_space<smem>>
    %735 = vector.broadcast %734 : f32 to vector<16x128xf32>
    %736 = arith.mulf %735, %729 : vector<16x128xf32>
    %737 = arith.addf %717, %736 : vector<16x128xf32>
    %c89 = arith.constant 89 : index
    %738 = memref.load %arg1[%c89] : memref<486xf32, #tpu.memory_space<smem>>
    %739 = vector.broadcast %738 : f32 to vector<16x128xf32>
    %740 = arith.mulf %739, %729 : vector<16x128xf32>
    %741 = arith.addf %721, %740 : vector<16x128xf32>
    %c96 = arith.constant 96 : index
    %742 = memref.load %arg1[%c96] : memref<486xf32, #tpu.memory_space<smem>>
    %743 = vector.broadcast %742 : f32 to vector<16x128xf32>
    %744 = arith.mulf %743, %726 : vector<16x128xf32>
    %745 = arith.addf %733, %744 : vector<16x128xf32>
    %c97 = arith.constant 97 : index
    %746 = memref.load %arg1[%c97] : memref<486xf32, #tpu.memory_space<smem>>
    %747 = vector.broadcast %746 : f32 to vector<16x128xf32>
    %748 = arith.mulf %747, %726 : vector<16x128xf32>
    %749 = arith.addf %737, %748 : vector<16x128xf32>
    %c98 = arith.constant 98 : index
    %750 = memref.load %arg1[%c98] : memref<486xf32, #tpu.memory_space<smem>>
    %751 = vector.broadcast %750 : f32 to vector<16x128xf32>
    %752 = arith.mulf %751, %726 : vector<16x128xf32>
    %753 = arith.addf %741, %752 : vector<16x128xf32>
    %c127_i32_128 = arith.constant 127 : i32
    %754 = tpu.dynamic_rotate %726 by %c127_i32_128 dim 1 : vector<16x128xf32>, i32 -> vector<16x128xf32>
    %cst_129 = arith.constant 0.000000e+00 : f32
    %755 = vector.broadcast %cst_129 : f32 to vector<16x128xf32>
    %756 = arith.select %9, %754, %755 : vector<16x128xi1>, vector<16x128xf32>
    %c105 = arith.constant 105 : index
    %757 = memref.load %arg1[%c105] : memref<486xf32, #tpu.memory_space<smem>>
    %758 = vector.broadcast %757 : f32 to vector<16x128xf32>
    %759 = arith.mulf %758, %756 : vector<16x128xf32>
    %760 = arith.addf %745, %759 : vector<16x128xf32>
    %c106 = arith.constant 106 : index
    %761 = memref.load %arg1[%c106] : memref<486xf32, #tpu.memory_space<smem>>
    %762 = vector.broadcast %761 : f32 to vector<16x128xf32>
    %763 = arith.mulf %762, %756 : vector<16x128xf32>
    %764 = arith.addf %749, %763 : vector<16x128xf32>
    %c107 = arith.constant 107 : index
    %765 = memref.load %arg1[%c107] : memref<486xf32, #tpu.memory_space<smem>>
    %766 = vector.broadcast %765 : f32 to vector<16x128xf32>
    %767 = arith.mulf %766, %756 : vector<16x128xf32>
    %768 = arith.addf %753, %767 : vector<16x128xf32>
    %c1_i32_130 = arith.constant 1 : i32
    %769 = tpu.dynamic_rotate %723 by %c1_i32_130 dim 1 : vector<16x128xf32>, i32 -> vector<16x128xf32>
    %cst_131 = arith.constant 0.000000e+00 : f32
    %770 = vector.broadcast %cst_131 : f32 to vector<16x128xf32>
    %771 = arith.select %7, %769, %770 : vector<16x128xi1>, vector<16x128xf32>
    %c114 = arith.constant 114 : index
    %772 = memref.load %arg1[%c114] : memref<486xf32, #tpu.memory_space<smem>>
    %773 = vector.broadcast %772 : f32 to vector<16x128xf32>
    %774 = arith.mulf %773, %771 : vector<16x128xf32>
    %775 = arith.addf %760, %774 : vector<16x128xf32>
    %c115 = arith.constant 115 : index
    %776 = memref.load %arg1[%c115] : memref<486xf32, #tpu.memory_space<smem>>
    %777 = vector.broadcast %776 : f32 to vector<16x128xf32>
    %778 = arith.mulf %777, %771 : vector<16x128xf32>
    %779 = arith.addf %764, %778 : vector<16x128xf32>
    %c116 = arith.constant 116 : index
    %780 = memref.load %arg1[%c116] : memref<486xf32, #tpu.memory_space<smem>>
    %781 = vector.broadcast %780 : f32 to vector<16x128xf32>
    %782 = arith.mulf %781, %771 : vector<16x128xf32>
    %783 = arith.addf %768, %782 : vector<16x128xf32>
    %c123 = arith.constant 123 : index
    %784 = memref.load %arg1[%c123] : memref<486xf32, #tpu.memory_space<smem>>
    %785 = vector.broadcast %784 : f32 to vector<16x128xf32>
    %786 = arith.mulf %785, %723 : vector<16x128xf32>
    %787 = arith.addf %775, %786 : vector<16x128xf32>
    %c124 = arith.constant 124 : index
    %788 = memref.load %arg1[%c124] : memref<486xf32, #tpu.memory_space<smem>>
    %789 = vector.broadcast %788 : f32 to vector<16x128xf32>
    %790 = arith.mulf %789, %723 : vector<16x128xf32>
    %791 = arith.addf %779, %790 : vector<16x128xf32>
    %c125 = arith.constant 125 : index
    %792 = memref.load %arg1[%c125] : memref<486xf32, #tpu.memory_space<smem>>
    %793 = vector.broadcast %792 : f32 to vector<16x128xf32>
    %794 = arith.mulf %793, %723 : vector<16x128xf32>
    %795 = arith.addf %783, %794 : vector<16x128xf32>
    %c127_i32_132 = arith.constant 127 : i32
    %796 = tpu.dynamic_rotate %723 by %c127_i32_132 dim 1 : vector<16x128xf32>, i32 -> vector<16x128xf32>
    %cst_133 = arith.constant 0.000000e+00 : f32
    %797 = vector.broadcast %cst_133 : f32 to vector<16x128xf32>
    %798 = arith.select %9, %796, %797 : vector<16x128xi1>, vector<16x128xf32>
    %c132 = arith.constant 132 : index
    %799 = memref.load %arg1[%c132] : memref<486xf32, #tpu.memory_space<smem>>
    %800 = vector.broadcast %799 : f32 to vector<16x128xf32>
    %801 = arith.mulf %800, %798 : vector<16x128xf32>
    %802 = arith.addf %787, %801 : vector<16x128xf32>
    %c133 = arith.constant 133 : index
    %803 = memref.load %arg1[%c133] : memref<486xf32, #tpu.memory_space<smem>>
    %804 = vector.broadcast %803 : f32 to vector<16x128xf32>
    %805 = arith.mulf %804, %798 : vector<16x128xf32>
    %806 = arith.addf %791, %805 : vector<16x128xf32>
    %c134 = arith.constant 134 : index
    %807 = memref.load %arg1[%c134] : memref<486xf32, #tpu.memory_space<smem>>
    %808 = vector.broadcast %807 : f32 to vector<16x128xf32>
    %809 = arith.mulf %808, %798 : vector<16x128xf32>
    %810 = arith.addf %795, %809 : vector<16x128xf32>
    %c15_i32_134 = arith.constant 15 : i32
    %811 = tpu.dynamic_rotate %723 by %c15_i32_134 dim 0 : vector<16x128xf32>, i32 -> vector<16x128xf32>
    %cst_135 = arith.constant 0.000000e+00 : f32
    %812 = vector.broadcast %cst_135 : f32 to vector<16x128xf32>
    %813 = arith.select %5, %811, %812 : vector<16x128xi1>, vector<16x128xf32>
    %c1_i32_136 = arith.constant 1 : i32
    %814 = tpu.dynamic_rotate %813 by %c1_i32_136 dim 1 : vector<16x128xf32>, i32 -> vector<16x128xf32>
    %cst_137 = arith.constant 0.000000e+00 : f32
    %815 = vector.broadcast %cst_137 : f32 to vector<16x128xf32>
    %816 = arith.select %7, %814, %815 : vector<16x128xi1>, vector<16x128xf32>
    %c141 = arith.constant 141 : index
    %817 = memref.load %arg1[%c141] : memref<486xf32, #tpu.memory_space<smem>>
    %818 = vector.broadcast %817 : f32 to vector<16x128xf32>
    %819 = arith.mulf %818, %816 : vector<16x128xf32>
    %820 = arith.addf %802, %819 : vector<16x128xf32>
    %c142 = arith.constant 142 : index
    %821 = memref.load %arg1[%c142] : memref<486xf32, #tpu.memory_space<smem>>
    %822 = vector.broadcast %821 : f32 to vector<16x128xf32>
    %823 = arith.mulf %822, %816 : vector<16x128xf32>
    %824 = arith.addf %806, %823 : vector<16x128xf32>
    %c143 = arith.constant 143 : index
    %825 = memref.load %arg1[%c143] : memref<486xf32, #tpu.memory_space<smem>>
    %826 = vector.broadcast %825 : f32 to vector<16x128xf32>
    %827 = arith.mulf %826, %816 : vector<16x128xf32>
    %828 = arith.addf %810, %827 : vector<16x128xf32>
    %c150 = arith.constant 150 : index
    %829 = memref.load %arg1[%c150] : memref<486xf32, #tpu.memory_space<smem>>
    %830 = vector.broadcast %829 : f32 to vector<16x128xf32>
    %831 = arith.mulf %830, %813 : vector<16x128xf32>
    %832 = arith.addf %820, %831 : vector<16x128xf32>
    %c151 = arith.constant 151 : index
    %833 = memref.load %arg1[%c151] : memref<486xf32, #tpu.memory_space<smem>>
    %834 = vector.broadcast %833 : f32 to vector<16x128xf32>
    %835 = arith.mulf %834, %813 : vector<16x128xf32>
    %836 = arith.addf %824, %835 : vector<16x128xf32>
    %c152 = arith.constant 152 : index
    %837 = memref.load %arg1[%c152] : memref<486xf32, #tpu.memory_space<smem>>
    %838 = vector.broadcast %837 : f32 to vector<16x128xf32>
    %839 = arith.mulf %838, %813 : vector<16x128xf32>
    %840 = arith.addf %828, %839 : vector<16x128xf32>
    %c127_i32_138 = arith.constant 127 : i32
    %841 = tpu.dynamic_rotate %813 by %c127_i32_138 dim 1 : vector<16x128xf32>, i32 -> vector<16x128xf32>
    %cst_139 = arith.constant 0.000000e+00 : f32
    %842 = vector.broadcast %cst_139 : f32 to vector<16x128xf32>
    %843 = arith.select %9, %841, %842 : vector<16x128xi1>, vector<16x128xf32>
    %c159 = arith.constant 159 : index
    %844 = memref.load %arg1[%c159] : memref<486xf32, #tpu.memory_space<smem>>
    %845 = vector.broadcast %844 : f32 to vector<16x128xf32>
    %846 = arith.mulf %845, %843 : vector<16x128xf32>
    %847 = arith.addf %832, %846 : vector<16x128xf32>
    %c160 = arith.constant 160 : index
    %848 = memref.load %arg1[%c160] : memref<486xf32, #tpu.memory_space<smem>>
    %849 = vector.broadcast %848 : f32 to vector<16x128xf32>
    %850 = arith.mulf %849, %843 : vector<16x128xf32>
    %851 = arith.addf %836, %850 : vector<16x128xf32>
    %c161 = arith.constant 161 : index
    %852 = memref.load %arg1[%c161] : memref<486xf32, #tpu.memory_space<smem>>
    %853 = vector.broadcast %852 : f32 to vector<16x128xf32>
    %854 = arith.mulf %853, %843 : vector<16x128xf32>
    %855 = arith.addf %840, %854 : vector<16x128xf32>
    %cst_140 = arith.constant 5.000000e-01 : f32
    %856 = vector.broadcast %cst_140 : f32 to vector<16x128xf32>
    %857 = arith.mulf %856, %847 : vector<16x128xf32>
    %858 = math.tanh %857 : vector<16x128xf32>
    %cst_141 = arith.constant 5.000000e-01 : f32
    %859 = vector.broadcast %cst_141 : f32 to vector<16x128xf32>
    %860 = arith.mulf %859, %858 : vector<16x128xf32>
    %cst_142 = arith.constant 5.000000e-01 : f32
    %861 = vector.broadcast %cst_142 : f32 to vector<16x128xf32>
    %862 = arith.addf %860, %861 : vector<16x128xf32>
    %c0_143 = arith.constant 0 : index
    %c0_144 = arith.constant 0 : index
    %c0_145 = arith.constant 0 : index
    %863 = vector.load %arg6[%c0_143, %c0_144, %c0_145] : memref<3x16x128xf32, #tpu.memory_space<vmem>>, vector<1x16x128xf32>
    %864 = vector.shape_cast %863 : vector<1x16x128xf32> to vector<16x128xf32>
    %865 = vector.shape_cast %862 : vector<16x128xf32> to vector<1x16x128xf32>
    tpu.vector_store %arg6[%c0_143, %c0_144, %c0_145], %865 {strides = array<i32>} : memref<3x16x128xf32, #tpu.memory_space<vmem>>, vector<1x16x128xf32>,
    %cst_146 = arith.constant 5.000000e-01 : f32
    %866 = vector.broadcast %cst_146 : f32 to vector<16x128xf32>
    %867 = arith.mulf %866, %851 : vector<16x128xf32>
    %868 = math.tanh %867 : vector<16x128xf32>
    %cst_147 = arith.constant 5.000000e-01 : f32
    %869 = vector.broadcast %cst_147 : f32 to vector<16x128xf32>
    %870 = arith.mulf %869, %868 : vector<16x128xf32>
    %cst_148 = arith.constant 5.000000e-01 : f32
    %871 = vector.broadcast %cst_148 : f32 to vector<16x128xf32>
    %872 = arith.addf %870, %871 : vector<16x128xf32>
    %c1_149 = arith.constant 1 : index
    %c0_150 = arith.constant 0 : index
    %c0_151 = arith.constant 0 : index
    %873 = vector.load %arg6[%c1_149, %c0_150, %c0_151] : memref<3x16x128xf32, #tpu.memory_space<vmem>>, vector<1x16x128xf32>
    %874 = vector.shape_cast %873 : vector<1x16x128xf32> to vector<16x128xf32>
    %875 = vector.shape_cast %872 : vector<16x128xf32> to vector<1x16x128xf32>
    tpu.vector_store %arg6[%c1_149, %c0_150, %c0_151], %875 {strides = array<i32>} : memref<3x16x128xf32, #tpu.memory_space<vmem>>, vector<1x16x128xf32>,
    %cst_152 = arith.constant 5.000000e-01 : f32
    %876 = vector.broadcast %cst_152 : f32 to vector<16x128xf32>
    %877 = arith.mulf %876, %855 : vector<16x128xf32>
    %878 = math.tanh %877 : vector<16x128xf32>
    %cst_153 = arith.constant 5.000000e-01 : f32
    %879 = vector.broadcast %cst_153 : f32 to vector<16x128xf32>
    %880 = arith.mulf %879, %878 : vector<16x128xf32>
    %cst_154 = arith.constant 5.000000e-01 : f32
    %881 = vector.broadcast %cst_154 : f32 to vector<16x128xf32>
    %882 = arith.addf %880, %881 : vector<16x128xf32>
    %c2_155 = arith.constant 2 : index
    %c0_156 = arith.constant 0 : index
    %c0_157 = arith.constant 0 : index
    %883 = vector.load %arg6[%c2_155, %c0_156, %c0_157] : memref<3x16x128xf32, #tpu.memory_space<vmem>>, vector<1x16x128xf32>
    %884 = vector.shape_cast %883 : vector<1x16x128xf32> to vector<16x128xf32>
    %885 = vector.shape_cast %882 : vector<16x128xf32> to vector<1x16x128xf32>
    tpu.vector_store %arg6[%c2_155, %c0_156, %c0_157], %885 {strides = array<i32>} : memref<3x16x128xf32, #tpu.memory_space<vmem>>, vector<1x16x128xf32>,
    %c6_158 = arith.constant 6 : index
    %886 = memref.load %arg2[%c6_158] : memref<18xf32, #tpu.memory_space<smem>>
    %887 = vector.broadcast %886 : f32 to vector<16x128xf32>
    %c7_159 = arith.constant 7 : index
    %888 = memref.load %arg2[%c7_159] : memref<18xf32, #tpu.memory_space<smem>>
    %889 = vector.broadcast %888 : f32 to vector<16x128xf32>
    %c8_160 = arith.constant 8 : index
    %890 = memref.load %arg2[%c8_160] : memref<18xf32, #tpu.memory_space<smem>>
    %891 = vector.broadcast %890 : f32 to vector<16x128xf32>
    %c0_161 = arith.constant 0 : index
    %c0_162 = arith.constant 0 : index
    %c0_163 = arith.constant 0 : index
    %892 = vector.load %arg6[%c0_161, %c0_162, %c0_163] : memref<3x16x128xf32, #tpu.memory_space<vmem>>, vector<1x16x128xf32>
    %893 = vector.shape_cast %892 : vector<1x16x128xf32> to vector<16x128xf32>
    %c1_i32_164 = arith.constant 1 : i32
    %894 = tpu.dynamic_rotate %893 by %c1_i32_164 dim 0 : vector<16x128xf32>, i32 -> vector<16x128xf32>
    %cst_165 = arith.constant 0.000000e+00 : f32
    %895 = vector.broadcast %cst_165 : f32 to vector<16x128xf32>
    %896 = arith.select %3, %894, %895 : vector<16x128xi1>, vector<16x128xf32>
    %c1_i32_166 = arith.constant 1 : i32
    %897 = tpu.dynamic_rotate %896 by %c1_i32_166 dim 1 : vector<16x128xf32>, i32 -> vector<16x128xf32>
    %cst_167 = arith.constant 0.000000e+00 : f32
    %898 = vector.broadcast %cst_167 : f32 to vector<16x128xf32>
    %899 = arith.select %7, %897, %898 : vector<16x128xi1>, vector<16x128xf32>
    %c162 = arith.constant 162 : index
    %900 = memref.load %arg1[%c162] : memref<486xf32, #tpu.memory_space<smem>>
    %901 = vector.broadcast %900 : f32 to vector<16x128xf32>
    %902 = arith.mulf %901, %899 : vector<16x128xf32>
    %903 = arith.addf %887, %902 : vector<16x128xf32>
    %c163 = arith.constant 163 : index
    %904 = memref.load %arg1[%c163] : memref<486xf32, #tpu.memory_space<smem>>
    %905 = vector.broadcast %904 : f32 to vector<16x128xf32>
    %906 = arith.mulf %905, %899 : vector<16x128xf32>
    %907 = arith.addf %889, %906 : vector<16x128xf32>
    %c164 = arith.constant 164 : index
    %908 = memref.load %arg1[%c164] : memref<486xf32, #tpu.memory_space<smem>>
    %909 = vector.broadcast %908 : f32 to vector<16x128xf32>
    %910 = arith.mulf %909, %899 : vector<16x128xf32>
    %911 = arith.addf %891, %910 : vector<16x128xf32>
    %c171 = arith.constant 171 : index
    %912 = memref.load %arg1[%c171] : memref<486xf32, #tpu.memory_space<smem>>
    %913 = vector.broadcast %912 : f32 to vector<16x128xf32>
    %914 = arith.mulf %913, %896 : vector<16x128xf32>
    %915 = arith.addf %903, %914 : vector<16x128xf32>
    %c172 = arith.constant 172 : index
    %916 = memref.load %arg1[%c172] : memref<486xf32, #tpu.memory_space<smem>>
    %917 = vector.broadcast %916 : f32 to vector<16x128xf32>
    %918 = arith.mulf %917, %896 : vector<16x128xf32>
    %919 = arith.addf %907, %918 : vector<16x128xf32>
    %c173 = arith.constant 173 : index
    %920 = memref.load %arg1[%c173] : memref<486xf32, #tpu.memory_space<smem>>
    %921 = vector.broadcast %920 : f32 to vector<16x128xf32>
    %922 = arith.mulf %921, %896 : vector<16x128xf32>
    %923 = arith.addf %911, %922 : vector<16x128xf32>
    %c127_i32_168 = arith.constant 127 : i32
    %924 = tpu.dynamic_rotate %896 by %c127_i32_168 dim 1 : vector<16x128xf32>, i32 -> vector<16x128xf32>
    %cst_169 = arith.constant 0.000000e+00 : f32
    %925 = vector.broadcast %cst_169 : f32 to vector<16x128xf32>
    %926 = arith.select %9, %924, %925 : vector<16x128xi1>, vector<16x128xf32>
    %c180 = arith.constant 180 : index
    %927 = memref.load %arg1[%c180] : memref<486xf32, #tpu.memory_space<smem>>
    %928 = vector.broadcast %927 : f32 to vector<16x128xf32>
    %929 = arith.mulf %928, %926 : vector<16x128xf32>
    %930 = arith.addf %915, %929 : vector<16x128xf32>
    %c181 = arith.constant 181 : index
    %931 = memref.load %arg1[%c181] : memref<486xf32, #tpu.memory_space<smem>>
    %932 = vector.broadcast %931 : f32 to vector<16x128xf32>
    %933 = arith.mulf %932, %926 : vector<16x128xf32>
    %934 = arith.addf %919, %933 : vector<16x128xf32>
    %c182 = arith.constant 182 : index
    %935 = memref.load %arg1[%c182] : memref<486xf32, #tpu.memory_space<smem>>
    %936 = vector.broadcast %935 : f32 to vector<16x128xf32>
    %937 = arith.mulf %936, %926 : vector<16x128xf32>
    %938 = arith.addf %923, %937 : vector<16x128xf32>
    %c1_i32_170 = arith.constant 1 : i32
    %939 = tpu.dynamic_rotate %893 by %c1_i32_170 dim 1 : vector<16x128xf32>, i32 -> vector<16x128xf32>
    %cst_171 = arith.constant 0.000000e+00 : f32
    %940 = vector.broadcast %cst_171 : f32 to vector<16x128xf32>
    %941 = arith.select %7, %939, %940 : vector<16x128xi1>, vector<16x128xf32>
    %c189 = arith.constant 189 : index
    %942 = memref.load %arg1[%c189] : memref<486xf32, #tpu.memory_space<smem>>
    %943 = vector.broadcast %942 : f32 to vector<16x128xf32>
    %944 = arith.mulf %943, %941 : vector<16x128xf32>
    %945 = arith.addf %930, %944 : vector<16x128xf32>
    %c190 = arith.constant 190 : index
    %946 = memref.load %arg1[%c190] : memref<486xf32, #tpu.memory_space<smem>>
    %947 = vector.broadcast %946 : f32 to vector<16x128xf32>
    %948 = arith.mulf %947, %941 : vector<16x128xf32>
    %949 = arith.addf %934, %948 : vector<16x128xf32>
    %c191 = arith.constant 191 : index
    %950 = memref.load %arg1[%c191] : memref<486xf32, #tpu.memory_space<smem>>
    %951 = vector.broadcast %950 : f32 to vector<16x128xf32>
    %952 = arith.mulf %951, %941 : vector<16x128xf32>
    %953 = arith.addf %938, %952 : vector<16x128xf32>
    %c198 = arith.constant 198 : index
    %954 = memref.load %arg1[%c198] : memref<486xf32, #tpu.memory_space<smem>>
    %955 = vector.broadcast %954 : f32 to vector<16x128xf32>
    %956 = arith.mulf %955, %893 : vector<16x128xf32>
    %957 = arith.addf %945, %956 : vector<16x128xf32>
    %c199 = arith.constant 199 : index
    %958 = memref.load %arg1[%c199] : memref<486xf32, #tpu.memory_space<smem>>
    %959 = vector.broadcast %958 : f32 to vector<16x128xf32>
    %960 = arith.mulf %959, %893 : vector<16x128xf32>
    %961 = arith.addf %949, %960 : vector<16x128xf32>
    %c200 = arith.constant 200 : index
    %962 = memref.load %arg1[%c200] : memref<486xf32, #tpu.memory_space<smem>>
    %963 = vector.broadcast %962 : f32 to vector<16x128xf32>
    %964 = arith.mulf %963, %893 : vector<16x128xf32>
    %965 = arith.addf %953, %964 : vector<16x128xf32>
    %c127_i32_172 = arith.constant 127 : i32
    %966 = tpu.dynamic_rotate %893 by %c127_i32_172 dim 1 : vector<16x128xf32>, i32 -> vector<16x128xf32>
    %cst_173 = arith.constant 0.000000e+00 : f32
    %967 = vector.broadcast %cst_173 : f32 to vector<16x128xf32>
    %968 = arith.select %9, %966, %967 : vector<16x128xi1>, vector<16x128xf32>
    %c207 = arith.constant 207 : index
    %969 = memref.load %arg1[%c207] : memref<486xf32, #tpu.memory_space<smem>>
    %970 = vector.broadcast %969 : f32 to vector<16x128xf32>
    %971 = arith.mulf %970, %968 : vector<16x128xf32>
    %972 = arith.addf %957, %971 : vector<16x128xf32>
    %c208 = arith.constant 208 : index
    %973 = memref.load %arg1[%c208] : memref<486xf32, #tpu.memory_space<smem>>
    %974 = vector.broadcast %973 : f32 to vector<16x128xf32>
    %975 = arith.mulf %974, %968 : vector<16x128xf32>
    %976 = arith.addf %961, %975 : vector<16x128xf32>
    %c209 = arith.constant 209 : index
    %977 = memref.load %arg1[%c209] : memref<486xf32, #tpu.memory_space<smem>>
    %978 = vector.broadcast %977 : f32 to vector<16x128xf32>
    %979 = arith.mulf %978, %968 : vector<16x128xf32>
    %980 = arith.addf %965, %979 : vector<16x128xf32>
    %c15_i32_174 = arith.constant 15 : i32
    %981 = tpu.dynamic_rotate %893 by %c15_i32_174 dim 0 : vector<16x128xf32>, i32 -> vector<16x128xf32>
    %cst_175 = arith.constant 0.000000e+00 : f32
    %982 = vector.broadcast %cst_175 : f32 to vector<16x128xf32>
    %983 = arith.select %5, %981, %982 : vector<16x128xi1>, vector<16x128xf32>
    %c1_i32_176 = arith.constant 1 : i32
    %984 = tpu.dynamic_rotate %983 by %c1_i32_176 dim 1 : vector<16x128xf32>, i32 -> vector<16x128xf32>
    %cst_177 = arith.constant 0.000000e+00 : f32
    %985 = vector.broadcast %cst_177 : f32 to vector<16x128xf32>
    %986 = arith.select %7, %984, %985 : vector<16x128xi1>, vector<16x128xf32>
    %c216 = arith.constant 216 : index
    %987 = memref.load %arg1[%c216] : memref<486xf32, #tpu.memory_space<smem>>
    %988 = vector.broadcast %987 : f32 to vector<16x128xf32>
    %989 = arith.mulf %988, %986 : vector<16x128xf32>
    %990 = arith.addf %972, %989 : vector<16x128xf32>
    %c217 = arith.constant 217 : index
    %991 = memref.load %arg1[%c217] : memref<486xf32, #tpu.memory_space<smem>>
    %992 = vector.broadcast %991 : f32 to vector<16x128xf32>
    %993 = arith.mulf %992, %986 : vector<16x128xf32>
    %994 = arith.addf %976, %993 : vector<16x128xf32>
    %c218 = arith.constant 218 : index
    %995 = memref.load %arg1[%c218] : memref<486xf32, #tpu.memory_space<smem>>
    %996 = vector.broadcast %995 : f32 to vector<16x128xf32>
    %997 = arith.mulf %996, %986 : vector<16x128xf32>
    %998 = arith.addf %980, %997 : vector<16x128xf32>
    %c225 = arith.constant 225 : index
    %999 = memref.load %arg1[%c225] : memref<486xf32, #tpu.memory_space<smem>>
    %1000 = vector.broadcast %999 : f32 to vector<16x128xf32>
    %1001 = arith.mulf %1000, %983 : vector<16x128xf32>
    %1002 = arith.addf %990, %1001 : vector<16x128xf32>
    %c226 = arith.constant 226 : index
    %1003 = memref.load %arg1[%c226] : memref<486xf32, #tpu.memory_space<smem>>
    %1004 = vector.broadcast %1003 : f32 to vector<16x128xf32>
    %1005 = arith.mulf %1004, %983 : vector<16x128xf32>
    %1006 = arith.addf %994, %1005 : vector<16x128xf32>
    %c227 = arith.constant 227 : index
    %1007 = memref.load %arg1[%c227] : memref<486xf32, #tpu.memory_space<smem>>
    %1008 = vector.broadcast %1007 : f32 to vector<16x128xf32>
    %1009 = arith.mulf %1008, %983 : vector<16x128xf32>
    %1010 = arith.addf %998, %1009 : vector<16x128xf32>
    %c127_i32_178 = arith.constant 127 : i32
    %1011 = tpu.dynamic_rotate %983 by %c127_i32_178 dim 1 : vector<16x128xf32>, i32 -> vector<16x128xf32>
    %cst_179 = arith.constant 0.000000e+00 : f32
    %1012 = vector.broadcast %cst_179 : f32 to vector<16x128xf32>
    %1013 = arith.select %9, %1011, %1012 : vector<16x128xi1>, vector<16x128xf32>
    %c234 = arith.constant 234 : index
    %1014 = memref.load %arg1[%c234] : memref<486xf32, #tpu.memory_space<smem>>
    %1015 = vector.broadcast %1014 : f32 to vector<16x128xf32>
    %1016 = arith.mulf %1015, %1013 : vector<16x128xf32>
    %1017 = arith.addf %1002, %1016 : vector<16x128xf32>
    %c235 = arith.constant 235 : index
    %1018 = memref.load %arg1[%c235] : memref<486xf32, #tpu.memory_space<smem>>
    %1019 = vector.broadcast %1018 : f32 to vector<16x128xf32>
    %1020 = arith.mulf %1019, %1013 : vector<16x128xf32>
    %1021 = arith.addf %1006, %1020 : vector<16x128xf32>
    %c236 = arith.constant 236 : index
    %1022 = memref.load %arg1[%c236] : memref<486xf32, #tpu.memory_space<smem>>
    %1023 = vector.broadcast %1022 : f32 to vector<16x128xf32>
    %1024 = arith.mulf %1023, %1013 : vector<16x128xf32>
    %1025 = arith.addf %1010, %1024 : vector<16x128xf32>
    %c1_180 = arith.constant 1 : index
    %c0_181 = arith.constant 0 : index
    %c0_182 = arith.constant 0 : index
    %1026 = vector.load %arg6[%c1_180, %c0_181, %c0_182] : memref<3x16x128xf32, #tpu.memory_space<vmem>>, vector<1x16x128xf32>
    %1027 = vector.shape_cast %1026 : vector<1x16x128xf32> to vector<16x128xf32>
    %c1_i32_183 = arith.constant 1 : i32
    %1028 = tpu.dynamic_rotate %1027 by %c1_i32_183 dim 0 : vector<16x128xf32>, i32 -> vector<16x128xf32>
    %cst_184 = arith.constant 0.000000e+00 : f32
    %1029 = vector.broadcast %cst_184 : f32 to vector<16x128xf32>
    %1030 = arith.select %3, %1028, %1029 : vector<16x128xi1>, vector<16x128xf32>
    %c1_i32_185 = arith.constant 1 : i32
    %1031 = tpu.dynamic_rotate %1030 by %c1_i32_185 dim 1 : vector<16x128xf32>, i32 -> vector<16x128xf32>
    %cst_186 = arith.constant 0.000000e+00 : f32
    %1032 = vector.broadcast %cst_186 : f32 to vector<16x128xf32>
    %1033 = arith.select %7, %1031, %1032 : vector<16x128xi1>, vector<16x128xf32>
    %c165 = arith.constant 165 : index
    %1034 = memref.load %arg1[%c165] : memref<486xf32, #tpu.memory_space<smem>>
    %1035 = vector.broadcast %1034 : f32 to vector<16x128xf32>
    %1036 = arith.mulf %1035, %1033 : vector<16x128xf32>
    %1037 = arith.addf %1017, %1036 : vector<16x128xf32>
    %c166 = arith.constant 166 : index
    %1038 = memref.load %arg1[%c166] : memref<486xf32, #tpu.memory_space<smem>>
    %1039 = vector.broadcast %1038 : f32 to vector<16x128xf32>
    %1040 = arith.mulf %1039, %1033 : vector<16x128xf32>
    %1041 = arith.addf %1021, %1040 : vector<16x128xf32>
    %c167 = arith.constant 167 : index
    %1042 = memref.load %arg1[%c167] : memref<486xf32, #tpu.memory_space<smem>>
    %1043 = vector.broadcast %1042 : f32 to vector<16x128xf32>
    %1044 = arith.mulf %1043, %1033 : vector<16x128xf32>
    %1045 = arith.addf %1025, %1044 : vector<16x128xf32>
    %c174 = arith.constant 174 : index
    %1046 = memref.load %arg1[%c174] : memref<486xf32, #tpu.memory_space<smem>>
    %1047 = vector.broadcast %1046 : f32 to vector<16x128xf32>
    %1048 = arith.mulf %1047, %1030 : vector<16x128xf32>
    %1049 = arith.addf %1037, %1048 : vector<16x128xf32>
    %c175 = arith.constant 175 : index
    %1050 = memref.load %arg1[%c175] : memref<486xf32, #tpu.memory_space<smem>>
    %1051 = vector.broadcast %1050 : f32 to vector<16x128xf32>
    %1052 = arith.mulf %1051, %1030 : vector<16x128xf32>
    %1053 = arith.addf %1041, %1052 : vector<16x128xf32>
    %c176 = arith.constant 176 : index
    %1054 = memref.load %arg1[%c176] : memref<486xf32, #tpu.memory_space<smem>>
    %1055 = vector.broadcast %1054 : f32 to vector<16x128xf32>
    %1056 = arith.mulf %1055, %1030 : vector<16x128xf32>
    %1057 = arith.addf %1045, %1056 : vector<16x128xf32>
    %c127_i32_187 = arith.constant 127 : i32
    %1058 = tpu.dynamic_rotate %1030 by %c127_i32_187 dim 1 : vector<16x128xf32>, i32 -> vector<16x128xf32>
    %cst_188 = arith.constant 0.000000e+00 : f32
    %1059 = vector.broadcast %cst_188 : f32 to vector<16x128xf32>
    %1060 = arith.select %9, %1058, %1059 : vector<16x128xi1>, vector<16x128xf32>
    %c183 = arith.constant 183 : index
    %1061 = memref.load %arg1[%c183] : memref<486xf32, #tpu.memory_space<smem>>
    %1062 = vector.broadcast %1061 : f32 to vector<16x128xf32>
    %1063 = arith.mulf %1062, %1060 : vector<16x128xf32>
    %1064 = arith.addf %1049, %1063 : vector<16x128xf32>
    %c184 = arith.constant 184 : index
    %1065 = memref.load %arg1[%c184] : memref<486xf32, #tpu.memory_space<smem>>
    %1066 = vector.broadcast %1065 : f32 to vector<16x128xf32>
    %1067 = arith.mulf %1066, %1060 : vector<16x128xf32>
    %1068 = arith.addf %1053, %1067 : vector<16x128xf32>
    %c185 = arith.constant 185 : index
    %1069 = memref.load %arg1[%c185] : memref<486xf32, #tpu.memory_space<smem>>
    %1070 = vector.broadcast %1069 : f32 to vector<16x128xf32>
    %1071 = arith.mulf %1070, %1060 : vector<16x128xf32>
    %1072 = arith.addf %1057, %1071 : vector<16x128xf32>
    %c1_i32_189 = arith.constant 1 : i32
    %1073 = tpu.dynamic_rotate %1027 by %c1_i32_189 dim 1 : vector<16x128xf32>, i32 -> vector<16x128xf32>
    %cst_190 = arith.constant 0.000000e+00 : f32
    %1074 = vector.broadcast %cst_190 : f32 to vector<16x128xf32>
    %1075 = arith.select %7, %1073, %1074 : vector<16x128xi1>, vector<16x128xf32>
    %c192 = arith.constant 192 : index
    %1076 = memref.load %arg1[%c192] : memref<486xf32, #tpu.memory_space<smem>>
    %1077 = vector.broadcast %1076 : f32 to vector<16x128xf32>
    %1078 = arith.mulf %1077, %1075 : vector<16x128xf32>
    %1079 = arith.addf %1064, %1078 : vector<16x128xf32>
    %c193 = arith.constant 193 : index
    %1080 = memref.load %arg1[%c193] : memref<486xf32, #tpu.memory_space<smem>>
    %1081 = vector.broadcast %1080 : f32 to vector<16x128xf32>
    %1082 = arith.mulf %1081, %1075 : vector<16x128xf32>
    %1083 = arith.addf %1068, %1082 : vector<16x128xf32>
    %c194 = arith.constant 194 : index
    %1084 = memref.load %arg1[%c194] : memref<486xf32, #tpu.memory_space<smem>>
    %1085 = vector.broadcast %1084 : f32 to vector<16x128xf32>
    %1086 = arith.mulf %1085, %1075 : vector<16x128xf32>
    %1087 = arith.addf %1072, %1086 : vector<16x128xf32>
    %c201 = arith.constant 201 : index
    %1088 = memref.load %arg1[%c201] : memref<486xf32, #tpu.memory_space<smem>>
    %1089 = vector.broadcast %1088 : f32 to vector<16x128xf32>
    %1090 = arith.mulf %1089, %1027 : vector<16x128xf32>
    %1091 = arith.addf %1079, %1090 : vector<16x128xf32>
    %c202 = arith.constant 202 : index
    %1092 = memref.load %arg1[%c202] : memref<486xf32, #tpu.memory_space<smem>>
    %1093 = vector.broadcast %1092 : f32 to vector<16x128xf32>
    %1094 = arith.mulf %1093, %1027 : vector<16x128xf32>
    %1095 = arith.addf %1083, %1094 : vector<16x128xf32>
    %c203 = arith.constant 203 : index
    %1096 = memref.load %arg1[%c203] : memref<486xf32, #tpu.memory_space<smem>>
    %1097 = vector.broadcast %1096 : f32 to vector<16x128xf32>
    %1098 = arith.mulf %1097, %1027 : vector<16x128xf32>
    %1099 = arith.addf %1087, %1098 : vector<16x128xf32>
    %c127_i32_191 = arith.constant 127 : i32
    %1100 = tpu.dynamic_rotate %1027 by %c127_i32_191 dim 1 : vector<16x128xf32>, i32 -> vector<16x128xf32>
    %cst_192 = arith.constant 0.000000e+00 : f32
    %1101 = vector.broadcast %cst_192 : f32 to vector<16x128xf32>
    %1102 = arith.select %9, %1100, %1101 : vector<16x128xi1>, vector<16x128xf32>
    %c210 = arith.constant 210 : index
    %1103 = memref.load %arg1[%c210] : memref<486xf32, #tpu.memory_space<smem>>
    %1104 = vector.broadcast %1103 : f32 to vector<16x128xf32>
    %1105 = arith.mulf %1104, %1102 : vector<16x128xf32>
    %1106 = arith.addf %1091, %1105 : vector<16x128xf32>
    %c211 = arith.constant 211 : index
    %1107 = memref.load %arg1[%c211] : memref<486xf32, #tpu.memory_space<smem>>
    %1108 = vector.broadcast %1107 : f32 to vector<16x128xf32>
    %1109 = arith.mulf %1108, %1102 : vector<16x128xf32>
    %1110 = arith.addf %1095, %1109 : vector<16x128xf32>
    %c212 = arith.constant 212 : index
    %1111 = memref.load %arg1[%c212] : memref<486xf32, #tpu.memory_space<smem>>
    %1112 = vector.broadcast %1111 : f32 to vector<16x128xf32>
    %1113 = arith.mulf %1112, %1102 : vector<16x128xf32>
    %1114 = arith.addf %1099, %1113 : vector<16x128xf32>
    %c15_i32_193 = arith.constant 15 : i32
    %1115 = tpu.dynamic_rotate %1027 by %c15_i32_193 dim 0 : vector<16x128xf32>, i32 -> vector<16x128xf32>
    %cst_194 = arith.constant 0.000000e+00 : f32
    %1116 = vector.broadcast %cst_194 : f32 to vector<16x128xf32>
    %1117 = arith.select %5, %1115, %1116 : vector<16x128xi1>, vector<16x128xf32>
    %c1_i32_195 = arith.constant 1 : i32
    %1118 = tpu.dynamic_rotate %1117 by %c1_i32_195 dim 1 : vector<16x128xf32>, i32 -> vector<16x128xf32>
    %cst_196 = arith.constant 0.000000e+00 : f32
    %1119 = vector.broadcast %cst_196 : f32 to vector<16x128xf32>
    %1120 = arith.select %7, %1118, %1119 : vector<16x128xi1>, vector<16x128xf32>
    %c219 = arith.constant 219 : index
    %1121 = memref.load %arg1[%c219] : memref<486xf32, #tpu.memory_space<smem>>
    %1122 = vector.broadcast %1121 : f32 to vector<16x128xf32>
    %1123 = arith.mulf %1122, %1120 : vector<16x128xf32>
    %1124 = arith.addf %1106, %1123 : vector<16x128xf32>
    %c220 = arith.constant 220 : index
    %1125 = memref.load %arg1[%c220] : memref<486xf32, #tpu.memory_space<smem>>
    %1126 = vector.broadcast %1125 : f32 to vector<16x128xf32>
    %1127 = arith.mulf %1126, %1120 : vector<16x128xf32>
    %1128 = arith.addf %1110, %1127 : vector<16x128xf32>
    %c221 = arith.constant 221 : index
    %1129 = memref.load %arg1[%c221] : memref<486xf32, #tpu.memory_space<smem>>
    %1130 = vector.broadcast %1129 : f32 to vector<16x128xf32>
    %1131 = arith.mulf %1130, %1120 : vector<16x128xf32>
    %1132 = arith.addf %1114, %1131 : vector<16x128xf32>
    %c228 = arith.constant 228 : index
    %1133 = memref.load %arg1[%c228] : memref<486xf32, #tpu.memory_space<smem>>
    %1134 = vector.broadcast %1133 : f32 to vector<16x128xf32>
    %1135 = arith.mulf %1134, %1117 : vector<16x128xf32>
    %1136 = arith.addf %1124, %1135 : vector<16x128xf32>
    %c229 = arith.constant 229 : index
    %1137 = memref.load %arg1[%c229] : memref<486xf32, #tpu.memory_space<smem>>
    %1138 = vector.broadcast %1137 : f32 to vector<16x128xf32>
    %1139 = arith.mulf %1138, %1117 : vector<16x128xf32>
    %1140 = arith.addf %1128, %1139 : vector<16x128xf32>
    %c230 = arith.constant 230 : index
    %1141 = memref.load %arg1[%c230] : memref<486xf32, #tpu.memory_space<smem>>
    %1142 = vector.broadcast %1141 : f32 to vector<16x128xf32>
    %1143 = arith.mulf %1142, %1117 : vector<16x128xf32>
    %1144 = arith.addf %1132, %1143 : vector<16x128xf32>
    %c127_i32_197 = arith.constant 127 : i32
    %1145 = tpu.dynamic_rotate %1117 by %c127_i32_197 dim 1 : vector<16x128xf32>, i32 -> vector<16x128xf32>
    %cst_198 = arith.constant 0.000000e+00 : f32
    %1146 = vector.broadcast %cst_198 : f32 to vector<16x128xf32>
    %1147 = arith.select %9, %1145, %1146 : vector<16x128xi1>, vector<16x128xf32>
    %c237 = arith.constant 237 : index
    %1148 = memref.load %arg1[%c237] : memref<486xf32, #tpu.memory_space<smem>>
    %1149 = vector.broadcast %1148 : f32 to vector<16x128xf32>
    %1150 = arith.mulf %1149, %1147 : vector<16x128xf32>
    %1151 = arith.addf %1136, %1150 : vector<16x128xf32>
    %c238 = arith.constant 238 : index
    %1152 = memref.load %arg1[%c238] : memref<486xf32, #tpu.memory_space<smem>>
    %1153 = vector.broadcast %1152 : f32 to vector<16x128xf32>
    %1154 = arith.mulf %1153, %1147 : vector<16x128xf32>
    %1155 = arith.addf %1140, %1154 : vector<16x128xf32>
    %c239 = arith.constant 239 : index
    %1156 = memref.load %arg1[%c239] : memref<486xf32, #tpu.memory_space<smem>>
    %1157 = vector.broadcast %1156 : f32 to vector<16x128xf32>
    %1158 = arith.mulf %1157, %1147 : vector<16x128xf32>
    %1159 = arith.addf %1144, %1158 : vector<16x128xf32>
    %c2_199 = arith.constant 2 : index
    %c0_200 = arith.constant 0 : index
    %c0_201 = arith.constant 0 : index
    %1160 = vector.load %arg6[%c2_199, %c0_200, %c0_201] : memref<3x16x128xf32, #tpu.memory_space<vmem>>, vector<1x16x128xf32>
    %1161 = vector.shape_cast %1160 : vector<1x16x128xf32> to vector<16x128xf32>
    %c1_i32_202 = arith.constant 1 : i32
    %1162 = tpu.dynamic_rotate %1161 by %c1_i32_202 dim 0 : vector<16x128xf32>, i32 -> vector<16x128xf32>
    %cst_203 = arith.constant 0.000000e+00 : f32
    %1163 = vector.broadcast %cst_203 : f32 to vector<16x128xf32>
    %1164 = arith.select %3, %1162, %1163 : vector<16x128xi1>, vector<16x128xf32>
    %c1_i32_204 = arith.constant 1 : i32
    %1165 = tpu.dynamic_rotate %1164 by %c1_i32_204 dim 1 : vector<16x128xf32>, i32 -> vector<16x128xf32>
    %cst_205 = arith.constant 0.000000e+00 : f32
    %1166 = vector.broadcast %cst_205 : f32 to vector<16x128xf32>
    %1167 = arith.select %7, %1165, %1166 : vector<16x128xi1>, vector<16x128xf32>
    %c168 = arith.constant 168 : index
    %1168 = memref.load %arg1[%c168] : memref<486xf32, #tpu.memory_space<smem>>
    %1169 = vector.broadcast %1168 : f32 to vector<16x128xf32>
    %1170 = arith.mulf %1169, %1167 : vector<16x128xf32>
    %1171 = arith.addf %1151, %1170 : vector<16x128xf32>
    %c169 = arith.constant 169 : index
    %1172 = memref.load %arg1[%c169] : memref<486xf32, #tpu.memory_space<smem>>
    %1173 = vector.broadcast %1172 : f32 to vector<16x128xf32>
    %1174 = arith.mulf %1173, %1167 : vector<16x128xf32>
    %1175 = arith.addf %1155, %1174 : vector<16x128xf32>
    %c170 = arith.constant 170 : index
    %1176 = memref.load %arg1[%c170] : memref<486xf32, #tpu.memory_space<smem>>
    %1177 = vector.broadcast %1176 : f32 to vector<16x128xf32>
    %1178 = arith.mulf %1177, %1167 : vector<16x128xf32>
    %1179 = arith.addf %1159, %1178 : vector<16x128xf32>
    %c177 = arith.constant 177 : index
    %1180 = memref.load %arg1[%c177] : memref<486xf32, #tpu.memory_space<smem>>
    %1181 = vector.broadcast %1180 : f32 to vector<16x128xf32>
    %1182 = arith.mulf %1181, %1164 : vector<16x128xf32>
    %1183 = arith.addf %1171, %1182 : vector<16x128xf32>
    %c178 = arith.constant 178 : index
    %1184 = memref.load %arg1[%c178] : memref<486xf32, #tpu.memory_space<smem>>
    %1185 = vector.broadcast %1184 : f32 to vector<16x128xf32>
    %1186 = arith.mulf %1185, %1164 : vector<16x128xf32>
    %1187 = arith.addf %1175, %1186 : vector<16x128xf32>
    %c179 = arith.constant 179 : index
    %1188 = memref.load %arg1[%c179] : memref<486xf32, #tpu.memory_space<smem>>
    %1189 = vector.broadcast %1188 : f32 to vector<16x128xf32>
    %1190 = arith.mulf %1189, %1164 : vector<16x128xf32>
    %1191 = arith.addf %1179, %1190 : vector<16x128xf32>
    %c127_i32_206 = arith.constant 127 : i32
    %1192 = tpu.dynamic_rotate %1164 by %c127_i32_206 dim 1 : vector<16x128xf32>, i32 -> vector<16x128xf32>
    %cst_207 = arith.constant 0.000000e+00 : f32
    %1193 = vector.broadcast %cst_207 : f32 to vector<16x128xf32>
    %1194 = arith.select %9, %1192, %1193 : vector<16x128xi1>, vector<16x128xf32>
    %c186 = arith.constant 186 : index
    %1195 = memref.load %arg1[%c186] : memref<486xf32, #tpu.memory_space<smem>>
    %1196 = vector.broadcast %1195 : f32 to vector<16x128xf32>
    %1197 = arith.mulf %1196, %1194 : vector<16x128xf32>
    %1198 = arith.addf %1183, %1197 : vector<16x128xf32>
    %c187 = arith.constant 187 : index
    %1199 = memref.load %arg1[%c187] : memref<486xf32, #tpu.memory_space<smem>>
    %1200 = vector.broadcast %1199 : f32 to vector<16x128xf32>
    %1201 = arith.mulf %1200, %1194 : vector<16x128xf32>
    %1202 = arith.addf %1187, %1201 : vector<16x128xf32>
    %c188 = arith.constant 188 : index
    %1203 = memref.load %arg1[%c188] : memref<486xf32, #tpu.memory_space<smem>>
    %1204 = vector.broadcast %1203 : f32 to vector<16x128xf32>
    %1205 = arith.mulf %1204, %1194 : vector<16x128xf32>
    %1206 = arith.addf %1191, %1205 : vector<16x128xf32>
    %c1_i32_208 = arith.constant 1 : i32
    %1207 = tpu.dynamic_rotate %1161 by %c1_i32_208 dim 1 : vector<16x128xf32>, i32 -> vector<16x128xf32>
    %cst_209 = arith.constant 0.000000e+00 : f32
    %1208 = vector.broadcast %cst_209 : f32 to vector<16x128xf32>
    %1209 = arith.select %7, %1207, %1208 : vector<16x128xi1>, vector<16x128xf32>
    %c195 = arith.constant 195 : index
    %1210 = memref.load %arg1[%c195] : memref<486xf32, #tpu.memory_space<smem>>
    %1211 = vector.broadcast %1210 : f32 to vector<16x128xf32>
    %1212 = arith.mulf %1211, %1209 : vector<16x128xf32>
    %1213 = arith.addf %1198, %1212 : vector<16x128xf32>
    %c196 = arith.constant 196 : index
    %1214 = memref.load %arg1[%c196] : memref<486xf32, #tpu.memory_space<smem>>
    %1215 = vector.broadcast %1214 : f32 to vector<16x128xf32>
    %1216 = arith.mulf %1215, %1209 : vector<16x128xf32>
    %1217 = arith.addf %1202, %1216 : vector<16x128xf32>
    %c197 = arith.constant 197 : index
    %1218 = memref.load %arg1[%c197] : memref<486xf32, #tpu.memory_space<smem>>
    %1219 = vector.broadcast %1218 : f32 to vector<16x128xf32>
    %1220 = arith.mulf %1219, %1209 : vector<16x128xf32>
    %1221 = arith.addf %1206, %1220 : vector<16x128xf32>
    %c204 = arith.constant 204 : index
    %1222 = memref.load %arg1[%c204] : memref<486xf32, #tpu.memory_space<smem>>
    %1223 = vector.broadcast %1222 : f32 to vector<16x128xf32>
    %1224 = arith.mulf %1223, %1161 : vector<16x128xf32>
    %1225 = arith.addf %1213, %1224 : vector<16x128xf32>
    %c205 = arith.constant 205 : index
    %1226 = memref.load %arg1[%c205] : memref<486xf32, #tpu.memory_space<smem>>
    %1227 = vector.broadcast %1226 : f32 to vector<16x128xf32>
    %1228 = arith.mulf %1227, %1161 : vector<16x128xf32>
    %1229 = arith.addf %1217, %1228 : vector<16x128xf32>
    %c206 = arith.constant 206 : index
    %1230 = memref.load %arg1[%c206] : memref<486xf32, #tpu.memory_space<smem>>
    %1231 = vector.broadcast %1230 : f32 to vector<16x128xf32>
    %1232 = arith.mulf %1231, %1161 : vector<16x128xf32>
    %1233 = arith.addf %1221, %1232 : vector<16x128xf32>
    %c127_i32_210 = arith.constant 127 : i32
    %1234 = tpu.dynamic_rotate %1161 by %c127_i32_210 dim 1 : vector<16x128xf32>, i32 -> vector<16x128xf32>
    %cst_211 = arith.constant 0.000000e+00 : f32
    %1235 = vector.broadcast %cst_211 : f32 to vector<16x128xf32>
    %1236 = arith.select %9, %1234, %1235 : vector<16x128xi1>, vector<16x128xf32>
    %c213 = arith.constant 213 : index
    %1237 = memref.load %arg1[%c213] : memref<486xf32, #tpu.memory_space<smem>>
    %1238 = vector.broadcast %1237 : f32 to vector<16x128xf32>
    %1239 = arith.mulf %1238, %1236 : vector<16x128xf32>
    %1240 = arith.addf %1225, %1239 : vector<16x128xf32>
    %c214 = arith.constant 214 : index
    %1241 = memref.load %arg1[%c214] : memref<486xf32, #tpu.memory_space<smem>>
    %1242 = vector.broadcast %1241 : f32 to vector<16x128xf32>
    %1243 = arith.mulf %1242, %1236 : vector<16x128xf32>
    %1244 = arith.addf %1229, %1243 : vector<16x128xf32>
    %c215 = arith.constant 215 : index
    %1245 = memref.load %arg1[%c215] : memref<486xf32, #tpu.memory_space<smem>>
    %1246 = vector.broadcast %1245 : f32 to vector<16x128xf32>
    %1247 = arith.mulf %1246, %1236 : vector<16x128xf32>
    %1248 = arith.addf %1233, %1247 : vector<16x128xf32>
    %c15_i32_212 = arith.constant 15 : i32
    %1249 = tpu.dynamic_rotate %1161 by %c15_i32_212 dim 0 : vector<16x128xf32>, i32 -> vector<16x128xf32>
    %cst_213 = arith.constant 0.000000e+00 : f32
    %1250 = vector.broadcast %cst_213 : f32 to vector<16x128xf32>
    %1251 = arith.select %5, %1249, %1250 : vector<16x128xi1>, vector<16x128xf32>
    %c1_i32_214 = arith.constant 1 : i32
    %1252 = tpu.dynamic_rotate %1251 by %c1_i32_214 dim 1 : vector<16x128xf32>, i32 -> vector<16x128xf32>
    %cst_215 = arith.constant 0.000000e+00 : f32
    %1253 = vector.broadcast %cst_215 : f32 to vector<16x128xf32>
    %1254 = arith.select %7, %1252, %1253 : vector<16x128xi1>, vector<16x128xf32>
    %c222 = arith.constant 222 : index
    %1255 = memref.load %arg1[%c222] : memref<486xf32, #tpu.memory_space<smem>>
    %1256 = vector.broadcast %1255 : f32 to vector<16x128xf32>
    %1257 = arith.mulf %1256, %1254 : vector<16x128xf32>
    %1258 = arith.addf %1240, %1257 : vector<16x128xf32>
    %c223 = arith.constant 223 : index
    %1259 = memref.load %arg1[%c223] : memref<486xf32, #tpu.memory_space<smem>>
    %1260 = vector.broadcast %1259 : f32 to vector<16x128xf32>
    %1261 = arith.mulf %1260, %1254 : vector<16x128xf32>
    %1262 = arith.addf %1244, %1261 : vector<16x128xf32>
    %c224 = arith.constant 224 : index
    %1263 = memref.load %arg1[%c224] : memref<486xf32, #tpu.memory_space<smem>>
    %1264 = vector.broadcast %1263 : f32 to vector<16x128xf32>
    %1265 = arith.mulf %1264, %1254 : vector<16x128xf32>
    %1266 = arith.addf %1248, %1265 : vector<16x128xf32>
    %c231 = arith.constant 231 : index
    %1267 = memref.load %arg1[%c231] : memref<486xf32, #tpu.memory_space<smem>>
    %1268 = vector.broadcast %1267 : f32 to vector<16x128xf32>
    %1269 = arith.mulf %1268, %1251 : vector<16x128xf32>
    %1270 = arith.addf %1258, %1269 : vector<16x128xf32>
    %c232 = arith.constant 232 : index
    %1271 = memref.load %arg1[%c232] : memref<486xf32, #tpu.memory_space<smem>>
    %1272 = vector.broadcast %1271 : f32 to vector<16x128xf32>
    %1273 = arith.mulf %1272, %1251 : vector<16x128xf32>
    %1274 = arith.addf %1262, %1273 : vector<16x128xf32>
    %c233 = arith.constant 233 : index
    %1275 = memref.load %arg1[%c233] : memref<486xf32, #tpu.memory_space<smem>>
    %1276 = vector.broadcast %1275 : f32 to vector<16x128xf32>
    %1277 = arith.mulf %1276, %1251 : vector<16x128xf32>
    %1278 = arith.addf %1266, %1277 : vector<16x128xf32>
    %c127_i32_216 = arith.constant 127 : i32
    %1279 = tpu.dynamic_rotate %1251 by %c127_i32_216 dim 1 : vector<16x128xf32>, i32 -> vector<16x128xf32>
    %cst_217 = arith.constant 0.000000e+00 : f32
    %1280 = vector.broadcast %cst_217 : f32 to vector<16x128xf32>
    %1281 = arith.select %9, %1279, %1280 : vector<16x128xi1>, vector<16x128xf32>
    %c240 = arith.constant 240 : index
    %1282 = memref.load %arg1[%c240] : memref<486xf32, #tpu.memory_space<smem>>
    %1283 = vector.broadcast %1282 : f32 to vector<16x128xf32>
    %1284 = arith.mulf %1283, %1281 : vector<16x128xf32>
    %1285 = arith.addf %1270, %1284 : vector<16x128xf32>
    %c241 = arith.constant 241 : index
    %1286 = memref.load %arg1[%c241] : memref<486xf32, #tpu.memory_space<smem>>
    %1287 = vector.broadcast %1286 : f32 to vector<16x128xf32>
    %1288 = arith.mulf %1287, %1281 : vector<16x128xf32>
    %1289 = arith.addf %1274, %1288 : vector<16x128xf32>
    %c242 = arith.constant 242 : index
    %1290 = memref.load %arg1[%c242] : memref<486xf32, #tpu.memory_space<smem>>
    %1291 = vector.broadcast %1290 : f32 to vector<16x128xf32>
    %1292 = arith.mulf %1291, %1281 : vector<16x128xf32>
    %1293 = arith.addf %1278, %1292 : vector<16x128xf32>
    %cst_218 = arith.constant 5.000000e-01 : f32
    %1294 = vector.broadcast %cst_218 : f32 to vector<16x128xf32>
    %1295 = arith.mulf %1294, %1285 : vector<16x128xf32>
    %1296 = math.tanh %1295 : vector<16x128xf32>
    %cst_219 = arith.constant 5.000000e-01 : f32
    %1297 = vector.broadcast %cst_219 : f32 to vector<16x128xf32>
    %1298 = arith.mulf %1297, %1296 : vector<16x128xf32>
    %cst_220 = arith.constant 5.000000e-01 : f32
    %1299 = vector.broadcast %cst_220 : f32 to vector<16x128xf32>
    %1300 = arith.addf %1298, %1299 : vector<16x128xf32>
    %c0_221 = arith.constant 0 : index
    %c0_222 = arith.constant 0 : index
    %c0_223 = arith.constant 0 : index
    %1301 = vector.load %arg5[%c0_221, %c0_222, %c0_223] : memref<3x16x128xf32, #tpu.memory_space<vmem>>, vector<1x16x128xf32>
    %1302 = vector.shape_cast %1301 : vector<1x16x128xf32> to vector<16x128xf32>
    %1303 = vector.shape_cast %1300 : vector<16x128xf32> to vector<1x16x128xf32>
    tpu.vector_store %arg5[%c0_221, %c0_222, %c0_223], %1303 {strides = array<i32>} : memref<3x16x128xf32, #tpu.memory_space<vmem>>, vector<1x16x128xf32>,
    %cst_224 = arith.constant 5.000000e-01 : f32
    %1304 = vector.broadcast %cst_224 : f32 to vector<16x128xf32>
    %1305 = arith.mulf %1304, %1289 : vector<16x128xf32>
    %1306 = math.tanh %1305 : vector<16x128xf32>
    %cst_225 = arith.constant 5.000000e-01 : f32
    %1307 = vector.broadcast %cst_225 : f32 to vector<16x128xf32>
    %1308 = arith.mulf %1307, %1306 : vector<16x128xf32>
    %cst_226 = arith.constant 5.000000e-01 : f32
    %1309 = vector.broadcast %cst_226 : f32 to vector<16x128xf32>
    %1310 = arith.addf %1308, %1309 : vector<16x128xf32>
    %c1_227 = arith.constant 1 : index
    %c0_228 = arith.constant 0 : index
    %c0_229 = arith.constant 0 : index
    %1311 = vector.load %arg5[%c1_227, %c0_228, %c0_229] : memref<3x16x128xf32, #tpu.memory_space<vmem>>, vector<1x16x128xf32>
    %1312 = vector.shape_cast %1311 : vector<1x16x128xf32> to vector<16x128xf32>
    %1313 = vector.shape_cast %1310 : vector<16x128xf32> to vector<1x16x128xf32>
    tpu.vector_store %arg5[%c1_227, %c0_228, %c0_229], %1313 {strides = array<i32>} : memref<3x16x128xf32, #tpu.memory_space<vmem>>, vector<1x16x128xf32>,
    %cst_230 = arith.constant 5.000000e-01 : f32
    %1314 = vector.broadcast %cst_230 : f32 to vector<16x128xf32>
    %1315 = arith.mulf %1314, %1293 : vector<16x128xf32>
    %1316 = math.tanh %1315 : vector<16x128xf32>
    %cst_231 = arith.constant 5.000000e-01 : f32
    %1317 = vector.broadcast %cst_231 : f32 to vector<16x128xf32>
    %1318 = arith.mulf %1317, %1316 : vector<16x128xf32>
    %cst_232 = arith.constant 5.000000e-01 : f32
    %1319 = vector.broadcast %cst_232 : f32 to vector<16x128xf32>
    %1320 = arith.addf %1318, %1319 : vector<16x128xf32>
    %c2_233 = arith.constant 2 : index
    %c0_234 = arith.constant 0 : index
    %c0_235 = arith.constant 0 : index
    %1321 = vector.load %arg5[%c2_233, %c0_234, %c0_235] : memref<3x16x128xf32, #tpu.memory_space<vmem>>, vector<1x16x128xf32>
    %1322 = vector.shape_cast %1321 : vector<1x16x128xf32> to vector<16x128xf32>
    %1323 = vector.shape_cast %1320 : vector<16x128xf32> to vector<1x16x128xf32>
    tpu.vector_store %arg5[%c2_233, %c0_234, %c0_235], %1323 {strides = array<i32>} : memref<3x16x128xf32, #tpu.memory_space<vmem>>, vector<1x16x128xf32>,
    %c9_236 = arith.constant 9 : index
    %1324 = memref.load %arg2[%c9_236] : memref<18xf32, #tpu.memory_space<smem>>
    %1325 = vector.broadcast %1324 : f32 to vector<16x128xf32>
    %c10_237 = arith.constant 10 : index
    %1326 = memref.load %arg2[%c10_237] : memref<18xf32, #tpu.memory_space<smem>>
    %1327 = vector.broadcast %1326 : f32 to vector<16x128xf32>
    %c11_238 = arith.constant 11 : index
    %1328 = memref.load %arg2[%c11_238] : memref<18xf32, #tpu.memory_space<smem>>
    %1329 = vector.broadcast %1328 : f32 to vector<16x128xf32>
    %c0_239 = arith.constant 0 : index
    %c0_240 = arith.constant 0 : index
    %c0_241 = arith.constant 0 : index
    %1330 = vector.load %arg5[%c0_239, %c0_240, %c0_241] : memref<3x16x128xf32, #tpu.memory_space<vmem>>, vector<1x16x128xf32>
    %1331 = vector.shape_cast %1330 : vector<1x16x128xf32> to vector<16x128xf32>
    %c1_i32_242 = arith.constant 1 : i32
    %1332 = tpu.dynamic_rotate %1331 by %c1_i32_242 dim 0 : vector<16x128xf32>, i32 -> vector<16x128xf32>
    %cst_243 = arith.constant 0.000000e+00 : f32
    %1333 = vector.broadcast %cst_243 : f32 to vector<16x128xf32>
    %1334 = arith.select %3, %1332, %1333 : vector<16x128xi1>, vector<16x128xf32>
    %c1_i32_244 = arith.constant 1 : i32
    %1335 = tpu.dynamic_rotate %1334 by %c1_i32_244 dim 1 : vector<16x128xf32>, i32 -> vector<16x128xf32>
    %cst_245 = arith.constant 0.000000e+00 : f32
    %1336 = vector.broadcast %cst_245 : f32 to vector<16x128xf32>
    %1337 = arith.select %7, %1335, %1336 : vector<16x128xi1>, vector<16x128xf32>
    %c243 = arith.constant 243 : index
    %1338 = memref.load %arg1[%c243] : memref<486xf32, #tpu.memory_space<smem>>
    %1339 = vector.broadcast %1338 : f32 to vector<16x128xf32>
    %1340 = arith.mulf %1339, %1337 : vector<16x128xf32>
    %1341 = arith.addf %1325, %1340 : vector<16x128xf32>
    %c244 = arith.constant 244 : index
    %1342 = memref.load %arg1[%c244] : memref<486xf32, #tpu.memory_space<smem>>
    %1343 = vector.broadcast %1342 : f32 to vector<16x128xf32>
    %1344 = arith.mulf %1343, %1337 : vector<16x128xf32>
    %1345 = arith.addf %1327, %1344 : vector<16x128xf32>
    %c245 = arith.constant 245 : index
    %1346 = memref.load %arg1[%c245] : memref<486xf32, #tpu.memory_space<smem>>
    %1347 = vector.broadcast %1346 : f32 to vector<16x128xf32>
    %1348 = arith.mulf %1347, %1337 : vector<16x128xf32>
    %1349 = arith.addf %1329, %1348 : vector<16x128xf32>
    %c252 = arith.constant 252 : index
    %1350 = memref.load %arg1[%c252] : memref<486xf32, #tpu.memory_space<smem>>
    %1351 = vector.broadcast %1350 : f32 to vector<16x128xf32>
    %1352 = arith.mulf %1351, %1334 : vector<16x128xf32>
    %1353 = arith.addf %1341, %1352 : vector<16x128xf32>
    %c253 = arith.constant 253 : index
    %1354 = memref.load %arg1[%c253] : memref<486xf32, #tpu.memory_space<smem>>
    %1355 = vector.broadcast %1354 : f32 to vector<16x128xf32>
    %1356 = arith.mulf %1355, %1334 : vector<16x128xf32>
    %1357 = arith.addf %1345, %1356 : vector<16x128xf32>
    %c254 = arith.constant 254 : index
    %1358 = memref.load %arg1[%c254] : memref<486xf32, #tpu.memory_space<smem>>
    %1359 = vector.broadcast %1358 : f32 to vector<16x128xf32>
    %1360 = arith.mulf %1359, %1334 : vector<16x128xf32>
    %1361 = arith.addf %1349, %1360 : vector<16x128xf32>
    %c127_i32_246 = arith.constant 127 : i32
    %1362 = tpu.dynamic_rotate %1334 by %c127_i32_246 dim 1 : vector<16x128xf32>, i32 -> vector<16x128xf32>
    %cst_247 = arith.constant 0.000000e+00 : f32
    %1363 = vector.broadcast %cst_247 : f32 to vector<16x128xf32>
    %1364 = arith.select %9, %1362, %1363 : vector<16x128xi1>, vector<16x128xf32>
    %c261 = arith.constant 261 : index
    %1365 = memref.load %arg1[%c261] : memref<486xf32, #tpu.memory_space<smem>>
    %1366 = vector.broadcast %1365 : f32 to vector<16x128xf32>
    %1367 = arith.mulf %1366, %1364 : vector<16x128xf32>
    %1368 = arith.addf %1353, %1367 : vector<16x128xf32>
    %c262 = arith.constant 262 : index
    %1369 = memref.load %arg1[%c262] : memref<486xf32, #tpu.memory_space<smem>>
    %1370 = vector.broadcast %1369 : f32 to vector<16x128xf32>
    %1371 = arith.mulf %1370, %1364 : vector<16x128xf32>
    %1372 = arith.addf %1357, %1371 : vector<16x128xf32>
    %c263 = arith.constant 263 : index
    %1373 = memref.load %arg1[%c263] : memref<486xf32, #tpu.memory_space<smem>>
    %1374 = vector.broadcast %1373 : f32 to vector<16x128xf32>
    %1375 = arith.mulf %1374, %1364 : vector<16x128xf32>
    %1376 = arith.addf %1361, %1375 : vector<16x128xf32>
    %c1_i32_248 = arith.constant 1 : i32
    %1377 = tpu.dynamic_rotate %1331 by %c1_i32_248 dim 1 : vector<16x128xf32>, i32 -> vector<16x128xf32>
    %cst_249 = arith.constant 0.000000e+00 : f32
    %1378 = vector.broadcast %cst_249 : f32 to vector<16x128xf32>
    %1379 = arith.select %7, %1377, %1378 : vector<16x128xi1>, vector<16x128xf32>
    %c270 = arith.constant 270 : index
    %1380 = memref.load %arg1[%c270] : memref<486xf32, #tpu.memory_space<smem>>
    %1381 = vector.broadcast %1380 : f32 to vector<16x128xf32>
    %1382 = arith.mulf %1381, %1379 : vector<16x128xf32>
    %1383 = arith.addf %1368, %1382 : vector<16x128xf32>
    %c271 = arith.constant 271 : index
    %1384 = memref.load %arg1[%c271] : memref<486xf32, #tpu.memory_space<smem>>
    %1385 = vector.broadcast %1384 : f32 to vector<16x128xf32>
    %1386 = arith.mulf %1385, %1379 : vector<16x128xf32>
    %1387 = arith.addf %1372, %1386 : vector<16x128xf32>
    %c272 = arith.constant 272 : index
    %1388 = memref.load %arg1[%c272] : memref<486xf32, #tpu.memory_space<smem>>
    %1389 = vector.broadcast %1388 : f32 to vector<16x128xf32>
    %1390 = arith.mulf %1389, %1379 : vector<16x128xf32>
    %1391 = arith.addf %1376, %1390 : vector<16x128xf32>
    %c279 = arith.constant 279 : index
    %1392 = memref.load %arg1[%c279] : memref<486xf32, #tpu.memory_space<smem>>
    %1393 = vector.broadcast %1392 : f32 to vector<16x128xf32>
    %1394 = arith.mulf %1393, %1331 : vector<16x128xf32>
    %1395 = arith.addf %1383, %1394 : vector<16x128xf32>
    %c280 = arith.constant 280 : index
    %1396 = memref.load %arg1[%c280] : memref<486xf32, #tpu.memory_space<smem>>
    %1397 = vector.broadcast %1396 : f32 to vector<16x128xf32>
    %1398 = arith.mulf %1397, %1331 : vector<16x128xf32>
    %1399 = arith.addf %1387, %1398 : vector<16x128xf32>
    %c281 = arith.constant 281 : index
    %1400 = memref.load %arg1[%c281] : memref<486xf32, #tpu.memory_space<smem>>
    %1401 = vector.broadcast %1400 : f32 to vector<16x128xf32>
    %1402 = arith.mulf %1401, %1331 : vector<16x128xf32>
    %1403 = arith.addf %1391, %1402 : vector<16x128xf32>
    %c127_i32_250 = arith.constant 127 : i32
    %1404 = tpu.dynamic_rotate %1331 by %c127_i32_250 dim 1 : vector<16x128xf32>, i32 -> vector<16x128xf32>
    %cst_251 = arith.constant 0.000000e+00 : f32
    %1405 = vector.broadcast %cst_251 : f32 to vector<16x128xf32>
    %1406 = arith.select %9, %1404, %1405 : vector<16x128xi1>, vector<16x128xf32>
    %c288 = arith.constant 288 : index
    %1407 = memref.load %arg1[%c288] : memref<486xf32, #tpu.memory_space<smem>>
    %1408 = vector.broadcast %1407 : f32 to vector<16x128xf32>
    %1409 = arith.mulf %1408, %1406 : vector<16x128xf32>
    %1410 = arith.addf %1395, %1409 : vector<16x128xf32>
    %c289 = arith.constant 289 : index
    %1411 = memref.load %arg1[%c289] : memref<486xf32, #tpu.memory_space<smem>>
    %1412 = vector.broadcast %1411 : f32 to vector<16x128xf32>
    %1413 = arith.mulf %1412, %1406 : vector<16x128xf32>
    %1414 = arith.addf %1399, %1413 : vector<16x128xf32>
    %c290 = arith.constant 290 : index
    %1415 = memref.load %arg1[%c290] : memref<486xf32, #tpu.memory_space<smem>>
    %1416 = vector.broadcast %1415 : f32 to vector<16x128xf32>
    %1417 = arith.mulf %1416, %1406 : vector<16x128xf32>
    %1418 = arith.addf %1403, %1417 : vector<16x128xf32>
    %c15_i32_252 = arith.constant 15 : i32
    %1419 = tpu.dynamic_rotate %1331 by %c15_i32_252 dim 0 : vector<16x128xf32>, i32 -> vector<16x128xf32>
    %cst_253 = arith.constant 0.000000e+00 : f32
    %1420 = vector.broadcast %cst_253 : f32 to vector<16x128xf32>
    %1421 = arith.select %5, %1419, %1420 : vector<16x128xi1>, vector<16x128xf32>
    %c1_i32_254 = arith.constant 1 : i32
    %1422 = tpu.dynamic_rotate %1421 by %c1_i32_254 dim 1 : vector<16x128xf32>, i32 -> vector<16x128xf32>
    %cst_255 = arith.constant 0.000000e+00 : f32
    %1423 = vector.broadcast %cst_255 : f32 to vector<16x128xf32>
    %1424 = arith.select %7, %1422, %1423 : vector<16x128xi1>, vector<16x128xf32>
    %c297 = arith.constant 297 : index
    %1425 = memref.load %arg1[%c297] : memref<486xf32, #tpu.memory_space<smem>>
    %1426 = vector.broadcast %1425 : f32 to vector<16x128xf32>
    %1427 = arith.mulf %1426, %1424 : vector<16x128xf32>
    %1428 = arith.addf %1410, %1427 : vector<16x128xf32>
    %c298 = arith.constant 298 : index
    %1429 = memref.load %arg1[%c298] : memref<486xf32, #tpu.memory_space<smem>>
    %1430 = vector.broadcast %1429 : f32 to vector<16x128xf32>
    %1431 = arith.mulf %1430, %1424 : vector<16x128xf32>
    %1432 = arith.addf %1414, %1431 : vector<16x128xf32>
    %c299 = arith.constant 299 : index
    %1433 = memref.load %arg1[%c299] : memref<486xf32, #tpu.memory_space<smem>>
    %1434 = vector.broadcast %1433 : f32 to vector<16x128xf32>
    %1435 = arith.mulf %1434, %1424 : vector<16x128xf32>
    %1436 = arith.addf %1418, %1435 : vector<16x128xf32>
    %c306 = arith.constant 306 : index
    %1437 = memref.load %arg1[%c306] : memref<486xf32, #tpu.memory_space<smem>>
    %1438 = vector.broadcast %1437 : f32 to vector<16x128xf32>
    %1439 = arith.mulf %1438, %1421 : vector<16x128xf32>
    %1440 = arith.addf %1428, %1439 : vector<16x128xf32>
    %c307 = arith.constant 307 : index
    %1441 = memref.load %arg1[%c307] : memref<486xf32, #tpu.memory_space<smem>>
    %1442 = vector.broadcast %1441 : f32 to vector<16x128xf32>
    %1443 = arith.mulf %1442, %1421 : vector<16x128xf32>
    %1444 = arith.addf %1432, %1443 : vector<16x128xf32>
    %c308 = arith.constant 308 : index
    %1445 = memref.load %arg1[%c308] : memref<486xf32, #tpu.memory_space<smem>>
    %1446 = vector.broadcast %1445 : f32 to vector<16x128xf32>
    %1447 = arith.mulf %1446, %1421 : vector<16x128xf32>
    %1448 = arith.addf %1436, %1447 : vector<16x128xf32>
    %c127_i32_256 = arith.constant 127 : i32
    %1449 = tpu.dynamic_rotate %1421 by %c127_i32_256 dim 1 : vector<16x128xf32>, i32 -> vector<16x128xf32>
    %cst_257 = arith.constant 0.000000e+00 : f32
    %1450 = vector.broadcast %cst_257 : f32 to vector<16x128xf32>
    %1451 = arith.select %9, %1449, %1450 : vector<16x128xi1>, vector<16x128xf32>
    %c315 = arith.constant 315 : index
    %1452 = memref.load %arg1[%c315] : memref<486xf32, #tpu.memory_space<smem>>
    %1453 = vector.broadcast %1452 : f32 to vector<16x128xf32>
    %1454 = arith.mulf %1453, %1451 : vector<16x128xf32>
    %1455 = arith.addf %1440, %1454 : vector<16x128xf32>
    %c316 = arith.constant 316 : index
    %1456 = memref.load %arg1[%c316] : memref<486xf32, #tpu.memory_space<smem>>
    %1457 = vector.broadcast %1456 : f32 to vector<16x128xf32>
    %1458 = arith.mulf %1457, %1451 : vector<16x128xf32>
    %1459 = arith.addf %1444, %1458 : vector<16x128xf32>
    %c317 = arith.constant 317 : index
    %1460 = memref.load %arg1[%c317] : memref<486xf32, #tpu.memory_space<smem>>
    %1461 = vector.broadcast %1460 : f32 to vector<16x128xf32>
    %1462 = arith.mulf %1461, %1451 : vector<16x128xf32>
    %1463 = arith.addf %1448, %1462 : vector<16x128xf32>
    %c1_258 = arith.constant 1 : index
    %c0_259 = arith.constant 0 : index
    %c0_260 = arith.constant 0 : index
    %1464 = vector.load %arg5[%c1_258, %c0_259, %c0_260] : memref<3x16x128xf32, #tpu.memory_space<vmem>>, vector<1x16x128xf32>
    %1465 = vector.shape_cast %1464 : vector<1x16x128xf32> to vector<16x128xf32>
    %c1_i32_261 = arith.constant 1 : i32
    %1466 = tpu.dynamic_rotate %1465 by %c1_i32_261 dim 0 : vector<16x128xf32>, i32 -> vector<16x128xf32>
    %cst_262 = arith.constant 0.000000e+00 : f32
    %1467 = vector.broadcast %cst_262 : f32 to vector<16x128xf32>
    %1468 = arith.select %3, %1466, %1467 : vector<16x128xi1>, vector<16x128xf32>
    %c1_i32_263 = arith.constant 1 : i32
    %1469 = tpu.dynamic_rotate %1468 by %c1_i32_263 dim 1 : vector<16x128xf32>, i32 -> vector<16x128xf32>
    %cst_264 = arith.constant 0.000000e+00 : f32
    %1470 = vector.broadcast %cst_264 : f32 to vector<16x128xf32>
    %1471 = arith.select %7, %1469, %1470 : vector<16x128xi1>, vector<16x128xf32>
    %c246 = arith.constant 246 : index
    %1472 = memref.load %arg1[%c246] : memref<486xf32, #tpu.memory_space<smem>>
    %1473 = vector.broadcast %1472 : f32 to vector<16x128xf32>
    %1474 = arith.mulf %1473, %1471 : vector<16x128xf32>
    %1475 = arith.addf %1455, %1474 : vector<16x128xf32>
    %c247 = arith.constant 247 : index
    %1476 = memref.load %arg1[%c247] : memref<486xf32, #tpu.memory_space<smem>>
    %1477 = vector.broadcast %1476 : f32 to vector<16x128xf32>
    %1478 = arith.mulf %1477, %1471 : vector<16x128xf32>
    %1479 = arith.addf %1459, %1478 : vector<16x128xf32>
    %c248 = arith.constant 248 : index
    %1480 = memref.load %arg1[%c248] : memref<486xf32, #tpu.memory_space<smem>>
    %1481 = vector.broadcast %1480 : f32 to vector<16x128xf32>
    %1482 = arith.mulf %1481, %1471 : vector<16x128xf32>
    %1483 = arith.addf %1463, %1482 : vector<16x128xf32>
    %c255 = arith.constant 255 : index
    %1484 = memref.load %arg1[%c255] : memref<486xf32, #tpu.memory_space<smem>>
    %1485 = vector.broadcast %1484 : f32 to vector<16x128xf32>
    %1486 = arith.mulf %1485, %1468 : vector<16x128xf32>
    %1487 = arith.addf %1475, %1486 : vector<16x128xf32>
    %c256 = arith.constant 256 : index
    %1488 = memref.load %arg1[%c256] : memref<486xf32, #tpu.memory_space<smem>>
    %1489 = vector.broadcast %1488 : f32 to vector<16x128xf32>
    %1490 = arith.mulf %1489, %1468 : vector<16x128xf32>
    %1491 = arith.addf %1479, %1490 : vector<16x128xf32>
    %c257 = arith.constant 257 : index
    %1492 = memref.load %arg1[%c257] : memref<486xf32, #tpu.memory_space<smem>>
    %1493 = vector.broadcast %1492 : f32 to vector<16x128xf32>
    %1494 = arith.mulf %1493, %1468 : vector<16x128xf32>
    %1495 = arith.addf %1483, %1494 : vector<16x128xf32>
    %c127_i32_265 = arith.constant 127 : i32
    %1496 = tpu.dynamic_rotate %1468 by %c127_i32_265 dim 1 : vector<16x128xf32>, i32 -> vector<16x128xf32>
    %cst_266 = arith.constant 0.000000e+00 : f32
    %1497 = vector.broadcast %cst_266 : f32 to vector<16x128xf32>
    %1498 = arith.select %9, %1496, %1497 : vector<16x128xi1>, vector<16x128xf32>
    %c264 = arith.constant 264 : index
    %1499 = memref.load %arg1[%c264] : memref<486xf32, #tpu.memory_space<smem>>
    %1500 = vector.broadcast %1499 : f32 to vector<16x128xf32>
    %1501 = arith.mulf %1500, %1498 : vector<16x128xf32>
    %1502 = arith.addf %1487, %1501 : vector<16x128xf32>
    %c265 = arith.constant 265 : index
    %1503 = memref.load %arg1[%c265] : memref<486xf32, #tpu.memory_space<smem>>
    %1504 = vector.broadcast %1503 : f32 to vector<16x128xf32>
    %1505 = arith.mulf %1504, %1498 : vector<16x128xf32>
    %1506 = arith.addf %1491, %1505 : vector<16x128xf32>
    %c266 = arith.constant 266 : index
    %1507 = memref.load %arg1[%c266] : memref<486xf32, #tpu.memory_space<smem>>
    %1508 = vector.broadcast %1507 : f32 to vector<16x128xf32>
    %1509 = arith.mulf %1508, %1498 : vector<16x128xf32>
    %1510 = arith.addf %1495, %1509 : vector<16x128xf32>
    %c1_i32_267 = arith.constant 1 : i32
    %1511 = tpu.dynamic_rotate %1465 by %c1_i32_267 dim 1 : vector<16x128xf32>, i32 -> vector<16x128xf32>
    %cst_268 = arith.constant 0.000000e+00 : f32
    %1512 = vector.broadcast %cst_268 : f32 to vector<16x128xf32>
    %1513 = arith.select %7, %1511, %1512 : vector<16x128xi1>, vector<16x128xf32>
    %c273 = arith.constant 273 : index
    %1514 = memref.load %arg1[%c273] : memref<486xf32, #tpu.memory_space<smem>>
    %1515 = vector.broadcast %1514 : f32 to vector<16x128xf32>
    %1516 = arith.mulf %1515, %1513 : vector<16x128xf32>
    %1517 = arith.addf %1502, %1516 : vector<16x128xf32>
    %c274 = arith.constant 274 : index
    %1518 = memref.load %arg1[%c274] : memref<486xf32, #tpu.memory_space<smem>>
    %1519 = vector.broadcast %1518 : f32 to vector<16x128xf32>
    %1520 = arith.mulf %1519, %1513 : vector<16x128xf32>
    %1521 = arith.addf %1506, %1520 : vector<16x128xf32>
    %c275 = arith.constant 275 : index
    %1522 = memref.load %arg1[%c275] : memref<486xf32, #tpu.memory_space<smem>>
    %1523 = vector.broadcast %1522 : f32 to vector<16x128xf32>
    %1524 = arith.mulf %1523, %1513 : vector<16x128xf32>
    %1525 = arith.addf %1510, %1524 : vector<16x128xf32>
    %c282 = arith.constant 282 : index
    %1526 = memref.load %arg1[%c282] : memref<486xf32, #tpu.memory_space<smem>>
    %1527 = vector.broadcast %1526 : f32 to vector<16x128xf32>
    %1528 = arith.mulf %1527, %1465 : vector<16x128xf32>
    %1529 = arith.addf %1517, %1528 : vector<16x128xf32>
    %c283 = arith.constant 283 : index
    %1530 = memref.load %arg1[%c283] : memref<486xf32, #tpu.memory_space<smem>>
    %1531 = vector.broadcast %1530 : f32 to vector<16x128xf32>
    %1532 = arith.mulf %1531, %1465 : vector<16x128xf32>
    %1533 = arith.addf %1521, %1532 : vector<16x128xf32>
    %c284 = arith.constant 284 : index
    %1534 = memref.load %arg1[%c284] : memref<486xf32, #tpu.memory_space<smem>>
    %1535 = vector.broadcast %1534 : f32 to vector<16x128xf32>
    %1536 = arith.mulf %1535, %1465 : vector<16x128xf32>
    %1537 = arith.addf %1525, %1536 : vector<16x128xf32>
    %c127_i32_269 = arith.constant 127 : i32
    %1538 = tpu.dynamic_rotate %1465 by %c127_i32_269 dim 1 : vector<16x128xf32>, i32 -> vector<16x128xf32>
    %cst_270 = arith.constant 0.000000e+00 : f32
    %1539 = vector.broadcast %cst_270 : f32 to vector<16x128xf32>
    %1540 = arith.select %9, %1538, %1539 : vector<16x128xi1>, vector<16x128xf32>
    %c291 = arith.constant 291 : index
    %1541 = memref.load %arg1[%c291] : memref<486xf32, #tpu.memory_space<smem>>
    %1542 = vector.broadcast %1541 : f32 to vector<16x128xf32>
    %1543 = arith.mulf %1542, %1540 : vector<16x128xf32>
    %1544 = arith.addf %1529, %1543 : vector<16x128xf32>
    %c292 = arith.constant 292 : index
    %1545 = memref.load %arg1[%c292] : memref<486xf32, #tpu.memory_space<smem>>
    %1546 = vector.broadcast %1545 : f32 to vector<16x128xf32>
    %1547 = arith.mulf %1546, %1540 : vector<16x128xf32>
    %1548 = arith.addf %1533, %1547 : vector<16x128xf32>
    %c293 = arith.constant 293 : index
    %1549 = memref.load %arg1[%c293] : memref<486xf32, #tpu.memory_space<smem>>
    %1550 = vector.broadcast %1549 : f32 to vector<16x128xf32>
    %1551 = arith.mulf %1550, %1540 : vector<16x128xf32>
    %1552 = arith.addf %1537, %1551 : vector<16x128xf32>
    %c15_i32_271 = arith.constant 15 : i32
    %1553 = tpu.dynamic_rotate %1465 by %c15_i32_271 dim 0 : vector<16x128xf32>, i32 -> vector<16x128xf32>
    %cst_272 = arith.constant 0.000000e+00 : f32
    %1554 = vector.broadcast %cst_272 : f32 to vector<16x128xf32>
    %1555 = arith.select %5, %1553, %1554 : vector<16x128xi1>, vector<16x128xf32>
    %c1_i32_273 = arith.constant 1 : i32
    %1556 = tpu.dynamic_rotate %1555 by %c1_i32_273 dim 1 : vector<16x128xf32>, i32 -> vector<16x128xf32>
    %cst_274 = arith.constant 0.000000e+00 : f32
    %1557 = vector.broadcast %cst_274 : f32 to vector<16x128xf32>
    %1558 = arith.select %7, %1556, %1557 : vector<16x128xi1>, vector<16x128xf32>
    %c300 = arith.constant 300 : index
    %1559 = memref.load %arg1[%c300] : memref<486xf32, #tpu.memory_space<smem>>
    %1560 = vector.broadcast %1559 : f32 to vector<16x128xf32>
    %1561 = arith.mulf %1560, %1558 : vector<16x128xf32>
    %1562 = arith.addf %1544, %1561 : vector<16x128xf32>
    %c301 = arith.constant 301 : index
    %1563 = memref.load %arg1[%c301] : memref<486xf32, #tpu.memory_space<smem>>
    %1564 = vector.broadcast %1563 : f32 to vector<16x128xf32>
    %1565 = arith.mulf %1564, %1558 : vector<16x128xf32>
    %1566 = arith.addf %1548, %1565 : vector<16x128xf32>
    %c302 = arith.constant 302 : index
    %1567 = memref.load %arg1[%c302] : memref<486xf32, #tpu.memory_space<smem>>
    %1568 = vector.broadcast %1567 : f32 to vector<16x128xf32>
    %1569 = arith.mulf %1568, %1558 : vector<16x128xf32>
    %1570 = arith.addf %1552, %1569 : vector<16x128xf32>
    %c309 = arith.constant 309 : index
    %1571 = memref.load %arg1[%c309] : memref<486xf32, #tpu.memory_space<smem>>
    %1572 = vector.broadcast %1571 : f32 to vector<16x128xf32>
    %1573 = arith.mulf %1572, %1555 : vector<16x128xf32>
    %1574 = arith.addf %1562, %1573 : vector<16x128xf32>
    %c310 = arith.constant 310 : index
    %1575 = memref.load %arg1[%c310] : memref<486xf32, #tpu.memory_space<smem>>
    %1576 = vector.broadcast %1575 : f32 to vector<16x128xf32>
    %1577 = arith.mulf %1576, %1555 : vector<16x128xf32>
    %1578 = arith.addf %1566, %1577 : vector<16x128xf32>
    %c311 = arith.constant 311 : index
    %1579 = memref.load %arg1[%c311] : memref<486xf32, #tpu.memory_space<smem>>
    %1580 = vector.broadcast %1579 : f32 to vector<16x128xf32>
    %1581 = arith.mulf %1580, %1555 : vector<16x128xf32>
    %1582 = arith.addf %1570, %1581 : vector<16x128xf32>
    %c127_i32_275 = arith.constant 127 : i32
    %1583 = tpu.dynamic_rotate %1555 by %c127_i32_275 dim 1 : vector<16x128xf32>, i32 -> vector<16x128xf32>
    %cst_276 = arith.constant 0.000000e+00 : f32
    %1584 = vector.broadcast %cst_276 : f32 to vector<16x128xf32>
    %1585 = arith.select %9, %1583, %1584 : vector<16x128xi1>, vector<16x128xf32>
    %c318 = arith.constant 318 : index
    %1586 = memref.load %arg1[%c318] : memref<486xf32, #tpu.memory_space<smem>>
    %1587 = vector.broadcast %1586 : f32 to vector<16x128xf32>
    %1588 = arith.mulf %1587, %1585 : vector<16x128xf32>
    %1589 = arith.addf %1574, %1588 : vector<16x128xf32>
    %c319 = arith.constant 319 : index
    %1590 = memref.load %arg1[%c319] : memref<486xf32, #tpu.memory_space<smem>>
    %1591 = vector.broadcast %1590 : f32 to vector<16x128xf32>
    %1592 = arith.mulf %1591, %1585 : vector<16x128xf32>
    %1593 = arith.addf %1578, %1592 : vector<16x128xf32>
    %c320 = arith.constant 320 : index
    %1594 = memref.load %arg1[%c320] : memref<486xf32, #tpu.memory_space<smem>>
    %1595 = vector.broadcast %1594 : f32 to vector<16x128xf32>
    %1596 = arith.mulf %1595, %1585 : vector<16x128xf32>
    %1597 = arith.addf %1582, %1596 : vector<16x128xf32>
    %c2_277 = arith.constant 2 : index
    %c0_278 = arith.constant 0 : index
    %c0_279 = arith.constant 0 : index
    %1598 = vector.load %arg5[%c2_277, %c0_278, %c0_279] : memref<3x16x128xf32, #tpu.memory_space<vmem>>, vector<1x16x128xf32>
    %1599 = vector.shape_cast %1598 : vector<1x16x128xf32> to vector<16x128xf32>
    %c1_i32_280 = arith.constant 1 : i32
    %1600 = tpu.dynamic_rotate %1599 by %c1_i32_280 dim 0 : vector<16x128xf32>, i32 -> vector<16x128xf32>
    %cst_281 = arith.constant 0.000000e+00 : f32
    %1601 = vector.broadcast %cst_281 : f32 to vector<16x128xf32>
    %1602 = arith.select %3, %1600, %1601 : vector<16x128xi1>, vector<16x128xf32>
    %c1_i32_282 = arith.constant 1 : i32
    %1603 = tpu.dynamic_rotate %1602 by %c1_i32_282 dim 1 : vector<16x128xf32>, i32 -> vector<16x128xf32>
    %cst_283 = arith.constant 0.000000e+00 : f32
    %1604 = vector.broadcast %cst_283 : f32 to vector<16x128xf32>
    %1605 = arith.select %7, %1603, %1604 : vector<16x128xi1>, vector<16x128xf32>
    %c249 = arith.constant 249 : index
    %1606 = memref.load %arg1[%c249] : memref<486xf32, #tpu.memory_space<smem>>
    %1607 = vector.broadcast %1606 : f32 to vector<16x128xf32>
    %1608 = arith.mulf %1607, %1605 : vector<16x128xf32>
    %1609 = arith.addf %1589, %1608 : vector<16x128xf32>
    %c250 = arith.constant 250 : index
    %1610 = memref.load %arg1[%c250] : memref<486xf32, #tpu.memory_space<smem>>
    %1611 = vector.broadcast %1610 : f32 to vector<16x128xf32>
    %1612 = arith.mulf %1611, %1605 : vector<16x128xf32>
    %1613 = arith.addf %1593, %1612 : vector<16x128xf32>
    %c251 = arith.constant 251 : index
    %1614 = memref.load %arg1[%c251] : memref<486xf32, #tpu.memory_space<smem>>
    %1615 = vector.broadcast %1614 : f32 to vector<16x128xf32>
    %1616 = arith.mulf %1615, %1605 : vector<16x128xf32>
    %1617 = arith.addf %1597, %1616 : vector<16x128xf32>
    %c258 = arith.constant 258 : index
    %1618 = memref.load %arg1[%c258] : memref<486xf32, #tpu.memory_space<smem>>
    %1619 = vector.broadcast %1618 : f32 to vector<16x128xf32>
    %1620 = arith.mulf %1619, %1602 : vector<16x128xf32>
    %1621 = arith.addf %1609, %1620 : vector<16x128xf32>
    %c259 = arith.constant 259 : index
    %1622 = memref.load %arg1[%c259] : memref<486xf32, #tpu.memory_space<smem>>
    %1623 = vector.broadcast %1622 : f32 to vector<16x128xf32>
    %1624 = arith.mulf %1623, %1602 : vector<16x128xf32>
    %1625 = arith.addf %1613, %1624 : vector<16x128xf32>
    %c260 = arith.constant 260 : index
    %1626 = memref.load %arg1[%c260] : memref<486xf32, #tpu.memory_space<smem>>
    %1627 = vector.broadcast %1626 : f32 to vector<16x128xf32>
    %1628 = arith.mulf %1627, %1602 : vector<16x128xf32>
    %1629 = arith.addf %1617, %1628 : vector<16x128xf32>
    %c127_i32_284 = arith.constant 127 : i32
    %1630 = tpu.dynamic_rotate %1602 by %c127_i32_284 dim 1 : vector<16x128xf32>, i32 -> vector<16x128xf32>
    %cst_285 = arith.constant 0.000000e+00 : f32
    %1631 = vector.broadcast %cst_285 : f32 to vector<16x128xf32>
    %1632 = arith.select %9, %1630, %1631 : vector<16x128xi1>, vector<16x128xf32>
    %c267 = arith.constant 267 : index
    %1633 = memref.load %arg1[%c267] : memref<486xf32, #tpu.memory_space<smem>>
    %1634 = vector.broadcast %1633 : f32 to vector<16x128xf32>
    %1635 = arith.mulf %1634, %1632 : vector<16x128xf32>
    %1636 = arith.addf %1621, %1635 : vector<16x128xf32>
    %c268 = arith.constant 268 : index
    %1637 = memref.load %arg1[%c268] : memref<486xf32, #tpu.memory_space<smem>>
    %1638 = vector.broadcast %1637 : f32 to vector<16x128xf32>
    %1639 = arith.mulf %1638, %1632 : vector<16x128xf32>
    %1640 = arith.addf %1625, %1639 : vector<16x128xf32>
    %c269 = arith.constant 269 : index
    %1641 = memref.load %arg1[%c269] : memref<486xf32, #tpu.memory_space<smem>>
    %1642 = vector.broadcast %1641 : f32 to vector<16x128xf32>
    %1643 = arith.mulf %1642, %1632 : vector<16x128xf32>
    %1644 = arith.addf %1629, %1643 : vector<16x128xf32>
    %c1_i32_286 = arith.constant 1 : i32
    %1645 = tpu.dynamic_rotate %1599 by %c1_i32_286 dim 1 : vector<16x128xf32>, i32 -> vector<16x128xf32>
    %cst_287 = arith.constant 0.000000e+00 : f32
    %1646 = vector.broadcast %cst_287 : f32 to vector<16x128xf32>
    %1647 = arith.select %7, %1645, %1646 : vector<16x128xi1>, vector<16x128xf32>
    %c276 = arith.constant 276 : index
    %1648 = memref.load %arg1[%c276] : memref<486xf32, #tpu.memory_space<smem>>
    %1649 = vector.broadcast %1648 : f32 to vector<16x128xf32>
    %1650 = arith.mulf %1649, %1647 : vector<16x128xf32>
    %1651 = arith.addf %1636, %1650 : vector<16x128xf32>
    %c277 = arith.constant 277 : index
    %1652 = memref.load %arg1[%c277] : memref<486xf32, #tpu.memory_space<smem>>
    %1653 = vector.broadcast %1652 : f32 to vector<16x128xf32>
    %1654 = arith.mulf %1653, %1647 : vector<16x128xf32>
    %1655 = arith.addf %1640, %1654 : vector<16x128xf32>
    %c278 = arith.constant 278 : index
    %1656 = memref.load %arg1[%c278] : memref<486xf32, #tpu.memory_space<smem>>
    %1657 = vector.broadcast %1656 : f32 to vector<16x128xf32>
    %1658 = arith.mulf %1657, %1647 : vector<16x128xf32>
    %1659 = arith.addf %1644, %1658 : vector<16x128xf32>
    %c285 = arith.constant 285 : index
    %1660 = memref.load %arg1[%c285] : memref<486xf32, #tpu.memory_space<smem>>
    %1661 = vector.broadcast %1660 : f32 to vector<16x128xf32>
    %1662 = arith.mulf %1661, %1599 : vector<16x128xf32>
    %1663 = arith.addf %1651, %1662 : vector<16x128xf32>
    %c286 = arith.constant 286 : index
    %1664 = memref.load %arg1[%c286] : memref<486xf32, #tpu.memory_space<smem>>
    %1665 = vector.broadcast %1664 : f32 to vector<16x128xf32>
    %1666 = arith.mulf %1665, %1599 : vector<16x128xf32>
    %1667 = arith.addf %1655, %1666 : vector<16x128xf32>
    %c287 = arith.constant 287 : index
    %1668 = memref.load %arg1[%c287] : memref<486xf32, #tpu.memory_space<smem>>
    %1669 = vector.broadcast %1668 : f32 to vector<16x128xf32>
    %1670 = arith.mulf %1669, %1599 : vector<16x128xf32>
    %1671 = arith.addf %1659, %1670 : vector<16x128xf32>
    %c127_i32_288 = arith.constant 127 : i32
    %1672 = tpu.dynamic_rotate %1599 by %c127_i32_288 dim 1 : vector<16x128xf32>, i32 -> vector<16x128xf32>
    %cst_289 = arith.constant 0.000000e+00 : f32
    %1673 = vector.broadcast %cst_289 : f32 to vector<16x128xf32>
    %1674 = arith.select %9, %1672, %1673 : vector<16x128xi1>, vector<16x128xf32>
    %c294 = arith.constant 294 : index
    %1675 = memref.load %arg1[%c294] : memref<486xf32, #tpu.memory_space<smem>>
    %1676 = vector.broadcast %1675 : f32 to vector<16x128xf32>
    %1677 = arith.mulf %1676, %1674 : vector<16x128xf32>
    %1678 = arith.addf %1663, %1677 : vector<16x128xf32>
    %c295 = arith.constant 295 : index
    %1679 = memref.load %arg1[%c295] : memref<486xf32, #tpu.memory_space<smem>>
    %1680 = vector.broadcast %1679 : f32 to vector<16x128xf32>
    %1681 = arith.mulf %1680, %1674 : vector<16x128xf32>
    %1682 = arith.addf %1667, %1681 : vector<16x128xf32>
    %c296 = arith.constant 296 : index
    %1683 = memref.load %arg1[%c296] : memref<486xf32, #tpu.memory_space<smem>>
    %1684 = vector.broadcast %1683 : f32 to vector<16x128xf32>
    %1685 = arith.mulf %1684, %1674 : vector<16x128xf32>
    %1686 = arith.addf %1671, %1685 : vector<16x128xf32>
    %c15_i32_290 = arith.constant 15 : i32
    %1687 = tpu.dynamic_rotate %1599 by %c15_i32_290 dim 0 : vector<16x128xf32>, i32 -> vector<16x128xf32>
    %cst_291 = arith.constant 0.000000e+00 : f32
    %1688 = vector.broadcast %cst_291 : f32 to vector<16x128xf32>
    %1689 = arith.select %5, %1687, %1688 : vector<16x128xi1>, vector<16x128xf32>
    %c1_i32_292 = arith.constant 1 : i32
    %1690 = tpu.dynamic_rotate %1689 by %c1_i32_292 dim 1 : vector<16x128xf32>, i32 -> vector<16x128xf32>
    %cst_293 = arith.constant 0.000000e+00 : f32
    %1691 = vector.broadcast %cst_293 : f32 to vector<16x128xf32>
    %1692 = arith.select %7, %1690, %1691 : vector<16x128xi1>, vector<16x128xf32>
    %c303 = arith.constant 303 : index
    %1693 = memref.load %arg1[%c303] : memref<486xf32, #tpu.memory_space<smem>>
    %1694 = vector.broadcast %1693 : f32 to vector<16x128xf32>
    %1695 = arith.mulf %1694, %1692 : vector<16x128xf32>
    %1696 = arith.addf %1678, %1695 : vector<16x128xf32>
    %c304 = arith.constant 304 : index
    %1697 = memref.load %arg1[%c304] : memref<486xf32, #tpu.memory_space<smem>>
    %1698 = vector.broadcast %1697 : f32 to vector<16x128xf32>
    %1699 = arith.mulf %1698, %1692 : vector<16x128xf32>
    %1700 = arith.addf %1682, %1699 : vector<16x128xf32>
    %c305 = arith.constant 305 : index
    %1701 = memref.load %arg1[%c305] : memref<486xf32, #tpu.memory_space<smem>>
    %1702 = vector.broadcast %1701 : f32 to vector<16x128xf32>
    %1703 = arith.mulf %1702, %1692 : vector<16x128xf32>
    %1704 = arith.addf %1686, %1703 : vector<16x128xf32>
    %c312 = arith.constant 312 : index
    %1705 = memref.load %arg1[%c312] : memref<486xf32, #tpu.memory_space<smem>>
    %1706 = vector.broadcast %1705 : f32 to vector<16x128xf32>
    %1707 = arith.mulf %1706, %1689 : vector<16x128xf32>
    %1708 = arith.addf %1696, %1707 : vector<16x128xf32>
    %c313 = arith.constant 313 : index
    %1709 = memref.load %arg1[%c313] : memref<486xf32, #tpu.memory_space<smem>>
    %1710 = vector.broadcast %1709 : f32 to vector<16x128xf32>
    %1711 = arith.mulf %1710, %1689 : vector<16x128xf32>
    %1712 = arith.addf %1700, %1711 : vector<16x128xf32>
    %c314 = arith.constant 314 : index
    %1713 = memref.load %arg1[%c314] : memref<486xf32, #tpu.memory_space<smem>>
    %1714 = vector.broadcast %1713 : f32 to vector<16x128xf32>
    %1715 = arith.mulf %1714, %1689 : vector<16x128xf32>
    %1716 = arith.addf %1704, %1715 : vector<16x128xf32>
    %c127_i32_294 = arith.constant 127 : i32
    %1717 = tpu.dynamic_rotate %1689 by %c127_i32_294 dim 1 : vector<16x128xf32>, i32 -> vector<16x128xf32>
    %cst_295 = arith.constant 0.000000e+00 : f32
    %1718 = vector.broadcast %cst_295 : f32 to vector<16x128xf32>
    %1719 = arith.select %9, %1717, %1718 : vector<16x128xi1>, vector<16x128xf32>
    %c321 = arith.constant 321 : index
    %1720 = memref.load %arg1[%c321] : memref<486xf32, #tpu.memory_space<smem>>
    %1721 = vector.broadcast %1720 : f32 to vector<16x128xf32>
    %1722 = arith.mulf %1721, %1719 : vector<16x128xf32>
    %1723 = arith.addf %1708, %1722 : vector<16x128xf32>
    %c322 = arith.constant 322 : index
    %1724 = memref.load %arg1[%c322] : memref<486xf32, #tpu.memory_space<smem>>
    %1725 = vector.broadcast %1724 : f32 to vector<16x128xf32>
    %1726 = arith.mulf %1725, %1719 : vector<16x128xf32>
    %1727 = arith.addf %1712, %1726 : vector<16x128xf32>
    %c323 = arith.constant 323 : index
    %1728 = memref.load %arg1[%c323] : memref<486xf32, #tpu.memory_space<smem>>
    %1729 = vector.broadcast %1728 : f32 to vector<16x128xf32>
    %1730 = arith.mulf %1729, %1719 : vector<16x128xf32>
    %1731 = arith.addf %1716, %1730 : vector<16x128xf32>
    %cst_296 = arith.constant 5.000000e-01 : f32
    %1732 = vector.broadcast %cst_296 : f32 to vector<16x128xf32>
    %1733 = arith.mulf %1732, %1723 : vector<16x128xf32>
    %1734 = math.tanh %1733 : vector<16x128xf32>
    %cst_297 = arith.constant 5.000000e-01 : f32
    %1735 = vector.broadcast %cst_297 : f32 to vector<16x128xf32>
    %1736 = arith.mulf %1735, %1734 : vector<16x128xf32>
    %cst_298 = arith.constant 5.000000e-01 : f32
    %1737 = vector.broadcast %cst_298 : f32 to vector<16x128xf32>
    %1738 = arith.addf %1736, %1737 : vector<16x128xf32>
    %c0_299 = arith.constant 0 : index
    %c0_300 = arith.constant 0 : index
    %c0_301 = arith.constant 0 : index
    %1739 = vector.load %arg6[%c0_299, %c0_300, %c0_301] : memref<3x16x128xf32, #tpu.memory_space<vmem>>, vector<1x16x128xf32>
    %1740 = vector.shape_cast %1739 : vector<1x16x128xf32> to vector<16x128xf32>
    %1741 = vector.shape_cast %1738 : vector<16x128xf32> to vector<1x16x128xf32>
    tpu.vector_store %arg6[%c0_299, %c0_300, %c0_301], %1741 {strides = array<i32>} : memref<3x16x128xf32, #tpu.memory_space<vmem>>, vector<1x16x128xf32>,
    %cst_302 = arith.constant 5.000000e-01 : f32
    %1742 = vector.broadcast %cst_302 : f32 to vector<16x128xf32>
    %1743 = arith.mulf %1742, %1727 : vector<16x128xf32>
    %1744 = math.tanh %1743 : vector<16x128xf32>
    %cst_303 = arith.constant 5.000000e-01 : f32
    %1745 = vector.broadcast %cst_303 : f32 to vector<16x128xf32>
    %1746 = arith.mulf %1745, %1744 : vector<16x128xf32>
    %cst_304 = arith.constant 5.000000e-01 : f32
    %1747 = vector.broadcast %cst_304 : f32 to vector<16x128xf32>
    %1748 = arith.addf %1746, %1747 : vector<16x128xf32>
    %c1_305 = arith.constant 1 : index
    %c0_306 = arith.constant 0 : index
    %c0_307 = arith.constant 0 : index
    %1749 = vector.load %arg6[%c1_305, %c0_306, %c0_307] : memref<3x16x128xf32, #tpu.memory_space<vmem>>, vector<1x16x128xf32>
    %1750 = vector.shape_cast %1749 : vector<1x16x128xf32> to vector<16x128xf32>
    %1751 = vector.shape_cast %1748 : vector<16x128xf32> to vector<1x16x128xf32>
    tpu.vector_store %arg6[%c1_305, %c0_306, %c0_307], %1751 {strides = array<i32>} : memref<3x16x128xf32, #tpu.memory_space<vmem>>, vector<1x16x128xf32>,
    %cst_308 = arith.constant 5.000000e-01 : f32
    %1752 = vector.broadcast %cst_308 : f32 to vector<16x128xf32>
    %1753 = arith.mulf %1752, %1731 : vector<16x128xf32>
    %1754 = math.tanh %1753 : vector<16x128xf32>
    %cst_309 = arith.constant 5.000000e-01 : f32
    %1755 = vector.broadcast %cst_309 : f32 to vector<16x128xf32>
    %1756 = arith.mulf %1755, %1754 : vector<16x128xf32>
    %cst_310 = arith.constant 5.000000e-01 : f32
    %1757 = vector.broadcast %cst_310 : f32 to vector<16x128xf32>
    %1758 = arith.addf %1756, %1757 : vector<16x128xf32>
    %c2_311 = arith.constant 2 : index
    %c0_312 = arith.constant 0 : index
    %c0_313 = arith.constant 0 : index
    %1759 = vector.load %arg6[%c2_311, %c0_312, %c0_313] : memref<3x16x128xf32, #tpu.memory_space<vmem>>, vector<1x16x128xf32>
    %1760 = vector.shape_cast %1759 : vector<1x16x128xf32> to vector<16x128xf32>
    %1761 = vector.shape_cast %1758 : vector<16x128xf32> to vector<1x16x128xf32>
    tpu.vector_store %arg6[%c2_311, %c0_312, %c0_313], %1761 {strides = array<i32>} : memref<3x16x128xf32, #tpu.memory_space<vmem>>, vector<1x16x128xf32>,
    %c12_314 = arith.constant 12 : index
    %1762 = memref.load %arg2[%c12_314] : memref<18xf32, #tpu.memory_space<smem>>
    %1763 = vector.broadcast %1762 : f32 to vector<16x128xf32>
    %c13_315 = arith.constant 13 : index
    %1764 = memref.load %arg2[%c13_315] : memref<18xf32, #tpu.memory_space<smem>>
    %1765 = vector.broadcast %1764 : f32 to vector<16x128xf32>
    %c14_316 = arith.constant 14 : index
    %1766 = memref.load %arg2[%c14_316] : memref<18xf32, #tpu.memory_space<smem>>
    %1767 = vector.broadcast %1766 : f32 to vector<16x128xf32>
    %c0_317 = arith.constant 0 : index
    %c0_318 = arith.constant 0 : index
    %c0_319 = arith.constant 0 : index
    %1768 = vector.load %arg6[%c0_317, %c0_318, %c0_319] : memref<3x16x128xf32, #tpu.memory_space<vmem>>, vector<1x16x128xf32>
    %1769 = vector.shape_cast %1768 : vector<1x16x128xf32> to vector<16x128xf32>
    %c1_i32_320 = arith.constant 1 : i32
    %1770 = tpu.dynamic_rotate %1769 by %c1_i32_320 dim 0 : vector<16x128xf32>, i32 -> vector<16x128xf32>
    %cst_321 = arith.constant 0.000000e+00 : f32
    %1771 = vector.broadcast %cst_321 : f32 to vector<16x128xf32>
    %1772 = arith.select %3, %1770, %1771 : vector<16x128xi1>, vector<16x128xf32>
    %c1_i32_322 = arith.constant 1 : i32
    %1773 = tpu.dynamic_rotate %1772 by %c1_i32_322 dim 1 : vector<16x128xf32>, i32 -> vector<16x128xf32>
    %cst_323 = arith.constant 0.000000e+00 : f32
    %1774 = vector.broadcast %cst_323 : f32 to vector<16x128xf32>
    %1775 = arith.select %7, %1773, %1774 : vector<16x128xi1>, vector<16x128xf32>
    %c324 = arith.constant 324 : index
    %1776 = memref.load %arg1[%c324] : memref<486xf32, #tpu.memory_space<smem>>
    %1777 = vector.broadcast %1776 : f32 to vector<16x128xf32>
    %1778 = arith.mulf %1777, %1775 : vector<16x128xf32>
    %1779 = arith.addf %1763, %1778 : vector<16x128xf32>
    %c325 = arith.constant 325 : index
    %1780 = memref.load %arg1[%c325] : memref<486xf32, #tpu.memory_space<smem>>
    %1781 = vector.broadcast %1780 : f32 to vector<16x128xf32>
    %1782 = arith.mulf %1781, %1775 : vector<16x128xf32>
    %1783 = arith.addf %1765, %1782 : vector<16x128xf32>
    %c326 = arith.constant 326 : index
    %1784 = memref.load %arg1[%c326] : memref<486xf32, #tpu.memory_space<smem>>
    %1785 = vector.broadcast %1784 : f32 to vector<16x128xf32>
    %1786 = arith.mulf %1785, %1775 : vector<16x128xf32>
    %1787 = arith.addf %1767, %1786 : vector<16x128xf32>
    %c333 = arith.constant 333 : index
    %1788 = memref.load %arg1[%c333] : memref<486xf32, #tpu.memory_space<smem>>
    %1789 = vector.broadcast %1788 : f32 to vector<16x128xf32>
    %1790 = arith.mulf %1789, %1772 : vector<16x128xf32>
    %1791 = arith.addf %1779, %1790 : vector<16x128xf32>
    %c334 = arith.constant 334 : index
    %1792 = memref.load %arg1[%c334] : memref<486xf32, #tpu.memory_space<smem>>
    %1793 = vector.broadcast %1792 : f32 to vector<16x128xf32>
    %1794 = arith.mulf %1793, %1772 : vector<16x128xf32>
    %1795 = arith.addf %1783, %1794 : vector<16x128xf32>
    %c335 = arith.constant 335 : index
    %1796 = memref.load %arg1[%c335] : memref<486xf32, #tpu.memory_space<smem>>
    %1797 = vector.broadcast %1796 : f32 to vector<16x128xf32>
    %1798 = arith.mulf %1797, %1772 : vector<16x128xf32>
    %1799 = arith.addf %1787, %1798 : vector<16x128xf32>
    %c127_i32_324 = arith.constant 127 : i32
    %1800 = tpu.dynamic_rotate %1772 by %c127_i32_324 dim 1 : vector<16x128xf32>, i32 -> vector<16x128xf32>
    %cst_325 = arith.constant 0.000000e+00 : f32
    %1801 = vector.broadcast %cst_325 : f32 to vector<16x128xf32>
    %1802 = arith.select %9, %1800, %1801 : vector<16x128xi1>, vector<16x128xf32>
    %c342 = arith.constant 342 : index
    %1803 = memref.load %arg1[%c342] : memref<486xf32, #tpu.memory_space<smem>>
    %1804 = vector.broadcast %1803 : f32 to vector<16x128xf32>
    %1805 = arith.mulf %1804, %1802 : vector<16x128xf32>
    %1806 = arith.addf %1791, %1805 : vector<16x128xf32>
    %c343 = arith.constant 343 : index
    %1807 = memref.load %arg1[%c343] : memref<486xf32, #tpu.memory_space<smem>>
    %1808 = vector.broadcast %1807 : f32 to vector<16x128xf32>
    %1809 = arith.mulf %1808, %1802 : vector<16x128xf32>
    %1810 = arith.addf %1795, %1809 : vector<16x128xf32>
    %c344 = arith.constant 344 : index
    %1811 = memref.load %arg1[%c344] : memref<486xf32, #tpu.memory_space<smem>>
    %1812 = vector.broadcast %1811 : f32 to vector<16x128xf32>
    %1813 = arith.mulf %1812, %1802 : vector<16x128xf32>
    %1814 = arith.addf %1799, %1813 : vector<16x128xf32>
    %c1_i32_326 = arith.constant 1 : i32
    %1815 = tpu.dynamic_rotate %1769 by %c1_i32_326 dim 1 : vector<16x128xf32>, i32 -> vector<16x128xf32>
    %cst_327 = arith.constant 0.000000e+00 : f32
    %1816 = vector.broadcast %cst_327 : f32 to vector<16x128xf32>
    %1817 = arith.select %7, %1815, %1816 : vector<16x128xi1>, vector<16x128xf32>
    %c351 = arith.constant 351 : index
    %1818 = memref.load %arg1[%c351] : memref<486xf32, #tpu.memory_space<smem>>
    %1819 = vector.broadcast %1818 : f32 to vector<16x128xf32>
    %1820 = arith.mulf %1819, %1817 : vector<16x128xf32>
    %1821 = arith.addf %1806, %1820 : vector<16x128xf32>
    %c352 = arith.constant 352 : index
    %1822 = memref.load %arg1[%c352] : memref<486xf32, #tpu.memory_space<smem>>
    %1823 = vector.broadcast %1822 : f32 to vector<16x128xf32>
    %1824 = arith.mulf %1823, %1817 : vector<16x128xf32>
    %1825 = arith.addf %1810, %1824 : vector<16x128xf32>
    %c353 = arith.constant 353 : index
    %1826 = memref.load %arg1[%c353] : memref<486xf32, #tpu.memory_space<smem>>
    %1827 = vector.broadcast %1826 : f32 to vector<16x128xf32>
    %1828 = arith.mulf %1827, %1817 : vector<16x128xf32>
    %1829 = arith.addf %1814, %1828 : vector<16x128xf32>
    %c360 = arith.constant 360 : index
    %1830 = memref.load %arg1[%c360] : memref<486xf32, #tpu.memory_space<smem>>
    %1831 = vector.broadcast %1830 : f32 to vector<16x128xf32>
    %1832 = arith.mulf %1831, %1769 : vector<16x128xf32>
    %1833 = arith.addf %1821, %1832 : vector<16x128xf32>
    %c361 = arith.constant 361 : index
    %1834 = memref.load %arg1[%c361] : memref<486xf32, #tpu.memory_space<smem>>
    %1835 = vector.broadcast %1834 : f32 to vector<16x128xf32>
    %1836 = arith.mulf %1835, %1769 : vector<16x128xf32>
    %1837 = arith.addf %1825, %1836 : vector<16x128xf32>
    %c362 = arith.constant 362 : index
    %1838 = memref.load %arg1[%c362] : memref<486xf32, #tpu.memory_space<smem>>
    %1839 = vector.broadcast %1838 : f32 to vector<16x128xf32>
    %1840 = arith.mulf %1839, %1769 : vector<16x128xf32>
    %1841 = arith.addf %1829, %1840 : vector<16x128xf32>
    %c127_i32_328 = arith.constant 127 : i32
    %1842 = tpu.dynamic_rotate %1769 by %c127_i32_328 dim 1 : vector<16x128xf32>, i32 -> vector<16x128xf32>
    %cst_329 = arith.constant 0.000000e+00 : f32
    %1843 = vector.broadcast %cst_329 : f32 to vector<16x128xf32>
    %1844 = arith.select %9, %1842, %1843 : vector<16x128xi1>, vector<16x128xf32>
    %c369 = arith.constant 369 : index
    %1845 = memref.load %arg1[%c369] : memref<486xf32, #tpu.memory_space<smem>>
    %1846 = vector.broadcast %1845 : f32 to vector<16x128xf32>
    %1847 = arith.mulf %1846, %1844 : vector<16x128xf32>
    %1848 = arith.addf %1833, %1847 : vector<16x128xf32>
    %c370 = arith.constant 370 : index
    %1849 = memref.load %arg1[%c370] : memref<486xf32, #tpu.memory_space<smem>>
    %1850 = vector.broadcast %1849 : f32 to vector<16x128xf32>
    %1851 = arith.mulf %1850, %1844 : vector<16x128xf32>
    %1852 = arith.addf %1837, %1851 : vector<16x128xf32>
    %c371 = arith.constant 371 : index
    %1853 = memref.load %arg1[%c371] : memref<486xf32, #tpu.memory_space<smem>>
    %1854 = vector.broadcast %1853 : f32 to vector<16x128xf32>
    %1855 = arith.mulf %1854, %1844 : vector<16x128xf32>
    %1856 = arith.addf %1841, %1855 : vector<16x128xf32>
    %c15_i32_330 = arith.constant 15 : i32
    %1857 = tpu.dynamic_rotate %1769 by %c15_i32_330 dim 0 : vector<16x128xf32>, i32 -> vector<16x128xf32>
    %cst_331 = arith.constant 0.000000e+00 : f32
    %1858 = vector.broadcast %cst_331 : f32 to vector<16x128xf32>
    %1859 = arith.select %5, %1857, %1858 : vector<16x128xi1>, vector<16x128xf32>
    %c1_i32_332 = arith.constant 1 : i32
    %1860 = tpu.dynamic_rotate %1859 by %c1_i32_332 dim 1 : vector<16x128xf32>, i32 -> vector<16x128xf32>
    %cst_333 = arith.constant 0.000000e+00 : f32
    %1861 = vector.broadcast %cst_333 : f32 to vector<16x128xf32>
    %1862 = arith.select %7, %1860, %1861 : vector<16x128xi1>, vector<16x128xf32>
    %c378 = arith.constant 378 : index
    %1863 = memref.load %arg1[%c378] : memref<486xf32, #tpu.memory_space<smem>>
    %1864 = vector.broadcast %1863 : f32 to vector<16x128xf32>
    %1865 = arith.mulf %1864, %1862 : vector<16x128xf32>
    %1866 = arith.addf %1848, %1865 : vector<16x128xf32>
    %c379 = arith.constant 379 : index
    %1867 = memref.load %arg1[%c379] : memref<486xf32, #tpu.memory_space<smem>>
    %1868 = vector.broadcast %1867 : f32 to vector<16x128xf32>
    %1869 = arith.mulf %1868, %1862 : vector<16x128xf32>
    %1870 = arith.addf %1852, %1869 : vector<16x128xf32>
    %c380 = arith.constant 380 : index
    %1871 = memref.load %arg1[%c380] : memref<486xf32, #tpu.memory_space<smem>>
    %1872 = vector.broadcast %1871 : f32 to vector<16x128xf32>
    %1873 = arith.mulf %1872, %1862 : vector<16x128xf32>
    %1874 = arith.addf %1856, %1873 : vector<16x128xf32>
    %c387 = arith.constant 387 : index
    %1875 = memref.load %arg1[%c387] : memref<486xf32, #tpu.memory_space<smem>>
    %1876 = vector.broadcast %1875 : f32 to vector<16x128xf32>
    %1877 = arith.mulf %1876, %1859 : vector<16x128xf32>
    %1878 = arith.addf %1866, %1877 : vector<16x128xf32>
    %c388 = arith.constant 388 : index
    %1879 = memref.load %arg1[%c388] : memref<486xf32, #tpu.memory_space<smem>>
    %1880 = vector.broadcast %1879 : f32 to vector<16x128xf32>
    %1881 = arith.mulf %1880, %1859 : vector<16x128xf32>
    %1882 = arith.addf %1870, %1881 : vector<16x128xf32>
    %c389 = arith.constant 389 : index
    %1883 = memref.load %arg1[%c389] : memref<486xf32, #tpu.memory_space<smem>>
    %1884 = vector.broadcast %1883 : f32 to vector<16x128xf32>
    %1885 = arith.mulf %1884, %1859 : vector<16x128xf32>
    %1886 = arith.addf %1874, %1885 : vector<16x128xf32>
    %c127_i32_334 = arith.constant 127 : i32
    %1887 = tpu.dynamic_rotate %1859 by %c127_i32_334 dim 1 : vector<16x128xf32>, i32 -> vector<16x128xf32>
    %cst_335 = arith.constant 0.000000e+00 : f32
    %1888 = vector.broadcast %cst_335 : f32 to vector<16x128xf32>
    %1889 = arith.select %9, %1887, %1888 : vector<16x128xi1>, vector<16x128xf32>
    %c396 = arith.constant 396 : index
    %1890 = memref.load %arg1[%c396] : memref<486xf32, #tpu.memory_space<smem>>
    %1891 = vector.broadcast %1890 : f32 to vector<16x128xf32>
    %1892 = arith.mulf %1891, %1889 : vector<16x128xf32>
    %1893 = arith.addf %1878, %1892 : vector<16x128xf32>
    %c397 = arith.constant 397 : index
    %1894 = memref.load %arg1[%c397] : memref<486xf32, #tpu.memory_space<smem>>
    %1895 = vector.broadcast %1894 : f32 to vector<16x128xf32>
    %1896 = arith.mulf %1895, %1889 : vector<16x128xf32>
    %1897 = arith.addf %1882, %1896 : vector<16x128xf32>
    %c398 = arith.constant 398 : index
    %1898 = memref.load %arg1[%c398] : memref<486xf32, #tpu.memory_space<smem>>
    %1899 = vector.broadcast %1898 : f32 to vector<16x128xf32>
    %1900 = arith.mulf %1899, %1889 : vector<16x128xf32>
    %1901 = arith.addf %1886, %1900 : vector<16x128xf32>
    %c1_336 = arith.constant 1 : index
    %c0_337 = arith.constant 0 : index
    %c0_338 = arith.constant 0 : index
    %1902 = vector.load %arg6[%c1_336, %c0_337, %c0_338] : memref<3x16x128xf32, #tpu.memory_space<vmem>>, vector<1x16x128xf32>
    %1903 = vector.shape_cast %1902 : vector<1x16x128xf32> to vector<16x128xf32>
    %c1_i32_339 = arith.constant 1 : i32
    %1904 = tpu.dynamic_rotate %1903 by %c1_i32_339 dim 0 : vector<16x128xf32>, i32 -> vector<16x128xf32>
    %cst_340 = arith.constant 0.000000e+00 : f32
    %1905 = vector.broadcast %cst_340 : f32 to vector<16x128xf32>
    %1906 = arith.select %3, %1904, %1905 : vector<16x128xi1>, vector<16x128xf32>
    %c1_i32_341 = arith.constant 1 : i32
    %1907 = tpu.dynamic_rotate %1906 by %c1_i32_341 dim 1 : vector<16x128xf32>, i32 -> vector<16x128xf32>
    %cst_342 = arith.constant 0.000000e+00 : f32
    %1908 = vector.broadcast %cst_342 : f32 to vector<16x128xf32>
    %1909 = arith.select %7, %1907, %1908 : vector<16x128xi1>, vector<16x128xf32>
    %c327 = arith.constant 327 : index
    %1910 = memref.load %arg1[%c327] : memref<486xf32, #tpu.memory_space<smem>>
    %1911 = vector.broadcast %1910 : f32 to vector<16x128xf32>
    %1912 = arith.mulf %1911, %1909 : vector<16x128xf32>
    %1913 = arith.addf %1893, %1912 : vector<16x128xf32>
    %c328 = arith.constant 328 : index
    %1914 = memref.load %arg1[%c328] : memref<486xf32, #tpu.memory_space<smem>>
    %1915 = vector.broadcast %1914 : f32 to vector<16x128xf32>
    %1916 = arith.mulf %1915, %1909 : vector<16x128xf32>
    %1917 = arith.addf %1897, %1916 : vector<16x128xf32>
    %c329 = arith.constant 329 : index
    %1918 = memref.load %arg1[%c329] : memref<486xf32, #tpu.memory_space<smem>>
    %1919 = vector.broadcast %1918 : f32 to vector<16x128xf32>
    %1920 = arith.mulf %1919, %1909 : vector<16x128xf32>
    %1921 = arith.addf %1901, %1920 : vector<16x128xf32>
    %c336 = arith.constant 336 : index
    %1922 = memref.load %arg1[%c336] : memref<486xf32, #tpu.memory_space<smem>>
    %1923 = vector.broadcast %1922 : f32 to vector<16x128xf32>
    %1924 = arith.mulf %1923, %1906 : vector<16x128xf32>
    %1925 = arith.addf %1913, %1924 : vector<16x128xf32>
    %c337 = arith.constant 337 : index
    %1926 = memref.load %arg1[%c337] : memref<486xf32, #tpu.memory_space<smem>>
    %1927 = vector.broadcast %1926 : f32 to vector<16x128xf32>
    %1928 = arith.mulf %1927, %1906 : vector<16x128xf32>
    %1929 = arith.addf %1917, %1928 : vector<16x128xf32>
    %c338 = arith.constant 338 : index
    %1930 = memref.load %arg1[%c338] : memref<486xf32, #tpu.memory_space<smem>>
    %1931 = vector.broadcast %1930 : f32 to vector<16x128xf32>
    %1932 = arith.mulf %1931, %1906 : vector<16x128xf32>
    %1933 = arith.addf %1921, %1932 : vector<16x128xf32>
    %c127_i32_343 = arith.constant 127 : i32
    %1934 = tpu.dynamic_rotate %1906 by %c127_i32_343 dim 1 : vector<16x128xf32>, i32 -> vector<16x128xf32>
    %cst_344 = arith.constant 0.000000e+00 : f32
    %1935 = vector.broadcast %cst_344 : f32 to vector<16x128xf32>
    %1936 = arith.select %9, %1934, %1935 : vector<16x128xi1>, vector<16x128xf32>
    %c345 = arith.constant 345 : index
    %1937 = memref.load %arg1[%c345] : memref<486xf32, #tpu.memory_space<smem>>
    %1938 = vector.broadcast %1937 : f32 to vector<16x128xf32>
    %1939 = arith.mulf %1938, %1936 : vector<16x128xf32>
    %1940 = arith.addf %1925, %1939 : vector<16x128xf32>
    %c346 = arith.constant 346 : index
    %1941 = memref.load %arg1[%c346] : memref<486xf32, #tpu.memory_space<smem>>
    %1942 = vector.broadcast %1941 : f32 to vector<16x128xf32>
    %1943 = arith.mulf %1942, %1936 : vector<16x128xf32>
    %1944 = arith.addf %1929, %1943 : vector<16x128xf32>
    %c347 = arith.constant 347 : index
    %1945 = memref.load %arg1[%c347] : memref<486xf32, #tpu.memory_space<smem>>
    %1946 = vector.broadcast %1945 : f32 to vector<16x128xf32>
    %1947 = arith.mulf %1946, %1936 : vector<16x128xf32>
    %1948 = arith.addf %1933, %1947 : vector<16x128xf32>
    %c1_i32_345 = arith.constant 1 : i32
    %1949 = tpu.dynamic_rotate %1903 by %c1_i32_345 dim 1 : vector<16x128xf32>, i32 -> vector<16x128xf32>
    %cst_346 = arith.constant 0.000000e+00 : f32
    %1950 = vector.broadcast %cst_346 : f32 to vector<16x128xf32>
    %1951 = arith.select %7, %1949, %1950 : vector<16x128xi1>, vector<16x128xf32>
    %c354 = arith.constant 354 : index
    %1952 = memref.load %arg1[%c354] : memref<486xf32, #tpu.memory_space<smem>>
    %1953 = vector.broadcast %1952 : f32 to vector<16x128xf32>
    %1954 = arith.mulf %1953, %1951 : vector<16x128xf32>
    %1955 = arith.addf %1940, %1954 : vector<16x128xf32>
    %c355 = arith.constant 355 : index
    %1956 = memref.load %arg1[%c355] : memref<486xf32, #tpu.memory_space<smem>>
    %1957 = vector.broadcast %1956 : f32 to vector<16x128xf32>
    %1958 = arith.mulf %1957, %1951 : vector<16x128xf32>
    %1959 = arith.addf %1944, %1958 : vector<16x128xf32>
    %c356 = arith.constant 356 : index
    %1960 = memref.load %arg1[%c356] : memref<486xf32, #tpu.memory_space<smem>>
    %1961 = vector.broadcast %1960 : f32 to vector<16x128xf32>
    %1962 = arith.mulf %1961, %1951 : vector<16x128xf32>
    %1963 = arith.addf %1948, %1962 : vector<16x128xf32>
    %c363 = arith.constant 363 : index
    %1964 = memref.load %arg1[%c363] : memref<486xf32, #tpu.memory_space<smem>>
    %1965 = vector.broadcast %1964 : f32 to vector<16x128xf32>
    %1966 = arith.mulf %1965, %1903 : vector<16x128xf32>
    %1967 = arith.addf %1955, %1966 : vector<16x128xf32>
    %c364 = arith.constant 364 : index
    %1968 = memref.load %arg1[%c364] : memref<486xf32, #tpu.memory_space<smem>>
    %1969 = vector.broadcast %1968 : f32 to vector<16x128xf32>
    %1970 = arith.mulf %1969, %1903 : vector<16x128xf32>
    %1971 = arith.addf %1959, %1970 : vector<16x128xf32>
    %c365 = arith.constant 365 : index
    %1972 = memref.load %arg1[%c365] : memref<486xf32, #tpu.memory_space<smem>>
    %1973 = vector.broadcast %1972 : f32 to vector<16x128xf32>
    %1974 = arith.mulf %1973, %1903 : vector<16x128xf32>
    %1975 = arith.addf %1963, %1974 : vector<16x128xf32>
    %c127_i32_347 = arith.constant 127 : i32
    %1976 = tpu.dynamic_rotate %1903 by %c127_i32_347 dim 1 : vector<16x128xf32>, i32 -> vector<16x128xf32>
    %cst_348 = arith.constant 0.000000e+00 : f32
    %1977 = vector.broadcast %cst_348 : f32 to vector<16x128xf32>
    %1978 = arith.select %9, %1976, %1977 : vector<16x128xi1>, vector<16x128xf32>
    %c372 = arith.constant 372 : index
    %1979 = memref.load %arg1[%c372] : memref<486xf32, #tpu.memory_space<smem>>
    %1980 = vector.broadcast %1979 : f32 to vector<16x128xf32>
    %1981 = arith.mulf %1980, %1978 : vector<16x128xf32>
    %1982 = arith.addf %1967, %1981 : vector<16x128xf32>
    %c373 = arith.constant 373 : index
    %1983 = memref.load %arg1[%c373] : memref<486xf32, #tpu.memory_space<smem>>
    %1984 = vector.broadcast %1983 : f32 to vector<16x128xf32>
    %1985 = arith.mulf %1984, %1978 : vector<16x128xf32>
    %1986 = arith.addf %1971, %1985 : vector<16x128xf32>
    %c374 = arith.constant 374 : index
    %1987 = memref.load %arg1[%c374] : memref<486xf32, #tpu.memory_space<smem>>
    %1988 = vector.broadcast %1987 : f32 to vector<16x128xf32>
    %1989 = arith.mulf %1988, %1978 : vector<16x128xf32>
    %1990 = arith.addf %1975, %1989 : vector<16x128xf32>
    %c15_i32_349 = arith.constant 15 : i32
    %1991 = tpu.dynamic_rotate %1903 by %c15_i32_349 dim 0 : vector<16x128xf32>, i32 -> vector<16x128xf32>
    %cst_350 = arith.constant 0.000000e+00 : f32
    %1992 = vector.broadcast %cst_350 : f32 to vector<16x128xf32>
    %1993 = arith.select %5, %1991, %1992 : vector<16x128xi1>, vector<16x128xf32>
    %c1_i32_351 = arith.constant 1 : i32
    %1994 = tpu.dynamic_rotate %1993 by %c1_i32_351 dim 1 : vector<16x128xf32>, i32 -> vector<16x128xf32>
    %cst_352 = arith.constant 0.000000e+00 : f32
    %1995 = vector.broadcast %cst_352 : f32 to vector<16x128xf32>
    %1996 = arith.select %7, %1994, %1995 : vector<16x128xi1>, vector<16x128xf32>
    %c381 = arith.constant 381 : index
    %1997 = memref.load %arg1[%c381] : memref<486xf32, #tpu.memory_space<smem>>
    %1998 = vector.broadcast %1997 : f32 to vector<16x128xf32>
    %1999 = arith.mulf %1998, %1996 : vector<16x128xf32>
    %2000 = arith.addf %1982, %1999 : vector<16x128xf32>
    %c382 = arith.constant 382 : index
    %2001 = memref.load %arg1[%c382] : memref<486xf32, #tpu.memory_space<smem>>
    %2002 = vector.broadcast %2001 : f32 to vector<16x128xf32>
    %2003 = arith.mulf %2002, %1996 : vector<16x128xf32>
    %2004 = arith.addf %1986, %2003 : vector<16x128xf32>
    %c383 = arith.constant 383 : index
    %2005 = memref.load %arg1[%c383] : memref<486xf32, #tpu.memory_space<smem>>
    %2006 = vector.broadcast %2005 : f32 to vector<16x128xf32>
    %2007 = arith.mulf %2006, %1996 : vector<16x128xf32>
    %2008 = arith.addf %1990, %2007 : vector<16x128xf32>
    %c390 = arith.constant 390 : index
    %2009 = memref.load %arg1[%c390] : memref<486xf32, #tpu.memory_space<smem>>
    %2010 = vector.broadcast %2009 : f32 to vector<16x128xf32>
    %2011 = arith.mulf %2010, %1993 : vector<16x128xf32>
    %2012 = arith.addf %2000, %2011 : vector<16x128xf32>
    %c391 = arith.constant 391 : index
    %2013 = memref.load %arg1[%c391] : memref<486xf32, #tpu.memory_space<smem>>
    %2014 = vector.broadcast %2013 : f32 to vector<16x128xf32>
    %2015 = arith.mulf %2014, %1993 : vector<16x128xf32>
    %2016 = arith.addf %2004, %2015 : vector<16x128xf32>
    %c392 = arith.constant 392 : index
    %2017 = memref.load %arg1[%c392] : memref<486xf32, #tpu.memory_space<smem>>
    %2018 = vector.broadcast %2017 : f32 to vector<16x128xf32>
    %2019 = arith.mulf %2018, %1993 : vector<16x128xf32>
    %2020 = arith.addf %2008, %2019 : vector<16x128xf32>
    %c127_i32_353 = arith.constant 127 : i32
    %2021 = tpu.dynamic_rotate %1993 by %c127_i32_353 dim 1 : vector<16x128xf32>, i32 -> vector<16x128xf32>
    %cst_354 = arith.constant 0.000000e+00 : f32
    %2022 = vector.broadcast %cst_354 : f32 to vector<16x128xf32>
    %2023 = arith.select %9, %2021, %2022 : vector<16x128xi1>, vector<16x128xf32>
    %c399 = arith.constant 399 : index
    %2024 = memref.load %arg1[%c399] : memref<486xf32, #tpu.memory_space<smem>>
    %2025 = vector.broadcast %2024 : f32 to vector<16x128xf32>
    %2026 = arith.mulf %2025, %2023 : vector<16x128xf32>
    %2027 = arith.addf %2012, %2026 : vector<16x128xf32>
    %c400 = arith.constant 400 : index
    %2028 = memref.load %arg1[%c400] : memref<486xf32, #tpu.memory_space<smem>>
    %2029 = vector.broadcast %2028 : f32 to vector<16x128xf32>
    %2030 = arith.mulf %2029, %2023 : vector<16x128xf32>
    %2031 = arith.addf %2016, %2030 : vector<16x128xf32>
    %c401 = arith.constant 401 : index
    %2032 = memref.load %arg1[%c401] : memref<486xf32, #tpu.memory_space<smem>>
    %2033 = vector.broadcast %2032 : f32 to vector<16x128xf32>
    %2034 = arith.mulf %2033, %2023 : vector<16x128xf32>
    %2035 = arith.addf %2020, %2034 : vector<16x128xf32>
    %c2_355 = arith.constant 2 : index
    %c0_356 = arith.constant 0 : index
    %c0_357 = arith.constant 0 : index
    %2036 = vector.load %arg6[%c2_355, %c0_356, %c0_357] : memref<3x16x128xf32, #tpu.memory_space<vmem>>, vector<1x16x128xf32>
    %2037 = vector.shape_cast %2036 : vector<1x16x128xf32> to vector<16x128xf32>
    %c1_i32_358 = arith.constant 1 : i32
    %2038 = tpu.dynamic_rotate %2037 by %c1_i32_358 dim 0 : vector<16x128xf32>, i32 -> vector<16x128xf32>
    %cst_359 = arith.constant 0.000000e+00 : f32
    %2039 = vector.broadcast %cst_359 : f32 to vector<16x128xf32>
    %2040 = arith.select %3, %2038, %2039 : vector<16x128xi1>, vector<16x128xf32>
    %c1_i32_360 = arith.constant 1 : i32
    %2041 = tpu.dynamic_rotate %2040 by %c1_i32_360 dim 1 : vector<16x128xf32>, i32 -> vector<16x128xf32>
    %cst_361 = arith.constant 0.000000e+00 : f32
    %2042 = vector.broadcast %cst_361 : f32 to vector<16x128xf32>
    %2043 = arith.select %7, %2041, %2042 : vector<16x128xi1>, vector<16x128xf32>
    %c330 = arith.constant 330 : index
    %2044 = memref.load %arg1[%c330] : memref<486xf32, #tpu.memory_space<smem>>
    %2045 = vector.broadcast %2044 : f32 to vector<16x128xf32>
    %2046 = arith.mulf %2045, %2043 : vector<16x128xf32>
    %2047 = arith.addf %2027, %2046 : vector<16x128xf32>
    %c331 = arith.constant 331 : index
    %2048 = memref.load %arg1[%c331] : memref<486xf32, #tpu.memory_space<smem>>
    %2049 = vector.broadcast %2048 : f32 to vector<16x128xf32>
    %2050 = arith.mulf %2049, %2043 : vector<16x128xf32>
    %2051 = arith.addf %2031, %2050 : vector<16x128xf32>
    %c332 = arith.constant 332 : index
    %2052 = memref.load %arg1[%c332] : memref<486xf32, #tpu.memory_space<smem>>
    %2053 = vector.broadcast %2052 : f32 to vector<16x128xf32>
    %2054 = arith.mulf %2053, %2043 : vector<16x128xf32>
    %2055 = arith.addf %2035, %2054 : vector<16x128xf32>
    %c339 = arith.constant 339 : index
    %2056 = memref.load %arg1[%c339] : memref<486xf32, #tpu.memory_space<smem>>
    %2057 = vector.broadcast %2056 : f32 to vector<16x128xf32>
    %2058 = arith.mulf %2057, %2040 : vector<16x128xf32>
    %2059 = arith.addf %2047, %2058 : vector<16x128xf32>
    %c340 = arith.constant 340 : index
    %2060 = memref.load %arg1[%c340] : memref<486xf32, #tpu.memory_space<smem>>
    %2061 = vector.broadcast %2060 : f32 to vector<16x128xf32>
    %2062 = arith.mulf %2061, %2040 : vector<16x128xf32>
    %2063 = arith.addf %2051, %2062 : vector<16x128xf32>
    %c341 = arith.constant 341 : index
    %2064 = memref.load %arg1[%c341] : memref<486xf32, #tpu.memory_space<smem>>
    %2065 = vector.broadcast %2064 : f32 to vector<16x128xf32>
    %2066 = arith.mulf %2065, %2040 : vector<16x128xf32>
    %2067 = arith.addf %2055, %2066 : vector<16x128xf32>
    %c127_i32_362 = arith.constant 127 : i32
    %2068 = tpu.dynamic_rotate %2040 by %c127_i32_362 dim 1 : vector<16x128xf32>, i32 -> vector<16x128xf32>
    %cst_363 = arith.constant 0.000000e+00 : f32
    %2069 = vector.broadcast %cst_363 : f32 to vector<16x128xf32>
    %2070 = arith.select %9, %2068, %2069 : vector<16x128xi1>, vector<16x128xf32>
    %c348 = arith.constant 348 : index
    %2071 = memref.load %arg1[%c348] : memref<486xf32, #tpu.memory_space<smem>>
    %2072 = vector.broadcast %2071 : f32 to vector<16x128xf32>
    %2073 = arith.mulf %2072, %2070 : vector<16x128xf32>
    %2074 = arith.addf %2059, %2073 : vector<16x128xf32>
    %c349 = arith.constant 349 : index
    %2075 = memref.load %arg1[%c349] : memref<486xf32, #tpu.memory_space<smem>>
    %2076 = vector.broadcast %2075 : f32 to vector<16x128xf32>
    %2077 = arith.mulf %2076, %2070 : vector<16x128xf32>
    %2078 = arith.addf %2063, %2077 : vector<16x128xf32>
    %c350 = arith.constant 350 : index
    %2079 = memref.load %arg1[%c350] : memref<486xf32, #tpu.memory_space<smem>>
    %2080 = vector.broadcast %2079 : f32 to vector<16x128xf32>
    %2081 = arith.mulf %2080, %2070 : vector<16x128xf32>
    %2082 = arith.addf %2067, %2081 : vector<16x128xf32>
    %c1_i32_364 = arith.constant 1 : i32
    %2083 = tpu.dynamic_rotate %2037 by %c1_i32_364 dim 1 : vector<16x128xf32>, i32 -> vector<16x128xf32>
    %cst_365 = arith.constant 0.000000e+00 : f32
    %2084 = vector.broadcast %cst_365 : f32 to vector<16x128xf32>
    %2085 = arith.select %7, %2083, %2084 : vector<16x128xi1>, vector<16x128xf32>
    %c357 = arith.constant 357 : index
    %2086 = memref.load %arg1[%c357] : memref<486xf32, #tpu.memory_space<smem>>
    %2087 = vector.broadcast %2086 : f32 to vector<16x128xf32>
    %2088 = arith.mulf %2087, %2085 : vector<16x128xf32>
    %2089 = arith.addf %2074, %2088 : vector<16x128xf32>
    %c358 = arith.constant 358 : index
    %2090 = memref.load %arg1[%c358] : memref<486xf32, #tpu.memory_space<smem>>
    %2091 = vector.broadcast %2090 : f32 to vector<16x128xf32>
    %2092 = arith.mulf %2091, %2085 : vector<16x128xf32>
    %2093 = arith.addf %2078, %2092 : vector<16x128xf32>
    %c359 = arith.constant 359 : index
    %2094 = memref.load %arg1[%c359] : memref<486xf32, #tpu.memory_space<smem>>
    %2095 = vector.broadcast %2094 : f32 to vector<16x128xf32>
    %2096 = arith.mulf %2095, %2085 : vector<16x128xf32>
    %2097 = arith.addf %2082, %2096 : vector<16x128xf32>
    %c366 = arith.constant 366 : index
    %2098 = memref.load %arg1[%c366] : memref<486xf32, #tpu.memory_space<smem>>
    %2099 = vector.broadcast %2098 : f32 to vector<16x128xf32>
    %2100 = arith.mulf %2099, %2037 : vector<16x128xf32>
    %2101 = arith.addf %2089, %2100 : vector<16x128xf32>
    %c367 = arith.constant 367 : index
    %2102 = memref.load %arg1[%c367] : memref<486xf32, #tpu.memory_space<smem>>
    %2103 = vector.broadcast %2102 : f32 to vector<16x128xf32>
    %2104 = arith.mulf %2103, %2037 : vector<16x128xf32>
    %2105 = arith.addf %2093, %2104 : vector<16x128xf32>
    %c368 = arith.constant 368 : index
    %2106 = memref.load %arg1[%c368] : memref<486xf32, #tpu.memory_space<smem>>
    %2107 = vector.broadcast %2106 : f32 to vector<16x128xf32>
    %2108 = arith.mulf %2107, %2037 : vector<16x128xf32>
    %2109 = arith.addf %2097, %2108 : vector<16x128xf32>
    %c127_i32_366 = arith.constant 127 : i32
    %2110 = tpu.dynamic_rotate %2037 by %c127_i32_366 dim 1 : vector<16x128xf32>, i32 -> vector<16x128xf32>
    %cst_367 = arith.constant 0.000000e+00 : f32
    %2111 = vector.broadcast %cst_367 : f32 to vector<16x128xf32>
    %2112 = arith.select %9, %2110, %2111 : vector<16x128xi1>, vector<16x128xf32>
    %c375 = arith.constant 375 : index
    %2113 = memref.load %arg1[%c375] : memref<486xf32, #tpu.memory_space<smem>>
    %2114 = vector.broadcast %2113 : f32 to vector<16x128xf32>
    %2115 = arith.mulf %2114, %2112 : vector<16x128xf32>
    %2116 = arith.addf %2101, %2115 : vector<16x128xf32>
    %c376 = arith.constant 376 : index
    %2117 = memref.load %arg1[%c376] : memref<486xf32, #tpu.memory_space<smem>>
    %2118 = vector.broadcast %2117 : f32 to vector<16x128xf32>
    %2119 = arith.mulf %2118, %2112 : vector<16x128xf32>
    %2120 = arith.addf %2105, %2119 : vector<16x128xf32>
    %c377 = arith.constant 377 : index
    %2121 = memref.load %arg1[%c377] : memref<486xf32, #tpu.memory_space<smem>>
    %2122 = vector.broadcast %2121 : f32 to vector<16x128xf32>
    %2123 = arith.mulf %2122, %2112 : vector<16x128xf32>
    %2124 = arith.addf %2109, %2123 : vector<16x128xf32>
    %c15_i32_368 = arith.constant 15 : i32
    %2125 = tpu.dynamic_rotate %2037 by %c15_i32_368 dim 0 : vector<16x128xf32>, i32 -> vector<16x128xf32>
    %cst_369 = arith.constant 0.000000e+00 : f32
    %2126 = vector.broadcast %cst_369 : f32 to vector<16x128xf32>
    %2127 = arith.select %5, %2125, %2126 : vector<16x128xi1>, vector<16x128xf32>
    %c1_i32_370 = arith.constant 1 : i32
    %2128 = tpu.dynamic_rotate %2127 by %c1_i32_370 dim 1 : vector<16x128xf32>, i32 -> vector<16x128xf32>
    %cst_371 = arith.constant 0.000000e+00 : f32
    %2129 = vector.broadcast %cst_371 : f32 to vector<16x128xf32>
    %2130 = arith.select %7, %2128, %2129 : vector<16x128xi1>, vector<16x128xf32>
    %c384 = arith.constant 384 : index
    %2131 = memref.load %arg1[%c384] : memref<486xf32, #tpu.memory_space<smem>>
    %2132 = vector.broadcast %2131 : f32 to vector<16x128xf32>
    %2133 = arith.mulf %2132, %2130 : vector<16x128xf32>
    %2134 = arith.addf %2116, %2133 : vector<16x128xf32>
    %c385 = arith.constant 385 : index
    %2135 = memref.load %arg1[%c385] : memref<486xf32, #tpu.memory_space<smem>>
    %2136 = vector.broadcast %2135 : f32 to vector<16x128xf32>
    %2137 = arith.mulf %2136, %2130 : vector<16x128xf32>
    %2138 = arith.addf %2120, %2137 : vector<16x128xf32>
    %c386 = arith.constant 386 : index
    %2139 = memref.load %arg1[%c386] : memref<486xf32, #tpu.memory_space<smem>>
    %2140 = vector.broadcast %2139 : f32 to vector<16x128xf32>
    %2141 = arith.mulf %2140, %2130 : vector<16x128xf32>
    %2142 = arith.addf %2124, %2141 : vector<16x128xf32>
    %c393 = arith.constant 393 : index
    %2143 = memref.load %arg1[%c393] : memref<486xf32, #tpu.memory_space<smem>>
    %2144 = vector.broadcast %2143 : f32 to vector<16x128xf32>
    %2145 = arith.mulf %2144, %2127 : vector<16x128xf32>
    %2146 = arith.addf %2134, %2145 : vector<16x128xf32>
    %c394 = arith.constant 394 : index
    %2147 = memref.load %arg1[%c394] : memref<486xf32, #tpu.memory_space<smem>>
    %2148 = vector.broadcast %2147 : f32 to vector<16x128xf32>
    %2149 = arith.mulf %2148, %2127 : vector<16x128xf32>
    %2150 = arith.addf %2138, %2149 : vector<16x128xf32>
    %c395 = arith.constant 395 : index
    %2151 = memref.load %arg1[%c395] : memref<486xf32, #tpu.memory_space<smem>>
    %2152 = vector.broadcast %2151 : f32 to vector<16x128xf32>
    %2153 = arith.mulf %2152, %2127 : vector<16x128xf32>
    %2154 = arith.addf %2142, %2153 : vector<16x128xf32>
    %c127_i32_372 = arith.constant 127 : i32
    %2155 = tpu.dynamic_rotate %2127 by %c127_i32_372 dim 1 : vector<16x128xf32>, i32 -> vector<16x128xf32>
    %cst_373 = arith.constant 0.000000e+00 : f32
    %2156 = vector.broadcast %cst_373 : f32 to vector<16x128xf32>
    %2157 = arith.select %9, %2155, %2156 : vector<16x128xi1>, vector<16x128xf32>
    %c402 = arith.constant 402 : index
    %2158 = memref.load %arg1[%c402] : memref<486xf32, #tpu.memory_space<smem>>
    %2159 = vector.broadcast %2158 : f32 to vector<16x128xf32>
    %2160 = arith.mulf %2159, %2157 : vector<16x128xf32>
    %2161 = arith.addf %2146, %2160 : vector<16x128xf32>
    %c403 = arith.constant 403 : index
    %2162 = memref.load %arg1[%c403] : memref<486xf32, #tpu.memory_space<smem>>
    %2163 = vector.broadcast %2162 : f32 to vector<16x128xf32>
    %2164 = arith.mulf %2163, %2157 : vector<16x128xf32>
    %2165 = arith.addf %2150, %2164 : vector<16x128xf32>
    %c404 = arith.constant 404 : index
    %2166 = memref.load %arg1[%c404] : memref<486xf32, #tpu.memory_space<smem>>
    %2167 = vector.broadcast %2166 : f32 to vector<16x128xf32>
    %2168 = arith.mulf %2167, %2157 : vector<16x128xf32>
    %2169 = arith.addf %2154, %2168 : vector<16x128xf32>
    %cst_374 = arith.constant 5.000000e-01 : f32
    %2170 = vector.broadcast %cst_374 : f32 to vector<16x128xf32>
    %2171 = arith.mulf %2170, %2161 : vector<16x128xf32>
    %2172 = math.tanh %2171 : vector<16x128xf32>
    %cst_375 = arith.constant 5.000000e-01 : f32
    %2173 = vector.broadcast %cst_375 : f32 to vector<16x128xf32>
    %2174 = arith.mulf %2173, %2172 : vector<16x128xf32>
    %cst_376 = arith.constant 5.000000e-01 : f32
    %2175 = vector.broadcast %cst_376 : f32 to vector<16x128xf32>
    %2176 = arith.addf %2174, %2175 : vector<16x128xf32>
    %c0_377 = arith.constant 0 : index
    %c0_378 = arith.constant 0 : index
    %c0_379 = arith.constant 0 : index
    %2177 = vector.load %arg5[%c0_377, %c0_378, %c0_379] : memref<3x16x128xf32, #tpu.memory_space<vmem>>, vector<1x16x128xf32>
    %2178 = vector.shape_cast %2177 : vector<1x16x128xf32> to vector<16x128xf32>
    %2179 = vector.shape_cast %2176 : vector<16x128xf32> to vector<1x16x128xf32>
    tpu.vector_store %arg5[%c0_377, %c0_378, %c0_379], %2179 {strides = array<i32>} : memref<3x16x128xf32, #tpu.memory_space<vmem>>, vector<1x16x128xf32>,
    %cst_380 = arith.constant 5.000000e-01 : f32
    %2180 = vector.broadcast %cst_380 : f32 to vector<16x128xf32>
    %2181 = arith.mulf %2180, %2165 : vector<16x128xf32>
    %2182 = math.tanh %2181 : vector<16x128xf32>
    %cst_381 = arith.constant 5.000000e-01 : f32
    %2183 = vector.broadcast %cst_381 : f32 to vector<16x128xf32>
    %2184 = arith.mulf %2183, %2182 : vector<16x128xf32>
    %cst_382 = arith.constant 5.000000e-01 : f32
    %2185 = vector.broadcast %cst_382 : f32 to vector<16x128xf32>
    %2186 = arith.addf %2184, %2185 : vector<16x128xf32>
    %c1_383 = arith.constant 1 : index
    %c0_384 = arith.constant 0 : index
    %c0_385 = arith.constant 0 : index
    %2187 = vector.load %arg5[%c1_383, %c0_384, %c0_385] : memref<3x16x128xf32, #tpu.memory_space<vmem>>, vector<1x16x128xf32>
    %2188 = vector.shape_cast %2187 : vector<1x16x128xf32> to vector<16x128xf32>
    %2189 = vector.shape_cast %2186 : vector<16x128xf32> to vector<1x16x128xf32>
    tpu.vector_store %arg5[%c1_383, %c0_384, %c0_385], %2189 {strides = array<i32>} : memref<3x16x128xf32, #tpu.memory_space<vmem>>, vector<1x16x128xf32>,
    %cst_386 = arith.constant 5.000000e-01 : f32
    %2190 = vector.broadcast %cst_386 : f32 to vector<16x128xf32>
    %2191 = arith.mulf %2190, %2169 : vector<16x128xf32>
    %2192 = math.tanh %2191 : vector<16x128xf32>
    %cst_387 = arith.constant 5.000000e-01 : f32
    %2193 = vector.broadcast %cst_387 : f32 to vector<16x128xf32>
    %2194 = arith.mulf %2193, %2192 : vector<16x128xf32>
    %cst_388 = arith.constant 5.000000e-01 : f32
    %2195 = vector.broadcast %cst_388 : f32 to vector<16x128xf32>
    %2196 = arith.addf %2194, %2195 : vector<16x128xf32>
    %c2_389 = arith.constant 2 : index
    %c0_390 = arith.constant 0 : index
    %c0_391 = arith.constant 0 : index
    %2197 = vector.load %arg5[%c2_389, %c0_390, %c0_391] : memref<3x16x128xf32, #tpu.memory_space<vmem>>, vector<1x16x128xf32>
    %2198 = vector.shape_cast %2197 : vector<1x16x128xf32> to vector<16x128xf32>
    %2199 = vector.shape_cast %2196 : vector<16x128xf32> to vector<1x16x128xf32>
    tpu.vector_store %arg5[%c2_389, %c0_390, %c0_391], %2199 {strides = array<i32>} : memref<3x16x128xf32, #tpu.memory_space<vmem>>, vector<1x16x128xf32>,
    %c15_392 = arith.constant 15 : index
    %2200 = memref.load %arg2[%c15_392] : memref<18xf32, #tpu.memory_space<smem>>
    %2201 = vector.broadcast %2200 : f32 to vector<16x128xf32>
    %c16_393 = arith.constant 16 : index
    %2202 = memref.load %arg2[%c16_393] : memref<18xf32, #tpu.memory_space<smem>>
    %2203 = vector.broadcast %2202 : f32 to vector<16x128xf32>
    %c17_394 = arith.constant 17 : index
    %2204 = memref.load %arg2[%c17_394] : memref<18xf32, #tpu.memory_space<smem>>
    %2205 = vector.broadcast %2204 : f32 to vector<16x128xf32>
    %c0_395 = arith.constant 0 : index
    %c0_396 = arith.constant 0 : index
    %c0_397 = arith.constant 0 : index
    %2206 = vector.load %arg5[%c0_395, %c0_396, %c0_397] : memref<3x16x128xf32, #tpu.memory_space<vmem>>, vector<1x16x128xf32>
    %2207 = vector.shape_cast %2206 : vector<1x16x128xf32> to vector<16x128xf32>
    %c1_i32_398 = arith.constant 1 : i32
    %2208 = tpu.dynamic_rotate %2207 by %c1_i32_398 dim 0 : vector<16x128xf32>, i32 -> vector<16x128xf32>
    %cst_399 = arith.constant 0.000000e+00 : f32
    %2209 = vector.broadcast %cst_399 : f32 to vector<16x128xf32>
    %2210 = arith.select %3, %2208, %2209 : vector<16x128xi1>, vector<16x128xf32>
    %c1_i32_400 = arith.constant 1 : i32
    %2211 = tpu.dynamic_rotate %2210 by %c1_i32_400 dim 1 : vector<16x128xf32>, i32 -> vector<16x128xf32>
    %cst_401 = arith.constant 0.000000e+00 : f32
    %2212 = vector.broadcast %cst_401 : f32 to vector<16x128xf32>
    %2213 = arith.select %7, %2211, %2212 : vector<16x128xi1>, vector<16x128xf32>
    %c405 = arith.constant 405 : index
    %2214 = memref.load %arg1[%c405] : memref<486xf32, #tpu.memory_space<smem>>
    %2215 = vector.broadcast %2214 : f32 to vector<16x128xf32>
    %2216 = arith.mulf %2215, %2213 : vector<16x128xf32>
    %2217 = arith.addf %2201, %2216 : vector<16x128xf32>
    %c406 = arith.constant 406 : index
    %2218 = memref.load %arg1[%c406] : memref<486xf32, #tpu.memory_space<smem>>
    %2219 = vector.broadcast %2218 : f32 to vector<16x128xf32>
    %2220 = arith.mulf %2219, %2213 : vector<16x128xf32>
    %2221 = arith.addf %2203, %2220 : vector<16x128xf32>
    %c407 = arith.constant 407 : index
    %2222 = memref.load %arg1[%c407] : memref<486xf32, #tpu.memory_space<smem>>
    %2223 = vector.broadcast %2222 : f32 to vector<16x128xf32>
    %2224 = arith.mulf %2223, %2213 : vector<16x128xf32>
    %2225 = arith.addf %2205, %2224 : vector<16x128xf32>
    %c414 = arith.constant 414 : index
    %2226 = memref.load %arg1[%c414] : memref<486xf32, #tpu.memory_space<smem>>
    %2227 = vector.broadcast %2226 : f32 to vector<16x128xf32>
    %2228 = arith.mulf %2227, %2210 : vector<16x128xf32>
    %2229 = arith.addf %2217, %2228 : vector<16x128xf32>
    %c415 = arith.constant 415 : index
    %2230 = memref.load %arg1[%c415] : memref<486xf32, #tpu.memory_space<smem>>
    %2231 = vector.broadcast %2230 : f32 to vector<16x128xf32>
    %2232 = arith.mulf %2231, %2210 : vector<16x128xf32>
    %2233 = arith.addf %2221, %2232 : vector<16x128xf32>
    %c416 = arith.constant 416 : index
    %2234 = memref.load %arg1[%c416] : memref<486xf32, #tpu.memory_space<smem>>
    %2235 = vector.broadcast %2234 : f32 to vector<16x128xf32>
    %2236 = arith.mulf %2235, %2210 : vector<16x128xf32>
    %2237 = arith.addf %2225, %2236 : vector<16x128xf32>
    %c127_i32_402 = arith.constant 127 : i32
    %2238 = tpu.dynamic_rotate %2210 by %c127_i32_402 dim 1 : vector<16x128xf32>, i32 -> vector<16x128xf32>
    %cst_403 = arith.constant 0.000000e+00 : f32
    %2239 = vector.broadcast %cst_403 : f32 to vector<16x128xf32>
    %2240 = arith.select %9, %2238, %2239 : vector<16x128xi1>, vector<16x128xf32>
    %c423 = arith.constant 423 : index
    %2241 = memref.load %arg1[%c423] : memref<486xf32, #tpu.memory_space<smem>>
    %2242 = vector.broadcast %2241 : f32 to vector<16x128xf32>
    %2243 = arith.mulf %2242, %2240 : vector<16x128xf32>
    %2244 = arith.addf %2229, %2243 : vector<16x128xf32>
    %c424 = arith.constant 424 : index
    %2245 = memref.load %arg1[%c424] : memref<486xf32, #tpu.memory_space<smem>>
    %2246 = vector.broadcast %2245 : f32 to vector<16x128xf32>
    %2247 = arith.mulf %2246, %2240 : vector<16x128xf32>
    %2248 = arith.addf %2233, %2247 : vector<16x128xf32>
    %c425 = arith.constant 425 : index
    %2249 = memref.load %arg1[%c425] : memref<486xf32, #tpu.memory_space<smem>>
    %2250 = vector.broadcast %2249 : f32 to vector<16x128xf32>
    %2251 = arith.mulf %2250, %2240 : vector<16x128xf32>
    %2252 = arith.addf %2237, %2251 : vector<16x128xf32>
    %c1_i32_404 = arith.constant 1 : i32
    %2253 = tpu.dynamic_rotate %2207 by %c1_i32_404 dim 1 : vector<16x128xf32>, i32 -> vector<16x128xf32>
    %cst_405 = arith.constant 0.000000e+00 : f32
    %2254 = vector.broadcast %cst_405 : f32 to vector<16x128xf32>
    %2255 = arith.select %7, %2253, %2254 : vector<16x128xi1>, vector<16x128xf32>
    %c432 = arith.constant 432 : index
    %2256 = memref.load %arg1[%c432] : memref<486xf32, #tpu.memory_space<smem>>
    %2257 = vector.broadcast %2256 : f32 to vector<16x128xf32>
    %2258 = arith.mulf %2257, %2255 : vector<16x128xf32>
    %2259 = arith.addf %2244, %2258 : vector<16x128xf32>
    %c433 = arith.constant 433 : index
    %2260 = memref.load %arg1[%c433] : memref<486xf32, #tpu.memory_space<smem>>
    %2261 = vector.broadcast %2260 : f32 to vector<16x128xf32>
    %2262 = arith.mulf %2261, %2255 : vector<16x128xf32>
    %2263 = arith.addf %2248, %2262 : vector<16x128xf32>
    %c434 = arith.constant 434 : index
    %2264 = memref.load %arg1[%c434] : memref<486xf32, #tpu.memory_space<smem>>
    %2265 = vector.broadcast %2264 : f32 to vector<16x128xf32>
    %2266 = arith.mulf %2265, %2255 : vector<16x128xf32>
    %2267 = arith.addf %2252, %2266 : vector<16x128xf32>
    %c441 = arith.constant 441 : index
    %2268 = memref.load %arg1[%c441] : memref<486xf32, #tpu.memory_space<smem>>
    %2269 = vector.broadcast %2268 : f32 to vector<16x128xf32>
    %2270 = arith.mulf %2269, %2207 : vector<16x128xf32>
    %2271 = arith.addf %2259, %2270 : vector<16x128xf32>
    %c442 = arith.constant 442 : index
    %2272 = memref.load %arg1[%c442] : memref<486xf32, #tpu.memory_space<smem>>
    %2273 = vector.broadcast %2272 : f32 to vector<16x128xf32>
    %2274 = arith.mulf %2273, %2207 : vector<16x128xf32>
    %2275 = arith.addf %2263, %2274 : vector<16x128xf32>
    %c443 = arith.constant 443 : index
    %2276 = memref.load %arg1[%c443] : memref<486xf32, #tpu.memory_space<smem>>
    %2277 = vector.broadcast %2276 : f32 to vector<16x128xf32>
    %2278 = arith.mulf %2277, %2207 : vector<16x128xf32>
    %2279 = arith.addf %2267, %2278 : vector<16x128xf32>
    %c127_i32_406 = arith.constant 127 : i32
    %2280 = tpu.dynamic_rotate %2207 by %c127_i32_406 dim 1 : vector<16x128xf32>, i32 -> vector<16x128xf32>
    %cst_407 = arith.constant 0.000000e+00 : f32
    %2281 = vector.broadcast %cst_407 : f32 to vector<16x128xf32>
    %2282 = arith.select %9, %2280, %2281 : vector<16x128xi1>, vector<16x128xf32>
    %c450 = arith.constant 450 : index
    %2283 = memref.load %arg1[%c450] : memref<486xf32, #tpu.memory_space<smem>>
    %2284 = vector.broadcast %2283 : f32 to vector<16x128xf32>
    %2285 = arith.mulf %2284, %2282 : vector<16x128xf32>
    %2286 = arith.addf %2271, %2285 : vector<16x128xf32>
    %c451 = arith.constant 451 : index
    %2287 = memref.load %arg1[%c451] : memref<486xf32, #tpu.memory_space<smem>>
    %2288 = vector.broadcast %2287 : f32 to vector<16x128xf32>
    %2289 = arith.mulf %2288, %2282 : vector<16x128xf32>
    %2290 = arith.addf %2275, %2289 : vector<16x128xf32>
    %c452 = arith.constant 452 : index
    %2291 = memref.load %arg1[%c452] : memref<486xf32, #tpu.memory_space<smem>>
    %2292 = vector.broadcast %2291 : f32 to vector<16x128xf32>
    %2293 = arith.mulf %2292, %2282 : vector<16x128xf32>
    %2294 = arith.addf %2279, %2293 : vector<16x128xf32>
    %c15_i32_408 = arith.constant 15 : i32
    %2295 = tpu.dynamic_rotate %2207 by %c15_i32_408 dim 0 : vector<16x128xf32>, i32 -> vector<16x128xf32>
    %cst_409 = arith.constant 0.000000e+00 : f32
    %2296 = vector.broadcast %cst_409 : f32 to vector<16x128xf32>
    %2297 = arith.select %5, %2295, %2296 : vector<16x128xi1>, vector<16x128xf32>
    %c1_i32_410 = arith.constant 1 : i32
    %2298 = tpu.dynamic_rotate %2297 by %c1_i32_410 dim 1 : vector<16x128xf32>, i32 -> vector<16x128xf32>
    %cst_411 = arith.constant 0.000000e+00 : f32
    %2299 = vector.broadcast %cst_411 : f32 to vector<16x128xf32>
    %2300 = arith.select %7, %2298, %2299 : vector<16x128xi1>, vector<16x128xf32>
    %c459 = arith.constant 459 : index
    %2301 = memref.load %arg1[%c459] : memref<486xf32, #tpu.memory_space<smem>>
    %2302 = vector.broadcast %2301 : f32 to vector<16x128xf32>
    %2303 = arith.mulf %2302, %2300 : vector<16x128xf32>
    %2304 = arith.addf %2286, %2303 : vector<16x128xf32>
    %c460 = arith.constant 460 : index
    %2305 = memref.load %arg1[%c460] : memref<486xf32, #tpu.memory_space<smem>>
    %2306 = vector.broadcast %2305 : f32 to vector<16x128xf32>
    %2307 = arith.mulf %2306, %2300 : vector<16x128xf32>
    %2308 = arith.addf %2290, %2307 : vector<16x128xf32>
    %c461 = arith.constant 461 : index
    %2309 = memref.load %arg1[%c461] : memref<486xf32, #tpu.memory_space<smem>>
    %2310 = vector.broadcast %2309 : f32 to vector<16x128xf32>
    %2311 = arith.mulf %2310, %2300 : vector<16x128xf32>
    %2312 = arith.addf %2294, %2311 : vector<16x128xf32>
    %c468 = arith.constant 468 : index
    %2313 = memref.load %arg1[%c468] : memref<486xf32, #tpu.memory_space<smem>>
    %2314 = vector.broadcast %2313 : f32 to vector<16x128xf32>
    %2315 = arith.mulf %2314, %2297 : vector<16x128xf32>
    %2316 = arith.addf %2304, %2315 : vector<16x128xf32>
    %c469 = arith.constant 469 : index
    %2317 = memref.load %arg1[%c469] : memref<486xf32, #tpu.memory_space<smem>>
    %2318 = vector.broadcast %2317 : f32 to vector<16x128xf32>
    %2319 = arith.mulf %2318, %2297 : vector<16x128xf32>
    %2320 = arith.addf %2308, %2319 : vector<16x128xf32>
    %c470 = arith.constant 470 : index
    %2321 = memref.load %arg1[%c470] : memref<486xf32, #tpu.memory_space<smem>>
    %2322 = vector.broadcast %2321 : f32 to vector<16x128xf32>
    %2323 = arith.mulf %2322, %2297 : vector<16x128xf32>
    %2324 = arith.addf %2312, %2323 : vector<16x128xf32>
    %c127_i32_412 = arith.constant 127 : i32
    %2325 = tpu.dynamic_rotate %2297 by %c127_i32_412 dim 1 : vector<16x128xf32>, i32 -> vector<16x128xf32>
    %cst_413 = arith.constant 0.000000e+00 : f32
    %2326 = vector.broadcast %cst_413 : f32 to vector<16x128xf32>
    %2327 = arith.select %9, %2325, %2326 : vector<16x128xi1>, vector<16x128xf32>
    %c477 = arith.constant 477 : index
    %2328 = memref.load %arg1[%c477] : memref<486xf32, #tpu.memory_space<smem>>
    %2329 = vector.broadcast %2328 : f32 to vector<16x128xf32>
    %2330 = arith.mulf %2329, %2327 : vector<16x128xf32>
    %2331 = arith.addf %2316, %2330 : vector<16x128xf32>
    %c478 = arith.constant 478 : index
    %2332 = memref.load %arg1[%c478] : memref<486xf32, #tpu.memory_space<smem>>
    %2333 = vector.broadcast %2332 : f32 to vector<16x128xf32>
    %2334 = arith.mulf %2333, %2327 : vector<16x128xf32>
    %2335 = arith.addf %2320, %2334 : vector<16x128xf32>
    %c479 = arith.constant 479 : index
    %2336 = memref.load %arg1[%c479] : memref<486xf32, #tpu.memory_space<smem>>
    %2337 = vector.broadcast %2336 : f32 to vector<16x128xf32>
    %2338 = arith.mulf %2337, %2327 : vector<16x128xf32>
    %2339 = arith.addf %2324, %2338 : vector<16x128xf32>
    %c1_414 = arith.constant 1 : index
    %c0_415 = arith.constant 0 : index
    %c0_416 = arith.constant 0 : index
    %2340 = vector.load %arg5[%c1_414, %c0_415, %c0_416] : memref<3x16x128xf32, #tpu.memory_space<vmem>>, vector<1x16x128xf32>
    %2341 = vector.shape_cast %2340 : vector<1x16x128xf32> to vector<16x128xf32>
    %c1_i32_417 = arith.constant 1 : i32
    %2342 = tpu.dynamic_rotate %2341 by %c1_i32_417 dim 0 : vector<16x128xf32>, i32 -> vector<16x128xf32>
    %cst_418 = arith.constant 0.000000e+00 : f32
    %2343 = vector.broadcast %cst_418 : f32 to vector<16x128xf32>
    %2344 = arith.select %3, %2342, %2343 : vector<16x128xi1>, vector<16x128xf32>
    %c1_i32_419 = arith.constant 1 : i32
    %2345 = tpu.dynamic_rotate %2344 by %c1_i32_419 dim 1 : vector<16x128xf32>, i32 -> vector<16x128xf32>
    %cst_420 = arith.constant 0.000000e+00 : f32
    %2346 = vector.broadcast %cst_420 : f32 to vector<16x128xf32>
    %2347 = arith.select %7, %2345, %2346 : vector<16x128xi1>, vector<16x128xf32>
    %c408 = arith.constant 408 : index
    %2348 = memref.load %arg1[%c408] : memref<486xf32, #tpu.memory_space<smem>>
    %2349 = vector.broadcast %2348 : f32 to vector<16x128xf32>
    %2350 = arith.mulf %2349, %2347 : vector<16x128xf32>
    %2351 = arith.addf %2331, %2350 : vector<16x128xf32>
    %c409 = arith.constant 409 : index
    %2352 = memref.load %arg1[%c409] : memref<486xf32, #tpu.memory_space<smem>>
    %2353 = vector.broadcast %2352 : f32 to vector<16x128xf32>
    %2354 = arith.mulf %2353, %2347 : vector<16x128xf32>
    %2355 = arith.addf %2335, %2354 : vector<16x128xf32>
    %c410 = arith.constant 410 : index
    %2356 = memref.load %arg1[%c410] : memref<486xf32, #tpu.memory_space<smem>>
    %2357 = vector.broadcast %2356 : f32 to vector<16x128xf32>
    %2358 = arith.mulf %2357, %2347 : vector<16x128xf32>
    %2359 = arith.addf %2339, %2358 : vector<16x128xf32>
    %c417 = arith.constant 417 : index
    %2360 = memref.load %arg1[%c417] : memref<486xf32, #tpu.memory_space<smem>>
    %2361 = vector.broadcast %2360 : f32 to vector<16x128xf32>
    %2362 = arith.mulf %2361, %2344 : vector<16x128xf32>
    %2363 = arith.addf %2351, %2362 : vector<16x128xf32>
    %c418 = arith.constant 418 : index
    %2364 = memref.load %arg1[%c418] : memref<486xf32, #tpu.memory_space<smem>>
    %2365 = vector.broadcast %2364 : f32 to vector<16x128xf32>
    %2366 = arith.mulf %2365, %2344 : vector<16x128xf32>
    %2367 = arith.addf %2355, %2366 : vector<16x128xf32>
    %c419 = arith.constant 419 : index
    %2368 = memref.load %arg1[%c419] : memref<486xf32, #tpu.memory_space<smem>>
    %2369 = vector.broadcast %2368 : f32 to vector<16x128xf32>
    %2370 = arith.mulf %2369, %2344 : vector<16x128xf32>
    %2371 = arith.addf %2359, %2370 : vector<16x128xf32>
    %c127_i32_421 = arith.constant 127 : i32
    %2372 = tpu.dynamic_rotate %2344 by %c127_i32_421 dim 1 : vector<16x128xf32>, i32 -> vector<16x128xf32>
    %cst_422 = arith.constant 0.000000e+00 : f32
    %2373 = vector.broadcast %cst_422 : f32 to vector<16x128xf32>
    %2374 = arith.select %9, %2372, %2373 : vector<16x128xi1>, vector<16x128xf32>
    %c426 = arith.constant 426 : index
    %2375 = memref.load %arg1[%c426] : memref<486xf32, #tpu.memory_space<smem>>
    %2376 = vector.broadcast %2375 : f32 to vector<16x128xf32>
    %2377 = arith.mulf %2376, %2374 : vector<16x128xf32>
    %2378 = arith.addf %2363, %2377 : vector<16x128xf32>
    %c427 = arith.constant 427 : index
    %2379 = memref.load %arg1[%c427] : memref<486xf32, #tpu.memory_space<smem>>
    %2380 = vector.broadcast %2379 : f32 to vector<16x128xf32>
    %2381 = arith.mulf %2380, %2374 : vector<16x128xf32>
    %2382 = arith.addf %2367, %2381 : vector<16x128xf32>
    %c428 = arith.constant 428 : index
    %2383 = memref.load %arg1[%c428] : memref<486xf32, #tpu.memory_space<smem>>
    %2384 = vector.broadcast %2383 : f32 to vector<16x128xf32>
    %2385 = arith.mulf %2384, %2374 : vector<16x128xf32>
    %2386 = arith.addf %2371, %2385 : vector<16x128xf32>
    %c1_i32_423 = arith.constant 1 : i32
    %2387 = tpu.dynamic_rotate %2341 by %c1_i32_423 dim 1 : vector<16x128xf32>, i32 -> vector<16x128xf32>
    %cst_424 = arith.constant 0.000000e+00 : f32
    %2388 = vector.broadcast %cst_424 : f32 to vector<16x128xf32>
    %2389 = arith.select %7, %2387, %2388 : vector<16x128xi1>, vector<16x128xf32>
    %c435 = arith.constant 435 : index
    %2390 = memref.load %arg1[%c435] : memref<486xf32, #tpu.memory_space<smem>>
    %2391 = vector.broadcast %2390 : f32 to vector<16x128xf32>
    %2392 = arith.mulf %2391, %2389 : vector<16x128xf32>
    %2393 = arith.addf %2378, %2392 : vector<16x128xf32>
    %c436 = arith.constant 436 : index
    %2394 = memref.load %arg1[%c436] : memref<486xf32, #tpu.memory_space<smem>>
    %2395 = vector.broadcast %2394 : f32 to vector<16x128xf32>
    %2396 = arith.mulf %2395, %2389 : vector<16x128xf32>
    %2397 = arith.addf %2382, %2396 : vector<16x128xf32>
    %c437 = arith.constant 437 : index
    %2398 = memref.load %arg1[%c437] : memref<486xf32, #tpu.memory_space<smem>>
    %2399 = vector.broadcast %2398 : f32 to vector<16x128xf32>
    %2400 = arith.mulf %2399, %2389 : vector<16x128xf32>
    %2401 = arith.addf %2386, %2400 : vector<16x128xf32>
    %c444 = arith.constant 444 : index
    %2402 = memref.load %arg1[%c444] : memref<486xf32, #tpu.memory_space<smem>>
    %2403 = vector.broadcast %2402 : f32 to vector<16x128xf32>
    %2404 = arith.mulf %2403, %2341 : vector<16x128xf32>
    %2405 = arith.addf %2393, %2404 : vector<16x128xf32>
    %c445 = arith.constant 445 : index
    %2406 = memref.load %arg1[%c445] : memref<486xf32, #tpu.memory_space<smem>>
    %2407 = vector.broadcast %2406 : f32 to vector<16x128xf32>
    %2408 = arith.mulf %2407, %2341 : vector<16x128xf32>
    %2409 = arith.addf %2397, %2408 : vector<16x128xf32>
    %c446 = arith.constant 446 : index
    %2410 = memref.load %arg1[%c446] : memref<486xf32, #tpu.memory_space<smem>>
    %2411 = vector.broadcast %2410 : f32 to vector<16x128xf32>
    %2412 = arith.mulf %2411, %2341 : vector<16x128xf32>
    %2413 = arith.addf %2401, %2412 : vector<16x128xf32>
    %c127_i32_425 = arith.constant 127 : i32
    %2414 = tpu.dynamic_rotate %2341 by %c127_i32_425 dim 1 : vector<16x128xf32>, i32 -> vector<16x128xf32>
    %cst_426 = arith.constant 0.000000e+00 : f32
    %2415 = vector.broadcast %cst_426 : f32 to vector<16x128xf32>
    %2416 = arith.select %9, %2414, %2415 : vector<16x128xi1>, vector<16x128xf32>
    %c453 = arith.constant 453 : index
    %2417 = memref.load %arg1[%c453] : memref<486xf32, #tpu.memory_space<smem>>
    %2418 = vector.broadcast %2417 : f32 to vector<16x128xf32>
    %2419 = arith.mulf %2418, %2416 : vector<16x128xf32>
    %2420 = arith.addf %2405, %2419 : vector<16x128xf32>
    %c454 = arith.constant 454 : index
    %2421 = memref.load %arg1[%c454] : memref<486xf32, #tpu.memory_space<smem>>
    %2422 = vector.broadcast %2421 : f32 to vector<16x128xf32>
    %2423 = arith.mulf %2422, %2416 : vector<16x128xf32>
    %2424 = arith.addf %2409, %2423 : vector<16x128xf32>
    %c455 = arith.constant 455 : index
    %2425 = memref.load %arg1[%c455] : memref<486xf32, #tpu.memory_space<smem>>
    %2426 = vector.broadcast %2425 : f32 to vector<16x128xf32>
    %2427 = arith.mulf %2426, %2416 : vector<16x128xf32>
    %2428 = arith.addf %2413, %2427 : vector<16x128xf32>
    %c15_i32_427 = arith.constant 15 : i32
    %2429 = tpu.dynamic_rotate %2341 by %c15_i32_427 dim 0 : vector<16x128xf32>, i32 -> vector<16x128xf32>
    %cst_428 = arith.constant 0.000000e+00 : f32
    %2430 = vector.broadcast %cst_428 : f32 to vector<16x128xf32>
    %2431 = arith.select %5, %2429, %2430 : vector<16x128xi1>, vector<16x128xf32>
    %c1_i32_429 = arith.constant 1 : i32
    %2432 = tpu.dynamic_rotate %2431 by %c1_i32_429 dim 1 : vector<16x128xf32>, i32 -> vector<16x128xf32>
    %cst_430 = arith.constant 0.000000e+00 : f32
    %2433 = vector.broadcast %cst_430 : f32 to vector<16x128xf32>
    %2434 = arith.select %7, %2432, %2433 : vector<16x128xi1>, vector<16x128xf32>
    %c462 = arith.constant 462 : index
    %2435 = memref.load %arg1[%c462] : memref<486xf32, #tpu.memory_space<smem>>
    %2436 = vector.broadcast %2435 : f32 to vector<16x128xf32>
    %2437 = arith.mulf %2436, %2434 : vector<16x128xf32>
    %2438 = arith.addf %2420, %2437 : vector<16x128xf32>
    %c463 = arith.constant 463 : index
    %2439 = memref.load %arg1[%c463] : memref<486xf32, #tpu.memory_space<smem>>
    %2440 = vector.broadcast %2439 : f32 to vector<16x128xf32>
    %2441 = arith.mulf %2440, %2434 : vector<16x128xf32>
    %2442 = arith.addf %2424, %2441 : vector<16x128xf32>
    %c464 = arith.constant 464 : index
    %2443 = memref.load %arg1[%c464] : memref<486xf32, #tpu.memory_space<smem>>
    %2444 = vector.broadcast %2443 : f32 to vector<16x128xf32>
    %2445 = arith.mulf %2444, %2434 : vector<16x128xf32>
    %2446 = arith.addf %2428, %2445 : vector<16x128xf32>
    %c471 = arith.constant 471 : index
    %2447 = memref.load %arg1[%c471] : memref<486xf32, #tpu.memory_space<smem>>
    %2448 = vector.broadcast %2447 : f32 to vector<16x128xf32>
    %2449 = arith.mulf %2448, %2431 : vector<16x128xf32>
    %2450 = arith.addf %2438, %2449 : vector<16x128xf32>
    %c472 = arith.constant 472 : index
    %2451 = memref.load %arg1[%c472] : memref<486xf32, #tpu.memory_space<smem>>
    %2452 = vector.broadcast %2451 : f32 to vector<16x128xf32>
    %2453 = arith.mulf %2452, %2431 : vector<16x128xf32>
    %2454 = arith.addf %2442, %2453 : vector<16x128xf32>
    %c473 = arith.constant 473 : index
    %2455 = memref.load %arg1[%c473] : memref<486xf32, #tpu.memory_space<smem>>
    %2456 = vector.broadcast %2455 : f32 to vector<16x128xf32>
    %2457 = arith.mulf %2456, %2431 : vector<16x128xf32>
    %2458 = arith.addf %2446, %2457 : vector<16x128xf32>
    %c127_i32_431 = arith.constant 127 : i32
    %2459 = tpu.dynamic_rotate %2431 by %c127_i32_431 dim 1 : vector<16x128xf32>, i32 -> vector<16x128xf32>
    %cst_432 = arith.constant 0.000000e+00 : f32
    %2460 = vector.broadcast %cst_432 : f32 to vector<16x128xf32>
    %2461 = arith.select %9, %2459, %2460 : vector<16x128xi1>, vector<16x128xf32>
    %c480 = arith.constant 480 : index
    %2462 = memref.load %arg1[%c480] : memref<486xf32, #tpu.memory_space<smem>>
    %2463 = vector.broadcast %2462 : f32 to vector<16x128xf32>
    %2464 = arith.mulf %2463, %2461 : vector<16x128xf32>
    %2465 = arith.addf %2450, %2464 : vector<16x128xf32>
    %c481 = arith.constant 481 : index
    %2466 = memref.load %arg1[%c481] : memref<486xf32, #tpu.memory_space<smem>>
    %2467 = vector.broadcast %2466 : f32 to vector<16x128xf32>
    %2468 = arith.mulf %2467, %2461 : vector<16x128xf32>
    %2469 = arith.addf %2454, %2468 : vector<16x128xf32>
    %c482 = arith.constant 482 : index
    %2470 = memref.load %arg1[%c482] : memref<486xf32, #tpu.memory_space<smem>>
    %2471 = vector.broadcast %2470 : f32 to vector<16x128xf32>
    %2472 = arith.mulf %2471, %2461 : vector<16x128xf32>
    %2473 = arith.addf %2458, %2472 : vector<16x128xf32>
    %c2_433 = arith.constant 2 : index
    %c0_434 = arith.constant 0 : index
    %c0_435 = arith.constant 0 : index
    %2474 = vector.load %arg5[%c2_433, %c0_434, %c0_435] : memref<3x16x128xf32, #tpu.memory_space<vmem>>, vector<1x16x128xf32>
    %2475 = vector.shape_cast %2474 : vector<1x16x128xf32> to vector<16x128xf32>
    %c1_i32_436 = arith.constant 1 : i32
    %2476 = tpu.dynamic_rotate %2475 by %c1_i32_436 dim 0 : vector<16x128xf32>, i32 -> vector<16x128xf32>
    %cst_437 = arith.constant 0.000000e+00 : f32
    %2477 = vector.broadcast %cst_437 : f32 to vector<16x128xf32>
    %2478 = arith.select %3, %2476, %2477 : vector<16x128xi1>, vector<16x128xf32>
    %c1_i32_438 = arith.constant 1 : i32
    %2479 = tpu.dynamic_rotate %2478 by %c1_i32_438 dim 1 : vector<16x128xf32>, i32 -> vector<16x128xf32>
    %cst_439 = arith.constant 0.000000e+00 : f32
    %2480 = vector.broadcast %cst_439 : f32 to vector<16x128xf32>
    %2481 = arith.select %7, %2479, %2480 : vector<16x128xi1>, vector<16x128xf32>
    %c411 = arith.constant 411 : index
    %2482 = memref.load %arg1[%c411] : memref<486xf32, #tpu.memory_space<smem>>
    %2483 = vector.broadcast %2482 : f32 to vector<16x128xf32>
    %2484 = arith.mulf %2483, %2481 : vector<16x128xf32>
    %2485 = arith.addf %2465, %2484 : vector<16x128xf32>
    %c412 = arith.constant 412 : index
    %2486 = memref.load %arg1[%c412] : memref<486xf32, #tpu.memory_space<smem>>
    %2487 = vector.broadcast %2486 : f32 to vector<16x128xf32>
    %2488 = arith.mulf %2487, %2481 : vector<16x128xf32>
    %2489 = arith.addf %2469, %2488 : vector<16x128xf32>
    %c413 = arith.constant 413 : index
    %2490 = memref.load %arg1[%c413] : memref<486xf32, #tpu.memory_space<smem>>
    %2491 = vector.broadcast %2490 : f32 to vector<16x128xf32>
    %2492 = arith.mulf %2491, %2481 : vector<16x128xf32>
    %2493 = arith.addf %2473, %2492 : vector<16x128xf32>
    %c420 = arith.constant 420 : index
    %2494 = memref.load %arg1[%c420] : memref<486xf32, #tpu.memory_space<smem>>
    %2495 = vector.broadcast %2494 : f32 to vector<16x128xf32>
    %2496 = arith.mulf %2495, %2478 : vector<16x128xf32>
    %2497 = arith.addf %2485, %2496 : vector<16x128xf32>
    %c421 = arith.constant 421 : index
    %2498 = memref.load %arg1[%c421] : memref<486xf32, #tpu.memory_space<smem>>
    %2499 = vector.broadcast %2498 : f32 to vector<16x128xf32>
    %2500 = arith.mulf %2499, %2478 : vector<16x128xf32>
    %2501 = arith.addf %2489, %2500 : vector<16x128xf32>
    %c422 = arith.constant 422 : index
    %2502 = memref.load %arg1[%c422] : memref<486xf32, #tpu.memory_space<smem>>
    %2503 = vector.broadcast %2502 : f32 to vector<16x128xf32>
    %2504 = arith.mulf %2503, %2478 : vector<16x128xf32>
    %2505 = arith.addf %2493, %2504 : vector<16x128xf32>
    %c127_i32_440 = arith.constant 127 : i32
    %2506 = tpu.dynamic_rotate %2478 by %c127_i32_440 dim 1 : vector<16x128xf32>, i32 -> vector<16x128xf32>
    %cst_441 = arith.constant 0.000000e+00 : f32
    %2507 = vector.broadcast %cst_441 : f32 to vector<16x128xf32>
    %2508 = arith.select %9, %2506, %2507 : vector<16x128xi1>, vector<16x128xf32>
    %c429 = arith.constant 429 : index
    %2509 = memref.load %arg1[%c429] : memref<486xf32, #tpu.memory_space<smem>>
    %2510 = vector.broadcast %2509 : f32 to vector<16x128xf32>
    %2511 = arith.mulf %2510, %2508 : vector<16x128xf32>
    %2512 = arith.addf %2497, %2511 : vector<16x128xf32>
    %c430 = arith.constant 430 : index
    %2513 = memref.load %arg1[%c430] : memref<486xf32, #tpu.memory_space<smem>>
    %2514 = vector.broadcast %2513 : f32 to vector<16x128xf32>
    %2515 = arith.mulf %2514, %2508 : vector<16x128xf32>
    %2516 = arith.addf %2501, %2515 : vector<16x128xf32>
    %c431 = arith.constant 431 : index
    %2517 = memref.load %arg1[%c431] : memref<486xf32, #tpu.memory_space<smem>>
    %2518 = vector.broadcast %2517 : f32 to vector<16x128xf32>
    %2519 = arith.mulf %2518, %2508 : vector<16x128xf32>
    %2520 = arith.addf %2505, %2519 : vector<16x128xf32>
    %c1_i32_442 = arith.constant 1 : i32
    %2521 = tpu.dynamic_rotate %2475 by %c1_i32_442 dim 1 : vector<16x128xf32>, i32 -> vector<16x128xf32>
    %cst_443 = arith.constant 0.000000e+00 : f32
    %2522 = vector.broadcast %cst_443 : f32 to vector<16x128xf32>
    %2523 = arith.select %7, %2521, %2522 : vector<16x128xi1>, vector<16x128xf32>
    %c438 = arith.constant 438 : index
    %2524 = memref.load %arg1[%c438] : memref<486xf32, #tpu.memory_space<smem>>
    %2525 = vector.broadcast %2524 : f32 to vector<16x128xf32>
    %2526 = arith.mulf %2525, %2523 : vector<16x128xf32>
    %2527 = arith.addf %2512, %2526 : vector<16x128xf32>
    %c439 = arith.constant 439 : index
    %2528 = memref.load %arg1[%c439] : memref<486xf32, #tpu.memory_space<smem>>
    %2529 = vector.broadcast %2528 : f32 to vector<16x128xf32>
    %2530 = arith.mulf %2529, %2523 : vector<16x128xf32>
    %2531 = arith.addf %2516, %2530 : vector<16x128xf32>
    %c440 = arith.constant 440 : index
    %2532 = memref.load %arg1[%c440] : memref<486xf32, #tpu.memory_space<smem>>
    %2533 = vector.broadcast %2532 : f32 to vector<16x128xf32>
    %2534 = arith.mulf %2533, %2523 : vector<16x128xf32>
    %2535 = arith.addf %2520, %2534 : vector<16x128xf32>
    %c447 = arith.constant 447 : index
    %2536 = memref.load %arg1[%c447] : memref<486xf32, #tpu.memory_space<smem>>
    %2537 = vector.broadcast %2536 : f32 to vector<16x128xf32>
    %2538 = arith.mulf %2537, %2475 : vector<16x128xf32>
    %2539 = arith.addf %2527, %2538 : vector<16x128xf32>
    %c448 = arith.constant 448 : index
    %2540 = memref.load %arg1[%c448] : memref<486xf32, #tpu.memory_space<smem>>
    %2541 = vector.broadcast %2540 : f32 to vector<16x128xf32>
    %2542 = arith.mulf %2541, %2475 : vector<16x128xf32>
    %2543 = arith.addf %2531, %2542 : vector<16x128xf32>
    %c449 = arith.constant 449 : index
    %2544 = memref.load %arg1[%c449] : memref<486xf32, #tpu.memory_space<smem>>
    %2545 = vector.broadcast %2544 : f32 to vector<16x128xf32>
    %2546 = arith.mulf %2545, %2475 : vector<16x128xf32>
    %2547 = arith.addf %2535, %2546 : vector<16x128xf32>
    %c127_i32_444 = arith.constant 127 : i32
    %2548 = tpu.dynamic_rotate %2475 by %c127_i32_444 dim 1 : vector<16x128xf32>, i32 -> vector<16x128xf32>
    %cst_445 = arith.constant 0.000000e+00 : f32
    %2549 = vector.broadcast %cst_445 : f32 to vector<16x128xf32>
    %2550 = arith.select %9, %2548, %2549 : vector<16x128xi1>, vector<16x128xf32>
    %c456 = arith.constant 456 : index
    %2551 = memref.load %arg1[%c456] : memref<486xf32, #tpu.memory_space<smem>>
    %2552 = vector.broadcast %2551 : f32 to vector<16x128xf32>
    %2553 = arith.mulf %2552, %2550 : vector<16x128xf32>
    %2554 = arith.addf %2539, %2553 : vector<16x128xf32>
    %c457 = arith.constant 457 : index
    %2555 = memref.load %arg1[%c457] : memref<486xf32, #tpu.memory_space<smem>>
    %2556 = vector.broadcast %2555 : f32 to vector<16x128xf32>
    %2557 = arith.mulf %2556, %2550 : vector<16x128xf32>
    %2558 = arith.addf %2543, %2557 : vector<16x128xf32>
    %c458 = arith.constant 458 : index
    %2559 = memref.load %arg1[%c458] : memref<486xf32, #tpu.memory_space<smem>>
    %2560 = vector.broadcast %2559 : f32 to vector<16x128xf32>
    %2561 = arith.mulf %2560, %2550 : vector<16x128xf32>
    %2562 = arith.addf %2547, %2561 : vector<16x128xf32>
    %c15_i32_446 = arith.constant 15 : i32
    %2563 = tpu.dynamic_rotate %2475 by %c15_i32_446 dim 0 : vector<16x128xf32>, i32 -> vector<16x128xf32>
    %cst_447 = arith.constant 0.000000e+00 : f32
    %2564 = vector.broadcast %cst_447 : f32 to vector<16x128xf32>
    %2565 = arith.select %5, %2563, %2564 : vector<16x128xi1>, vector<16x128xf32>
    %c1_i32_448 = arith.constant 1 : i32
    %2566 = tpu.dynamic_rotate %2565 by %c1_i32_448 dim 1 : vector<16x128xf32>, i32 -> vector<16x128xf32>
    %cst_449 = arith.constant 0.000000e+00 : f32
    %2567 = vector.broadcast %cst_449 : f32 to vector<16x128xf32>
    %2568 = arith.select %7, %2566, %2567 : vector<16x128xi1>, vector<16x128xf32>
    %c465 = arith.constant 465 : index
    %2569 = memref.load %arg1[%c465] : memref<486xf32, #tpu.memory_space<smem>>
    %2570 = vector.broadcast %2569 : f32 to vector<16x128xf32>
    %2571 = arith.mulf %2570, %2568 : vector<16x128xf32>
    %2572 = arith.addf %2554, %2571 : vector<16x128xf32>
    %c466 = arith.constant 466 : index
    %2573 = memref.load %arg1[%c466] : memref<486xf32, #tpu.memory_space<smem>>
    %2574 = vector.broadcast %2573 : f32 to vector<16x128xf32>
    %2575 = arith.mulf %2574, %2568 : vector<16x128xf32>
    %2576 = arith.addf %2558, %2575 : vector<16x128xf32>
    %c467 = arith.constant 467 : index
    %2577 = memref.load %arg1[%c467] : memref<486xf32, #tpu.memory_space<smem>>
    %2578 = vector.broadcast %2577 : f32 to vector<16x128xf32>
    %2579 = arith.mulf %2578, %2568 : vector<16x128xf32>
    %2580 = arith.addf %2562, %2579 : vector<16x128xf32>
    %c474 = arith.constant 474 : index
    %2581 = memref.load %arg1[%c474] : memref<486xf32, #tpu.memory_space<smem>>
    %2582 = vector.broadcast %2581 : f32 to vector<16x128xf32>
    %2583 = arith.mulf %2582, %2565 : vector<16x128xf32>
    %2584 = arith.addf %2572, %2583 : vector<16x128xf32>
    %c475 = arith.constant 475 : index
    %2585 = memref.load %arg1[%c475] : memref<486xf32, #tpu.memory_space<smem>>
    %2586 = vector.broadcast %2585 : f32 to vector<16x128xf32>
    %2587 = arith.mulf %2586, %2565 : vector<16x128xf32>
    %2588 = arith.addf %2576, %2587 : vector<16x128xf32>
    %c476 = arith.constant 476 : index
    %2589 = memref.load %arg1[%c476] : memref<486xf32, #tpu.memory_space<smem>>
    %2590 = vector.broadcast %2589 : f32 to vector<16x128xf32>
    %2591 = arith.mulf %2590, %2565 : vector<16x128xf32>
    %2592 = arith.addf %2580, %2591 : vector<16x128xf32>
    %c127_i32_450 = arith.constant 127 : i32
    %2593 = tpu.dynamic_rotate %2565 by %c127_i32_450 dim 1 : vector<16x128xf32>, i32 -> vector<16x128xf32>
    %cst_451 = arith.constant 0.000000e+00 : f32
    %2594 = vector.broadcast %cst_451 : f32 to vector<16x128xf32>
    %2595 = arith.select %9, %2593, %2594 : vector<16x128xi1>, vector<16x128xf32>
    %c483 = arith.constant 483 : index
    %2596 = memref.load %arg1[%c483] : memref<486xf32, #tpu.memory_space<smem>>
    %2597 = vector.broadcast %2596 : f32 to vector<16x128xf32>
    %2598 = arith.mulf %2597, %2595 : vector<16x128xf32>
    %2599 = arith.addf %2584, %2598 : vector<16x128xf32>
    %c484 = arith.constant 484 : index
    %2600 = memref.load %arg1[%c484] : memref<486xf32, #tpu.memory_space<smem>>
    %2601 = vector.broadcast %2600 : f32 to vector<16x128xf32>
    %2602 = arith.mulf %2601, %2595 : vector<16x128xf32>
    %2603 = arith.addf %2588, %2602 : vector<16x128xf32>
    %c485 = arith.constant 485 : index
    %2604 = memref.load %arg1[%c485] : memref<486xf32, #tpu.memory_space<smem>>
    %2605 = vector.broadcast %2604 : f32 to vector<16x128xf32>
    %2606 = arith.mulf %2605, %2595 : vector<16x128xf32>
    %2607 = arith.addf %2592, %2606 : vector<16x128xf32>
    %2608 = math.tanh %2599 : vector<16x128xf32>
    %c0_452 = arith.constant 0 : index
    %c0_453 = arith.constant 0 : index
    %c0_454 = arith.constant 0 : index
    %c0_455 = arith.constant 0 : index
    %2609 = vector.load %arg4[%c0_452, %c0_453, %c0_454, %c0_455] : memref<1x3x16x128xf32, #tpu.memory_space<vmem>>, vector<1x1x16x128xf32>
    %2610 = vector.shape_cast %2609 : vector<1x1x16x128xf32> to vector<16x128xf32>
    %2611 = vector.shape_cast %2608 : vector<16x128xf32> to vector<1x1x16x128xf32>
    tpu.vector_store %arg4[%c0_452, %c0_453, %c0_454, %c0_455], %2611 {strides = array<i32>} : memref<1x3x16x128xf32, #tpu.memory_space<vmem>>, vector<1x1x16x128xf32>,
    %2612 = math.tanh %2603 : vector<16x128xf32>
    %c0_456 = arith.constant 0 : index
    %c1_457 = arith.constant 1 : index
    %c0_458 = arith.constant 0 : index
    %c0_459 = arith.constant 0 : index
    %2613 = vector.load %arg4[%c0_456, %c1_457, %c0_458, %c0_459] : memref<1x3x16x128xf32, #tpu.memory_space<vmem>>, vector<1x1x16x128xf32>
    %2614 = vector.shape_cast %2613 : vector<1x1x16x128xf32> to vector<16x128xf32>
    %2615 = vector.shape_cast %2612 : vector<16x128xf32> to vector<1x1x16x128xf32>
    tpu.vector_store %arg4[%c0_456, %c1_457, %c0_458, %c0_459], %2615 {strides = array<i32>} : memref<1x3x16x128xf32, #tpu.memory_space<vmem>>, vector<1x1x16x128xf32>,
    %2616 = math.tanh %2607 : vector<16x128xf32>
    %c0_460 = arith.constant 0 : index
    %c2_461 = arith.constant 2 : index
    %c0_462 = arith.constant 0 : index
    %c0_463 = arith.constant 0 : index
    %2617 = vector.load %arg4[%c0_460, %c2_461, %c0_462, %c0_463] : memref<1x3x16x128xf32, #tpu.memory_space<vmem>>, vector<1x1x16x128xf32>
    %2618 = vector.shape_cast %2617 : vector<1x1x16x128xf32> to vector<16x128xf32>
    %2619 = vector.shape_cast %2616 : vector<16x128xf32> to vector<1x1x16x128xf32>
    tpu.vector_store %arg4[%c0_460, %c2_461, %c0_462, %c0_463], %2619 {strides = array<i32>} : memref<1x3x16x128xf32, #tpu.memory_space<vmem>>, vector<1x1x16x128xf32>,
    return
  }
  func.func @transform_0(%arg0: i32, %arg1: memref<486xf32, #tpu.memory_space<smem>>, %arg2: memref<18xf32, #tpu.memory_space<smem>>) -> (i32, i32, i32, i32) {
    %c0_i32 = arith.constant 0 : i32
    %c0_i32_0 = arith.constant 0 : i32
    %c0_i32_1 = arith.constant 0 : i32
    %c0_i32_2 = arith.constant 0 : i32
    return %arg0, %c0_i32, %c0_i32_0, %c0_i32_1 : i32, i32, i32, i32
  }
  func.func @transform_1(%arg0: i32, %arg1: memref<486xf32, #tpu.memory_space<smem>>, %arg2: memref<18xf32, #tpu.memory_space<smem>>) -> (i32, i32, i32, i32) {
    %c0_i32 = arith.constant 0 : i32
    %c0_i32_0 = arith.constant 0 : i32
    %c0_i32_1 = arith.constant 0 : i32
    %c0_i32_2 = arith.constant 0 : i32
    return %arg0, %c0_i32, %c0_i32_0, %c0_i32_1 : i32, i32, i32, i32
  }
}

</mosaic_0001>

<llo_original>
// kernel: adapter_forward.1
$region0: #{adapter_forward.1}
  #allocation0 [shape = 'u32[]', space=smem, size = 0x4, offset = 0x4, fixed_abs, tag = 'smem constant byte address 0x4 - core index']
  #allocation1 [shape = 'u32[144,128]{1,0:T(1,128)}', space=vmem, size = 0x12000, scoped, tag = 'internal scratch']
  #allocation2 [shape = 'f32[3,16,128]{2,1,0:T(8,128)}', space=vmem, size = 0x6000, scoped, tag = 'scratch operand']
  #allocation3 [shape = 'f32[3,16,128]{2,1,0:T(8,128)}', space=vmem, size = 0x6000, scoped, tag = 'scratch operand']
  #allocation4 [shape = 's32[1]{0}', space=sflag, size = 0x4, scoped, tag = 'scoped memory for adapter_forward.1']
  #allocation5 [shape = 'u8[2048]{0}', space=smem, size = 0x800, scoped, tag = 'prefetched SMEM operand 0']
  #allocation6 [shape = 'u8[512]{0}', space=smem, size = 0x200, scoped, tag = 'prefetched SMEM operand 1']
  %s0 = inlined_call_operand.vmem [shape: f32[486], index: 0, kind: input, shape index: {}]
  %s1 = inlined_call_operand.vmem [shape: f32[18], index: 1, kind: input, shape index: {}]
  %s2 = inlined_call_operand.vmem [shape: f32[4,3,16,128], index: 2, kind: input, shape index: {}]
  %s3 = inlined_call_operand.vmem [shape: f32[4,3,16,128], index: 3, kind: output, shape index: {}]
  %s4 = sld [smem:[#allocation0]]
  $region37: #{adapter_forward.1} parent=0
    _
  %s6 = ssub.s32 1, %s4
  %s7 = scalar_select 0, %s6, %s4
  %s8 = sshll.u32 %s0, 4
  %s9 = int_to_ptr.vmem [resolvable:$true] %s8
  %11 = dma.vmem_to_smem %s9, 64, [#allocation5], [#allocation4]
  %s12 = sshll.u32 %s1, 4
  %s13 = int_to_ptr.vmem [resolvable:$true] %s12
  %15 = dma.vmem_to_smem %s13, 16, [#allocation6], [#allocation4]
  %16 = dma.done [#allocation4], 80
  %17 = sfence
  loop: start=0, step=1, limit=6
  $region2: #{adapter_forward.1} parent=0 // loop_pre_header
    _
  $region3: #{adapter_forward.1} parent=0 // loop_header
    %s19 = sphi 0, %s23
    %p20 = scmp.ge.s32.totalorder %s19, 6
    %s29 = sphi 0, %s31
    %s32 = sphi 0, %s29
    %s33 = sphi 0, %s32
    %s49 = sphi 0, %s33
    %s55 = sphi 0, %s57
    %s58 = sphi 0, %s55
    %s59 = sphi 0, %s58
    %s75 = sphi 0, %s59
  $region4: #{adapter_forward.1} parent=0 // loop_header_branch
    %22 = sbr.rel (%p20) target = $region8
  $region5: #{adapter_forward.1} parent=0 // loop_body
    %s24 = ssub.s32 %s19, 1
    %s25 = ssub.s32 %s19, 2
    %s26 = sadd.s32 %s19, 1
    %s27 = ssub.s32 %s19, %s26
    %p28 = scmp.eq.s32.totalorder %s27, 0
    %s30 = sadd.s32 %s29, 1
    %s31 = scalar_select %p28, %s29, %s30
    %p34 = pneg %p28
    %p35 = scmp.eq.s32.totalorder %s19, 3
    %p36 = por %p34, %p35
    %p37 = scmp.ne.s32.totalorder %s29, %s32
    %p38 = scmp.eq.s32.totalorder %s19, 0
    %p39 = por %p37, %p38
    %p40 = scmp.ne.s32.totalorder %s29, %s32
    %p41 = scmp.eq.s32.totalorder %s24, 3
    %p42 = por %p40, %p41
    %p43 = scmp.ne.s32.totalorder %s32, %s33
    %p44 = scmp.eq.s32.totalorder %s24, 0
    %p45 = por %p43, %p44
    %p46 = scmp.ne.s32.totalorder %s32, %s33
    %p47 = scmp.eq.s32.totalorder %s25, 3
    %p48 = por %p46, %p47
    %p50 = scmp.ne.s32.totalorder %s33, %s49
    %p51 = scmp.eq.s32.totalorder %s25, 0
    %p52 = por %p50, %p51
    %s53 = ssub.s32 %s19, %s26
    %p54 = scmp.eq.s32.totalorder %s53, 0
    %s56 = sadd.s32 %s55, 1
    %s57 = scalar_select %p54, %s55, %s56
    %p60 = pneg %p54
    %p61 = scmp.eq.s32.totalorder %s19, 3
    %p62 = por %p60, %p61
    %p63 = scmp.ne.s32.totalorder %s55, %s58
    %p64 = scmp.eq.s32.totalorder %s19, 0
    %p65 = por %p63, %p64
    %p66 = scmp.ne.s32.totalorder %s55, %s58
    %p67 = scmp.eq.s32.totalorder %s24, 3
    %p68 = por %p66, %p67
    %p69 = scmp.ne.s32.totalorder %s58, %s59
    %p70 = scmp.eq.s32.totalorder %s24, 0
    %p71 = por %p69, %p70
    %p72 = scmp.ne.s32.totalorder %s58, %s59
    %p73 = scmp.eq.s32.totalorder %s25, 3
    %p74 = por %p72, %p73
    %p76 = scmp.ne.s32.totalorder %s59, %s75
    %p77 = scmp.eq.s32.totalorder %s25, 0
    %p78 = por %p76, %p77
    %p79 = scmp.le.s32.totalorder 1, %s19
    %p80 = scmp.lt.s32.totalorder %s19, 5
    %p81 = pnand %p79, %p80
    %p82 = pneg %p81
    // Predicated region
    $region9: #{adapter_forward.1} parent=5 // pred_check
      _
    $region10: #{adapter_forward.1} parent=5 // pred_check_branch
      %84 = sbr.rel (%p81) target = $region12
    $region11: #{adapter_forward.1} parent=5 // pred_region
      %s85 = ssub.s32 %s19, 1
    $region12: #{adapter_forward.1} parent=5 // pred_fallthru
      _
    %p86 = scmp.lt.s32.totalorder %s19, 4
    // Predicated region
    $region13: #{adapter_forward.1} parent=5 // pred_check
      %p87 = pneg %p86
    $region14: #{adapter_forward.1} parent=5 // pred_check_branch
      %89 = sbr.rel (%p87) target = $region16
    $region15: #{adapter_forward.1} parent=5 // pred_region
      // Predicated region
      $region17: #{adapter_forward.1} parent=15 // pred_check
        %p90 = pneg %p39
      $region18: #{adapter_forward.1} parent=15 // pred_check_branch
        %92 = sbr.rel (%p90) target = $region20
      $region19: #{adapter_forward.1} parent=15 // pred_region
        %p93 = scmp.lt.s32.totalorder %s19, 3
        %s94 = scalar_select %p93, %s19, 3
        %s95 = smul.addr %s94, 6
        %s96 = smul.addr %s95, 8
        %s97 = scalar_lea.vmem %s2, %s96
      $region20: #{adapter_forward.1} parent=15 // pred_fallthru
        _
    $region16: #{adapter_forward.1} parent=5 // pred_fallthru
      _
    %p98 = scmp.le.s32.totalorder 1, %s19
    %p99 = scmp.lt.s32.totalorder %s19, 5
    %p100 = pnand %p98, %p99
    %p101 = pneg %p100
    // Predicated region
    $region21: #{adapter_forward.1} parent=5 // pred_check
      _
    $region22: #{adapter_forward.1} parent=5 // pred_check_branch
      %103 = sbr.rel (%p100) target = $region24
    $region23: #{adapter_forward.1} parent=5 // pred_region
      %s104 = ssub.s32 %s19, 1
      %p105 = scmp.lt.s32.totalorder %s24, 3
      %s106 = scalar_select %p105, %s24, 3
      %s107 = smul.addr %s106, 6
      %s108 = smul.addr %s107, 8
      %s109 = scalar_lea.vmem %s2, %s108
      %p110 = pneg %p45
      %p111 = pneg %p42
      %p112 = pneg %p71
      %p113 = pneg %p68
      %p114 = scmp.lt.s32.totalorder %s24, 3
      %s115 = scalar_select %p114, %s24, 3
      %s116 = smul.addr %s115, 6
      %s117 = smul.addr %s116, 8
      %s118 = scalar_lea.vmem %s3, %s117
      %p119 = scmp.lt.s32.totalorder %s24, 3
      %s120 = scalar_select %p119, %s24, 3
      %s121 = smul.addr %s120, 6
      %s122 = smul.addr %s121, 8
      %s123 = scalar_lea.vmem %s2, %s122
      %p124 = scmp.lt.s32.totalorder %s24, 3
      %s125 = scalar_select %p124, %s24, 3
      %s126 = smul.addr %s125, 6
      %s127 = smul.addr %s126, 8
      %s128 = scalar_lea.vmem %s3, %s127
      %v129 = vlaneseq
      %v130 = vshrl.u32 %v129, 7
      %v131 = vadd.s32 %v130, 8
      %v132 = vlaneseq
      %v133 = vand.u32 %v132, 127
      %vm134 = vcmp.gt.s32.totalorder %v130, 0
      %vm135 = vcmp.gt.s32.totalorder %v131, 0
      %vm136 = vcmp.lt.s32.totalorder %v130, 15
      %vm137 = vcmp.lt.s32.totalorder %v131, 15
      %vm138 = vcmp.gt.s32.totalorder %v133, 0
      %vm139 = vcmp.lt.s32.totalorder %v133, 127
      %s140 = sld [smem:[#allocation6]]
      %v141 = vstv %s140
      %s142 = sld [smem:[#allocation6 + $0x1]]
      %v143 = vstv %s142
      %s144 = sld [smem:[#allocation6 + $0x2]]
      %v145 = vstv %s144
      %v146 = vld [vmem:[%s123] sm:$0xff]
      %v147 = vld [vmem:[%s123 + $0x8] sm:$0xff]
      %v148 = vrot.slane %v146, 7
      %v149 = vrot.slane %v147, 7
      %vm150 = vcmp.lt.s32.totalorder %v130, 1
      %v151 = vsel %vm150, %v148, %v149
      %v152 = vsel %vm150, %v149, %v148
      %v153 = vsel %vm134, %v152, 0.0
      %v154 = vsel %vm135, %v151, 0.0
      %155 = vrot.lane.b32.xlu0 %v153, 1
      %v156 = vpop.permute.xlu0 %155
      %157 = vrot.lane.b32.xlu0 %v154, 1
      %v158 = vpop.permute.xlu0 %157
      %v159 = vsel %vm138, %v156, 0.0
      %v160 = vsel %vm138, %v158, 0.0
      %s161 = sld [smem:[#allocation5]]
      %v162 = vstv %s161
      %v163 = vmul.f32 %v162, %v159
      %v164 = vmul.f32 %v162, %v160
      %v165 = vadd.f32 %v141, %v163
      %v166 = vadd.f32 %v141, %v164
      %s167 = sld [smem:[#allocation5 + $0x1]]
      %v168 = vstv %s167
      %v169 = vmul.f32 %v168, %v159
      %v170 = vmul.f32 %v168, %v160
      %v171 = vadd.f32 %v143, %v169
      %v172 = vadd.f32 %v143, %v170
      %s173 = sld [smem:[#allocation5 + $0x2]]
      %v174 = vstv %s173
      %v175 = vmul.f32 %v174, %v159
      %v176 = vmul.f32 %v174, %v160
      %v177 = vadd.f32 %v145, %v175
      %v178 = vadd.f32 %v145, %v176
      %s179 = sld [smem:[#allocation5 + $0x9]]
      %v180 = vstv %s179
      %v181 = vmul.f32 %v180, %v153
      %v182 = vmul.f32 %v180, %v154
      %v183 = vadd.f32 %v165, %v181
      %v184 = vadd.f32 %v166, %v182
      %s185 = sld [smem:[#allocation5 + $0xa]]
      %v186 = vstv %s185
      %v187 = vmul.f32 %v186, %v153
      %v188 = vmul.f32 %v186, %v154
      %v189 = vadd.f32 %v171, %v187
      %v190 = vadd.f32 %v172, %v188
      %s191 = sld [smem:[#allocation5 + $0xb]]
      %v192 = vstv %s191
      %v193 = vmul.f32 %v192, %v153
      %v194 = vmul.f32 %v192, %v154
      %v195 = vadd.f32 %v177, %v193
      %v196 = vadd.f32 %v178, %v194
      %197 = vrot.lane.b32.xlu0 %v153, 127
      %v198 = vpop.permute.xlu0 %197
      %199 = vrot.lane.b32.xlu0 %v154, 127
      %v200 = vpop.permute.xlu0 %199
      %v201 = vsel %vm139, %v198, 0.0
      %v202 = vsel %vm139, %v200, 0.0
      %s203 = sld [smem:[#allocation5 + $0x12]]
      %v204 = vstv %s203
      %v205 = vmul.f32 %v204, %v201
      %v206 = vmul.f32 %v204, %v202
      %v207 = vadd.f32 %v183, %v205
      %v208 = vadd.f32 %v184, %v206
      %s209 = sld [smem:[#allocation5 + $0x13]]
      %v210 = vstv %s209
      %v211 = vmul.f32 %v210, %v201
      %v212 = vmul.f32 %v210, %v202
      %v213 = vadd.f32 %v189, %v211
      %v214 = vadd.f32 %v190, %v212
      %s215 = sld [smem:[#allocation5 + $0x14]]
      %v216 = vstv %s215
      %v217 = vmul.f32 %v216, %v201
      %v218 = vmul.f32 %v216, %v202
      %v219 = vadd.f32 %v195, %v217
      %v220 = vadd.f32 %v196, %v218
      %221 = vrot.lane.b32.xlu0 %v146, 1
      %v222 = vpop.permute.xlu0 %221
      %223 = vrot.lane.b32.xlu0 %v147, 1
      %v224 = vpop.permute.xlu0 %223
      %v225 = vsel %vm138, %v222, 0.0
      %v226 = vsel %vm138, %v224, 0.0
      %s227 = sld [smem:[#allocation5 + $0x1b]]
      %v228 = vstv %s227
      %v229 = vmul.f32 %v228, %v225
      %v230 = vmul.f32 %v228, %v226
      %v231 = vadd.f32 %v207, %v229
      %v232 = vadd.f32 %v208, %v230
      %s233 = sld [smem:[#allocation5 + $0x1c]]
      %v234 = vstv %s233
      %v235 = vmul.f32 %v234, %v225
      %v236 = vmul.f32 %v234, %v226
      %v237 = vadd.f32 %v213, %v235
      %v238 = vadd.f32 %v214, %v236
      %s239 = sld [smem:[#allocation5 + $0x1d]]
      %v240 = vstv %s239
      %v241 = vmul.f32 %v240, %v225
      %v242 = vmul.f32 %v240, %v226
      %v243 = vadd.f32 %v219, %v241
      %v244 = vadd.f32 %v220, %v242
      %s245 = sld [smem:[#allocation5 + $0x24]]
      %v246 = vstv %s245
      %v247 = vmul.f32 %v246, %v146
      %v248 = vmul.f32 %v246, %v147
      %v249 = vadd.f32 %v231, %v247
      %v250 = vadd.f32 %v232, %v248
      %s251 = sld [smem:[#allocation5 + $0x25]]
      %v252 = vstv %s251
      %v253 = vmul.f32 %v252, %v146
      %v254 = vmul.f32 %v252, %v147
      %v255 = vadd.f32 %v237, %v253
      %v256 = vadd.f32 %v238, %v254
      %s257 = sld [smem:[#allocation5 + $0x26]]
      %v258 = vstv %s257
      %v259 = vmul.f32 %v258, %v146
      %v260 = vmul.f32 %v258, %v147
      %v261 = vadd.f32 %v243, %v259
      %v262 = vadd.f32 %v244, %v260
      %263 = vrot.lane.b32.xlu0 %v146, 127
      %v264 = vpop.permute.xlu0 %263
      %265 = vrot.lane.b32.xlu0 %v147, 127
      %v266 = vpop.permute.xlu0 %265
      %v267 = vsel %vm139, %v264, 0.0
      %v268 = vsel %vm139, %v266, 0.0
      %s269 = sld [smem:[#allocation5 + $0x2d]]
      %v270 = vstv %s269
      %v271 = vmul.f32 %v270, %v267
      %v272 = vmul.f32 %v270, %v268
      %v273 = vadd.f32 %v249, %v271
      %v274 = vadd.f32 %v250, %v272
      %s275 = sld [smem:[#allocation5 + $0x2e]]
      %v276 = vstv %s275
      %v277 = vmul.f32 %v276, %v267
      %v278 = vmul.f32 %v276, %v268
      %v279 = vadd.f32 %v255, %v277
      %v280 = vadd.f32 %v256, %v278
      %s281 = sld [smem:[#allocation5 + $0x2f]]
      %v282 = vstv %s281
      %v283 = vmul.f32 %v282, %v267
      %v284 = vmul.f32 %v282, %v268
      %v285 = vadd.f32 %v261, %v283
      %v286 = vadd.f32 %v262, %v284
      %v287 = vrot.slane %v146, 1
      %v288 = vrot.slane %v147, 1
      %vm289 = vcmp.lt.s32.totalorder %v130, 7
      %v290 = vsel %vm289, %v287, %v288
      %v291 = vsel %vm289, %v288, %v287
      %v292 = vsel %vm136, %v290, 0.0
      %v293 = vsel %vm137, %v291, 0.0
      %294 = vrot.lane.b32.xlu0 %v292, 1
      %v295 = vpop.permute.xlu0 %294
      %296 = vrot.lane.b32.xlu0 %v293, 1
      %v297 = vpop.permute.xlu0 %296
      %v298 = vsel %vm138, %v295, 0.0
      %v299 = vsel %vm138, %v297, 0.0
      %s300 = sld [smem:[#allocation5 + $0x36]]
      %v301 = vstv %s300
      %v302 = vmul.f32 %v301, %v298
      %v303 = vmul.f32 %v301, %v299
      %v304 = vadd.f32 %v273, %v302
      %v305 = vadd.f32 %v274, %v303
      %s306 = sld [smem:[#allocation5 + $0x37]]
      %v307 = vstv %s306
      %v308 = vmul.f32 %v307, %v298
      %v309 = vmul.f32 %v307, %v299
      %v310 = vadd.f32 %v279, %v308
      %v311 = vadd.f32 %v280, %v309
      %s312 = sld [smem:[#allocation5 + $0x38]]
      %v313 = vstv %s312
      %v314 = vmul.f32 %v313, %v298
      %v315 = vmul.f32 %v313, %v299
      %v316 = vadd.f32 %v285, %v314
      %v317 = vadd.f32 %v286, %v315
      %s318 = sld [smem:[#allocation5 + $0x3f]]
      %v319 = vstv %s318
      %v320 = vmul.f32 %v319, %v292
      %v321 = vmul.f32 %v319, %v293
      %v322 = vadd.f32 %v304, %v320
      %v323 = vadd.f32 %v305, %v321
      %s324 = sld [smem:[#allocation5 + $0x40]]
      %v325 = vstv %s324
      %v326 = vmul.f32 %v325, %v292
      %v327 = vmul.f32 %v325, %v293
      %v328 = vadd.f32 %v310, %v326
      %v329 = vadd.f32 %v311, %v327
      %s330 = sld [smem:[#allocation5 + $0x41]]
      %v331 = vstv %s330
      %v332 = vmul.f32 %v331, %v292
      %v333 = vmul.f32 %v331, %v293
      %v334 = vadd.f32 %v316, %v332
      %v335 = vadd.f32 %v317, %v333
      %336 = vrot.lane.b32.xlu0 %v292, 127
      %v337 = vpop.permute.xlu0 %336
      %338 = vrot.lane.b32.xlu0 %v293, 127
      %v339 = vpop.permute.xlu0 %338
      %v340 = vsel %vm139, %v337, 0.0
      %v341 = vsel %vm139, %v339, 0.0
      %s342 = sld [smem:[#allocation5 + $0x48]]
      %v343 = vstv %s342
      %v344 = vmul.f32 %v343, %v340
      %v345 = vmul.f32 %v343, %v341
      %v346 = vadd.f32 %v322, %v344
      %v347 = vadd.f32 %v323, %v345
      %s348 = sld [smem:[#allocation5 + $0x49]]
      %v349 = vstv %s348
      %v350 = vmul.f32 %v349, %v340
      %v351 = vmul.f32 %v349, %v341
      %v352 = vadd.f32 %v328, %v350
      %v353 = vadd.f32 %v329, %v351
      %s354 = sld [smem:[#allocation5 + $0x4a]]
      %v355 = vstv %s354
      %v356 = vmul.f32 %v355, %v340
      %v357 = vmul.f32 %v355, %v341
      %v358 = vadd.f32 %v334, %v356
      %v359 = vadd.f32 %v335, %v357
      %s360 = scalar_lea.vmem %s123, 16
      %v361 = vld [vmem:[%s360] sm:$0xff]
      %v362 = vld [vmem:[%s360 + $0x8] sm:$0xff]
      %v363 = vrot.slane %v361, 7
      %v364 = vrot.slane %v362, 7
      %v365 = vsel %vm150, %v363, %v364
      %v366 = vsel %vm150, %v364, %v363
      %v367 = vsel %vm134, %v366, 0.0
      %v368 = vsel %vm135, %v365, 0.0
      %369 = vrot.lane.b32.xlu0 %v367, 1
      %v370 = vpop.permute.xlu0 %369
      %371 = vrot.lane.b32.xlu0 %v368, 1
      %v372 = vpop.permute.xlu0 %371
      %v373 = vsel %vm138, %v370, 0.0
      %v374 = vsel %vm138, %v372, 0.0
      %s375 = sld [smem:[#allocation5 + $0x3]]
      %v376 = vstv %s375
      %v377 = vmul.f32 %v376, %v373
      %v378 = vmul.f32 %v376, %v374
      %v379 = vadd.f32 %v346, %v377
      %v380 = vadd.f32 %v347, %v378
      %s381 = sld [smem:[#allocation5 + $0x4]]
      %v382 = vstv %s381
      %v383 = vmul.f32 %v382, %v373
      %v384 = vmul.f32 %v382, %v374
      %v385 = vadd.f32 %v352, %v383
      %v386 = vadd.f32 %v353, %v384
      %s387 = sld [smem:[#allocation5 + $0x5]]
      %v388 = vstv %s387
      %v389 = vmul.f32 %v388, %v373
      %v390 = vmul.f32 %v388, %v374
      %v391 = vadd.f32 %v358, %v389
      %v392 = vadd.f32 %v359, %v390
      %s393 = sld [smem:[#allocation5 + $0xc]]
      %v394 = vstv %s393
      %v395 = vmul.f32 %v394, %v367
      %v396 = vmul.f32 %v394, %v368
      %v397 = vadd.f32 %v379, %v395
      %v398 = vadd.f32 %v380, %v396
      %s399 = sld [smem:[#allocation5 + $0xd]]
      %v400 = vstv %s399
      %v401 = vmul.f32 %v400, %v367
      %v402 = vmul.f32 %v400, %v368
      %v403 = vadd.f32 %v385, %v401
      %v404 = vadd.f32 %v386, %v402
      %s405 = sld [smem:[#allocation5 + $0xe]]
      %v406 = vstv %s405
      %v407 = vmul.f32 %v406, %v367
      %v408 = vmul.f32 %v406, %v368
      %v409 = vadd.f32 %v391, %v407
      %v410 = vadd.f32 %v392, %v408
      %411 = vrot.lane.b32.xlu0 %v367, 127
      %v412 = vpop.permute.xlu0 %411
      %413 = vrot.lane.b32.xlu0 %v368, 127
      %v414 = vpop.permute.xlu0 %413
      %v415 = vsel %vm139, %v412, 0.0
      %v416 = vsel %vm139, %v414, 0.0
      %s417 = sld [smem:[#allocation5 + $0x15]]
      %v418 = vstv %s417
      %v419 = vmul.f32 %v418, %v415
      %v420 = vmul.f32 %v418, %v416
      %v421 = vadd.f32 %v397, %v419
      %v422 = vadd.f32 %v398, %v420
      %s423 = sld [smem:[#allocation5 + $0x16]]
      %v424 = vstv %s423
      %v425 = vmul.f32 %v424, %v415
      %v426 = vmul.f32 %v424, %v416
      %v427 = vadd.f32 %v403, %v425
      %v428 = vadd.f32 %v404, %v426
      %s429 = sld [smem:[#allocation5 + $0x17]]
      %v430 = vstv %s429
      %v431 = vmul.f32 %v430, %v415
      %v432 = vmul.f32 %v430, %v416
      %v433 = vadd.f32 %v409, %v431
      %v434 = vadd.f32 %v410, %v432
      %435 = vrot.lane.b32.xlu0 %v361, 1
      %v436 = vpop.permute.xlu0 %435
      %437 = vrot.lane.b32.xlu0 %v362, 1
      %v438 = vpop.permute.xlu0 %437
      %v439 = vsel %vm138, %v436, 0.0
      %v440 = vsel %vm138, %v438, 0.0
      %s441 = sld [smem:[#allocation5 + $0x1e]]
      %v442 = vstv %s441
      %v443 = vmul.f32 %v442, %v439
      %v444 = vmul.f32 %v442, %v440
      %v445 = vadd.f32 %v421, %v443
      %v446 = vadd.f32 %v422, %v444
      %s447 = sld [smem:[#allocation5 + $0x1f]]
      %v448 = vstv %s447
      %v449 = vmul.f32 %v448, %v439
      %v450 = vmul.f32 %v448, %v440
      %v451 = vadd.f32 %v427, %v449
      %v452 = vadd.f32 %v428, %v450
      %s453 = sld [smem:[#allocation5 + $0x20]]
      %v454 = vstv %s453
      %v455 = vmul.f32 %v454, %v439
      %v456 = vmul.f32 %v454, %v440
      %v457 = vadd.f32 %v433, %v455
      %v458 = vadd.f32 %v434, %v456
      %s459 = sld [smem:[#allocation5 + $0x27]]
      %v460 = vstv %s459
      %v461 = vmul.f32 %v460, %v361
      %v462 = vmul.f32 %v460, %v362
      %v463 = vadd.f32 %v445, %v461
      %v464 = vadd.f32 %v446, %v462
      %s465 = sld [smem:[#allocation5 + $0x28]]
      %v466 = vstv %s465
      %v467 = vmul.f32 %v466, %v361
      %v468 = vmul.f32 %v466, %v362
      %v469 = vadd.f32 %v451, %v467
      %v470 = vadd.f32 %v452, %v468
      %s471 = sld [smem:[#allocation5 + $0x29]]
      %v472 = vstv %s471
      %v473 = vmul.f32 %v472, %v361
      %v474 = vmul.f32 %v472, %v362
      %v475 = vadd.f32 %v457, %v473
      %v476 = vadd.f32 %v458, %v474
      %477 = vrot.lane.b32.xlu0 %v361, 127
      %v478 = vpop.permute.xlu0 %477
      %479 = vrot.lane.b32.xlu0 %v362, 127
      %v480 = vpop.permute.xlu0 %479
      %v481 = vsel %vm139, %v478, 0.0
      %v482 = vsel %vm139, %v480, 0.0
      %s483 = sld [smem:[#allocation5 + $0x30]]
      %v484 = vstv %s483
      %v485 = vmul.f32 %v484, %v481
      %v486 = vmul.f32 %v484, %v482
      %v487 = vadd.f32 %v463, %v485
      %v488 = vadd.f32 %v464, %v486
      %s489 = sld [smem:[#allocation5 + $0x31]]
      %v490 = vstv %s489
      %v491 = vmul.f32 %v490, %v481
      %v492 = vmul.f32 %v490, %v482
      %v493 = vadd.f32 %v469, %v491
      %v494 = vadd.f32 %v470, %v492
      %s495 = sld [smem:[#allocation5 + $0x32]]
      %v496 = vstv %s495
      %v497 = vmul.f32 %v496, %v481
      %v498 = vmul.f32 %v496, %v482
      %v499 = vadd.f32 %v475, %v497
      %v500 = vadd.f32 %v476, %v498
      %v501 = vrot.slane %v361, 1
      %v502 = vrot.slane %v362, 1
      %v503 = vsel %vm289, %v501, %v502
      %v504 = vsel %vm289, %v502, %v501
      %v505 = vsel %vm136, %v503, 0.0
      %v506 = vsel %vm137, %v504, 0.0
      %507 = vrot.lane.b32.xlu0 %v505, 1
      %v508 = vpop.permute.xlu0 %507
      %509 = vrot.lane.b32.xlu0 %v506, 1
      %v510 = vpop.permute.xlu0 %509
      %v511 = vsel %vm138, %v508, 0.0
      %v512 = vsel %vm138, %v510, 0.0
      %s513 = sld [smem:[#allocation5 + $0x39]]
      %v514 = vstv %s513
      %v515 = vmul.f32 %v514, %v511
      %v516 = vmul.f32 %v514, %v512
      %v517 = vadd.f32 %v487, %v515
      %v518 = vadd.f32 %v488, %v516
      %s519 = sld [smem:[#allocation5 + $0x3a]]
      %v520 = vstv %s519
      %v521 = vmul.f32 %v520, %v511
      %v522 = vmul.f32 %v520, %v512
      %v523 = vadd.f32 %v493, %v521
      %v524 = vadd.f32 %v494, %v522
      %s525 = sld [smem:[#allocation5 + $0x3b]]
      %v526 = vstv %s525
      %v527 = vmul.f32 %v526, %v511
      %v528 = vmul.f32 %v526, %v512
      %v529 = vadd.f32 %v499, %v527
      %v530 = vadd.f32 %v500, %v528
      %s531 = sld [smem:[#allocation5 + $0x42]]
      %v532 = vstv %s531
      %v533 = vmul.f32 %v532, %v505
      %v534 = vmul.f32 %v532, %v506
      %v535 = vadd.f32 %v517, %v533
      %v536 = vadd.f32 %v518, %v534
      %s537 = sld [smem:[#allocation5 + $0x43]]
      %v538 = vstv %s537
      %v539 = vmul.f32 %v538, %v505
      %v540 = vmul.f32 %v538, %v506
      %v541 = vadd.f32 %v523, %v539
      %v542 = vadd.f32 %v524, %v540
      %s543 = sld [smem:[#allocation5 + $0x44]]
      %v544 = vstv %s543
      %v545 = vmul.f32 %v544, %v505
      %v546 = vmul.f32 %v544, %v506
      %v547 = vadd.f32 %v529, %v545
      %v548 = vadd.f32 %v530, %v546
      %549 = vrot.lane.b32.xlu0 %v505, 127
      %v550 = vpop.permute.xlu0 %549
      %551 = vrot.lane.b32.xlu0 %v506, 127
      %v552 = vpop.permute.xlu0 %551
      %v553 = vsel %vm139, %v550, 0.0
      %v554 = vsel %vm139, %v552, 0.0
      %s555 = sld [smem:[#allocation5 + $0x4b]]
      %v556 = vstv %s555
      %v557 = vmul.f32 %v556, %v553
      %v558 = vmul.f32 %v556, %v554
      %v559 = vadd.f32 %v535, %v557
      %v560 = vadd.f32 %v536, %v558
      %s561 = sld [smem:[#allocation5 + $0x4c]]
      %v562 = vstv %s561
      %v563 = vmul.f32 %v562, %v553
      %v564 = vmul.f32 %v562, %v554
      %v565 = vadd.f32 %v541, %v563
      %v566 = vadd.f32 %v542, %v564
      %s567 = sld [smem:[#allocation5 + $0x4d]]
      %v568 = vstv %s567
      %v569 = vmul.f32 %v568, %v553
      %v570 = vmul.f32 %v568, %v554
      %v571 = vadd.f32 %v547, %v569
      %v572 = vadd.f32 %v548, %v570
      %s573 = scalar_lea.vmem %s123, 32
      %v574 = vld [vmem:[%s573] sm:$0xff]
      %v575 = vld [vmem:[%s573 + $0x8] sm:$0xff]
      %v576 = vrot.slane %v574, 7
      %v577 = vrot.slane %v575, 7
      %v578 = vsel %vm150, %v576, %v577
      %v579 = vsel %vm150, %v577, %v576
      %v580 = vsel %vm134, %v579, 0.0
      %v581 = vsel %vm135, %v578, 0.0
      %582 = vrot.lane.b32.xlu0 %v580, 1
      %v583 = vpop.permute.xlu0 %582
      %584 = vrot.lane.b32.xlu0 %v581, 1
      %v585 = vpop.permute.xlu0 %584
      %v586 = vsel %vm138, %v583, 0.0
      %v587 = vsel %vm138, %v585, 0.0
      %s588 = sld [smem:[#allocation5 + $0x6]]
      %v589 = vstv %s588
      %v590 = vmul.f32 %v589, %v586
      %v591 = vmul.f32 %v589, %v587
      %v592 = vadd.f32 %v559, %v590
      %v593 = vadd.f32 %v560, %v591
      %s594 = sld [smem:[#allocation5 + $0x7]]
      %v595 = vstv %s594
      %v596 = vmul.f32 %v595, %v586
      %v597 = vmul.f32 %v595, %v587
      %v598 = vadd.f32 %v565, %v596
      %v599 = vadd.f32 %v566, %v597
      %s600 = sld [smem:[#allocation5 + $0x8]]
      %v601 = vstv %s600
      %v602 = vmul.f32 %v601, %v586
      %v603 = vmul.f32 %v601, %v587
      %v604 = vadd.f32 %v571, %v602
      %v605 = vadd.f32 %v572, %v603
      %s606 = sld [smem:[#allocation5 + $0xf]]
      %v607 = vstv %s606
      %v608 = vmul.f32 %v607, %v580
      %v609 = vmul.f32 %v607, %v581
      %v610 = vadd.f32 %v592, %v608
      %v611 = vadd.f32 %v593, %v609
      %s612 = sld [smem:[#allocation5 + $0x10]]
      %v613 = vstv %s612
      %v614 = vmul.f32 %v613, %v580
      %v615 = vmul.f32 %v613, %v581
      %v616 = vadd.f32 %v598, %v614
      %v617 = vadd.f32 %v599, %v615
      %s618 = sld [smem:[#allocation5 + $0x11]]
      %v619 = vstv %s618
      %v620 = vmul.f32 %v619, %v580
      %v621 = vmul.f32 %v619, %v581
      %v622 = vadd.f32 %v604, %v620
      %v623 = vadd.f32 %v605, %v621
      %624 = vrot.lane.b32.xlu0 %v580, 127
      %v625 = vpop.permute.xlu0 %624
      %626 = vrot.lane.b32.xlu0 %v581, 127
      %v627 = vpop.permute.xlu0 %626
      %v628 = vsel %vm139, %v625, 0.0
      %v629 = vsel %vm139, %v627, 0.0
      %s630 = sld [smem:[#allocation5 + $0x18]]
      %v631 = vstv %s630
      %v632 = vmul.f32 %v631, %v628
      %v633 = vmul.f32 %v631, %v629
      %v634 = vadd.f32 %v610, %v632
      %v635 = vadd.f32 %v611, %v633
      %s636 = sld [smem:[#allocation5 + $0x19]]
      %v637 = vstv %s636
      %v638 = vmul.f32 %v637, %v628
      %v639 = vmul.f32 %v637, %v629
      %v640 = vadd.f32 %v616, %v638
      %v641 = vadd.f32 %v617, %v639
      %s642 = sld [smem:[#allocation5 + $0x1a]]
      %v643 = vstv %s642
      %v644 = vmul.f32 %v643, %v628
      %v645 = vmul.f32 %v643, %v629
      %v646 = vadd.f32 %v622, %v644
      %v647 = vadd.f32 %v623, %v645
      %648 = vrot.lane.b32.xlu0 %v574, 1
      %v649 = vpop.permute.xlu0 %648
      %650 = vrot.lane.b32.xlu0 %v575, 1
      %v651 = vpop.permute.xlu0 %650
      %v652 = vsel %vm138, %v649, 0.0
      %v653 = vsel %vm138, %v651, 0.0
      %s654 = sld [smem:[#allocation5 + $0x21]]
      %v655 = vstv %s654
      %v656 = vmul.f32 %v655, %v652
      %v657 = vmul.f32 %v655, %v653
      %v658 = vadd.f32 %v634, %v656
      %v659 = vadd.f32 %v635, %v657
      %s660 = sld [smem:[#allocation5 + $0x22]]
      %v661 = vstv %s660
      %v662 = vmul.f32 %v661, %v652
      %v663 = vmul.f32 %v661, %v653
      %v664 = vadd.f32 %v640, %v662
      %v665 = vadd.f32 %v641, %v663
      %s666 = sld [smem:[#allocation5 + $0x23]]
      %v667 = vstv %s666
      %v668 = vmul.f32 %v667, %v652
      %v669 = vmul.f32 %v667, %v653
      %v670 = vadd.f32 %v646, %v668
      %v671 = vadd.f32 %v647, %v669
      %s672 = sld [smem:[#allocation5 + $0x2a]]
      %v673 = vstv %s672
      %v674 = vmul.f32 %v673, %v574
      %v675 = vmul.f32 %v673, %v575
      %v676 = vadd.f32 %v658, %v674
      %v677 = vadd.f32 %v659, %v675
      %s678 = sld [smem:[#allocation5 + $0x2b]]
      %v679 = vstv %s678
      %v680 = vmul.f32 %v679, %v574
      %v681 = vmul.f32 %v679, %v575
      %v682 = vadd.f32 %v664, %v680
      %v683 = vadd.f32 %v665, %v681
      %s684 = sld [smem:[#allocation5 + $0x2c]]
      %v685 = vstv %s684
      %v686 = vmul.f32 %v685, %v574
      %v687 = vmul.f32 %v685, %v575
      %v688 = vadd.f32 %v670, %v686
      %v689 = vadd.f32 %v671, %v687
      %690 = vrot.lane.b32.xlu0 %v574, 127
      %v691 = vpop.permute.xlu0 %690
      %692 = vrot.lane.b32.xlu0 %v575, 127
      %v693 = vpop.permute.xlu0 %692
      %v694 = vsel %vm139, %v691, 0.0
      %v695 = vsel %vm139, %v693, 0.0
      %s696 = sld [smem:[#allocation5 + $0x33]]
      %v697 = vstv %s696
      %v698 = vmul.f32 %v697, %v694
      %v699 = vmul.f32 %v697, %v695
      %v700 = vadd.f32 %v676, %v698
      %v701 = vadd.f32 %v677, %v699
      %s702 = sld [smem:[#allocation5 + $0x34]]
      %v703 = vstv %s702
      %v704 = vmul.f32 %v703, %v694
      %v705 = vmul.f32 %v703, %v695
      %v706 = vadd.f32 %v682, %v704
      %v707 = vadd.f32 %v683, %v705
      %s708 = sld [smem:[#allocation5 + $0x35]]
      %v709 = vstv %s708
      %v710 = vmul.f32 %v709, %v694
      %v711 = vmul.f32 %v709, %v695
      %v712 = vadd.f32 %v688, %v710
      %v713 = vadd.f32 %v689, %v711
      %v714 = vrot.slane %v574, 1
      %v715 = vrot.slane %v575, 1
      %v716 = vsel %vm289, %v714, %v715
      %v717 = vsel %vm289, %v715, %v714
      %v718 = vsel %vm136, %v716, 0.0
      %v719 = vsel %vm137, %v717, 0.0
      %720 = vrot.lane.b32.xlu0 %v718, 1
      %v721 = vpop.permute.xlu0 %720
      %722 = vrot.lane.b32.xlu0 %v719, 1
      %v723 = vpop.permute.xlu0 %722
      %v724 = vsel %vm138, %v721, 0.0
      %v725 = vsel %vm138, %v723, 0.0
      %s726 = sld [smem:[#allocation5 + $0x3c]]
      %v727 = vstv %s726
      %v728 = vmul.f32 %v727, %v724
      %v729 = vmul.f32 %v727, %v725
      %v730 = vadd.f32 %v700, %v728
      %v731 = vadd.f32 %v701, %v729
      %s732 = sld [smem:[#allocation5 + $0x3d]]
      %v733 = vstv %s732
      %v734 = vmul.f32 %v733, %v724
      %v735 = vmul.f32 %v733, %v725
      %v736 = vadd.f32 %v706, %v734
      %v737 = vadd.f32 %v707, %v735
      %s738 = sld [smem:[#allocation5 + $0x3e]]
      %v739 = vstv %s738
      %v740 = vmul.f32 %v739, %v724
      %v741 = vmul.f32 %v739, %v725
      %v742 = vadd.f32 %v712, %v740
      %v743 = vadd.f32 %v713, %v741
      %s744 = sld [smem:[#allocation5 + $0x45]]
      %v745 = vstv %s744
      %v746 = vmul.f32 %v745, %v718
      %v747 = vmul.f32 %v745, %v719
      %v748 = vadd.f32 %v730, %v746
      %v749 = vadd.f32 %v731, %v747
      %s750 = sld [smem:[#allocation5 + $0x46]]
      %v751 = vstv %s750
      %v752 = vmul.f32 %v751, %v718
      %v753 = vmul.f32 %v751, %v719
      %v754 = vadd.f32 %v736, %v752
      %v755 = vadd.f32 %v737, %v753
      %s756 = sld [smem:[#allocation5 + $0x47]]
      %v757 = vstv %s756
      %v758 = vmul.f32 %v757, %v718
      %v759 = vmul.f32 %v757, %v719
      %v760 = vadd.f32 %v742, %v758
      %v761 = vadd.f32 %v743, %v759
      %762 = vrot.lane.b32.xlu0 %v718, 127
      %v763 = vpop.permute.xlu0 %762
      %764 = vrot.lane.b32.xlu0 %v719, 127
      %v765 = vpop.permute.xlu0 %764
      %v766 = vsel %vm139, %v763, 0.0
      %v767 = vsel %vm139, %v765, 0.0
      %s768 = sld [smem:[#allocation5 + $0x4e]]
      %v769 = vstv %s768
      %v770 = vmul.f32 %v769, %v766
      %v771 = vmul.f32 %v769, %v767
      %v772 = vadd.f32 %v748, %v770
      %v773 = vadd.f32 %v749, %v771
      %s774 = sld [smem:[#allocation5 + $0x4f]]
      %v775 = vstv %s774
      %v776 = vmul.f32 %v775, %v766
      %v777 = vmul.f32 %v775, %v767
      %v778 = vadd.f32 %v754, %v776
      %v779 = vadd.f32 %v755, %v777
      %s780 = sld [smem:[#allocation5 + $0x50]]
      %v781 = vstv %s780
      %v782 = vmul.f32 %v781, %v766
      %v783 = vmul.f32 %v781, %v767
      %v784 = vadd.f32 %v760, %v782
      %v785 = vadd.f32 %v761, %v783
      %v786 = vmul.f32 %v772, 0.5
      %v787 = vmul.f32 %v773, 0.5
      %v788 = vtanh.pop %v786
      %v789 = vtanh.pop %v787
      %v790 = vmul.f32 %v788, 0.5
      %v791 = vmul.f32 %v789, 0.5
      %v792 = vadd.f32 %v790, 0.5
      %v793 = vadd.f32 %v791, 0.5
      %794 = vst [vmem:[#allocation2] sm:$0xff] %v792
      %795 = vst [vmem:[#allocation2 + $0x8] sm:$0xff] %v793
      %v796 = vmul.f32 %v778, 0.5
      %v797 = vmul.f32 %v779, 0.5
      %v798 = vtanh.pop %v796
      %v799 = vtanh.pop %v797
      %v800 = vmul.f32 %v798, 0.5
      %v801 = vmul.f32 %v799, 0.5
      %v802 = vadd.f32 %v800, 0.5
      %v803 = vadd.f32 %v801, 0.5
      %s804 = scalar_lea.vmem [#allocation2], 16
      %805 = vst [vmem:[%s804] sm:$0xff] %v802
      %806 = vst [vmem:[%s804 + $0x8] sm:$0xff] %v803
      %v807 = vmul.f32 %v784, 0.5
      %v808 = vmul.f32 %v785, 0.5
      %v809 = vtanh.pop %v807
      %v810 = vtanh.pop %v808
      %v811 = vmul.f32 %v809, 0.5
      %v812 = vmul.f32 %v810, 0.5
      %v813 = vadd.f32 %v811, 0.5
      %v814 = vadd.f32 %v812, 0.5
      %s815 = scalar_lea.vmem [#allocation2], 32
      %816 = vst [vmem:[%s815] sm:$0xff] %v813
      %817 = vst [vmem:[%s815 + $0x8] sm:$0xff] %v814
      %s818 = sld [smem:[#allocation6 + $0x3]]
      %v819 = vstv %s818
      %s820 = sld [smem:[#allocation6 + $0x4]]
      %v821 = vstv %s820
      %s822 = sld [smem:[#allocation6 + $0x5]]
      %v823 = vstv %s822
      %v824 = vld [vmem:[#allocation2] sm:$0xff]
      %v825 = vld [vmem:[#allocation2 + $0x8] sm:$0xff]
      %v826 = vrot.slane %v824, 7
      %v827 = vrot.slane %v825, 7
      %v828 = vsel %vm150, %v826, %v827
      %v829 = vsel %vm150, %v827, %v826
      %v830 = vsel %vm134, %v829, 0.0
      %v831 = vsel %vm135, %v828, 0.0
      %832 = vrot.lane.b32.xlu0 %v830, 1
      %v833 = vpop.permute.xlu0 %832
      %834 = vrot.lane.b32.xlu0 %v831, 1
      %v835 = vpop.permute.xlu0 %834
      %v836 = vsel %vm138, %v833, 0.0
      %v837 = vsel %vm138, %v835, 0.0
      %s838 = sld [smem:[#allocation5 + $0x51]]
      %v839 = vstv %s838
      %v840 = vmul.f32 %v839, %v836
      %v841 = vmul.f32 %v839, %v837
      %v842 = vadd.f32 %v819, %v840
      %v843 = vadd.f32 %v819, %v841
      %s844 = sld [smem:[#allocation5 + $0x52]]
      %v845 = vstv %s844
      %v846 = vmul.f32 %v845, %v836
      %v847 = vmul.f32 %v845, %v837
      %v848 = vadd.f32 %v821, %v846
      %v849 = vadd.f32 %v821, %v847
      %s850 = sld [smem:[#allocation5 + $0x53]]
      %v851 = vstv %s850
      %v852 = vmul.f32 %v851, %v836
      %v853 = vmul.f32 %v851, %v837
      %v854 = vadd.f32 %v823, %v852
      %v855 = vadd.f32 %v823, %v853
      %s856 = sld [smem:[#allocation5 + $0x5a]]
      %v857 = vstv %s856
      %v858 = vmul.f32 %v857, %v830
      %v859 = vmul.f32 %v857, %v831
      %v860 = vadd.f32 %v842, %v858
      %v861 = vadd.f32 %v843, %v859
      %s862 = sld [smem:[#allocation5 + $0x5b]]
      %v863 = vstv %s862
      %v864 = vmul.f32 %v863, %v830
      %v865 = vmul.f32 %v863, %v831
      %v866 = vadd.f32 %v848, %v864
      %v867 = vadd.f32 %v849, %v865
      %s868 = sld [smem:[#allocation5 + $0x5c]]
      %v869 = vstv %s868
      %v870 = vmul.f32 %v869, %v830
      %v871 = vmul.f32 %v869, %v831
      %v872 = vadd.f32 %v854, %v870
      %v873 = vadd.f32 %v855, %v871
      %874 = vrot.lane.b32.xlu0 %v830, 127
      %v875 = vpop.permute.xlu0 %874
      %876 = vrot.lane.b32.xlu0 %v831, 127
      %v877 = vpop.permute.xlu0 %876
      %v878 = vsel %vm139, %v875, 0.0
      %v879 = vsel %vm139, %v877, 0.0
      %s880 = sld [smem:[#allocation5 + $0x63]]
      %v881 = vstv %s880
      %v882 = vmul.f32 %v881, %v878
      %v883 = vmul.f32 %v881, %v879
      %v884 = vadd.f32 %v860, %v882
      %v885 = vadd.f32 %v861, %v883
      %s886 = sld [smem:[#allocation5 + $0x64]]
      %v887 = vstv %s886
      %v888 = vmul.f32 %v887, %v878
      %v889 = vmul.f32 %v887, %v879
      %v890 = vadd.f32 %v866, %v888
      %v891 = vadd.f32 %v867, %v889
      %s892 = sld [smem:[#allocation5 + $0x65]]
      %v893 = vstv %s892
      %v894 = vmul.f32 %v893, %v878
      %v895 = vmul.f32 %v893, %v879
      %v896 = vadd.f32 %v872, %v894
      %v897 = vadd.f32 %v873, %v895
      %898 = vrot.lane.b32.xlu0 %v824, 1
      %v899 = vpop.permute.xlu0 %898
      %900 = vrot.lane.b32.xlu0 %v825, 1
      %v901 = vpop.permute.xlu0 %900
      %v902 = vsel %vm138, %v899, 0.0
      %v903 = vsel %vm138, %v901, 0.0
      %s904 = sld [smem:[#allocation5 + $0x6c]]
      %v905 = vstv %s904
      %v906 = vmul.f32 %v905, %v902
      %v907 = vmul.f32 %v905, %v903
      %v908 = vadd.f32 %v884, %v906
      %v909 = vadd.f32 %v885, %v907
      %s910 = sld [smem:[#allocation5 + $0x6d]]
      %v911 = vstv %s910
      %v912 = vmul.f32 %v911, %v902
      %v913 = vmul.f32 %v911, %v903
      %v914 = vadd.f32 %v890, %v912
      %v915 = vadd.f32 %v891, %v913
      %s916 = sld [smem:[#allocation5 + $0x6e]]
      %v917 = vstv %s916
      %v918 = vmul.f32 %v917, %v902
      %v919 = vmul.f32 %v917, %v903
      %v920 = vadd.f32 %v896, %v918
      %v921 = vadd.f32 %v897, %v919
      %s922 = sld [smem:[#allocation5 + $0x75]]
      %v923 = vstv %s922
      %v924 = vmul.f32 %v923, %v824
      %v925 = vmul.f32 %v923, %v825
      %v926 = vadd.f32 %v908, %v924
      %v927 = vadd.f32 %v909, %v925
      %s928 = sld [smem:[#allocation5 + $0x76]]
      %v929 = vstv %s928
      %v930 = vmul.f32 %v929, %v824
      %v931 = vmul.f32 %v929, %v825
      %v932 = vadd.f32 %v914, %v930
      %v933 = vadd.f32 %v915, %v931
      %s934 = sld [smem:[#allocation5 + $0x77]]
      %v935 = vstv %s934
      %v936 = vmul.f32 %v935, %v824
      %v937 = vmul.f32 %v935, %v825
      %v938 = vadd.f32 %v920, %v936
      %v939 = vadd.f32 %v921, %v937
      %940 = vrot.lane.b32.xlu0 %v824, 127
      %v941 = vpop.permute.xlu0 %940
      %942 = vrot.lane.b32.xlu0 %v825, 127
      %v943 = vpop.permute.xlu0 %942
      %v944 = vsel %vm139, %v941, 0.0
      %v945 = vsel %vm139, %v943, 0.0
      %s946 = sld [smem:[#allocation5 + $0x7e]]
      %v947 = vstv %s946
      %v948 = vmul.f32 %v947, %v944
      %v949 = vmul.f32 %v947, %v945
      %v950 = vadd.f32 %v926, %v948
      %v951 = vadd.f32 %v927, %v949
      %s952 = sld [smem:[#allocation5 + $0x7f]]
      %v953 = vstv %s952
      %v954 = vmul.f32 %v953, %v944
      %v955 = vmul.f32 %v953, %v945
      %v956 = vadd.f32 %v932, %v954
      %v957 = vadd.f32 %v933, %v955
      %s958 = sld [smem:[#allocation5 + $0x80]]
      %v959 = vstv %s958
      %v960 = vmul.f32 %v959, %v944
      %v961 = vmul.f32 %v959, %v945
      %v962 = vadd.f32 %v938, %v960
      %v963 = vadd.f32 %v939, %v961
      %v964 = vrot.slane %v824, 1
      %v965 = vrot.slane %v825, 1
      %v966 = vsel %vm289, %v964, %v965
      %v967 = vsel %vm289, %v965, %v964
      %v968 = vsel %vm136, %v966, 0.0
      %v969 = vsel %vm137, %v967, 0.0
      %970 = vrot.lane.b32.xlu0 %v968, 1
      %v971 = vpop.permute.xlu0 %970
      %972 = vrot.lane.b32.xlu0 %v969, 1
      %v973 = vpop.permute.xlu0 %972
      %v974 = vsel %vm138, %v971, 0.0
      %v975 = vsel %vm138, %v973, 0.0
      %s976 = sld [smem:[#allocation5 + $0x87]]
      %v977 = vstv %s976
      %v978 = vmul.f32 %v977, %v974
      %v979 = vmul.f32 %v977, %v975
      %v980 = vadd.f32 %v950, %v978
      %v981 = vadd.f32 %v951, %v979
      %s982 = sld [smem:[#allocation5 + $0x88]]
      %v983 = vstv %s982
      %v984 = vmul.f32 %v983, %v974
      %v985 = vmul.f32 %v983, %v975
      %v986 = vadd.f32 %v956, %v984
      %v987 = vadd.f32 %v957, %v985
      %s988 = sld [smem:[#allocation5 + $0x89]]
      %v989 = vstv %s988
      %v990 = vmul.f32 %v989, %v974
      %v991 = vmul.f32 %v989, %v975
      %v992 = vadd.f32 %v962, %v990
      %v993 = vadd.f32 %v963, %v991
      %s994 = sld [smem:[#allocation5 + $0x90]]
      %v995 = vstv %s994
      %v996 = vmul.f32 %v995, %v968
      %v997 = vmul.f32 %v995, %v969
      %v998 = vadd.f32 %v980, %v996
      %v999 = vadd.f32 %v981, %v997
      %s1000 = sld [smem:[#allocation5 + $0x91]]
      %v1001 = vstv %s1000
      %v1002 = vmul.f32 %v1001, %v968
      %v1003 = vmul.f32 %v1001, %v969
      %v1004 = vadd.f32 %v986, %v1002
      %v1005 = vadd.f32 %v987, %v1003
      %s1006 = sld [smem:[#allocation5 + $0x92]]
      %v1007 = vstv %s1006
      %v1008 = vmul.f32 %v1007, %v968
      %v1009 = vmul.f32 %v1007, %v969
      %v1010 = vadd.f32 %v992, %v1008
      %v1011 = vadd.f32 %v993, %v1009
      %1012 = vrot.lane.b32.xlu0 %v968, 127
      %v1013 = vpop.permute.xlu0 %1012
      %1014 = vrot.lane.b32.xlu0 %v969, 127
      %v1015 = vpop.permute.xlu0 %1014
      %v1016 = vsel %vm139, %v1013, 0.0
      %v1017 = vsel %vm139, %v1015, 0.0
      %s1018 = sld [smem:[#allocation5 + $0x99]]
      %v1019 = vstv %s1018
      %v1020 = vmul.f32 %v1019, %v1016
      %v1021 = vmul.f32 %v1019, %v1017
      %v1022 = vadd.f32 %v998, %v1020
      %v1023 = vadd.f32 %v999, %v1021
      %s1024 = sld [smem:[#allocation5 + $0x9a]]
      %v1025 = vstv %s1024
      %v1026 = vmul.f32 %v1025, %v1016
      %v1027 = vmul.f32 %v1025, %v1017
      %v1028 = vadd.f32 %v1004, %v1026
      %v1029 = vadd.f32 %v1005, %v1027
      %s1030 = sld [smem:[#allocation5 + $0x9b]]
      %v1031 = vstv %s1030
      %v1032 = vmul.f32 %v1031, %v1016
      %v1033 = vmul.f32 %v1031, %v1017
      %v1034 = vadd.f32 %v1010, %v1032
      %v1035 = vadd.f32 %v1011, %v1033
      %v1036 = vld [vmem:[%s804] sm:$0xff]
      %v1037 = vld [vmem:[%s804 + $0x8] sm:$0xff]
      %v1038 = vrot.slane %v1036, 7
      %v1039 = vrot.slane %v1037, 7
      %v1040 = vsel %vm150, %v1038, %v1039
      %v1041 = vsel %vm150, %v1039, %v1038
      %v1042 = vsel %vm134, %v1041, 0.0
      %v1043 = vsel %vm135, %v1040, 0.0
      %1044 = vrot.lane.b32.xlu0 %v1042, 1
      %v1045 = vpop.permute.xlu0 %1044
      %1046 = vrot.lane.b32.xlu0 %v1043, 1
      %v1047 = vpop.permute.xlu0 %1046
      %v1048 = vsel %vm138, %v1045, 0.0
      %v1049 = vsel %vm138, %v1047, 0.0
      %s1050 = sld [smem:[#allocation5 + $0x54]]
      %v1051 = vstv %s1050
      %v1052 = vmul.f32 %v1051, %v1048
      %v1053 = vmul.f32 %v1051, %v1049
      %v1054 = vadd.f32 %v1022, %v1052
      %v1055 = vadd.f32 %v1023, %v1053
      %s1056 = sld [smem:[#allocation5 + $0x55]]
      %v1057 = vstv %s1056
      %v1058 = vmul.f32 %v1057, %v1048
      %v1059 = vmul.f32 %v1057, %v1049
      %v1060 = vadd.f32 %v1028, %v1058
      %v1061 = vadd.f32 %v1029, %v1059
      %s1062 = sld [smem:[#allocation5 + $0x56]]
      %v1063 = vstv %s1062
      %v1064 = vmul.f32 %v1063, %v1048
      %v1065 = vmul.f32 %v1063, %v1049
      %v1066 = vadd.f32 %v1034, %v1064
      %v1067 = vadd.f32 %v1035, %v1065
      %s1068 = sld [smem:[#allocation5 + $0x5d]]
      %v1069 = vstv %s1068
      %v1070 = vmul.f32 %v1069, %v1042
      %v1071 = vmul.f32 %v1069, %v1043
      %v1072 = vadd.f32 %v1054, %v1070
      %v1073 = vadd.f32 %v1055, %v1071
      %s1074 = sld [smem:[#allocation5 + $0x5e]]
      %v1075 = vstv %s1074
      %v1076 = vmul.f32 %v1075, %v1042
      %v1077 = vmul.f32 %v1075, %v1043
      %v1078 = vadd.f32 %v1060, %v1076
      %v1079 = vadd.f32 %v1061, %v1077
      %s1080 = sld [smem:[#allocation5 + $0x5f]]
      %v1081 = vstv %s1080
      %v1082 = vmul.f32 %v1081, %v1042
      %v1083 = vmul.f32 %v1081, %v1043
      %v1084 = vadd.f32 %v1066, %v1082
      %v1085 = vadd.f32 %v1067, %v1083
      %1086 = vrot.lane.b32.xlu0 %v1042, 127
      %v1087 = vpop.permute.xlu0 %1086
      %1088 = vrot.lane.b32.xlu0 %v1043, 127
      %v1089 = vpop.permute.xlu0 %1088
      %v1090 = vsel %vm139, %v1087, 0.0
      %v1091 = vsel %vm139, %v1089, 0.0
      %s1092 = sld [smem:[#allocation5 + $0x66]]
      %v1093 = vstv %s1092
      %v1094 = vmul.f32 %v1093, %v1090
      %v1095 = vmul.f32 %v1093, %v1091
      %v1096 = vadd.f32 %v1072, %v1094
      %v1097 = vadd.f32 %v1073, %v1095
      %s1098 = sld [smem:[#allocation5 + $0x67]]
      %v1099 = vstv %s1098
      %v1100 = vmul.f32 %v1099, %v1090
      %v1101 = vmul.f32 %v1099, %v1091
      %v1102 = vadd.f32 %v1078, %v1100
      %v1103 = vadd.f32 %v1079, %v1101
      %s1104 = sld [smem:[#allocation5 + $0x68]]
      %v1105 = vstv %s1104
      %v1106 = vmul.f32 %v1105, %v1090
      %v1107 = vmul.f32 %v1105, %v1091
      %v1108 = vadd.f32 %v1084, %v1106
      %v1109 = vadd.f32 %v1085, %v1107
      %1110 = vrot.lane.b32.xlu0 %v1036, 1
      %v1111 = vpop.permute.xlu0 %1110
      %1112 = vrot.lane.b32.xlu0 %v1037, 1
      %v1113 = vpop.permute.xlu0 %1112
      %v1114 = vsel %vm138, %v1111, 0.0
      %v1115 = vsel %vm138, %v1113, 0.0
      %s1116 = sld [smem:[#allocation5 + $0x6f]]
      %v1117 = vstv %s1116
      %v1118 = vmul.f32 %v1117, %v1114
      %v1119 = vmul.f32 %v1117, %v1115
      %v1120 = vadd.f32 %v1096, %v1118
      %v1121 = vadd.f32 %v1097, %v1119
      %s1122 = sld [smem:[#allocation5 + $0x70]]
      %v1123 = vstv %s1122
      %v1124 = vmul.f32 %v1123, %v1114
      %v1125 = vmul.f32 %v1123, %v1115
      %v1126 = vadd.f32 %v1102, %v1124
      %v1127 = vadd.f32 %v1103, %v1125
      %s1128 = sld [smem:[#allocation5 + $0x71]]
      %v1129 = vstv %s1128
      %v1130 = vmul.f32 %v1129, %v1114
      %v1131 = vmul.f32 %v1129, %v1115
      %v1132 = vadd.f32 %v1108, %v1130
      %v1133 = vadd.f32 %v1109, %v1131
      %s1134 = sld [smem:[#allocation5 + $0x78]]
      %v1135 = vstv %s1134
      %v1136 = vmul.f32 %v1135, %v1036
      %v1137 = vmul.f32 %v1135, %v1037
      %v1138 = vadd.f32 %v1120, %v1136
      %v1139 = vadd.f32 %v1121, %v1137
      %s1140 = sld [smem:[#allocation5 + $0x79]]
      %v1141 = vstv %s1140
      %v1142 = vmul.f32 %v1141, %v1036
      %v1143 = vmul.f32 %v1141, %v1037
      %v1144 = vadd.f32 %v1126, %v1142
      %v1145 = vadd.f32 %v1127, %v1143
      %s1146 = sld [smem:[#allocation5 + $0x7a]]
      %v1147 = vstv %s1146
      %v1148 = vmul.f32 %v1147, %v1036
      %v1149 = vmul.f32 %v1147, %v1037
      %v1150 = vadd.f32 %v1132, %v1148
      %v1151 = vadd.f32 %v1133, %v1149
      %1152 = vrot.lane.b32.xlu0 %v1036, 127
      %v1153 = vpop.permute.xlu0 %1152
      %1154 = vrot.lane.b32.xlu0 %v1037, 127
      %v1155 = vpop.permute.xlu0 %1154
      %v1156 = vsel %vm139, %v1153, 0.0
      %v1157 = vsel %vm139, %v1155, 0.0
      %s1158 = sld [smem:[#allocation5 + $0x81]]
      %v1159 = vstv %s1158
      %v1160 = vmul.f32 %v1159, %v1156
      %v1161 = vmul.f32 %v1159, %v1157
      %v1162 = vadd.f32 %v1138, %v1160
      %v1163 = vadd.f32 %v1139, %v1161
      %s1164 = sld [smem:[#allocation5 + $0x82]]
      %v1165 = vstv %s1164
      %v1166 = vmul.f32 %v1165, %v1156
      %v1167 = vmul.f32 %v1165, %v1157
      %v1168 = vadd.f32 %v1144, %v1166
      %v1169 = vadd.f32 %v1145, %v1167
      %s1170 = sld [smem:[#allocation5 + $0x83]]
      %v1171 = vstv %s1170
      %v1172 = vmul.f32 %v1171, %v1156
      %v1173 = vmul.f32 %v1171, %v1157
      %v1174 = vadd.f32 %v1150, %v1172
      %v1175 = vadd.f32 %v1151, %v1173
      %v1176 = vrot.slane %v1036, 1
      %v1177 = vrot.slane %v1037, 1
      %v1178 = vsel %vm289, %v1176, %v1177
      %v1179 = vsel %vm289, %v1177, %v1176
      %v1180 = vsel %vm136, %v1178, 0.0
      %v1181 = vsel %vm137, %v1179, 0.0
      %1182 = vrot.lane.b32.xlu0 %v1180, 1
      %v1183 = vpop.permute.xlu0 %1182
      %1184 = vrot.lane.b32.xlu0 %v1181, 1
      %v1185 = vpop.permute.xlu0 %1184
      %v1186 = vsel %vm138, %v1183, 0.0
      %v1187 = vsel %vm138, %v1185, 0.0
      %s1188 = sld [smem:[#allocation5 + $0x8a]]
      %v1189 = vstv %s1188
      %v1190 = vmul.f32 %v1189, %v1186
      %v1191 = vmul.f32 %v1189, %v1187
      %v1192 = vadd.f32 %v1162, %v1190
      %v1193 = vadd.f32 %v1163, %v1191
      %s1194 = sld [smem:[#allocation5 + $0x8b]]
      %v1195 = vstv %s1194
      %v1196 = vmul.f32 %v1195, %v1186
      %v1197 = vmul.f32 %v1195, %v1187
      %v1198 = vadd.f32 %v1168, %v1196
      %v1199 = vadd.f32 %v1169, %v1197
      %s1200 = sld [smem:[#allocation5 + $0x8c]]
      %v1201 = vstv %s1200
      %v1202 = vmul.f32 %v1201, %v1186
      %v1203 = vmul.f32 %v1201, %v1187
      %v1204 = vadd.f32 %v1174, %v1202
      %v1205 = vadd.f32 %v1175, %v1203
      %s1206 = sld [smem:[#allocation5 + $0x93]]
      %v1207 = vstv %s1206
      %v1208 = vmul.f32 %v1207, %v1180
      %v1209 = vmul.f32 %v1207, %v1181
      %v1210 = vadd.f32 %v1192, %v1208
      %v1211 = vadd.f32 %v1193, %v1209
      %s1212 = sld [smem:[#allocation5 + $0x94]]
      %v1213 = vstv %s1212
      %v1214 = vmul.f32 %v1213, %v1180
      %v1215 = vmul.f32 %v1213, %v1181
      %v1216 = vadd.f32 %v1198, %v1214
      %v1217 = vadd.f32 %v1199, %v1215
      %s1218 = sld [smem:[#allocation5 + $0x95]]
      %v1219 = vstv %s1218
      %v1220 = vmul.f32 %v1219, %v1180
      %v1221 = vmul.f32 %v1219, %v1181
      %v1222 = vadd.f32 %v1204, %v1220
      %v1223 = vadd.f32 %v1205, %v1221
      %1224 = vrot.lane.b32.xlu0 %v1180, 127
      %v1225 = vpop.permute.xlu0 %1224
      %1226 = vrot.lane.b32.xlu0 %v1181, 127
      %v1227 = vpop.permute.xlu0 %1226
      %v1228 = vsel %vm139, %v1225, 0.0
      %v1229 = vsel %vm139, %v1227, 0.0
      %s1230 = sld [smem:[#allocation5 + $0x9c]]
      %v1231 = vstv %s1230
      %v1232 = vmul.f32 %v1231, %v1228
      %v1233 = vmul.f32 %v1231, %v1229
      %v1234 = vadd.f32 %v1210, %v1232
      %v1235 = vadd.f32 %v1211, %v1233
      %s1236 = sld [smem:[#allocation5 + $0x9d]]
      %v1237 = vstv %s1236
      %v1238 = vmul.f32 %v1237, %v1228
      %v1239 = vmul.f32 %v1237, %v1229
      %v1240 = vadd.f32 %v1216, %v1238
      %v1241 = vadd.f32 %v1217, %v1239
      %s1242 = sld [smem:[#allocation5 + $0x9e]]
      %v1243 = vstv %s1242
      %v1244 = vmul.f32 %v1243, %v1228
      %v1245 = vmul.f32 %v1243, %v1229
      %v1246 = vadd.f32 %v1222, %v1244
      %v1247 = vadd.f32 %v1223, %v1245
      %v1248 = vld [vmem:[%s815] sm:$0xff]
      %v1249 = vld [vmem:[%s815 + $0x8] sm:$0xff]
      %v1250 = vrot.slane %v1248, 7
      %v1251 = vrot.slane %v1249, 7
      %v1252 = vsel %vm150, %v1250, %v1251
      %v1253 = vsel %vm150, %v1251, %v1250
      %v1254 = vsel %vm134, %v1253, 0.0
      %v1255 = vsel %vm135, %v1252, 0.0
      %1256 = vrot.lane.b32.xlu0 %v1254, 1
      %v1257 = vpop.permute.xlu0 %1256
      %1258 = vrot.lane.b32.xlu0 %v1255, 1
      %v1259 = vpop.permute.xlu0 %1258
      %v1260 = vsel %vm138, %v1257, 0.0
      %v1261 = vsel %vm138, %v1259, 0.0
      %s1262 = sld [smem:[#allocation5 + $0x57]]
      %v1263 = vstv %s1262
      %v1264 = vmul.f32 %v1263, %v1260
      %v1265 = vmul.f32 %v1263, %v1261
      %v1266 = vadd.f32 %v1234, %v1264
      %v1267 = vadd.f32 %v1235, %v1265
      %s1268 = sld [smem:[#allocation5 + $0x58]]
      %v1269 = vstv %s1268
      %v1270 = vmul.f32 %v1269, %v1260
      %v1271 = vmul.f32 %v1269, %v1261
      %v1272 = vadd.f32 %v1240, %v1270
      %v1273 = vadd.f32 %v1241, %v1271
      %s1274 = sld [smem:[#allocation5 + $0x59]]
      %v1275 = vstv %s1274
      %v1276 = vmul.f32 %v1275, %v1260
      %v1277 = vmul.f32 %v1275, %v1261
      %v1278 = vadd.f32 %v1246, %v1276
      %v1279 = vadd.f32 %v1247, %v1277
      %s1280 = sld [smem:[#allocation5 + $0x60]]
      %v1281 = vstv %s1280
      %v1282 = vmul.f32 %v1281, %v1254
      %v1283 = vmul.f32 %v1281, %v1255
      %v1284 = vadd.f32 %v1266, %v1282
      %v1285 = vadd.f32 %v1267, %v1283
      %s1286 = sld [smem:[#allocation5 + $0x61]]
      %v1287 = vstv %s1286
      %v1288 = vmul.f32 %v1287, %v1254
      %v1289 = vmul.f32 %v1287, %v1255
      %v1290 = vadd.f32 %v1272, %v1288
      %v1291 = vadd.f32 %v1273, %v1289
      %s1292 = sld [smem:[#allocation5 + $0x62]]
      %v1293 = vstv %s1292
      %v1294 = vmul.f32 %v1293, %v1254
      %v1295 = vmul.f32 %v1293, %v1255
      %v1296 = vadd.f32 %v1278, %v1294
      %v1297 = vadd.f32 %v1279, %v1295
      %1298 = vrot.lane.b32.xlu0 %v1254, 127
      %v1299 = vpop.permute.xlu0 %1298
      %1300 = vrot.lane.b32.xlu0 %v1255, 127
      %v1301 = vpop.permute.xlu0 %1300
      %v1302 = vsel %vm139, %v1299, 0.0
      %v1303 = vsel %vm139, %v1301, 0.0
      %s1304 = sld [smem:[#allocation5 + $0x69]]
      %v1305 = vstv %s1304
      %v1306 = vmul.f32 %v1305, %v1302
      %v1307 = vmul.f32 %v1305, %v1303
      %v1308 = vadd.f32 %v1284, %v1306
      %v1309 = vadd.f32 %v1285, %v1307
      %s1310 = sld [smem:[#allocation5 + $0x6a]]
      %v1311 = vstv %s1310
      %v1312 = vmul.f32 %v1311, %v1302
      %v1313 = vmul.f32 %v1311, %v1303
      %v1314 = vadd.f32 %v1290, %v1312
      %v1315 = vadd.f32 %v1291, %v1313
      %s1316 = sld [smem:[#allocation5 + $0x6b]]
      %v1317 = vstv %s1316
      %v1318 = vmul.f32 %v1317, %v1302
      %v1319 = vmul.f32 %v1317, %v1303
      %v1320 = vadd.f32 %v1296, %v1318
      %v1321 = vadd.f32 %v1297, %v1319
      %1322 = vrot.lane.b32.xlu0 %v1248, 1
      %v1323 = vpop.permute.xlu0 %1322
      %1324 = vrot.lane.b32.xlu0 %v1249, 1
      %v1325 = vpop.permute.xlu0 %1324
      %v1326 = vsel %vm138, %v1323, 0.0
      %v1327 = vsel %vm138, %v1325, 0.0
      %s1328 = sld [smem:[#allocation5 + $0x72]]
      %v1329 = vstv %s1328
      %v1330 = vmul.f32 %v1329, %v1326
      %v1331 = vmul.f32 %v1329, %v1327
      %v1332 = vadd.f32 %v1308, %v1330
      %v1333 = vadd.f32 %v1309, %v1331
      %s1334 = sld [smem:[#allocation5 + $0x73]]
      %v1335 = vstv %s1334
      %v1336 = vmul.f32 %v1335, %v1326
      %v1337 = vmul.f32 %v1335, %v1327
      %v1338 = vadd.f32 %v1314, %v1336
      %v1339 = vadd.f32 %v1315, %v1337
      %s1340 = sld [smem:[#allocation5 + $0x74]]
      %v1341 = vstv %s1340
      %v1342 = vmul.f32 %v1341, %v1326
      %v1343 = vmul.f32 %v1341, %v1327
      %v1344 = vadd.f32 %v1320, %v1342
      %v1345 = vadd.f32 %v1321, %v1343
      %s1346 = sld [smem:[#allocation5 + $0x7b]]
      %v1347 = vstv %s1346
      %v1348 = vmul.f32 %v1347, %v1248
      %v1349 = vmul.f32 %v1347, %v1249
      %v1350 = vadd.f32 %v1332, %v1348
      %v1351 = vadd.f32 %v1333, %v1349
      %s1352 = sld [smem:[#allocation5 + $0x7c]]
      %v1353 = vstv %s1352
      %v1354 = vmul.f32 %v1353, %v1248
      %v1355 = vmul.f32 %v1353, %v1249
      %v1356 = vadd.f32 %v1338, %v1354
      %v1357 = vadd.f32 %v1339, %v1355
      %s1358 = sld [smem:[#allocation5 + $0x7d]]
      %v1359 = vstv %s1358
      %v1360 = vmul.f32 %v1359, %v1248
      %v1361 = vmul.f32 %v1359, %v1249
      %v1362 = vadd.f32 %v1344, %v1360
      %v1363 = vadd.f32 %v1345, %v1361
      %1364 = vrot.lane.b32.xlu0 %v1248, 127
      %v1365 = vpop.permute.xlu0 %1364
      %1366 = vrot.lane.b32.xlu0 %v1249, 127
      %v1367 = vpop.permute.xlu0 %1366
      %v1368 = vsel %vm139, %v1365, 0.0
      %v1369 = vsel %vm139, %v1367, 0.0
      %s1370 = sld [smem:[#allocation5 + $0x84]]
      %v1371 = vstv %s1370
      %v1372 = vmul.f32 %v1371, %v1368
      %v1373 = vmul.f32 %v1371, %v1369
      %v1374 = vadd.f32 %v1350, %v1372
      %v1375 = vadd.f32 %v1351, %v1373
      %s1376 = sld [smem:[#allocation5 + $0x85]]
      %v1377 = vstv %s1376
      %v1378 = vmul.f32 %v1377, %v1368
      %v1379 = vmul.f32 %v1377, %v1369
      %v1380 = vadd.f32 %v1356, %v1378
      %v1381 = vadd.f32 %v1357, %v1379
      %s1382 = sld [smem:[#allocation5 + $0x86]]
      %v1383 = vstv %s1382
      %v1384 = vmul.f32 %v1383, %v1368
      %v1385 = vmul.f32 %v1383, %v1369
      %v1386 = vadd.f32 %v1362, %v1384
      %v1387 = vadd.f32 %v1363, %v1385
      %v1388 = vrot.slane %v1248, 1
      %v1389 = vrot.slane %v1249, 1
      %v1390 = vsel %vm289, %v1388, %v1389
      %v1391 = vsel %vm289, %v1389, %v1388
      %v1392 = vsel %vm136, %v1390, 0.0
      %v1393 = vsel %vm137, %v1391, 0.0
      %1394 = vrot.lane.b32.xlu0 %v1392, 1
      %v1395 = vpop.permute.xlu0 %1394
      %1396 = vrot.lane.b32.xlu0 %v1393, 1
      %v1397 = vpop.permute.xlu0 %1396
      %v1398 = vsel %vm138, %v1395, 0.0
      %v1399 = vsel %vm138, %v1397, 0.0
      %s1400 = sld [smem:[#allocation5 + $0x8d]]
      %v1401 = vstv %s1400
      %v1402 = vmul.f32 %v1401, %v1398
      %v1403 = vmul.f32 %v1401, %v1399
      %v1404 = vadd.f32 %v1374, %v1402
      %v1405 = vadd.f32 %v1375, %v1403
      %s1406 = sld [smem:[#allocation5 + $0x8e]]
      %v1407 = vstv %s1406
      %v1408 = vmul.f32 %v1407, %v1398
      %v1409 = vmul.f32 %v1407, %v1399
      %v1410 = vadd.f32 %v1380, %v1408
      %v1411 = vadd.f32 %v1381, %v1409
      %s1412 = sld [smem:[#allocation5 + $0x8f]]
      %v1413 = vstv %s1412
      %v1414 = vmul.f32 %v1413, %v1398
      %v1415 = vmul.f32 %v1413, %v1399
      %v1416 = vadd.f32 %v1386, %v1414
      %v1417 = vadd.f32 %v1387, %v1415
      %s1418 = sld [smem:[#allocation5 + $0x96]]
      %v1419 = vstv %s1418
      %v1420 = vmul.f32 %v1419, %v1392
      %v1421 = vmul.f32 %v1419, %v1393
      %v1422 = vadd.f32 %v1404, %v1420
      %v1423 = vadd.f32 %v1405, %v1421
      %s1424 = sld [smem:[#allocation5 + $0x97]]
      %v1425 = vstv %s1424
      %v1426 = vmul.f32 %v1425, %v1392
      %v1427 = vmul.f32 %v1425, %v1393
      %v1428 = vadd.f32 %v1410, %v1426
      %v1429 = vadd.f32 %v1411, %v1427
      %s1430 = sld [smem:[#allocation5 + $0x98]]
      %v1431 = vstv %s1430
      %v1432 = vmul.f32 %v1431, %v1392
      %v1433 = vmul.f32 %v1431, %v1393
      %v1434 = vadd.f32 %v1416, %v1432
      %v1435 = vadd.f32 %v1417, %v1433
      %1436 = vrot.lane.b32.xlu0 %v1392, 127
      %v1437 = vpop.permute.xlu0 %1436
      %1438 = vrot.lane.b32.xlu0 %v1393, 127
      %v1439 = vpop.permute.xlu0 %1438
      %v1440 = vsel %vm139, %v1437, 0.0
      %v1441 = vsel %vm139, %v1439, 0.0
      %s1442 = sld [smem:[#allocation5 + $0x9f]]
      %v1443 = vstv %s1442
      %v1444 = vmul.f32 %v1443, %v1440
      %v1445 = vmul.f32 %v1443, %v1441
      %v1446 = vadd.f32 %v1422, %v1444
      %v1447 = vadd.f32 %v1423, %v1445
      %s1448 = sld [smem:[#allocation5 + $0xa0]]
      %v1449 = vstv %s1448
      %v1450 = vmul.f32 %v1449, %v1440
      %v1451 = vmul.f32 %v1449, %v1441
      %v1452 = vadd.f32 %v1428, %v1450
      %v1453 = vadd.f32 %v1429, %v1451
      %s1454 = sld [smem:[#allocation5 + $0xa1]]
      %v1455 = vstv %s1454
      %v1456 = vmul.f32 %v1455, %v1440
      %v1457 = vmul.f32 %v1455, %v1441
      %v1458 = vadd.f32 %v1434, %v1456
      %v1459 = vadd.f32 %v1435, %v1457
      %v1460 = vmul.f32 %v1446, 0.5
      %v1461 = vmul.f32 %v1447, 0.5
      %v1462 = vtanh.pop %v1460
      %v1463 = vtanh.pop %v1461
      %v1464 = vmul.f32 %v1462, 0.5
      %v1465 = vmul.f32 %v1463, 0.5
      %v1466 = vadd.f32 %v1464, 0.5
      %v1467 = vadd.f32 %v1465, 0.5
      %1468 = vst [vmem:[#allocation3] sm:$0xff] %v1466
      %1469 = vst [vmem:[#allocation3 + $0x8] sm:$0xff] %v1467
      %v1470 = vmul.f32 %v1452, 0.5
      %v1471 = vmul.f32 %v1453, 0.5
      %v1472 = vtanh.pop %v1470
      %v1473 = vtanh.pop %v1471
      %v1474 = vmul.f32 %v1472, 0.5
      %v1475 = vmul.f32 %v1473, 0.5
      %v1476 = vadd.f32 %v1474, 0.5
      %v1477 = vadd.f32 %v1475, 0.5
      %s1478 = scalar_lea.vmem [#allocation3], 16
      %1479 = vst [vmem:[%s1478] sm:$0xff] %v1476
      %1480 = vst [vmem:[%s1478 + $0x8] sm:$0xff] %v1477
      %v1481 = vmul.f32 %v1458, 0.5
      %v1482 = vmul.f32 %v1459, 0.5
      %v1483 = vtanh.pop %v1481
      %v1484 = vtanh.pop %v1482
      %v1485 = vmul.f32 %v1483, 0.5
      %v1486 = vmul.f32 %v1484, 0.5
      %v1487 = vadd.f32 %v1485, 0.5
      %v1488 = vadd.f32 %v1486, 0.5
      %s1489 = scalar_lea.vmem [#allocation3], 32
      %1490 = vst [vmem:[%s1489] sm:$0xff] %v1487
      %1491 = vst [vmem:[%s1489 + $0x8] sm:$0xff] %v1488
      %s1492 = sld [smem:[#allocation6 + $0x6]]
      %v1493 = vstv %s1492
      %s1494 = sld [smem:[#allocation6 + $0x7]]
      %v1495 = vstv %s1494
      %s1496 = sld [smem:[#allocation6 + $0x8]]
      %v1497 = vstv %s1496
      %v1498 = vld [vmem:[#allocation3] sm:$0xff]
      %v1499 = vld [vmem:[#allocation3 + $0x8] sm:$0xff]
      %v1500 = vrot.slane %v1498, 7
      %v1501 = vrot.slane %v1499, 7
      %v1502 = vsel %vm150, %v1500, %v1501
      %v1503 = vsel %vm150, %v1501, %v1500
      %v1504 = vsel %vm134, %v1503, 0.0
      %v1505 = vsel %vm135, %v1502, 0.0
      %1506 = vrot.lane.b32.xlu0 %v1504, 1
      %v1507 = vpop.permute.xlu0 %1506
      %1508 = vrot.lane.b32.xlu0 %v1505, 1
      %v1509 = vpop.permute.xlu0 %1508
      %v1510 = vsel %vm138, %v1507, 0.0
      %v1511 = vsel %vm138, %v1509, 0.0
      %s1512 = sld [smem:[#allocation5 + $0xa2]]
      %v1513 = vstv %s1512
      %v1514 = vmul.f32 %v1513, %v1510
      %v1515 = vmul.f32 %v1513, %v1511
      %v1516 = vadd.f32 %v1493, %v1514
      %v1517 = vadd.f32 %v1493, %v1515
      %s1518 = sld [smem:[#allocation5 + $0xa3]]
      %v1519 = vstv %s1518
      %v1520 = vmul.f32 %v1519, %v1510
      %v1521 = vmul.f32 %v1519, %v1511
      %v1522 = vadd.f32 %v1495, %v1520
      %v1523 = vadd.f32 %v1495, %v1521
      %s1524 = sld [smem:[#allocation5 + $0xa4]]
      %v1525 = vstv %s1524
      %v1526 = vmul.f32 %v1525, %v1510
      %v1527 = vmul.f32 %v1525, %v1511
      %v1528 = vadd.f32 %v1497, %v1526
      %v1529 = vadd.f32 %v1497, %v1527
      %s1530 = sld [smem:[#allocation5 + $0xab]]
      %v1531 = vstv %s1530
      %v1532 = vmul.f32 %v1531, %v1504
      %v1533 = vmul.f32 %v1531, %v1505
      %v1534 = vadd.f32 %v1516, %v1532
      %v1535 = vadd.f32 %v1517, %v1533
      %s1536 = sld [smem:[#allocation5 + $0xac]]
      %v1537 = vstv %s1536
      %v1538 = vmul.f32 %v1537, %v1504
      %v1539 = vmul.f32 %v1537, %v1505
      %v1540 = vadd.f32 %v1522, %v1538
      %v1541 = vadd.f32 %v1523, %v1539
      %s1542 = sld [smem:[#allocation5 + $0xad]]
      %v1543 = vstv %s1542
      %v1544 = vmul.f32 %v1543, %v1504
      %v1545 = vmul.f32 %v1543, %v1505
      %v1546 = vadd.f32 %v1528, %v1544
      %v1547 = vadd.f32 %v1529, %v1545
      %1548 = vrot.lane.b32.xlu0 %v1504, 127
      %v1549 = vpop.permute.xlu0 %1548
      %1550 = vrot.lane.b32.xlu0 %v1505, 127
      %v1551 = vpop.permute.xlu0 %1550
      %v1552 = vsel %vm139, %v1549, 0.0
      %v1553 = vsel %vm139, %v1551, 0.0
      %s1554 = sld [smem:[#allocation5 + $0xb4]]
      %v1555 = vstv %s1554
      %v1556 = vmul.f32 %v1555, %v1552
      %v1557 = vmul.f32 %v1555, %v1553
      %v1558 = vadd.f32 %v1534, %v1556
      %v1559 = vadd.f32 %v1535, %v1557
      %s1560 = sld [smem:[#allocation5 + $0xb5]]
      %v1561 = vstv %s1560
      %v1562 = vmul.f32 %v1561, %v1552
      %v1563 = vmul.f32 %v1561, %v1553
      %v1564 = vadd.f32 %v1540, %v1562
      %v1565 = vadd.f32 %v1541, %v1563
      %s1566 = sld [smem:[#allocation5 + $0xb6]]
      %v1567 = vstv %s1566
      %v1568 = vmul.f32 %v1567, %v1552
      %v1569 = vmul.f32 %v1567, %v1553
      %v1570 = vadd.f32 %v1546, %v1568
      %v1571 = vadd.f32 %v1547, %v1569
      %1572 = vrot.lane.b32.xlu0 %v1498, 1
      %v1573 = vpop.permute.xlu0 %1572
      %1574 = vrot.lane.b32.xlu0 %v1499, 1
      %v1575 = vpop.permute.xlu0 %1574
      %v1576 = vsel %vm138, %v1573, 0.0
      %v1577 = vsel %vm138, %v1575, 0.0
      %s1578 = sld [smem:[#allocation5 + $0xbd]]
      %v1579 = vstv %s1578
      %v1580 = vmul.f32 %v1579, %v1576
      %v1581 = vmul.f32 %v1579, %v1577
      %v1582 = vadd.f32 %v1558, %v1580
      %v1583 = vadd.f32 %v1559, %v1581
      %s1584 = sld [smem:[#allocation5 + $0xbe]]
      %v1585 = vstv %s1584
      %v1586 = vmul.f32 %v1585, %v1576
      %v1587 = vmul.f32 %v1585, %v1577
      %v1588 = vadd.f32 %v1564, %v1586
      %v1589 = vadd.f32 %v1565, %v1587
      %s1590 = sld [smem:[#allocation5 + $0xbf]]
      %v1591 = vstv %s1590
      %v1592 = vmul.f32 %v1591, %v1576
      %v1593 = vmul.f32 %v1591, %v1577
      %v1594 = vadd.f32 %v1570, %v1592
      %v1595 = vadd.f32 %v1571, %v1593
      %s1596 = sld [smem:[#allocation5 + $0xc6]]
      %v1597 = vstv %s1596
      %v1598 = vmul.f32 %v1597, %v1498
      %v1599 = vmul.f32 %v1597, %v1499
      %v1600 = vadd.f32 %v1582, %v1598
      %v1601 = vadd.f32 %v1583, %v1599
      %s1602 = sld [smem:[#allocation5 + $0xc7]]
      %v1603 = vstv %s1602
      %v1604 = vmul.f32 %v1603, %v1498
      %v1605 = vmul.f32 %v1603, %v1499
      %v1606 = vadd.f32 %v1588, %v1604
      %v1607 = vadd.f32 %v1589, %v1605
      %s1608 = sld [smem:[#allocation5 + $0xc8]]
      %v1609 = vstv %s1608
      %v1610 = vmul.f32 %v1609, %v1498
      %v1611 = vmul.f32 %v1609, %v1499
      %v1612 = vadd.f32 %v1594, %v1610
      %v1613 = vadd.f32 %v1595, %v1611
      %1614 = vrot.lane.b32.xlu0 %v1498, 127
      %v1615 = vpop.permute.xlu0 %1614
      %1616 = vrot.lane.b32.xlu0 %v1499, 127
      %v1617 = vpop.permute.xlu0 %1616
      %v1618 = vsel %vm139, %v1615, 0.0
      %v1619 = vsel %vm139, %v1617, 0.0
      %s1620 = sld [smem:[#allocation5 + $0xcf]]
      %v1621 = vstv %s1620
      %v1622 = vmul.f32 %v1621, %v1618
      %v1623 = vmul.f32 %v1621, %v1619
      %v1624 = vadd.f32 %v1600, %v1622
      %v1625 = vadd.f32 %v1601, %v1623
      %s1626 = sld [smem:[#allocation5 + $0xd0]]
      %v1627 = vstv %s1626
      %v1628 = vmul.f32 %v1627, %v1618
      %v1629 = vmul.f32 %v1627, %v1619
      %v1630 = vadd.f32 %v1606, %v1628
      %v1631 = vadd.f32 %v1607, %v1629
      %s1632 = sld [smem:[#allocation5 + $0xd1]]
      %v1633 = vstv %s1632
      %v1634 = vmul.f32 %v1633, %v1618
      %v1635 = vmul.f32 %v1633, %v1619
      %v1636 = vadd.f32 %v1612, %v1634
      %v1637 = vadd.f32 %v1613, %v1635
      %v1638 = vrot.slane %v1498, 1
      %v1639 = vrot.slane %v1499, 1
      %v1640 = vsel %vm289, %v1638, %v1639
      %v1641 = vsel %vm289, %v1639, %v1638
      %v1642 = vsel %vm136, %v1640, 0.0
      %v1643 = vsel %vm137, %v1641, 0.0
      %1644 = vrot.lane.b32.xlu0 %v1642, 1
      %v1645 = vpop.permute.xlu0 %1644
      %1646 = vrot.lane.b32.xlu0 %v1643, 1
      %v1647 = vpop.permute.xlu0 %1646
      %v1648 = vsel %vm138, %v1645, 0.0
      %v1649 = vsel %vm138, %v1647, 0.0
      %s1650 = sld [smem:[#allocation5 + $0xd8]]
      %v1651 = vstv %s1650
      %v1652 = vmul.f32 %v1651, %v1648
      %v1653 = vmul.f32 %v1651, %v1649
      %v1654 = vadd.f32 %v1624, %v1652
      %v1655 = vadd.f32 %v1625, %v1653
      %s1656 = sld [smem:[#allocation5 + $0xd9]]
      %v1657 = vstv %s1656
      %v1658 = vmul.f32 %v1657, %v1648
      %v1659 = vmul.f32 %v1657, %v1649
      %v1660 = vadd.f32 %v1630, %v1658
      %v1661 = vadd.f32 %v1631, %v1659
      %s1662 = sld [smem:[#allocation5 + $0xda]]
      %v1663 = vstv %s1662
      %v1664 = vmul.f32 %v1663, %v1648
      %v1665 = vmul.f32 %v1663, %v1649
      %v1666 = vadd.f32 %v1636, %v1664
      %v1667 = vadd.f32 %v1637, %v1665
      %s1668 = sld [smem:[#allocation5 + $0xe1]]
      %v1669 = vstv %s1668
      %v1670 = vmul.f32 %v1669, %v1642
      %v1671 = vmul.f32 %v1669, %v1643
      %v1672 = vadd.f32 %v1654, %v1670
      %v1673 = vadd.f32 %v1655, %v1671
      %s1674 = sld [smem:[#allocation5 + $0xe2]]
      %v1675 = vstv %s1674
      %v1676 = vmul.f32 %v1675, %v1642
      %v1677 = vmul.f32 %v1675, %v1643
      %v1678 = vadd.f32 %v1660, %v1676
      %v1679 = vadd.f32 %v1661, %v1677
      %s1680 = sld [smem:[#allocation5 + $0xe3]]
      %v1681 = vstv %s1680
      %v1682 = vmul.f32 %v1681, %v1642
      %v1683 = vmul.f32 %v1681, %v1643
      %v1684 = vadd.f32 %v1666, %v1682
      %v1685 = vadd.f32 %v1667, %v1683
      %1686 = vrot.lane.b32.xlu0 %v1642, 127
      %v1687 = vpop.permute.xlu0 %1686
      %1688 = vrot.lane.b32.xlu0 %v1643, 127
      %v1689 = vpop.permute.xlu0 %1688
      %v1690 = vsel %vm139, %v1687, 0.0
      %v1691 = vsel %vm139, %v1689, 0.0
      %s1692 = sld [smem:[#allocation5 + $0xea]]
      %v1693 = vstv %s1692
      %v1694 = vmul.f32 %v1693, %v1690
      %v1695 = vmul.f32 %v1693, %v1691
      %v1696 = vadd.f32 %v1672, %v1694
      %v1697 = vadd.f32 %v1673, %v1695
      %s1698 = sld [smem:[#allocation5 + $0xeb]]
      %v1699 = vstv %s1698
      %v1700 = vmul.f32 %v1699, %v1690
      %v1701 = vmul.f32 %v1699, %v1691
      %v1702 = vadd.f32 %v1678, %v1700
      %v1703 = vadd.f32 %v1679, %v1701
      %s1704 = sld [smem:[#allocation5 + $0xec]]
      %v1705 = vstv %s1704
      %v1706 = vmul.f32 %v1705, %v1690
      %v1707 = vmul.f32 %v1705, %v1691
      %v1708 = vadd.f32 %v1684, %v1706
      %v1709 = vadd.f32 %v1685, %v1707
      %v1710 = vld [vmem:[%s1478] sm:$0xff]
      %v1711 = vld [vmem:[%s1478 + $0x8] sm:$0xff]
      %v1712 = vrot.slane %v1710, 7
      %v1713 = vrot.slane %v1711, 7
      %v1714 = vsel %vm150, %v1712, %v1713
      %v1715 = vsel %vm150, %v1713, %v1712
      %v1716 = vsel %vm134, %v1715, 0.0
      %v1717 = vsel %vm135, %v1714, 0.0
      %1718 = vrot.lane.b32.xlu0 %v1716, 1
      %v1719 = vpop.permute.xlu0 %1718
      %1720 = vrot.lane.b32.xlu0 %v1717, 1
      %v1721 = vpop.permute.xlu0 %1720
      %v1722 = vsel %vm138, %v1719, 0.0
      %v1723 = vsel %vm138, %v1721, 0.0
      %s1724 = sld [smem:[#allocation5 + $0xa5]]
      %v1725 = vstv %s1724
      %v1726 = vmul.f32 %v1725, %v1722
      %v1727 = vmul.f32 %v1725, %v1723
      %v1728 = vadd.f32 %v1696, %v1726
      %v1729 = vadd.f32 %v1697, %v1727
      %s1730 = sld [smem:[#allocation5 + $0xa6]]
      %v1731 = vstv %s1730
      %v1732 = vmul.f32 %v1731, %v1722
      %v1733 = vmul.f32 %v1731, %v1723
      %v1734 = vadd.f32 %v1702, %v1732
      %v1735 = vadd.f32 %v1703, %v1733
      %s1736 = sld [smem:[#allocation5 + $0xa7]]
      %v1737 = vstv %s1736
      %v1738 = vmul.f32 %v1737, %v1722
      %v1739 = vmul.f32 %v1737, %v1723
      %v1740 = vadd.f32 %v1708, %v1738
      %v1741 = vadd.f32 %v1709, %v1739
      %s1742 = sld [smem:[#allocation5 + $0xae]]
      %v1743 = vstv %s1742
      %v1744 = vmul.f32 %v1743, %v1716
      %v1745 = vmul.f32 %v1743, %v1717
      %v1746 = vadd.f32 %v1728, %v1744
      %v1747 = vadd.f32 %v1729, %v1745
      %s1748 = sld [smem:[#allocation5 + $0xaf]]
      %v1749 = vstv %s1748
      %v1750 = vmul.f32 %v1749, %v1716
      %v1751 = vmul.f32 %v1749, %v1717
      %v1752 = vadd.f32 %v1734, %v1750
      %v1753 = vadd.f32 %v1735, %v1751
      %s1754 = sld [smem:[#allocation5 + $0xb0]]
      %v1755 = vstv %s1754
      %v1756 = vmul.f32 %v1755, %v1716
      %v1757 = vmul.f32 %v1755, %v1717
      %v1758 = vadd.f32 %v1740, %v1756
      %v1759 = vadd.f32 %v1741, %v1757
      %1760 = vrot.lane.b32.xlu0 %v1716, 127
      %v1761 = vpop.permute.xlu0 %1760
      %1762 = vrot.lane.b32.xlu0 %v1717, 127
      %v1763 = vpop.permute.xlu0 %1762
      %v1764 = vsel %vm139, %v1761, 0.0
      %v1765 = vsel %vm139, %v1763, 0.0
      %s1766 = sld [smem:[#allocation5 + $0xb7]]
      %v1767 = vstv %s1766
      %v1768 = vmul.f32 %v1767, %v1764
      %v1769 = vmul.f32 %v1767, %v1765
      %v1770 = vadd.f32 %v1746, %v1768
      %v1771 = vadd.f32 %v1747, %v1769
      %s1772 = sld [smem:[#allocation5 + $0xb8]]
      %v1773 = vstv %s1772
      %v1774 = vmul.f32 %v1773, %v1764
      %v1775 = vmul.f32 %v1773, %v1765
      %v1776 = vadd.f32 %v1752, %v1774
      %v1777 = vadd.f32 %v1753, %v1775
      %s1778 = sld [smem:[#allocation5 + $0xb9]]
      %v1779 = vstv %s1778
      %v1780 = vmul.f32 %v1779, %v1764
      %v1781 = vmul.f32 %v1779, %v1765
      %v1782 = vadd.f32 %v1758, %v1780
      %v1783 = vadd.f32 %v1759, %v1781
      %1784 = vrot.lane.b32.xlu0 %v1710, 1
      %v1785 = vpop.permute.xlu0 %1784
      %1786 = vrot.lane.b32.xlu0 %v1711, 1
      %v1787 = vpop.permute.xlu0 %1786
      %v1788 = vsel %vm138, %v1785, 0.0
      %v1789 = vsel %vm138, %v1787, 0.0
      %s1790 = sld [smem:[#allocation5 + $0xc0]]
      %v1791 = vstv %s1790
      %v1792 = vmul.f32 %v1791, %v1788
      %v1793 = vmul.f32 %v1791, %v1789
      %v1794 = vadd.f32 %v1770, %v1792
      %v1795 = vadd.f32 %v1771, %v1793
      %s1796 = sld [smem:[#allocation5 + $0xc1]]
      %v1797 = vstv %s1796
      %v1798 = vmul.f32 %v1797, %v1788
      %v1799 = vmul.f32 %v1797, %v1789
      %v1800 = vadd.f32 %v1776, %v1798
      %v1801 = vadd.f32 %v1777, %v1799
      %s1802 = sld [smem:[#allocation5 + $0xc2]]
      %v1803 = vstv %s1802
      %v1804 = vmul.f32 %v1803, %v1788
      %v1805 = vmul.f32 %v1803, %v1789
      %v1806 = vadd.f32 %v1782, %v1804
      %v1807 = vadd.f32 %v1783, %v1805
      %s1808 = sld [smem:[#allocation5 + $0xc9]]
      %v1809 = vstv %s1808
      %v1810 = vmul.f32 %v1809, %v1710
      %v1811 = vmul.f32 %v1809, %v1711
      %v1812 = vadd.f32 %v1794, %v1810
      %v1813 = vadd.f32 %v1795, %v1811
      %s1814 = sld [smem:[#allocation5 + $0xca]]
      %v1815 = vstv %s1814
      %v1816 = vmul.f32 %v1815, %v1710
      %v1817 = vmul.f32 %v1815, %v1711
      %v1818 = vadd.f32 %v1800, %v1816
      %v1819 = vadd.f32 %v1801, %v1817
      %s1820 = sld [smem:[#allocation5 + $0xcb]]
      %v1821 = vstv %s1820
      %v1822 = vmul.f32 %v1821, %v1710
      %v1823 = vmul.f32 %v1821, %v1711
      %v1824 = vadd.f32 %v1806, %v1822
      %v1825 = vadd.f32 %v1807, %v1823
      %1826 = vrot.lane.b32.xlu0 %v1710, 127
      %v1827 = vpop.permute.xlu0 %1826
      %1828 = vrot.lane.b32.xlu0 %v1711, 127
      %v1829 = vpop.permute.xlu0 %1828
      %v1830 = vsel %vm139, %v1827, 0.0
      %v1831 = vsel %vm139, %v1829, 0.0
      %s1832 = sld [smem:[#allocation5 + $0xd2]]
      %v1833 = vstv %s1832
      %v1834 = vmul.f32 %v1833, %v1830
      %v1835 = vmul.f32 %v1833, %v1831
      %v1836 = vadd.f32 %v1812, %v1834
      %v1837 = vadd.f32 %v1813, %v1835
      %s1838 = sld [smem:[#allocation5 + $0xd3]]
      %v1839 = vstv %s1838
      %v1840 = vmul.f32 %v1839, %v1830
      %v1841 = vmul.f32 %v1839, %v1831
      %v1842 = vadd.f32 %v1818, %v1840
      %v1843 = vadd.f32 %v1819, %v1841
      %s1844 = sld [smem:[#allocation5 + $0xd4]]
      %v1845 = vstv %s1844
      %v1846 = vmul.f32 %v1845, %v1830
      %v1847 = vmul.f32 %v1845, %v1831
      %v1848 = vadd.f32 %v1824, %v1846
      %v1849 = vadd.f32 %v1825, %v1847
      %v1850 = vrot.slane %v1710, 1
      %v1851 = vrot.slane %v1711, 1
      %v1852 = vsel %vm289, %v1850, %v1851
      %v1853 = vsel %vm289, %v1851, %v1850
      %v1854 = vsel %vm136, %v1852, 0.0
      %v1855 = vsel %vm137, %v1853, 0.0
      %1856 = vrot.lane.b32.xlu0 %v1854, 1
      %v1857 = vpop.permute.xlu0 %1856
      %1858 = vrot.lane.b32.xlu0 %v1855, 1
      %v1859 = vpop.permute.xlu0 %1858
      %v1860 = vsel %vm138, %v1857, 0.0
      %v1861 = vsel %vm138, %v1859, 0.0
      %s1862 = sld [smem:[#allocation5 + $0xdb]]
      %v1863 = vstv %s1862
      %v1864 = vmul.f32 %v1863, %v1860
      %v1865 = vmul.f32 %v1863, %v1861
      %v1866 = vadd.f32 %v1836, %v1864
      %v1867 = vadd.f32 %v1837, %v1865
      %s1868 = sld [smem:[#allocation5 + $0xdc]]
      %v1869 = vstv %s1868
      %v1870 = vmul.f32 %v1869, %v1860
      %v1871 = vmul.f32 %v1869, %v1861
      %v1872 = vadd.f32 %v1842, %v1870
      %v1873 = vadd.f32 %v1843, %v1871
      %s1874 = sld [smem:[#allocation5 + $0xdd]]
      %v1875 = vstv %s1874
      %v1876 = vmul.f32 %v1875, %v1860
      %v1877 = vmul.f32 %v1875, %v1861
      %v1878 = vadd.f32 %v1848, %v1876
      %v1879 = vadd.f32 %v1849, %v1877
      %s1880 = sld [smem:[#allocation5 + $0xe4]]
      %v1881 = vstv %s1880
      %v1882 = vmul.f32 %v1881, %v1854
      %v1883 = vmul.f32 %v1881, %v1855
      %v1884 = vadd.f32 %v1866, %v1882
      %v1885 = vadd.f32 %v1867, %v1883
      %s1886 = sld [smem:[#allocation5 + $0xe5]]
      %v1887 = vstv %s1886
      %v1888 = vmul.f32 %v1887, %v1854
      %v1889 = vmul.f32 %v1887, %v1855
      %v1890 = vadd.f32 %v1872, %v1888
      %v1891 = vadd.f32 %v1873, %v1889
      %s1892 = sld [smem:[#allocation5 + $0xe6]]
      %v1893 = vstv %s1892
      %v1894 = vmul.f32 %v1893, %v1854
      %v1895 = vmul.f32 %v1893, %v1855
      %v1896 = vadd.f32 %v1878, %v1894
      %v1897 = vadd.f32 %v1879, %v1895
      %1898 = vrot.lane.b32.xlu0 %v1854, 127
      %v1899 = vpop.permute.xlu0 %1898
      %1900 = vrot.lane.b32.xlu0 %v1855, 127
      %v1901 = vpop.permute.xlu0 %1900
      %v1902 = vsel %vm139, %v1899, 0.0
      %v1903 = vsel %vm139, %v1901, 0.0
      %s1904 = sld [smem:[#allocation5 + $0xed]]
      %v1905 = vstv %s1904
      %v1906 = vmul.f32 %v1905, %v1902
      %v1907 = vmul.f32 %v1905, %v1903
      %v1908 = vadd.f32 %v1884, %v1906
      %v1909 = vadd.f32 %v1885, %v1907
      %s1910 = sld [smem:[#allocation5 + $0xee]]
      %v1911 = vstv %s1910
      %v1912 = vmul.f32 %v1911, %v1902
      %v1913 = vmul.f32 %v1911, %v1903
      %v1914 = vadd.f32 %v1890, %v1912
      %v1915 = vadd.f32 %v1891, %v1913
      %s1916 = sld [smem:[#allocation5 + $0xef]]
      %v1917 = vstv %s1916
      %v1918 = vmul.f32 %v1917, %v1902
      %v1919 = vmul.f32 %v1917, %v1903
      %v1920 = vadd.f32 %v1896, %v1918
      %v1921 = vadd.f32 %v1897, %v1919
      %v1922 = vld [vmem:[%s1489] sm:$0xff]
      %v1923 = vld [vmem:[%s1489 + $0x8] sm:$0xff]
      %v1924 = vrot.slane %v1922, 7
      %v1925 = vrot.slane %v1923, 7
      %v1926 = vsel %vm150, %v1924, %v1925
      %v1927 = vsel %vm150, %v1925, %v1924
      %v1928 = vsel %vm134, %v1927, 0.0
      %v1929 = vsel %vm135, %v1926, 0.0
      %1930 = vrot.lane.b32.xlu0 %v1928, 1
      %v1931 = vpop.permute.xlu0 %1930
      %1932 = vrot.lane.b32.xlu0 %v1929, 1
      %v1933 = vpop.permute.xlu0 %1932
      %v1934 = vsel %vm138, %v1931, 0.0
      %v1935 = vsel %vm138, %v1933, 0.0
      %s1936 = sld [smem:[#allocation5 + $0xa8]]
      %v1937 = vstv %s1936
      %v1938 = vmul.f32 %v1937, %v1934
      %v1939 = vmul.f32 %v1937, %v1935
      %v1940 = vadd.f32 %v1908, %v1938
      %v1941 = vadd.f32 %v1909, %v1939
      %s1942 = sld [smem:[#allocation5 + $0xa9]]
      %v1943 = vstv %s1942
      %v1944 = vmul.f32 %v1943, %v1934
      %v1945 = vmul.f32 %v1943, %v1935
      %v1946 = vadd.f32 %v1914, %v1944
      %v1947 = vadd.f32 %v1915, %v1945
      %s1948 = sld [smem:[#allocation5 + $0xaa]]
      %v1949 = vstv %s1948
      %v1950 = vmul.f32 %v1949, %v1934
      %v1951 = vmul.f32 %v1949, %v1935
      %v1952 = vadd.f32 %v1920, %v1950
      %v1953 = vadd.f32 %v1921, %v1951
      %s1954 = sld [smem:[#allocation5 + $0xb1]]
      %v1955 = vstv %s1954
      %v1956 = vmul.f32 %v1955, %v1928
      %v1957 = vmul.f32 %v1955, %v1929
      %v1958 = vadd.f32 %v1940, %v1956
      %v1959 = vadd.f32 %v1941, %v1957
      %s1960 = sld [smem:[#allocation5 + $0xb2]]
      %v1961 = vstv %s1960
      %v1962 = vmul.f32 %v1961, %v1928
      %v1963 = vmul.f32 %v1961, %v1929
      %v1964 = vadd.f32 %v1946, %v1962
      %v1965 = vadd.f32 %v1947, %v1963
      %s1966 = sld [smem:[#allocation5 + $0xb3]]
      %v1967 = vstv %s1966
      %v1968 = vmul.f32 %v1967, %v1928
      %v1969 = vmul.f32 %v1967, %v1929
      %v1970 = vadd.f32 %v1952, %v1968
      %v1971 = vadd.f32 %v1953, %v1969
      %1972 = vrot.lane.b32.xlu0 %v1928, 127
      %v1973 = vpop.permute.xlu0 %1972
      %1974 = vrot.lane.b32.xlu0 %v1929, 127
      %v1975 = vpop.permute.xlu0 %1974
      %v1976 = vsel %vm139, %v1973, 0.0
      %v1977 = vsel %vm139, %v1975, 0.0
      %s1978 = sld [smem:[#allocation5 + $0xba]]
      %v1979 = vstv %s1978
      %v1980 = vmul.f32 %v1979, %v1976
      %v1981 = vmul.f32 %v1979, %v1977
      %v1982 = vadd.f32 %v1958, %v1980
      %v1983 = vadd.f32 %v1959, %v1981
      %s1984 = sld [smem:[#allocation5 + $0xbb]]
      %v1985 = vstv %s1984
      %v1986 = vmul.f32 %v1985, %v1976
      %v1987 = vmul.f32 %v1985, %v1977
      %v1988 = vadd.f32 %v1964, %v1986
      %v1989 = vadd.f32 %v1965, %v1987
      %s1990 = sld [smem:[#allocation5 + $0xbc]]
      %v1991 = vstv %s1990
      %v1992 = vmul.f32 %v1991, %v1976
      %v1993 = vmul.f32 %v1991, %v1977
      %v1994 = vadd.f32 %v1970, %v1992
      %v1995 = vadd.f32 %v1971, %v1993
      %1996 = vrot.lane.b32.xlu0 %v1922, 1
      %v1997 = vpop.permute.xlu0 %1996
      %1998 = vrot.lane.b32.xlu0 %v1923, 1
      %v1999 = vpop.permute.xlu0 %1998
      %v2000 = vsel %vm138, %v1997, 0.0
      %v2001 = vsel %vm138, %v1999, 0.0
      %s2002 = sld [smem:[#allocation5 + $0xc3]]
      %v2003 = vstv %s2002
      %v2004 = vmul.f32 %v2003, %v2000
      %v2005 = vmul.f32 %v2003, %v2001
      %v2006 = vadd.f32 %v1982, %v2004
      %v2007 = vadd.f32 %v1983, %v2005
      %s2008 = sld [smem:[#allocation5 + $0xc4]]
      %v2009 = vstv %s2008
      %v2010 = vmul.f32 %v2009, %v2000
      %v2011 = vmul.f32 %v2009, %v2001
      %v2012 = vadd.f32 %v1988, %v2010
      %v2013 = vadd.f32 %v1989, %v2011
      %s2014 = sld [smem:[#allocation5 + $0xc5]]
      %v2015 = vstv %s2014
      %v2016 = vmul.f32 %v2015, %v2000
      %v2017 = vmul.f32 %v2015, %v2001
      %v2018 = vadd.f32 %v1994, %v2016
      %v2019 = vadd.f32 %v1995, %v2017
      %s2020 = sld [smem:[#allocation5 + $0xcc]]
      %v2021 = vstv %s2020
      %v2022 = vmul.f32 %v2021, %v1922
      %v2023 = vmul.f32 %v2021, %v1923
      %v2024 = vadd.f32 %v2006, %v2022
      %v2025 = vadd.f32 %v2007, %v2023
      %s2026 = sld [smem:[#allocation5 + $0xcd]]
      %v2027 = vstv %s2026
      %v2028 = vmul.f32 %v2027, %v1922
      %v2029 = vmul.f32 %v2027, %v1923
      %v2030 = vadd.f32 %v2012, %v2028
      %v2031 = vadd.f32 %v2013, %v2029
      %s2032 = sld [smem:[#allocation5 + $0xce]]
      %v2033 = vstv %s2032
      %v2034 = vmul.f32 %v2033, %v1922
      %v2035 = vmul.f32 %v2033, %v1923
      %v2036 = vadd.f32 %v2018, %v2034
      %v2037 = vadd.f32 %v2019, %v2035
      %2038 = vrot.lane.b32.xlu0 %v1922, 127
      %v2039 = vpop.permute.xlu0 %2038
      %2040 = vrot.lane.b32.xlu0 %v1923, 127
      %v2041 = vpop.permute.xlu0 %2040
      %v2042 = vsel %vm139, %v2039, 0.0
      %v2043 = vsel %vm139, %v2041, 0.0
      %s2044 = sld [smem:[#allocation5 + $0xd5]]
      %v2045 = vstv %s2044
      %v2046 = vmul.f32 %v2045, %v2042
      %v2047 = vmul.f32 %v2045, %v2043
      %v2048 = vadd.f32 %v2024, %v2046
      %v2049 = vadd.f32 %v2025, %v2047
      %s2050 = sld [smem:[#allocation5 + $0xd6]]
      %v2051 = vstv %s2050
      %v2052 = vmul.f32 %v2051, %v2042
      %v2053 = vmul.f32 %v2051, %v2043
      %v2054 = vadd.f32 %v2030, %v2052
      %v2055 = vadd.f32 %v2031, %v2053
      %s2056 = sld [smem:[#allocation5 + $0xd7]]
      %v2057 = vstv %s2056
      %v2058 = vmul.f32 %v2057, %v2042
      %v2059 = vmul.f32 %v2057, %v2043
      %v2060 = vadd.f32 %v2036, %v2058
      %v2061 = vadd.f32 %v2037, %v2059
      %v2062 = vrot.slane %v1922, 1
      %v2063 = vrot.slane %v1923, 1
      %v2064 = vsel %vm289, %v2062, %v2063
      %v2065 = vsel %vm289, %v2063, %v2062
      %v2066 = vsel %vm136, %v2064, 0.0
      %v2067 = vsel %vm137, %v2065, 0.0
      %2068 = vrot.lane.b32.xlu0 %v2066, 1
      %v2069 = vpop.permute.xlu0 %2068
      %2070 = vrot.lane.b32.xlu0 %v2067, 1
      %v2071 = vpop.permute.xlu0 %2070
      %v2072 = vsel %vm138, %v2069, 0.0
      %v2073 = vsel %vm138, %v2071, 0.0
      %s2074 = sld [smem:[#allocation5 + $0xde]]
      %v2075 = vstv %s2074
      %v2076 = vmul.f32 %v2075, %v2072
      %v2077 = vmul.f32 %v2075, %v2073
      %v2078 = vadd.f32 %v2048, %v2076
      %v2079 = vadd.f32 %v2049, %v2077
      %s2080 = sld [smem:[#allocation5 + $0xdf]]
      %v2081 = vstv %s2080
      %v2082 = vmul.f32 %v2081, %v2072
      %v2083 = vmul.f32 %v2081, %v2073
      %v2084 = vadd.f32 %v2054, %v2082
      %v2085 = vadd.f32 %v2055, %v2083
      %s2086 = sld [smem:[#allocation5 + $0xe0]]
      %v2087 = vstv %s2086
      %v2088 = vmul.f32 %v2087, %v2072
      %v2089 = vmul.f32 %v2087, %v2073
      %v2090 = vadd.f32 %v2060, %v2088
      %v2091 = vadd.f32 %v2061, %v2089
      %s2092 = sld [smem:[#allocation5 + $0xe7]]
      %v2093 = vstv %s2092
      %v2094 = vmul.f32 %v2093, %v2066
      %v2095 = vmul.f32 %v2093, %v2067
      %v2096 = vadd.f32 %v2078, %v2094
      %v2097 = vadd.f32 %v2079, %v2095
      %s2098 = sld [smem:[#allocation5 + $0xe8]]
      %v2099 = vstv %s2098
      %v2100 = vmul.f32 %v2099, %v2066
      %v2101 = vmul.f32 %v2099, %v2067
      %v2102 = vadd.f32 %v2084, %v2100
      %v2103 = vadd.f32 %v2085, %v2101
      %s2104 = sld [smem:[#allocation5 + $0xe9]]
      %v2105 = vstv %s2104
      %v2106 = vmul.f32 %v2105, %v2066
      %v2107 = vmul.f32 %v2105, %v2067
      %v2108 = vadd.f32 %v2090, %v2106
      %v2109 = vadd.f32 %v2091, %v2107
      %2110 = vrot.lane.b32.xlu0 %v2066, 127
      %v2111 = vpop.permute.xlu0 %2110
      %2112 = vrot.lane.b32.xlu0 %v2067, 127
      %v2113 = vpop.permute.xlu0 %2112
      %v2114 = vsel %vm139, %v2111, 0.0
      %v2115 = vsel %vm139, %v2113, 0.0
      %s2116 = sld [smem:[#allocation5 + $0xf0]]
      %v2117 = vstv %s2116
      %v2118 = vmul.f32 %v2117, %v2114
      %v2119 = vmul.f32 %v2117, %v2115
      %v2120 = vadd.f32 %v2096, %v2118
      %v2121 = vadd.f32 %v2097, %v2119
      %s2122 = sld [smem:[#allocation5 + $0xf1]]
      %v2123 = vstv %s2122
      %v2124 = vmul.f32 %v2123, %v2114
      %v2125 = vmul.f32 %v2123, %v2115
      %v2126 = vadd.f32 %v2102, %v2124
      %v2127 = vadd.f32 %v2103, %v2125
      %s2128 = sld [smem:[#allocation5 + $0xf2]]
      %v2129 = vstv %s2128
      %v2130 = vmul.f32 %v2129, %v2114
      %v2131 = vmul.f32 %v2129, %v2115
      %v2132 = vadd.f32 %v2108, %v2130
      %v2133 = vadd.f32 %v2109, %v2131
      %v2134 = vmul.f32 %v2120, 0.5
      %v2135 = vmul.f32 %v2121, 0.5
      %v2136 = vtanh.pop %v2134
      %v2137 = vtanh.pop %v2135
      %v2138 = vmul.f32 %v2136, 0.5
      %v2139 = vmul.f32 %v2137, 0.5
      %v2140 = vadd.f32 %v2138, 0.5
      %v2141 = vadd.f32 %v2139, 0.5
      %2142 = vst [vmem:[#allocation2] sm:$0xff] %v2140
      %2143 = vst [vmem:[#allocation2 + $0x8] sm:$0xff] %v2141
      %v2144 = vmul.f32 %v2126, 0.5
      %v2145 = vmul.f32 %v2127, 0.5
      %v2146 = vtanh.pop %v2144
      %v2147 = vtanh.pop %v2145
      %v2148 = vmul.f32 %v2146, 0.5
      %v2149 = vmul.f32 %v2147, 0.5
      %v2150 = vadd.f32 %v2148, 0.5
      %v2151 = vadd.f32 %v2149, 0.5
      %2152 = vst [vmem:[%s804] sm:$0xff] %v2150
      %2153 = vst [vmem:[%s804 + $0x8] sm:$0xff] %v2151
      %v2154 = vmul.f32 %v2132, 0.5
      %v2155 = vmul.f32 %v2133, 0.5
      %v2156 = vtanh.pop %v2154
      %v2157 = vtanh.pop %v2155
      %v2158 = vmul.f32 %v2156, 0.5
      %v2159 = vmul.f32 %v2157, 0.5
      %v2160 = vadd.f32 %v2158, 0.5
      %v2161 = vadd.f32 %v2159, 0.5
      %2162 = vst [vmem:[%s815] sm:$0xff] %v2160
      %2163 = vst [vmem:[%s815 + $0x8] sm:$0xff] %v2161
      %s2164 = sld [smem:[#allocation6 + $0x9]]
      %v2165 = vstv %s2164
      %s2166 = sld [smem:[#allocation6 + $0xa]]
      %v2167 = vstv %s2166
      %s2168 = sld [smem:[#allocation6 + $0xb]]
      %v2169 = vstv %s2168
      %v2170 = vld [vmem:[#allocation2] sm:$0xff]
      %v2171 = vld [vmem:[#allocation2 + $0x8] sm:$0xff]
      %v2172 = vrot.slane %v2170, 7
      %v2173 = vrot.slane %v2171, 7
      %v2174 = vsel %vm150, %v2172, %v2173
      %v2175 = vsel %vm150, %v2173, %v2172
      %v2176 = vsel %vm134, %v2175, 0.0
      %v2177 = vsel %vm135, %v2174, 0.0
      %2178 = vrot.lane.b32.xlu0 %v2176, 1
      %v2179 = vpop.permute.xlu0 %2178
      %2180 = vrot.lane.b32.xlu0 %v2177, 1
      %v2181 = vpop.permute.xlu0 %2180
      %v2182 = vsel %vm138, %v2179, 0.0
      %v2183 = vsel %vm138, %v2181, 0.0
      %s2184 = sld [smem:[#allocation5 + $0xf3]]
      %v2185 = vstv %s2184
      %v2186 = vmul.f32 %v2185, %v2182
      %v2187 = vmul.f32 %v2185, %v2183
      %v2188 = vadd.f32 %v2165, %v2186
      %v2189 = vadd.f32 %v2165, %v2187
      %s2190 = sld [smem:[#allocation5 + $0xf4]]
      %v2191 = vstv %s2190
      %v2192 = vmul.f32 %v2191, %v2182
      %v2193 = vmul.f32 %v2191, %v2183
      %v2194 = vadd.f32 %v2167, %v2192
      %v2195 = vadd.f32 %v2167, %v2193
      %s2196 = sld [smem:[#allocation5 + $0xf5]]
      %v2197 = vstv %s2196
      %v2198 = vmul.f32 %v2197, %v2182
      %v2199 = vmul.f32 %v2197, %v2183
      %v2200 = vadd.f32 %v2169, %v2198
      %v2201 = vadd.f32 %v2169, %v2199
      %s2202 = sld [smem:[#allocation5 + $0xfc]]
      %v2203 = vstv %s2202
      %v2204 = vmul.f32 %v2203, %v2176
      %v2205 = vmul.f32 %v2203, %v2177
      %v2206 = vadd.f32 %v2188, %v2204
      %v2207 = vadd.f32 %v2189, %v2205
      %s2208 = sld [smem:[#allocation5 + $0xfd]]
      %v2209 = vstv %s2208
      %v2210 = vmul.f32 %v2209, %v2176
      %v2211 = vmul.f32 %v2209, %v2177
      %v2212 = vadd.f32 %v2194, %v2210
      %v2213 = vadd.f32 %v2195, %v2211
      %s2214 = sld [smem:[#allocation5 + $0xfe]]
      %v2215 = vstv %s2214
      %v2216 = vmul.f32 %v2215, %v2176
      %v2217 = vmul.f32 %v2215, %v2177
      %v2218 = vadd.f32 %v2200, %v2216
      %v2219 = vadd.f32 %v2201, %v2217
      %2220 = vrot.lane.b32.xlu0 %v2176, 127
      %v2221 = vpop.permute.xlu0 %2220
      %2222 = vrot.lane.b32.xlu0 %v2177, 127
      %v2223 = vpop.permute.xlu0 %2222
      %v2224 = vsel %vm139, %v2221, 0.0
      %v2225 = vsel %vm139, %v2223, 0.0
      %s2226 = sld [smem:[#allocation5 + $0x105]]
      %v2227 = vstv %s2226
      %v2228 = vmul.f32 %v2227, %v2224
      %v2229 = vmul.f32 %v2227, %v2225
      %v2230 = vadd.f32 %v2206, %v2228
      %v2231 = vadd.f32 %v2207, %v2229
      %s2232 = sld [smem:[#allocation5 + $0x106]]
      %v2233 = vstv %s2232
      %v2234 = vmul.f32 %v2233, %v2224
      %v2235 = vmul.f32 %v2233, %v2225
      %v2236 = vadd.f32 %v2212, %v2234
      %v2237 = vadd.f32 %v2213, %v2235
      %s2238 = sld [smem:[#allocation5 + $0x107]]
      %v2239 = vstv %s2238
      %v2240 = vmul.f32 %v2239, %v2224
      %v2241 = vmul.f32 %v2239, %v2225
      %v2242 = vadd.f32 %v2218, %v2240
      %v2243 = vadd.f32 %v2219, %v2241
      %2244 = vrot.lane.b32.xlu0 %v2170, 1
      %v2245 = vpop.permute.xlu0 %2244
      %2246 = vrot.lane.b32.xlu0 %v2171, 1
      %v2247 = vpop.permute.xlu0 %2246
      %v2248 = vsel %vm138, %v2245, 0.0
      %v2249 = vsel %vm138, %v2247, 0.0
      %s2250 = sld [smem:[#allocation5 + $0x10e]]
      %v2251 = vstv %s2250
      %v2252 = vmul.f32 %v2251, %v2248
      %v2253 = vmul.f32 %v2251, %v2249
      %v2254 = vadd.f32 %v2230, %v2252
      %v2255 = vadd.f32 %v2231, %v2253
      %s2256 = sld [smem:[#allocation5 + $0x10f]]
      %v2257 = vstv %s2256
      %v2258 = vmul.f32 %v2257, %v2248
      %v2259 = vmul.f32 %v2257, %v2249
      %v2260 = vadd.f32 %v2236, %v2258
      %v2261 = vadd.f32 %v2237, %v2259
      %s2262 = sld [smem:[#allocation5 + $0x110]]
      %v2263 = vstv %s2262
      %v2264 = vmul.f32 %v2263, %v2248
      %v2265 = vmul.f32 %v2263, %v2249
      %v2266 = vadd.f32 %v2242, %v2264
      %v2267 = vadd.f32 %v2243, %v2265
      %s2268 = sld [smem:[#allocation5 + $0x117]]
      %v2269 = vstv %s2268
      %v2270 = vmul.f32 %v2269, %v2170
      %v2271 = vmul.f32 %v2269, %v2171
      %v2272 = vadd.f32 %v2254, %v2270
      %v2273 = vadd.f32 %v2255, %v2271
      %s2274 = sld [smem:[#allocation5 + $0x118]]
      %v2275 = vstv %s2274
      %v2276 = vmul.f32 %v2275, %v2170
      %v2277 = vmul.f32 %v2275, %v2171
      %v2278 = vadd.f32 %v2260, %v2276
      %v2279 = vadd.f32 %v2261, %v2277
      %s2280 = sld [smem:[#allocation5 + $0x119]]
      %v2281 = vstv %s2280
      %v2282 = vmul.f32 %v2281, %v2170
      %v2283 = vmul.f32 %v2281, %v2171
      %v2284 = vadd.f32 %v2266, %v2282
      %v2285 = vadd.f32 %v2267, %v2283
      %2286 = vrot.lane.b32.xlu0 %v2170, 127
      %v2287 = vpop.permute.xlu0 %2286
      %2288 = vrot.lane.b32.xlu0 %v2171, 127
      %v2289 = vpop.permute.xlu0 %2288
      %v2290 = vsel %vm139, %v2287, 0.0
      %v2291 = vsel %vm139, %v2289, 0.0
      %s2292 = sld [smem:[#allocation5 + $0x120]]
      %v2293 = vstv %s2292
      %v2294 = vmul.f32 %v2293, %v2290
      %v2295 = vmul.f32 %v2293, %v2291
      %v2296 = vadd.f32 %v2272, %v2294
      %v2297 = vadd.f32 %v2273, %v2295
      %s2298 = sld [smem:[#allocation5 + $0x121]]
      %v2299 = vstv %s2298
      %v2300 = vmul.f32 %v2299, %v2290
      %v2301 = vmul.f32 %v2299, %v2291
      %v2302 = vadd.f32 %v2278, %v2300
      %v2303 = vadd.f32 %v2279, %v2301
      %s2304 = sld [smem:[#allocation5 + $0x122]]
      %v2305 = vstv %s2304
      %v2306 = vmul.f32 %v2305, %v2290
      %v2307 = vmul.f32 %v2305, %v2291
      %v2308 = vadd.f32 %v2284, %v2306
      %v2309 = vadd.f32 %v2285, %v2307
      %v2310 = vrot.slane %v2170, 1
      %v2311 = vrot.slane %v2171, 1
      %v2312 = vsel %vm289, %v2310, %v2311
      %v2313 = vsel %vm289, %v2311, %v2310
      %v2314 = vsel %vm136, %v2312, 0.0
      %v2315 = vsel %vm137, %v2313, 0.0
      %2316 = vrot.lane.b32.xlu0 %v2314, 1
      %v2317 = vpop.permute.xlu0 %2316
      %2318 = vrot.lane.b32.xlu0 %v2315, 1
      %v2319 = vpop.permute.xlu0 %2318
      %v2320 = vsel %vm138, %v2317, 0.0
      %v2321 = vsel %vm138, %v2319, 0.0
      %s2322 = sld [smem:[#allocation5 + $0x129]]
      %v2323 = vstv %s2322
      %v2324 = vmul.f32 %v2323, %v2320
      %v2325 = vmul.f32 %v2323, %v2321
      %v2326 = vadd.f32 %v2296, %v2324
      %v2327 = vadd.f32 %v2297, %v2325
      %s2328 = sld [smem:[#allocation5 + $0x12a]]
      %v2329 = vstv %s2328
      %v2330 = vmul.f32 %v2329, %v2320
      %v2331 = vmul.f32 %v2329, %v2321
      %v2332 = vadd.f32 %v2302, %v2330
      %v2333 = vadd.f32 %v2303, %v2331
      %s2334 = sld [smem:[#allocation5 + $0x12b]]
      %v2335 = vstv %s2334
      %v2336 = vmul.f32 %v2335, %v2320
      %v2337 = vmul.f32 %v2335, %v2321
      %v2338 = vadd.f32 %v2308, %v2336
      %v2339 = vadd.f32 %v2309, %v2337
      %s2340 = sld [smem:[#allocation5 + $0x132]]
      %v2341 = vstv %s2340
      %v2342 = vmul.f32 %v2341, %v2314
      %v2343 = vmul.f32 %v2341, %v2315
      %v2344 = vadd.f32 %v2326, %v2342
      %v2345 = vadd.f32 %v2327, %v2343
      %s2346 = sld [smem:[#allocation5 + $0x133]]
      %v2347 = vstv %s2346
      %v2348 = vmul.f32 %v2347, %v2314
      %v2349 = vmul.f32 %v2347, %v2315
      %v2350 = vadd.f32 %v2332, %v2348
      %v2351 = vadd.f32 %v2333, %v2349
      %s2352 = sld [smem:[#allocation5 + $0x134]]
      %v2353 = vstv %s2352
      %v2354 = vmul.f32 %v2353, %v2314
      %v2355 = vmul.f32 %v2353, %v2315
      %v2356 = vadd.f32 %v2338, %v2354
      %v2357 = vadd.f32 %v2339, %v2355
      %2358 = vrot.lane.b32.xlu0 %v2314, 127
      %v2359 = vpop.permute.xlu0 %2358
      %2360 = vrot.lane.b32.xlu0 %v2315, 127
      %v2361 = vpop.permute.xlu0 %2360
      %v2362 = vsel %vm139, %v2359, 0.0
      %v2363 = vsel %vm139, %v2361, 0.0
      %s2364 = sld [smem:[#allocation5 + $0x13b]]
      %v2365 = vstv %s2364
      %v2366 = vmul.f32 %v2365, %v2362
      %v2367 = vmul.f32 %v2365, %v2363
      %v2368 = vadd.f32 %v2344, %v2366
      %v2369 = vadd.f32 %v2345, %v2367
      %s2370 = sld [smem:[#allocation5 + $0x13c]]
      %v2371 = vstv %s2370
      %v2372 = vmul.f32 %v2371, %v2362
      %v2373 = vmul.f32 %v2371, %v2363
      %v2374 = vadd.f32 %v2350, %v2372
      %v2375 = vadd.f32 %v2351, %v2373
      %s2376 = sld [smem:[#allocation5 + $0x13d]]
      %v2377 = vstv %s2376
      %v2378 = vmul.f32 %v2377, %v2362
      %v2379 = vmul.f32 %v2377, %v2363
      %v2380 = vadd.f32 %v2356, %v2378
      %v2381 = vadd.f32 %v2357, %v2379
      %v2382 = vld [vmem:[%s804] sm:$0xff]
      %v2383 = vld [vmem:[%s804 + $0x8] sm:$0xff]
      %v2384 = vrot.slane %v2382, 7
      %v2385 = vrot.slane %v2383, 7
      %v2386 = vsel %vm150, %v2384, %v2385
      %v2387 = vsel %vm150, %v2385, %v2384
      %v2388 = vsel %vm134, %v2387, 0.0
      %v2389 = vsel %vm135, %v2386, 0.0
      %2390 = vrot.lane.b32.xlu0 %v2388, 1
      %v2391 = vpop.permute.xlu0 %2390
      %2392 = vrot.lane.b32.xlu0 %v2389, 1
      %v2393 = vpop.permute.xlu0 %2392
      %v2394 = vsel %vm138, %v2391, 0.0
      %v2395 = vsel %vm138, %v2393, 0.0
      %s2396 = sld [smem:[#allocation5 + $0xf6]]
      %v2397 = vstv %s2396
      %v2398 = vmul.f32 %v2397, %v2394
      %v2399 = vmul.f32 %v2397, %v2395
      %v2400 = vadd.f32 %v2368, %v2398
      %v2401 = vadd.f32 %v2369, %v2399
      %s2402 = sld [smem:[#allocation5 + $0xf7]]
      %v2403 = vstv %s2402
      %v2404 = vmul.f32 %v2403, %v2394
      %v2405 = vmul.f32 %v2403, %v2395
      %v2406 = vadd.f32 %v2374, %v2404
      %v2407 = vadd.f32 %v2375, %v2405
      %s2408 = sld [smem:[#allocation5 + $0xf8]]
      %v2409 = vstv %s2408
      %v2410 = vmul.f32 %v2409, %v2394
      %v2411 = vmul.f32 %v2409, %v2395
      %v2412 = vadd.f32 %v2380, %v2410
      %v2413 = vadd.f32 %v2381, %v2411
      %s2414 = sld [smem:[#allocation5 + $0xff]]
      %v2415 = vstv %s2414
      %v2416 = vmul.f32 %v2415, %v2388
      %v2417 = vmul.f32 %v2415, %v2389
      %v2418 = vadd.f32 %v2400, %v2416
      %v2419 = vadd.f32 %v2401, %v2417
      %s2420 = sld [smem:[#allocation5 + $0x100]]
      %v2421 = vstv %s2420
      %v2422 = vmul.f32 %v2421, %v2388
      %v2423 = vmul.f32 %v2421, %v2389
      %v2424 = vadd.f32 %v2406, %v2422
      %v2425 = vadd.f32 %v2407, %v2423
      %s2426 = sld [smem:[#allocation5 + $0x101]]
      %v2427 = vstv %s2426
      %v2428 = vmul.f32 %v2427, %v2388
      %v2429 = vmul.f32 %v2427, %v2389
      %v2430 = vadd.f32 %v2412, %v2428
      %v2431 = vadd.f32 %v2413, %v2429
      %2432 = vrot.lane.b32.xlu0 %v2388, 127
      %v2433 = vpop.permute.xlu0 %2432
      %2434 = vrot.lane.b32.xlu0 %v2389, 127
      %v2435 = vpop.permute.xlu0 %2434
      %v2436 = vsel %vm139, %v2433, 0.0
      %v2437 = vsel %vm139, %v2435, 0.0
      %s2438 = sld [smem:[#allocation5 + $0x108]]
      %v2439 = vstv %s2438
      %v2440 = vmul.f32 %v2439, %v2436
      %v2441 = vmul.f32 %v2439, %v2437
      %v2442 = vadd.f32 %v2418, %v2440
      %v2443 = vadd.f32 %v2419, %v2441
      %s2444 = sld [smem:[#allocation5 + $0x109]]
      %v2445 = vstv %s2444
      %v2446 = vmul.f32 %v2445, %v2436
      %v2447 = vmul.f32 %v2445, %v2437
      %v2448 = vadd.f32 %v2424, %v2446
      %v2449 = vadd.f32 %v2425, %v2447
      %s2450 = sld [smem:[#allocation5 + $0x10a]]
      %v2451 = vstv %s2450
      %v2452 = vmul.f32 %v2451, %v2436
      %v2453 = vmul.f32 %v2451, %v2437
      %v2454 = vadd.f32 %v2430, %v2452
      %v2455 = vadd.f32 %v2431, %v2453
      %2456 = vrot.lane.b32.xlu0 %v2382, 1
      %v2457 = vpop.permute.xlu0 %2456
      %2458 = vrot.lane.b32.xlu0 %v2383, 1
      %v2459 = vpop.permute.xlu0 %2458
      %v2460 = vsel %vm138, %v2457, 0.0
      %v2461 = vsel %vm138, %v2459, 0.0
      %s2462 = sld [smem:[#allocation5 + $0x111]]
      %v2463 = vstv %s2462
      %v2464 = vmul.f32 %v2463, %v2460
      %v2465 = vmul.f32 %v2463, %v2461
      %v2466 = vadd.f32 %v2442, %v2464
      %v2467 = vadd.f32 %v2443, %v2465
      %s2468 = sld [smem:[#allocation5 + $0x112]]
      %v2469 = vstv %s2468
      %v2470 = vmul.f32 %v2469, %v2460
      %v2471 = vmul.f32 %v2469, %v2461
      %v2472 = vadd.f32 %v2448, %v2470
      %v2473 = vadd.f32 %v2449, %v2471
      %s2474 = sld [smem:[#allocation5 + $0x113]]
      %v2475 = vstv %s2474
      %v2476 = vmul.f32 %v2475, %v2460
      %v2477 = vmul.f32 %v2475, %v2461
      %v2478 = vadd.f32 %v2454, %v2476
      %v2479 = vadd.f32 %v2455, %v2477
      %s2480 = sld [smem:[#allocation5 + $0x11a]]
      %v2481 = vstv %s2480
      %v2482 = vmul.f32 %v2481, %v2382
      %v2483 = vmul.f32 %v2481, %v2383
      %v2484 = vadd.f32 %v2466, %v2482
      %v2485 = vadd.f32 %v2467, %v2483
      %s2486 = sld [smem:[#allocation5 + $0x11b]]
      %v2487 = vstv %s2486
      %v2488 = vmul.f32 %v2487, %v2382
      %v2489 = vmul.f32 %v2487, %v2383
      %v2490 = vadd.f32 %v2472, %v2488
      %v2491 = vadd.f32 %v2473, %v2489
      %s2492 = sld [smem:[#allocation5 + $0x11c]]
      %v2493 = vstv %s2492
      %v2494 = vmul.f32 %v2493, %v2382
      %v2495 = vmul.f32 %v2493, %v2383
      %v2496 = vadd.f32 %v2478, %v2494
      %v2497 = vadd.f32 %v2479, %v2495
      %2498 = vrot.lane.b32.xlu0 %v2382, 127
      %v2499 = vpop.permute.xlu0 %2498
      %2500 = vrot.lane.b32.xlu0 %v2383, 127
      %v2501 = vpop.permute.xlu0 %2500
      %v2502 = vsel %vm139, %v2499, 0.0
      %v2503 = vsel %vm139, %v2501, 0.0
      %s2504 = sld [smem:[#allocation5 + $0x123]]
      %v2505 = vstv %s2504
      %v2506 = vmul.f32 %v2505, %v2502
      %v2507 = vmul.f32 %v2505, %v2503
      %v2508 = vadd.f32 %v2484, %v2506
      %v2509 = vadd.f32 %v2485, %v2507
      %s2510 = sld [smem:[#allocation5 + $0x124]]
      %v2511 = vstv %s2510
      %v2512 = vmul.f32 %v2511, %v2502
      %v2513 = vmul.f32 %v2511, %v2503
      %v2514 = vadd.f32 %v2490, %v2512
      %v2515 = vadd.f32 %v2491, %v2513
      %s2516 = sld [smem:[#allocation5 + $0x125]]
      %v2517 = vstv %s2516
      %v2518 = vmul.f32 %v2517, %v2502
      %v2519 = vmul.f32 %v2517, %v2503
      %v2520 = vadd.f32 %v2496, %v2518
      %v2521 = vadd.f32 %v2497, %v2519
      %v2522 = vrot.slane %v2382, 1
      %v2523 = vrot.slane %v2383, 1
      %v2524 = vsel %vm289, %v2522, %v2523
      %v2525 = vsel %vm289, %v2523, %v2522
      %v2526 = vsel %vm136, %v2524, 0.0
      %v2527 = vsel %vm137, %v2525, 0.0
      %2528 = vrot.lane.b32.xlu0 %v2526, 1
      %v2529 = vpop.permute.xlu0 %2528
      %2530 = vrot.lane.b32.xlu0 %v2527, 1
      %v2531 = vpop.permute.xlu0 %2530
      %v2532 = vsel %vm138, %v2529, 0.0
      %v2533 = vsel %vm138, %v2531, 0.0
      %s2534 = sld [smem:[#allocation5 + $0x12c]]
      %v2535 = vstv %s2534
      %v2536 = vmul.f32 %v2535, %v2532
      %v2537 = vmul.f32 %v2535, %v2533
      %v2538 = vadd.f32 %v2508, %v2536
      %v2539 = vadd.f32 %v2509, %v2537
      %s2540 = sld [smem:[#allocation5 + $0x12d]]
      %v2541 = vstv %s2540
      %v2542 = vmul.f32 %v2541, %v2532
      %v2543 = vmul.f32 %v2541, %v2533
      %v2544 = vadd.f32 %v2514, %v2542
      %v2545 = vadd.f32 %v2515, %v2543
      %s2546 = sld [smem:[#allocation5 + $0x12e]]
      %v2547 = vstv %s2546
      %v2548 = vmul.f32 %v2547, %v2532
      %v2549 = vmul.f32 %v2547, %v2533
      %v2550 = vadd.f32 %v2520, %v2548
      %v2551 = vadd.f32 %v2521, %v2549
      %s2552 = sld [smem:[#allocation5 + $0x135]]
      %v2553 = vstv %s2552
      %v2554 = vmul.f32 %v2553, %v2526
      %v2555 = vmul.f32 %v2553, %v2527
      %v2556 = vadd.f32 %v2538, %v2554
      %v2557 = vadd.f32 %v2539, %v2555
      %s2558 = sld [smem:[#allocation5 + $0x136]]
      %v2559 = vstv %s2558
      %v2560 = vmul.f32 %v2559, %v2526
      %v2561 = vmul.f32 %v2559, %v2527
      %v2562 = vadd.f32 %v2544, %v2560
      %v2563 = vadd.f32 %v2545, %v2561
      %s2564 = sld [smem:[#allocation5 + $0x137]]
      %v2565 = vstv %s2564
      %v2566 = vmul.f32 %v2565, %v2526
      %v2567 = vmul.f32 %v2565, %v2527
      %v2568 = vadd.f32 %v2550, %v2566
      %v2569 = vadd.f32 %v2551, %v2567
      %2570 = vrot.lane.b32.xlu0 %v2526, 127
      %v2571 = vpop.permute.xlu0 %2570
      %2572 = vrot.lane.b32.xlu0 %v2527, 127
      %v2573 = vpop.permute.xlu0 %2572
      %v2574 = vsel %vm139, %v2571, 0.0
      %v2575 = vsel %vm139, %v2573, 0.0
      %s2576 = sld [smem:[#allocation5 + $0x13e]]
      %v2577 = vstv %s2576
      %v2578 = vmul.f32 %v2577, %v2574
      %v2579 = vmul.f32 %v2577, %v2575
      %v2580 = vadd.f32 %v2556, %v2578
      %v2581 = vadd.f32 %v2557, %v2579
      %s2582 = sld [smem:[#allocation5 + $0x13f]]
      %v2583 = vstv %s2582
      %v2584 = vmul.f32 %v2583, %v2574
      %v2585 = vmul.f32 %v2583, %v2575
      %v2586 = vadd.f32 %v2562, %v2584
      %v2587 = vadd.f32 %v2563, %v2585
      %s2588 = sld [smem:[#allocation5 + $0x140]]
      %v2589 = vstv %s2588
      %v2590 = vmul.f32 %v2589, %v2574
      %v2591 = vmul.f32 %v2589, %v2575
      %v2592 = vadd.f32 %v2568, %v2590
      %v2593 = vadd.f32 %v2569, %v2591
      %v2594 = vld [vmem:[%s815] sm:$0xff]
      %v2595 = vld [vmem:[%s815 + $0x8] sm:$0xff]
      %v2596 = vrot.slane %v2594, 7
      %v2597 = vrot.slane %v2595, 7
      %v2598 = vsel %vm150, %v2596, %v2597
      %v2599 = vsel %vm150, %v2597, %v2596
      %v2600 = vsel %vm134, %v2599, 0.0
      %v2601 = vsel %vm135, %v2598, 0.0
      %2602 = vrot.lane.b32.xlu0 %v2600, 1
      %v2603 = vpop.permute.xlu0 %2602
      %2604 = vrot.lane.b32.xlu0 %v2601, 1
      %v2605 = vpop.permute.xlu0 %2604
      %v2606 = vsel %vm138, %v2603, 0.0
      %v2607 = vsel %vm138, %v2605, 0.0
      %s2608 = sld [smem:[#allocation5 + $0xf9]]
      %v2609 = vstv %s2608
      %v2610 = vmul.f32 %v2609, %v2606
      %v2611 = vmul.f32 %v2609, %v2607
      %v2612 = vadd.f32 %v2580, %v2610
      %v2613 = vadd.f32 %v2581, %v2611
      %s2614 = sld [smem:[#allocation5 + $0xfa]]
      %v2615 = vstv %s2614
      %v2616 = vmul.f32 %v2615, %v2606
      %v2617 = vmul.f32 %v2615, %v2607
      %v2618 = vadd.f32 %v2586, %v2616
      %v2619 = vadd.f32 %v2587, %v2617
      %s2620 = sld [smem:[#allocation5 + $0xfb]]
      %v2621 = vstv %s2620
      %v2622 = vmul.f32 %v2621, %v2606
      %v2623 = vmul.f32 %v2621, %v2607
      %v2624 = vadd.f32 %v2592, %v2622
      %v2625 = vadd.f32 %v2593, %v2623
      %s2626 = sld [smem:[#allocation5 + $0x102]]
      %v2627 = vstv %s2626
      %v2628 = vmul.f32 %v2627, %v2600
      %v2629 = vmul.f32 %v2627, %v2601
      %v2630 = vadd.f32 %v2612, %v2628
      %v2631 = vadd.f32 %v2613, %v2629
      %s2632 = sld [smem:[#allocation5 + $0x103]]
      %v2633 = vstv %s2632
      %v2634 = vmul.f32 %v2633, %v2600
      %v2635 = vmul.f32 %v2633, %v2601
      %v2636 = vadd.f32 %v2618, %v2634
      %v2637 = vadd.f32 %v2619, %v2635
      %s2638 = sld [smem:[#allocation5 + $0x104]]
      %v2639 = vstv %s2638
      %v2640 = vmul.f32 %v2639, %v2600
      %v2641 = vmul.f32 %v2639, %v2601
      %v2642 = vadd.f32 %v2624, %v2640
      %v2643 = vadd.f32 %v2625, %v2641
      %2644 = vrot.lane.b32.xlu0 %v2600, 127
      %v2645 = vpop.permute.xlu0 %2644
      %2646 = vrot.lane.b32.xlu0 %v2601, 127
      %v2647 = vpop.permute.xlu0 %2646
      %v2648 = vsel %vm139, %v2645, 0.0
      %v2649 = vsel %vm139, %v2647, 0.0
      %s2650 = sld [smem:[#allocation5 + $0x10b]]
      %v2651 = vstv %s2650
      %v2652 = vmul.f32 %v2651, %v2648
      %v2653 = vmul.f32 %v2651, %v2649
      %v2654 = vadd.f32 %v2630, %v2652
      %v2655 = vadd.f32 %v2631, %v2653
      %s2656 = sld [smem:[#allocation5 + $0x10c]]
      %v2657 = vstv %s2656
      %v2658 = vmul.f32 %v2657, %v2648
      %v2659 = vmul.f32 %v2657, %v2649
      %v2660 = vadd.f32 %v2636, %v2658
      %v2661 = vadd.f32 %v2637, %v2659
      %s2662 = sld [smem:[#allocation5 + $0x10d]]
      %v2663 = vstv %s2662
      %v2664 = vmul.f32 %v2663, %v2648
      %v2665 = vmul.f32 %v2663, %v2649
      %v2666 = vadd.f32 %v2642, %v2664
      %v2667 = vadd.f32 %v2643, %v2665
      %2668 = vrot.lane.b32.xlu0 %v2594, 1
      %v2669 = vpop.permute.xlu0 %2668
      %2670 = vrot.lane.b32.xlu0 %v2595, 1
      %v2671 = vpop.permute.xlu0 %2670
      %v2672 = vsel %vm138, %v2669, 0.0
      %v2673 = vsel %vm138, %v2671, 0.0
      %s2674 = sld [smem:[#allocation5 + $0x114]]
      %v2675 = vstv %s2674
      %v2676 = vmul.f32 %v2675, %v2672
      %v2677 = vmul.f32 %v2675, %v2673
      %v2678 = vadd.f32 %v2654, %v2676
      %v2679 = vadd.f32 %v2655, %v2677
      %s2680 = sld [smem:[#allocation5 + $0x115]]
      %v2681 = vstv %s2680
      %v2682 = vmul.f32 %v2681, %v2672
      %v2683 = vmul.f32 %v2681, %v2673
      %v2684 = vadd.f32 %v2660, %v2682
      %v2685 = vadd.f32 %v2661, %v2683
      %s2686 = sld [smem:[#allocation5 + $0x116]]
      %v2687 = vstv %s2686
      %v2688 = vmul.f32 %v2687, %v2672
      %v2689 = vmul.f32 %v2687, %v2673
      %v2690 = vadd.f32 %v2666, %v2688
      %v2691 = vadd.f32 %v2667, %v2689
      %s2692 = sld [smem:[#allocation5 + $0x11d]]
      %v2693 = vstv %s2692
      %v2694 = vmul.f32 %v2693, %v2594
      %v2695 = vmul.f32 %v2693, %v2595
      %v2696 = vadd.f32 %v2678, %v2694
      %v2697 = vadd.f32 %v2679, %v2695
      %s2698 = sld [smem:[#allocation5 + $0x11e]]
      %v2699 = vstv %s2698
      %v2700 = vmul.f32 %v2699, %v2594
      %v2701 = vmul.f32 %v2699, %v2595
      %v2702 = vadd.f32 %v2684, %v2700
      %v2703 = vadd.f32 %v2685, %v2701
      %s2704 = sld [smem:[#allocation5 + $0x11f]]
      %v2705 = vstv %s2704
      %v2706 = vmul.f32 %v2705, %v2594
      %v2707 = vmul.f32 %v2705, %v2595
      %v2708 = vadd.f32 %v2690, %v2706
      %v2709 = vadd.f32 %v2691, %v2707
      %2710 = vrot.lane.b32.xlu0 %v2594, 127
      %v2711 = vpop.permute.xlu0 %2710
      %2712 = vrot.lane.b32.xlu0 %v2595, 127
      %v2713 = vpop.permute.xlu0 %2712
      %v2714 = vsel %vm139, %v2711, 0.0
      %v2715 = vsel %vm139, %v2713, 0.0
      %s2716 = sld [smem:[#allocation5 + $0x126]]
      %v2717 = vstv %s2716
      %v2718 = vmul.f32 %v2717, %v2714
      %v2719 = vmul.f32 %v2717, %v2715
      %v2720 = vadd.f32 %v2696, %v2718
      %v2721 = vadd.f32 %v2697, %v2719
      %s2722 = sld [smem:[#allocation5 + $0x127]]
      %v2723 = vstv %s2722
      %v2724 = vmul.f32 %v2723, %v2714
      %v2725 = vmul.f32 %v2723, %v2715
      %v2726 = vadd.f32 %v2702, %v2724
      %v2727 = vadd.f32 %v2703, %v2725
      %s2728 = sld [smem:[#allocation5 + $0x128]]
      %v2729 = vstv %s2728
      %v2730 = vmul.f32 %v2729, %v2714
      %v2731 = vmul.f32 %v2729, %v2715
      %v2732 = vadd.f32 %v2708, %v2730
      %v2733 = vadd.f32 %v2709, %v2731
      %v2734 = vrot.slane %v2594, 1
      %v2735 = vrot.slane %v2595, 1
      %v2736 = vsel %vm289, %v2734, %v2735
      %v2737 = vsel %vm289, %v2735, %v2734
      %v2738 = vsel %vm136, %v2736, 0.0
      %v2739 = vsel %vm137, %v2737, 0.0
      %2740 = vrot.lane.b32.xlu0 %v2738, 1
      %v2741 = vpop.permute.xlu0 %2740
      %2742 = vrot.lane.b32.xlu0 %v2739, 1
      %v2743 = vpop.permute.xlu0 %2742
      %v2744 = vsel %vm138, %v2741, 0.0
      %v2745 = vsel %vm138, %v2743, 0.0
      %s2746 = sld [smem:[#allocation5 + $0x12f]]
      %v2747 = vstv %s2746
      %v2748 = vmul.f32 %v2747, %v2744
      %v2749 = vmul.f32 %v2747, %v2745
      %v2750 = vadd.f32 %v2720, %v2748
      %v2751 = vadd.f32 %v2721, %v2749
      %s2752 = sld [smem:[#allocation5 + $0x130]]
      %v2753 = vstv %s2752
      %v2754 = vmul.f32 %v2753, %v2744
      %v2755 = vmul.f32 %v2753, %v2745
      %v2756 = vadd.f32 %v2726, %v2754
      %v2757 = vadd.f32 %v2727, %v2755
      %s2758 = sld [smem:[#allocation5 + $0x131]]
      %v2759 = vstv %s2758
      %v2760 = vmul.f32 %v2759, %v2744
      %v2761 = vmul.f32 %v2759, %v2745
      %v2762 = vadd.f32 %v2732, %v2760
      %v2763 = vadd.f32 %v2733, %v2761
      %s2764 = sld [smem:[#allocation5 + $0x138]]
      %v2765 = vstv %s2764
      %v2766 = vmul.f32 %v2765, %v2738
      %v2767 = vmul.f32 %v2765, %v2739
      %v2768 = vadd.f32 %v2750, %v2766
      %v2769 = vadd.f32 %v2751, %v2767
      %s2770 = sld [smem:[#allocation5 + $0x139]]
      %v2771 = vstv %s2770
      %v2772 = vmul.f32 %v2771, %v2738
      %v2773 = vmul.f32 %v2771, %v2739
      %v2774 = vadd.f32 %v2756, %v2772
      %v2775 = vadd.f32 %v2757, %v2773
      %s2776 = sld [smem:[#allocation5 + $0x13a]]
      %v2777 = vstv %s2776
      %v2778 = vmul.f32 %v2777, %v2738
      %v2779 = vmul.f32 %v2777, %v2739
      %v2780 = vadd.f32 %v2762, %v2778
      %v2781 = vadd.f32 %v2763, %v2779
      %2782 = vrot.lane.b32.xlu0 %v2738, 127
      %v2783 = vpop.permute.xlu0 %2782
      %2784 = vrot.lane.b32.xlu0 %v2739, 127
      %v2785 = vpop.permute.xlu0 %2784
      %v2786 = vsel %vm139, %v2783, 0.0
      %v2787 = vsel %vm139, %v2785, 0.0
      %s2788 = sld [smem:[#allocation5 + $0x141]]
      %v2789 = vstv %s2788
      %v2790 = vmul.f32 %v2789, %v2786
      %v2791 = vmul.f32 %v2789, %v2787
      %v2792 = vadd.f32 %v2768, %v2790
      %v2793 = vadd.f32 %v2769, %v2791
      %s2794 = sld [smem:[#allocation5 + $0x142]]
      %v2795 = vstv %s2794
      %v2796 = vmul.f32 %v2795, %v2786
      %v2797 = vmul.f32 %v2795, %v2787
      %v2798 = vadd.f32 %v2774, %v2796
      %v2799 = vadd.f32 %v2775, %v2797
      %s2800 = sld [smem:[#allocation5 + $0x143]]
      %v2801 = vstv %s2800
      %v2802 = vmul.f32 %v2801, %v2786
      %v2803 = vmul.f32 %v2801, %v2787
      %v2804 = vadd.f32 %v2780, %v2802
      %v2805 = vadd.f32 %v2781, %v2803
      %v2806 = vmul.f32 %v2792, 0.5
      %v2807 = vmul.f32 %v2793, 0.5
      %v2808 = vtanh.pop %v2806
      %v2809 = vtanh.pop %v2807
      %v2810 = vmul.f32 %v2808, 0.5
      %v2811 = vmul.f32 %v2809, 0.5
      %v2812 = vadd.f32 %v2810, 0.5
      %v2813 = vadd.f32 %v2811, 0.5
      %2814 = vst [vmem:[#allocation3] sm:$0xff] %v2812
      %2815 = vst [vmem:[#allocation3 + $0x8] sm:$0xff] %v2813
      %v2816 = vmul.f32 %v2798, 0.5
      %v2817 = vmul.f32 %v2799, 0.5
      %v2818 = vtanh.pop %v2816
      %v2819 = vtanh.pop %v2817
      %v2820 = vmul.f32 %v2818, 0.5
      %v2821 = vmul.f32 %v2819, 0.5
      %v2822 = vadd.f32 %v2820, 0.5
      %v2823 = vadd.f32 %v2821, 0.5
      %2824 = vst [vmem:[%s1478] sm:$0xff] %v2822
      %2825 = vst [vmem:[%s1478 + $0x8] sm:$0xff] %v2823
      %v2826 = vmul.f32 %v2804, 0.5
      %v2827 = vmul.f32 %v2805, 0.5
      %v2828 = vtanh.pop %v2826
      %v2829 = vtanh.pop %v2827
      %v2830 = vmul.f32 %v2828, 0.5
      %v2831 = vmul.f32 %v2829, 0.5
      %v2832 = vadd.f32 %v2830, 0.5
      %v2833 = vadd.f32 %v2831, 0.5
      %2834 = vst [vmem:[%s1489] sm:$0xff] %v2832
      %2835 = vst [vmem:[%s1489 + $0x8] sm:$0xff] %v2833
      %s2836 = sld [smem:[#allocation6 + $0xc]]
      %v2837 = vstv %s2836
      %s2838 = sld [smem:[#allocation6 + $0xd]]
      %v2839 = vstv %s2838
      %s2840 = sld [smem:[#allocation6 + $0xe]]
      %v2841 = vstv %s2840
      %v2842 = vld [vmem:[#allocation3] sm:$0xff]
      %v2843 = vld [vmem:[#allocation3 + $0x8] sm:$0xff]
      %v2844 = vrot.slane %v2842, 7
      %v2845 = vrot.slane %v2843, 7
      %v2846 = vsel %vm150, %v2844, %v2845
      %v2847 = vsel %vm150, %v2845, %v2844
      %v2848 = vsel %vm134, %v2847, 0.0
      %v2849 = vsel %vm135, %v2846, 0.0
      %2850 = vrot.lane.b32.xlu0 %v2848, 1
      %v2851 = vpop.permute.xlu0 %2850
      %2852 = vrot.lane.b32.xlu0 %v2849, 1
      %v2853 = vpop.permute.xlu0 %2852
      %v2854 = vsel %vm138, %v2851, 0.0
      %v2855 = vsel %vm138, %v2853, 0.0
      %s2856 = sld [smem:[#allocation5 + $0x144]]
      %v2857 = vstv %s2856
      %v2858 = vmul.f32 %v2857, %v2854
      %v2859 = vmul.f32 %v2857, %v2855
      %v2860 = vadd.f32 %v2837, %v2858
      %v2861 = vadd.f32 %v2837, %v2859
      %s2862 = sld [smem:[#allocation5 + $0x145]]
      %v2863 = vstv %s2862
      %v2864 = vmul.f32 %v2863, %v2854
      %v2865 = vmul.f32 %v2863, %v2855
      %v2866 = vadd.f32 %v2839, %v2864
      %v2867 = vadd.f32 %v2839, %v2865
      %s2868 = sld [smem:[#allocation5 + $0x146]]
      %v2869 = vstv %s2868
      %v2870 = vmul.f32 %v2869, %v2854
      %v2871 = vmul.f32 %v2869, %v2855
      %v2872 = vadd.f32 %v2841, %v2870
      %v2873 = vadd.f32 %v2841, %v2871
      %s2874 = sld [smem:[#allocation5 + $0x14d]]
      %v2875 = vstv %s2874
      %v2876 = vmul.f32 %v2875, %v2848
      %v2877 = vmul.f32 %v2875, %v2849
      %v2878 = vadd.f32 %v2860, %v2876
      %v2879 = vadd.f32 %v2861, %v2877
      %s2880 = sld [smem:[#allocation5 + $0x14e]]
      %v2881 = vstv %s2880
      %v2882 = vmul.f32 %v2881, %v2848
      %v2883 = vmul.f32 %v2881, %v2849
      %v2884 = vadd.f32 %v2866, %v2882
      %v2885 = vadd.f32 %v2867, %v2883
      %s2886 = sld [smem:[#allocation5 + $0x14f]]
      %v2887 = vstv %s2886
      %v2888 = vmul.f32 %v2887, %v2848
      %v2889 = vmul.f32 %v2887, %v2849
      %v2890 = vadd.f32 %v2872, %v2888
      %v2891 = vadd.f32 %v2873, %v2889
      %2892 = vrot.lane.b32.xlu0 %v2848, 127
      %v2893 = vpop.permute.xlu0 %2892
      %2894 = vrot.lane.b32.xlu0 %v2849, 127
      %v2895 = vpop.permute.xlu0 %2894
      %v2896 = vsel %vm139, %v2893, 0.0
      %v2897 = vsel %vm139, %v2895, 0.0
      %s2898 = sld [smem:[#allocation5 + $0x156]]
      %v2899 = vstv %s2898
      %v2900 = vmul.f32 %v2899, %v2896
      %v2901 = vmul.f32 %v2899, %v2897
      %v2902 = vadd.f32 %v2878, %v2900
      %v2903 = vadd.f32 %v2879, %v2901
      %s2904 = sld [smem:[#allocation5 + $0x157]]
      %v2905 = vstv %s2904
      %v2906 = vmul.f32 %v2905, %v2896
      %v2907 = vmul.f32 %v2905, %v2897
      %v2908 = vadd.f32 %v2884, %v2906
      %v2909 = vadd.f32 %v2885, %v2907
      %s2910 = sld [smem:[#allocation5 + $0x158]]
      %v2911 = vstv %s2910
      %v2912 = vmul.f32 %v2911, %v2896
      %v2913 = vmul.f32 %v2911, %v2897
      %v2914 = vadd.f32 %v2890, %v2912
      %v2915 = vadd.f32 %v2891, %v2913
      %2916 = vrot.lane.b32.xlu0 %v2842, 1
      %v2917 = vpop.permute.xlu0 %2916
      %2918 = vrot.lane.b32.xlu0 %v2843, 1
      %v2919 = vpop.permute.xlu0 %2918
      %v2920 = vsel %vm138, %v2917, 0.0
      %v2921 = vsel %vm138, %v2919, 0.0
      %s2922 = sld [smem:[#allocation5 + $0x15f]]
      %v2923 = vstv %s2922
      %v2924 = vmul.f32 %v2923, %v2920
      %v2925 = vmul.f32 %v2923, %v2921
      %v2926 = vadd.f32 %v2902, %v2924
      %v2927 = vadd.f32 %v2903, %v2925
      %s2928 = sld [smem:[#allocation5 + $0x160]]
      %v2929 = vstv %s2928
      %v2930 = vmul.f32 %v2929, %v2920
      %v2931 = vmul.f32 %v2929, %v2921
      %v2932 = vadd.f32 %v2908, %v2930
      %v2933 = vadd.f32 %v2909, %v2931
      %s2934 = sld [smem:[#allocation5 + $0x161]]
      %v2935 = vstv %s2934
      %v2936 = vmul.f32 %v2935, %v2920
      %v2937 = vmul.f32 %v2935, %v2921
      %v2938 = vadd.f32 %v2914, %v2936
      %v2939 = vadd.f32 %v2915, %v2937
      %s2940 = sld [smem:[#allocation5 + $0x168]]
      %v2941 = vstv %s2940
      %v2942 = vmul.f32 %v2941, %v2842
      %v2943 = vmul.f32 %v2941, %v2843
      %v2944 = vadd.f32 %v2926, %v2942
      %v2945 = vadd.f32 %v2927, %v2943
      %s2946 = sld [smem:[#allocation5 + $0x169]]
      %v2947 = vstv %s2946
      %v2948 = vmul.f32 %v2947, %v2842
      %v2949 = vmul.f32 %v2947, %v2843
      %v2950 = vadd.f32 %v2932, %v2948
      %v2951 = vadd.f32 %v2933, %v2949
      %s2952 = sld [smem:[#allocation5 + $0x16a]]
      %v2953 = vstv %s2952
      %v2954 = vmul.f32 %v2953, %v2842
      %v2955 = vmul.f32 %v2953, %v2843
      %v2956 = vadd.f32 %v2938, %v2954
      %v2957 = vadd.f32 %v2939, %v2955
      %2958 = vrot.lane.b32.xlu0 %v2842, 127
      %v2959 = vpop.permute.xlu0 %2958
      %2960 = vrot.lane.b32.xlu0 %v2843, 127
      %v2961 = vpop.permute.xlu0 %2960
      %v2962 = vsel %vm139, %v2959, 0.0
      %v2963 = vsel %vm139, %v2961, 0.0
      %s2964 = sld [smem:[#allocation5 + $0x171]]
      %v2965 = vstv %s2964
      %v2966 = vmul.f32 %v2965, %v2962
      %v2967 = vmul.f32 %v2965, %v2963
      %v2968 = vadd.f32 %v2944, %v2966
      %v2969 = vadd.f32 %v2945, %v2967
      %s2970 = sld [smem:[#allocation5 + $0x172]]
      %v2971 = vstv %s2970
      %v2972 = vmul.f32 %v2971, %v2962
      %v2973 = vmul.f32 %v2971, %v2963
      %v2974 = vadd.f32 %v2950, %v2972
      %v2975 = vadd.f32 %v2951, %v2973
      %s2976 = sld [smem:[#allocation5 + $0x173]]
      %v2977 = vstv %s2976
      %v2978 = vmul.f32 %v2977, %v2962
      %v2979 = vmul.f32 %v2977, %v2963
      %v2980 = vadd.f32 %v2956, %v2978
      %v2981 = vadd.f32 %v2957, %v2979
      %v2982 = vrot.slane %v2842, 1
      %v2983 = vrot.slane %v2843, 1
      %v2984 = vsel %vm289, %v2982, %v2983
      %v2985 = vsel %vm289, %v2983, %v2982
      %v2986 = vsel %vm136, %v2984, 0.0
      %v2987 = vsel %vm137, %v2985, 0.0
      %2988 = vrot.lane.b32.xlu0 %v2986, 1
      %v2989 = vpop.permute.xlu0 %2988
      %2990 = vrot.lane.b32.xlu0 %v2987, 1
      %v2991 = vpop.permute.xlu0 %2990
      %v2992 = vsel %vm138, %v2989, 0.0
      %v2993 = vsel %vm138, %v2991, 0.0
      %s2994 = sld [smem:[#allocation5 + $0x17a]]
      %v2995 = vstv %s2994
      %v2996 = vmul.f32 %v2995, %v2992
      %v2997 = vmul.f32 %v2995, %v2993
      %v2998 = vadd.f32 %v2968, %v2996
      %v2999 = vadd.f32 %v2969, %v2997
      %s3000 = sld [smem:[#allocation5 + $0x17b]]
      %v3001 = vstv %s3000
      %v3002 = vmul.f32 %v3001, %v2992
      %v3003 = vmul.f32 %v3001, %v2993
      %v3004 = vadd.f32 %v2974, %v3002
      %v3005 = vadd.f32 %v2975, %v3003
      %s3006 = sld [smem:[#allocation5 + $0x17c]]
      %v3007 = vstv %s3006
      %v3008 = vmul.f32 %v3007, %v2992
      %v3009 = vmul.f32 %v3007, %v2993
      %v3010 = vadd.f32 %v2980, %v3008
      %v3011 = vadd.f32 %v2981, %v3009
      %s3012 = sld [smem:[#allocation5 + $0x183]]
      %v3013 = vstv %s3012
      %v3014 = vmul.f32 %v3013, %v2986
      %v3015 = vmul.f32 %v3013, %v2987
      %v3016 = vadd.f32 %v2998, %v3014
      %v3017 = vadd.f32 %v2999, %v3015
      %s3018 = sld [smem:[#allocation5 + $0x184]]
      %v3019 = vstv %s3018
      %v3020 = vmul.f32 %v3019, %v2986
      %v3021 = vmul.f32 %v3019, %v2987
      %v3022 = vadd.f32 %v3004, %v3020
      %v3023 = vadd.f32 %v3005, %v3021
      %s3024 = sld [smem:[#allocation5 + $0x185]]
      %v3025 = vstv %s3024
      %v3026 = vmul.f32 %v3025, %v2986
      %v3027 = vmul.f32 %v3025, %v2987
      %v3028 = vadd.f32 %v3010, %v3026
      %v3029 = vadd.f32 %v3011, %v3027
      %3030 = vrot.lane.b32.xlu0 %v2986, 127
      %v3031 = vpop.permute.xlu0 %3030
      %3032 = vrot.lane.b32.xlu0 %v2987, 127
      %v3033 = vpop.permute.xlu0 %3032
      %v3034 = vsel %vm139, %v3031, 0.0
      %v3035 = vsel %vm139, %v3033, 0.0
      %s3036 = sld [smem:[#allocation5 + $0x18c]]
      %v3037 = vstv %s3036
      %v3038 = vmul.f32 %v3037, %v3034
      %v3039 = vmul.f32 %v3037, %v3035
      %v3040 = vadd.f32 %v3016, %v3038
      %v3041 = vadd.f32 %v3017, %v3039
      %s3042 = sld [smem:[#allocation5 + $0x18d]]
      %v3043 = vstv %s3042
      %v3044 = vmul.f32 %v3043, %v3034
      %v3045 = vmul.f32 %v3043, %v3035
      %v3046 = vadd.f32 %v3022, %v3044
      %v3047 = vadd.f32 %v3023, %v3045
      %s3048 = sld [smem:[#allocation5 + $0x18e]]
      %v3049 = vstv %s3048
      %v3050 = vmul.f32 %v3049, %v3034
      %v3051 = vmul.f32 %v3049, %v3035
      %v3052 = vadd.f32 %v3028, %v3050
      %v3053 = vadd.f32 %v3029, %v3051
      %v3054 = vld [vmem:[%s1478] sm:$0xff]
      %v3055 = vld [vmem:[%s1478 + $0x8] sm:$0xff]
      %v3056 = vrot.slane %v3054, 7
      %v3057 = vrot.slane %v3055, 7
      %v3058 = vsel %vm150, %v3056, %v3057
      %v3059 = vsel %vm150, %v3057, %v3056
      %v3060 = vsel %vm134, %v3059, 0.0
      %v3061 = vsel %vm135, %v3058, 0.0
      %3062 = vrot.lane.b32.xlu0 %v3060, 1
      %v3063 = vpop.permute.xlu0 %3062
      %3064 = vrot.lane.b32.xlu0 %v3061, 1
      %v3065 = vpop.permute.xlu0 %3064
      %v3066 = vsel %vm138, %v3063, 0.0
      %v3067 = vsel %vm138, %v3065, 0.0
      %s3068 = sld [smem:[#allocation5 + $0x147]]
      %v3069 = vstv %s3068
      %v3070 = vmul.f32 %v3069, %v3066
      %v3071 = vmul.f32 %v3069, %v3067
      %v3072 = vadd.f32 %v3040, %v3070
      %v3073 = vadd.f32 %v3041, %v3071
      %s3074 = sld [smem:[#allocation5 + $0x148]]
      %v3075 = vstv %s3074
      %v3076 = vmul.f32 %v3075, %v3066
      %v3077 = vmul.f32 %v3075, %v3067
      %v3078 = vadd.f32 %v3046, %v3076
      %v3079 = vadd.f32 %v3047, %v3077
      %s3080 = sld [smem:[#allocation5 + $0x149]]
      %v3081 = vstv %s3080
      %v3082 = vmul.f32 %v3081, %v3066
      %v3083 = vmul.f32 %v3081, %v3067
      %v3084 = vadd.f32 %v3052, %v3082
      %v3085 = vadd.f32 %v3053, %v3083
      %s3086 = sld [smem:[#allocation5 + $0x150]]
      %v3087 = vstv %s3086
      %v3088 = vmul.f32 %v3087, %v3060
      %v3089 = vmul.f32 %v3087, %v3061
      %v3090 = vadd.f32 %v3072, %v3088
      %v3091 = vadd.f32 %v3073, %v3089
      %s3092 = sld [smem:[#allocation5 + $0x151]]
      %v3093 = vstv %s3092
      %v3094 = vmul.f32 %v3093, %v3060
      %v3095 = vmul.f32 %v3093, %v3061
      %v3096 = vadd.f32 %v3078, %v3094
      %v3097 = vadd.f32 %v3079, %v3095
      %s3098 = sld [smem:[#allocation5 + $0x152]]
      %v3099 = vstv %s3098
      %v3100 = vmul.f32 %v3099, %v3060
      %v3101 = vmul.f32 %v3099, %v3061
      %v3102 = vadd.f32 %v3084, %v3100
      %v3103 = vadd.f32 %v3085, %v3101
      %3104 = vrot.lane.b32.xlu0 %v3060, 127
      %v3105 = vpop.permute.xlu0 %3104
      %3106 = vrot.lane.b32.xlu0 %v3061, 127
      %v3107 = vpop.permute.xlu0 %3106
      %v3108 = vsel %vm139, %v3105, 0.0
      %v3109 = vsel %vm139, %v3107, 0.0
      %s3110 = sld [smem:[#allocation5 + $0x159]]
      %v3111 = vstv %s3110
      %v3112 = vmul.f32 %v3111, %v3108
      %v3113 = vmul.f32 %v3111, %v3109
      %v3114 = vadd.f32 %v3090, %v3112
      %v3115 = vadd.f32 %v3091, %v3113
      %s3116 = sld [smem:[#allocation5 + $0x15a]]
      %v3117 = vstv %s3116
      %v3118 = vmul.f32 %v3117, %v3108
      %v3119 = vmul.f32 %v3117, %v3109
      %v3120 = vadd.f32 %v3096, %v3118
      %v3121 = vadd.f32 %v3097, %v3119
      %s3122 = sld [smem:[#allocation5 + $0x15b]]
      %v3123 = vstv %s3122
      %v3124 = vmul.f32 %v3123, %v3108
      %v3125 = vmul.f32 %v3123, %v3109
      %v3126 = vadd.f32 %v3102, %v3124
      %v3127 = vadd.f32 %v3103, %v3125
      %3128 = vrot.lane.b32.xlu0 %v3054, 1
      %v3129 = vpop.permute.xlu0 %3128
      %3130 = vrot.lane.b32.xlu0 %v3055, 1
      %v3131 = vpop.permute.xlu0 %3130
      %v3132 = vsel %vm138, %v3129, 0.0
      %v3133 = vsel %vm138, %v3131, 0.0
      %s3134 = sld [smem:[#allocation5 + $0x162]]
      %v3135 = vstv %s3134
      %v3136 = vmul.f32 %v3135, %v3132
      %v3137 = vmul.f32 %v3135, %v3133
      %v3138 = vadd.f32 %v3114, %v3136
      %v3139 = vadd.f32 %v3115, %v3137
      %s3140 = sld [smem:[#allocation5 + $0x163]]
      %v3141 = vstv %s3140
      %v3142 = vmul.f32 %v3141, %v3132
      %v3143 = vmul.f32 %v3141, %v3133
      %v3144 = vadd.f32 %v3120, %v3142
      %v3145 = vadd.f32 %v3121, %v3143
      %s3146 = sld [smem:[#allocation5 + $0x164]]
      %v3147 = vstv %s3146
      %v3148 = vmul.f32 %v3147, %v3132
      %v3149 = vmul.f32 %v3147, %v3133
      %v3150 = vadd.f32 %v3126, %v3148
      %v3151 = vadd.f32 %v3127, %v3149
      %s3152 = sld [smem:[#allocation5 + $0x16b]]
      %v3153 = vstv %s3152
      %v3154 = vmul.f32 %v3153, %v3054
      %v3155 = vmul.f32 %v3153, %v3055
      %v3156 = vadd.f32 %v3138, %v3154
      %v3157 = vadd.f32 %v3139, %v3155
      %s3158 = sld [smem:[#allocation5 + $0x16c]]
      %v3159 = vstv %s3158
      %v3160 = vmul.f32 %v3159, %v3054
      %v3161 = vmul.f32 %v3159, %v3055
      %v3162 = vadd.f32 %v3144, %v3160
      %v3163 = vadd.f32 %v3145, %v3161
      %s3164 = sld [smem:[#allocation5 + $0x16d]]
      %v3165 = vstv %s3164
      %v3166 = vmul.f32 %v3165, %v3054
      %v3167 = vmul.f32 %v3165, %v3055
      %v3168 = vadd.f32 %v3150, %v3166
      %v3169 = vadd.f32 %v3151, %v3167
      %3170 = vrot.lane.b32.xlu0 %v3054, 127
      %v3171 = vpop.permute.xlu0 %3170
      %3172 = vrot.lane.b32.xlu0 %v3055, 127
      %v3173 = vpop.permute.xlu0 %3172
      %v3174 = vsel %vm139, %v3171, 0.0
      %v3175 = vsel %vm139, %v3173, 0.0
      %s3176 = sld [smem:[#allocation5 + $0x174]]
      %v3177 = vstv %s3176
      %v3178 = vmul.f32 %v3177, %v3174
      %v3179 = vmul.f32 %v3177, %v3175
      %v3180 = vadd.f32 %v3156, %v3178
      %v3181 = vadd.f32 %v3157, %v3179
      %s3182 = sld [smem:[#allocation5 + $0x175]]
      %v3183 = vstv %s3182
      %v3184 = vmul.f32 %v3183, %v3174
      %v3185 = vmul.f32 %v3183, %v3175
      %v3186 = vadd.f32 %v3162, %v3184
      %v3187 = vadd.f32 %v3163, %v3185
      %s3188 = sld [smem:[#allocation5 + $0x176]]
      %v3189 = vstv %s3188
      %v3190 = vmul.f32 %v3189, %v3174
      %v3191 = vmul.f32 %v3189, %v3175
      %v3192 = vadd.f32 %v3168, %v3190
      %v3193 = vadd.f32 %v3169, %v3191
      %v3194 = vrot.slane %v3054, 1
      %v3195 = vrot.slane %v3055, 1
      %v3196 = vsel %vm289, %v3194, %v3195
      %v3197 = vsel %vm289, %v3195, %v3194
      %v3198 = vsel %vm136, %v3196, 0.0
      %v3199 = vsel %vm137, %v3197, 0.0
      %3200 = vrot.lane.b32.xlu0 %v3198, 1
      %v3201 = vpop.permute.xlu0 %3200
      %3202 = vrot.lane.b32.xlu0 %v3199, 1
      %v3203 = vpop.permute.xlu0 %3202
      %v3204 = vsel %vm138, %v3201, 0.0
      %v3205 = vsel %vm138, %v3203, 0.0
      %s3206 = sld [smem:[#allocation5 + $0x17d]]
      %v3207 = vstv %s3206
      %v3208 = vmul.f32 %v3207, %v3204
      %v3209 = vmul.f32 %v3207, %v3205
      %v3210 = vadd.f32 %v3180, %v3208
      %v3211 = vadd.f32 %v3181, %v3209
      %s3212 = sld [smem:[#allocation5 + $0x17e]]
      %v3213 = vstv %s3212
      %v3214 = vmul.f32 %v3213, %v3204
      %v3215 = vmul.f32 %v3213, %v3205
      %v3216 = vadd.f32 %v3186, %v3214
      %v3217 = vadd.f32 %v3187, %v3215
      %s3218 = sld [smem:[#allocation5 + $0x17f]]
      %v3219 = vstv %s3218
      %v3220 = vmul.f32 %v3219, %v3204
      %v3221 = vmul.f32 %v3219, %v3205
      %v3222 = vadd.f32 %v3192, %v3220
      %v3223 = vadd.f32 %v3193, %v3221
      %s3224 = sld [smem:[#allocation5 + $0x186]]
      %v3225 = vstv %s3224
      %v3226 = vmul.f32 %v3225, %v3198
      %v3227 = vmul.f32 %v3225, %v3199
      %v3228 = vadd.f32 %v3210, %v3226
      %v3229 = vadd.f32 %v3211, %v3227
      %s3230 = sld [smem:[#allocation5 + $0x187]]
      %v3231 = vstv %s3230
      %v3232 = vmul.f32 %v3231, %v3198
      %v3233 = vmul.f32 %v3231, %v3199
      %v3234 = vadd.f32 %v3216, %v3232
      %v3235 = vadd.f32 %v3217, %v3233
      %s3236 = sld [smem:[#allocation5 + $0x188]]
      %v3237 = vstv %s3236
      %v3238 = vmul.f32 %v3237, %v3198
      %v3239 = vmul.f32 %v3237, %v3199
      %v3240 = vadd.f32 %v3222, %v3238
      %v3241 = vadd.f32 %v3223, %v3239
      %3242 = vrot.lane.b32.xlu0 %v3198, 127
      %v3243 = vpop.permute.xlu0 %3242
      %3244 = vrot.lane.b32.xlu0 %v3199, 127
      %v3245 = vpop.permute.xlu0 %3244
      %v3246 = vsel %vm139, %v3243, 0.0
      %v3247 = vsel %vm139, %v3245, 0.0
      %s3248 = sld [smem:[#allocation5 + $0x18f]]
      %v3249 = vstv %s3248
      %v3250 = vmul.f32 %v3249, %v3246
      %v3251 = vmul.f32 %v3249, %v3247
      %v3252 = vadd.f32 %v3228, %v3250
      %v3253 = vadd.f32 %v3229, %v3251
      %s3254 = sld [smem:[#allocation5 + $0x190]]
      %v3255 = vstv %s3254
      %v3256 = vmul.f32 %v3255, %v3246
      %v3257 = vmul.f32 %v3255, %v3247
      %v3258 = vadd.f32 %v3234, %v3256
      %v3259 = vadd.f32 %v3235, %v3257
      %s3260 = sld [smem:[#allocation5 + $0x191]]
      %v3261 = vstv %s3260
      %v3262 = vmul.f32 %v3261, %v3246
      %v3263 = vmul.f32 %v3261, %v3247
      %v3264 = vadd.f32 %v3240, %v3262
      %v3265 = vadd.f32 %v3241, %v3263
      %v3266 = vld [vmem:[%s1489] sm:$0xff]
      %v3267 = vld [vmem:[%s1489 + $0x8] sm:$0xff]
      %v3268 = vrot.slane %v3266, 7
      %v3269 = vrot.slane %v3267, 7
      %v3270 = vsel %vm150, %v3268, %v3269
      %v3271 = vsel %vm150, %v3269, %v3268
      %v3272 = vsel %vm134, %v3271, 0.0
      %v3273 = vsel %vm135, %v3270, 0.0
      %3274 = vrot.lane.b32.xlu0 %v3272, 1
      %v3275 = vpop.permute.xlu0 %3274
      %3276 = vrot.lane.b32.xlu0 %v3273, 1
      %v3277 = vpop.permute.xlu0 %3276
      %v3278 = vsel %vm138, %v3275, 0.0
      %v3279 = vsel %vm138, %v3277, 0.0
      %s3280 = sld [smem:[#allocation5 + $0x14a]]
      %v3281 = vstv %s3280
      %v3282 = vmul.f32 %v3281, %v3278
      %v3283 = vmul.f32 %v3281, %v3279
      %v3284 = vadd.f32 %v3252, %v3282
      %v3285 = vadd.f32 %v3253, %v3283
      %s3286 = sld [smem:[#allocation5 + $0x14b]]
      %v3287 = vstv %s3286
      %v3288 = vmul.f32 %v3287, %v3278
      %v3289 = vmul.f32 %v3287, %v3279
      %v3290 = vadd.f32 %v3258, %v3288
      %v3291 = vadd.f32 %v3259, %v3289
      %s3292 = sld [smem:[#allocation5 + $0x14c]]
      %v3293 = vstv %s3292
      %v3294 = vmul.f32 %v3293, %v3278
      %v3295 = vmul.f32 %v3293, %v3279
      %v3296 = vadd.f32 %v3264, %v3294
      %v3297 = vadd.f32 %v3265, %v3295
      %s3298 = sld [smem:[#allocation5 + $0x153]]
      %v3299 = vstv %s3298
      %v3300 = vmul.f32 %v3299, %v3272
      %v3301 = vmul.f32 %v3299, %v3273
      %v3302 = vadd.f32 %v3284, %v3300
      %v3303 = vadd.f32 %v3285, %v3301
      %s3304 = sld [smem:[#allocation5 + $0x154]]
      %v3305 = vstv %s3304
      %v3306 = vmul.f32 %v3305, %v3272
      %v3307 = vmul.f32 %v3305, %v3273
      %v3308 = vadd.f32 %v3290, %v3306
      %v3309 = vadd.f32 %v3291, %v3307
      %s3310 = sld [smem:[#allocation5 + $0x155]]
      %v3311 = vstv %s3310
      %v3312 = vmul.f32 %v3311, %v3272
      %v3313 = vmul.f32 %v3311, %v3273
      %v3314 = vadd.f32 %v3296, %v3312
      %v3315 = vadd.f32 %v3297, %v3313
      %3316 = vrot.lane.b32.xlu0 %v3272, 127
      %v3317 = vpop.permute.xlu0 %3316
      %3318 = vrot.lane.b32.xlu0 %v3273, 127
      %v3319 = vpop.permute.xlu0 %3318
      %v3320 = vsel %vm139, %v3317, 0.0
      %v3321 = vsel %vm139, %v3319, 0.0
      %s3322 = sld [smem:[#allocation5 + $0x15c]]
      %v3323 = vstv %s3322
      %v3324 = vmul.f32 %v3323, %v3320
      %v3325 = vmul.f32 %v3323, %v3321
      %v3326 = vadd.f32 %v3302, %v3324
      %v3327 = vadd.f32 %v3303, %v3325
      %s3328 = sld [smem:[#allocation5 + $0x15d]]
      %v3329 = vstv %s3328
      %v3330 = vmul.f32 %v3329, %v3320
      %v3331 = vmul.f32 %v3329, %v3321
      %v3332 = vadd.f32 %v3308, %v3330
      %v3333 = vadd.f32 %v3309, %v3331
      %s3334 = sld [smem:[#allocation5 + $0x15e]]
      %v3335 = vstv %s3334
      %v3336 = vmul.f32 %v3335, %v3320
      %v3337 = vmul.f32 %v3335, %v3321
      %v3338 = vadd.f32 %v3314, %v3336
      %v3339 = vadd.f32 %v3315, %v3337
      %3340 = vrot.lane.b32.xlu0 %v3266, 1
      %v3341 = vpop.permute.xlu0 %3340
      %3342 = vrot.lane.b32.xlu0 %v3267, 1
      %v3343 = vpop.permute.xlu0 %3342
      %v3344 = vsel %vm138, %v3341, 0.0
      %v3345 = vsel %vm138, %v3343, 0.0
      %s3346 = sld [smem:[#allocation5 + $0x165]]
      %v3347 = vstv %s3346
      %v3348 = vmul.f32 %v3347, %v3344
      %v3349 = vmul.f32 %v3347, %v3345
      %v3350 = vadd.f32 %v3326, %v3348
      %v3351 = vadd.f32 %v3327, %v3349
      %s3352 = sld [smem:[#allocation5 + $0x166]]
      %v3353 = vstv %s3352
      %v3354 = vmul.f32 %v3353, %v3344
      %v3355 = vmul.f32 %v3353, %v3345
      %v3356 = vadd.f32 %v3332, %v3354
      %v3357 = vadd.f32 %v3333, %v3355
      %s3358 = sld [smem:[#allocation5 + $0x167]]
      %v3359 = vstv %s3358
      %v3360 = vmul.f32 %v3359, %v3344
      %v3361 = vmul.f32 %v3359, %v3345
      %v3362 = vadd.f32 %v3338, %v3360
      %v3363 = vadd.f32 %v3339, %v3361
      %s3364 = sld [smem:[#allocation5 + $0x16e]]
      %v3365 = vstv %s3364
      %v3366 = vmul.f32 %v3365, %v3266
      %v3367 = vmul.f32 %v3365, %v3267
      %v3368 = vadd.f32 %v3350, %v3366
      %v3369 = vadd.f32 %v3351, %v3367
      %s3370 = sld [smem:[#allocation5 + $0x16f]]
      %v3371 = vstv %s3370
      %v3372 = vmul.f32 %v3371, %v3266
      %v3373 = vmul.f32 %v3371, %v3267
      %v3374 = vadd.f32 %v3356, %v3372
      %v3375 = vadd.f32 %v3357, %v3373
      %s3376 = sld [smem:[#allocation5 + $0x170]]
      %v3377 = vstv %s3376
      %v3378 = vmul.f32 %v3377, %v3266
      %v3379 = vmul.f32 %v3377, %v3267
      %v3380 = vadd.f32 %v3362, %v3378
      %v3381 = vadd.f32 %v3363, %v3379
      %3382 = vrot.lane.b32.xlu0 %v3266, 127
      %v3383 = vpop.permute.xlu0 %3382
      %3384 = vrot.lane.b32.xlu0 %v3267, 127
      %v3385 = vpop.permute.xlu0 %3384
      %v3386 = vsel %vm139, %v3383, 0.0
      %v3387 = vsel %vm139, %v3385, 0.0
      %s3388 = sld [smem:[#allocation5 + $0x177]]
      %v3389 = vstv %s3388
      %v3390 = vmul.f32 %v3389, %v3386
      %v3391 = vmul.f32 %v3389, %v3387
      %v3392 = vadd.f32 %v3368, %v3390
      %v3393 = vadd.f32 %v3369, %v3391
      %s3394 = sld [smem:[#allocation5 + $0x178]]
      %v3395 = vstv %s3394
      %v3396 = vmul.f32 %v3395, %v3386
      %v3397 = vmul.f32 %v3395, %v3387
      %v3398 = vadd.f32 %v3374, %v3396
      %v3399 = vadd.f32 %v3375, %v3397
      %s3400 = sld [smem:[#allocation5 + $0x179]]
      %v3401 = vstv %s3400
      %v3402 = vmul.f32 %v3401, %v3386
      %v3403 = vmul.f32 %v3401, %v3387
      %v3404 = vadd.f32 %v3380, %v3402
      %v3405 = vadd.f32 %v3381, %v3403
      %v3406 = vrot.slane %v3266, 1
      %v3407 = vrot.slane %v3267, 1
      %v3408 = vsel %vm289, %v3406, %v3407
      %v3409 = vsel %vm289, %v3407, %v3406
      %v3410 = vsel %vm136, %v3408, 0.0
      %v3411 = vsel %vm137, %v3409, 0.0
      %3412 = vrot.lane.b32.xlu0 %v3410, 1
      %v3413 = vpop.permute.xlu0 %3412
      %3414 = vrot.lane.b32.xlu0 %v3411, 1
      %v3415 = vpop.permute.xlu0 %3414
      %v3416 = vsel %vm138, %v3413, 0.0
      %v3417 = vsel %vm138, %v3415, 0.0
      %s3418 = sld [smem:[#allocation5 + $0x180]]
      %v3419 = vstv %s3418
      %v3420 = vmul.f32 %v3419, %v3416
      %v3421 = vmul.f32 %v3419, %v3417
      %v3422 = vadd.f32 %v3392, %v3420
      %v3423 = vadd.f32 %v3393, %v3421
      %s3424 = sld [smem:[#allocation5 + $0x181]]
      %v3425 = vstv %s3424
      %v3426 = vmul.f32 %v3425, %v3416
      %v3427 = vmul.f32 %v3425, %v3417
      %v3428 = vadd.f32 %v3398, %v3426
      %v3429 = vadd.f32 %v3399, %v3427
      %s3430 = sld [smem:[#allocation5 + $0x182]]
      %v3431 = vstv %s3430
      %v3432 = vmul.f32 %v3431, %v3416
      %v3433 = vmul.f32 %v3431, %v3417
      %v3434 = vadd.f32 %v3404, %v3432
      %v3435 = vadd.f32 %v3405, %v3433
      %s3436 = sld [smem:[#allocation5 + $0x189]]
      %v3437 = vstv %s3436
      %v3438 = vmul.f32 %v3437, %v3410
      %v3439 = vmul.f32 %v3437, %v3411
      %v3440 = vadd.f32 %v3422, %v3438
      %v3441 = vadd.f32 %v3423, %v3439
      %s3442 = sld [smem:[#allocation5 + $0x18a]]
      %v3443 = vstv %s3442
      %v3444 = vmul.f32 %v3443, %v3410
      %v3445 = vmul.f32 %v3443, %v3411
      %v3446 = vadd.f32 %v3428, %v3444
      %v3447 = vadd.f32 %v3429, %v3445
      %s3448 = sld [smem:[#allocation5 + $0x18b]]
      %v3449 = vstv %s3448
      %v3450 = vmul.f32 %v3449, %v3410
      %v3451 = vmul.f32 %v3449, %v3411
      %v3452 = vadd.f32 %v3434, %v3450
      %v3453 = vadd.f32 %v3435, %v3451
      %3454 = vrot.lane.b32.xlu0 %v3410, 127
      %v3455 = vpop.permute.xlu0 %3454
      %3456 = vrot.lane.b32.xlu0 %v3411, 127
      %v3457 = vpop.permute.xlu0 %3456
      %v3458 = vsel %vm139, %v3455, 0.0
      %v3459 = vsel %vm139, %v3457, 0.0
      %s3460 = sld [smem:[#allocation5 + $0x192]]
      %v3461 = vstv %s3460
      %v3462 = vmul.f32 %v3461, %v3458
      %v3463 = vmul.f32 %v3461, %v3459
      %v3464 = vadd.f32 %v3440, %v3462
      %v3465 = vadd.f32 %v3441, %v3463
      %s3466 = sld [smem:[#allocation5 + $0x193]]
      %v3467 = vstv %s3466
      %v3468 = vmul.f32 %v3467, %v3458
      %v3469 = vmul.f32 %v3467, %v3459
      %v3470 = vadd.f32 %v3446, %v3468
      %v3471 = vadd.f32 %v3447, %v3469
      %s3472 = sld [smem:[#allocation5 + $0x194]]
      %v3473 = vstv %s3472
      %v3474 = vmul.f32 %v3473, %v3458
      %v3475 = vmul.f32 %v3473, %v3459
      %v3476 = vadd.f32 %v3452, %v3474
      %v3477 = vadd.f32 %v3453, %v3475
      %v3478 = vmul.f32 %v3464, 0.5
      %v3479 = vmul.f32 %v3465, 0.5
      %v3480 = vtanh.pop %v3478
      %v3481 = vtanh.pop %v3479
      %v3482 = vmul.f32 %v3480, 0.5
      %v3483 = vmul.f32 %v3481, 0.5
      %v3484 = vadd.f32 %v3482, 0.5
      %v3485 = vadd.f32 %v3483, 0.5
      %3486 = vst [vmem:[#allocation2] sm:$0xff] %v3484
      %3487 = vst [vmem:[#allocation2 + $0x8] sm:$0xff] %v3485
      %v3488 = vmul.f32 %v3470, 0.5
      %v3489 = vmul.f32 %v3471, 0.5
      %v3490 = vtanh.pop %v3488
      %v3491 = vtanh.pop %v3489
      %v3492 = vmul.f32 %v3490, 0.5
      %v3493 = vmul.f32 %v3491, 0.5
      %v3494 = vadd.f32 %v3492, 0.5
      %v3495 = vadd.f32 %v3493, 0.5
      %3496 = vst [vmem:[%s804] sm:$0xff] %v3494
      %3497 = vst [vmem:[%s804 + $0x8] sm:$0xff] %v3495
      %v3498 = vmul.f32 %v3476, 0.5
      %v3499 = vmul.f32 %v3477, 0.5
      %v3500 = vtanh.pop %v3498
      %v3501 = vtanh.pop %v3499
      %v3502 = vmul.f32 %v3500, 0.5
      %v3503 = vmul.f32 %v3501, 0.5
      %v3504 = vadd.f32 %v3502, 0.5
      %v3505 = vadd.f32 %v3503, 0.5
      %3506 = vst [vmem:[%s815] sm:$0xff] %v3504
      %3507 = vst [vmem:[%s815 + $0x8] sm:$0xff] %v3505
      %s3508 = sld [smem:[#allocation6 + $0xf]]
      %v3509 = vstv %s3508
      %s3510 = sld [smem:[#allocation6 + $0x10]]
      %v3511 = vstv %s3510
      %s3512 = sld [smem:[#allocation6 + $0x11]]
      %v3513 = vstv %s3512
      %v3514 = vld [vmem:[#allocation2] sm:$0xff]
      %v3515 = vld [vmem:[#allocation2 + $0x8] sm:$0xff]
      %v3516 = vrot.slane %v3514, 7
      %v3517 = vrot.slane %v3515, 7
      %v3518 = vsel %vm150, %v3516, %v3517
      %v3519 = vsel %vm150, %v3517, %v3516
      %v3520 = vsel %vm134, %v3519, 0.0
      %v3521 = vsel %vm135, %v3518, 0.0
      %3522 = vrot.lane.b32.xlu0 %v3520, 1
      %v3523 = vpop.permute.xlu0 %3522
      %3524 = vrot.lane.b32.xlu0 %v3521, 1
      %v3525 = vpop.permute.xlu0 %3524
      %v3526 = vsel %vm138, %v3523, 0.0
      %v3527 = vsel %vm138, %v3525, 0.0
      %s3528 = sld [smem:[#allocation5 + $0x195]]
      %v3529 = vstv %s3528
      %v3530 = vmul.f32 %v3529, %v3526
      %v3531 = vmul.f32 %v3529, %v3527
      %v3532 = vadd.f32 %v3509, %v3530
      %v3533 = vadd.f32 %v3509, %v3531
      %s3534 = sld [smem:[#allocation5 + $0x196]]
      %v3535 = vstv %s3534
      %v3536 = vmul.f32 %v3535, %v3526
      %v3537 = vmul.f32 %v3535, %v3527
      %v3538 = vadd.f32 %v3511, %v3536
      %v3539 = vadd.f32 %v3511, %v3537
      %s3540 = sld [smem:[#allocation5 + $0x197]]
      %v3541 = vstv %s3540
      %v3542 = vmul.f32 %v3541, %v3526
      %v3543 = vmul.f32 %v3541, %v3527
      %v3544 = vadd.f32 %v3513, %v3542
      %v3545 = vadd.f32 %v3513, %v3543
      %s3546 = sld [smem:[#allocation5 + $0x19e]]
      %v3547 = vstv %s3546
      %v3548 = vmul.f32 %v3547, %v3520
      %v3549 = vmul.f32 %v3547, %v3521
      %v3550 = vadd.f32 %v3532, %v3548
      %v3551 = vadd.f32 %v3533, %v3549
      %s3552 = sld [smem:[#allocation5 + $0x19f]]
      %v3553 = vstv %s3552
      %v3554 = vmul.f32 %v3553, %v3520
      %v3555 = vmul.f32 %v3553, %v3521
      %v3556 = vadd.f32 %v3538, %v3554
      %v3557 = vadd.f32 %v3539, %v3555
      %s3558 = sld [smem:[#allocation5 + $0x1a0]]
      %v3559 = vstv %s3558
      %v3560 = vmul.f32 %v3559, %v3520
      %v3561 = vmul.f32 %v3559, %v3521
      %v3562 = vadd.f32 %v3544, %v3560
      %v3563 = vadd.f32 %v3545, %v3561
      %3564 = vrot.lane.b32.xlu0 %v3520, 127
      %v3565 = vpop.permute.xlu0 %3564
      %3566 = vrot.lane.b32.xlu0 %v3521, 127
      %v3567 = vpop.permute.xlu0 %3566
      %v3568 = vsel %vm139, %v3565, 0.0
      %v3569 = vsel %vm139, %v3567, 0.0
      %s3570 = sld [smem:[#allocation5 + $0x1a7]]
      %v3571 = vstv %s3570
      %v3572 = vmul.f32 %v3571, %v3568
      %v3573 = vmul.f32 %v3571, %v3569
      %v3574 = vadd.f32 %v3550, %v3572
      %v3575 = vadd.f32 %v3551, %v3573
      %s3576 = sld [smem:[#allocation5 + $0x1a8]]
      %v3577 = vstv %s3576
      %v3578 = vmul.f32 %v3577, %v3568
      %v3579 = vmul.f32 %v3577, %v3569
      %v3580 = vadd.f32 %v3556, %v3578
      %v3581 = vadd.f32 %v3557, %v3579
      %s3582 = sld [smem:[#allocation5 + $0x1a9]]
      %v3583 = vstv %s3582
      %v3584 = vmul.f32 %v3583, %v3568
      %v3585 = vmul.f32 %v3583, %v3569
      %v3586 = vadd.f32 %v3562, %v3584
      %v3587 = vadd.f32 %v3563, %v3585
      %3588 = vrot.lane.b32.xlu0 %v3514, 1
      %v3589 = vpop.permute.xlu0 %3588
      %3590 = vrot.lane.b32.xlu0 %v3515, 1
      %v3591 = vpop.permute.xlu0 %3590
      %v3592 = vsel %vm138, %v3589, 0.0
      %v3593 = vsel %vm138, %v3591, 0.0
      %s3594 = sld [smem:[#allocation5 + $0x1b0]]
      %v3595 = vstv %s3594
      %v3596 = vmul.f32 %v3595, %v3592
      %v3597 = vmul.f32 %v3595, %v3593
      %v3598 = vadd.f32 %v3574, %v3596
      %v3599 = vadd.f32 %v3575, %v3597
      %s3600 = sld [smem:[#allocation5 + $0x1b1]]
      %v3601 = vstv %s3600
      %v3602 = vmul.f32 %v3601, %v3592
      %v3603 = vmul.f32 %v3601, %v3593
      %v3604 = vadd.f32 %v3580, %v3602
      %v3605 = vadd.f32 %v3581, %v3603
      %s3606 = sld [smem:[#allocation5 + $0x1b2]]
      %v3607 = vstv %s3606
      %v3608 = vmul.f32 %v3607, %v3592
      %v3609 = vmul.f32 %v3607, %v3593
      %v3610 = vadd.f32 %v3586, %v3608
      %v3611 = vadd.f32 %v3587, %v3609
      %s3612 = sld [smem:[#allocation5 + $0x1b9]]
      %v3613 = vstv %s3612
      %v3614 = vmul.f32 %v3613, %v3514
      %v3615 = vmul.f32 %v3613, %v3515
      %v3616 = vadd.f32 %v3598, %v3614
      %v3617 = vadd.f32 %v3599, %v3615
      %s3618 = sld [smem:[#allocation5 + $0x1ba]]
      %v3619 = vstv %s3618
      %v3620 = vmul.f32 %v3619, %v3514
      %v3621 = vmul.f32 %v3619, %v3515
      %v3622 = vadd.f32 %v3604, %v3620
      %v3623 = vadd.f32 %v3605, %v3621
      %s3624 = sld [smem:[#allocation5 + $0x1bb]]
      %v3625 = vstv %s3624
      %v3626 = vmul.f32 %v3625, %v3514
      %v3627 = vmul.f32 %v3625, %v3515
      %v3628 = vadd.f32 %v3610, %v3626
      %v3629 = vadd.f32 %v3611, %v3627
      %3630 = vrot.lane.b32.xlu0 %v3514, 127
      %v3631 = vpop.permute.xlu0 %3630
      %3632 = vrot.lane.b32.xlu0 %v3515, 127
      %v3633 = vpop.permute.xlu0 %3632
      %v3634 = vsel %vm139, %v3631, 0.0
      %v3635 = vsel %vm139, %v3633, 0.0
      %s3636 = sld [smem:[#allocation5 + $0x1c2]]
      %v3637 = vstv %s3636
      %v3638 = vmul.f32 %v3637, %v3634
      %v3639 = vmul.f32 %v3637, %v3635
      %v3640 = vadd.f32 %v3616, %v3638
      %v3641 = vadd.f32 %v3617, %v3639
      %s3642 = sld [smem:[#allocation5 + $0x1c3]]
      %v3643 = vstv %s3642
      %v3644 = vmul.f32 %v3643, %v3634
      %v3645 = vmul.f32 %v3643, %v3635
      %v3646 = vadd.f32 %v3622, %v3644
      %v3647 = vadd.f32 %v3623, %v3645
      %s3648 = sld [smem:[#allocation5 + $0x1c4]]
      %v3649 = vstv %s3648
      %v3650 = vmul.f32 %v3649, %v3634
      %v3651 = vmul.f32 %v3649, %v3635
      %v3652 = vadd.f32 %v3628, %v3650
      %v3653 = vadd.f32 %v3629, %v3651
      %v3654 = vrot.slane %v3514, 1
      %v3655 = vrot.slane %v3515, 1
      %v3656 = vsel %vm289, %v3654, %v3655
      %v3657 = vsel %vm289, %v3655, %v3654
      %v3658 = vsel %vm136, %v3656, 0.0
      %v3659 = vsel %vm137, %v3657, 0.0
      %3660 = vrot.lane.b32.xlu0 %v3658, 1
      %v3661 = vpop.permute.xlu0 %3660
      %3662 = vrot.lane.b32.xlu0 %v3659, 1
      %v3663 = vpop.permute.xlu0 %3662
      %v3664 = vsel %vm138, %v3661, 0.0
      %v3665 = vsel %vm138, %v3663, 0.0
      %s3666 = sld [smem:[#allocation5 + $0x1cb]]
      %v3667 = vstv %s3666
      %v3668 = vmul.f32 %v3667, %v3664
      %v3669 = vmul.f32 %v3667, %v3665
      %v3670 = vadd.f32 %v3640, %v3668
      %v3671 = vadd.f32 %v3641, %v3669
      %s3672 = sld [smem:[#allocation5 + $0x1cc]]
      %v3673 = vstv %s3672
      %v3674 = vmul.f32 %v3673, %v3664
      %v3675 = vmul.f32 %v3673, %v3665
      %v3676 = vadd.f32 %v3646, %v3674
      %v3677 = vadd.f32 %v3647, %v3675
      %s3678 = sld [smem:[#allocation5 + $0x1cd]]
      %v3679 = vstv %s3678
      %v3680 = vmul.f32 %v3679, %v3664
      %v3681 = vmul.f32 %v3679, %v3665
      %v3682 = vadd.f32 %v3652, %v3680
      %v3683 = vadd.f32 %v3653, %v3681
      %s3684 = sld [smem:[#allocation5 + $0x1d4]]
      %v3685 = vstv %s3684
      %v3686 = vmul.f32 %v3685, %v3658
      %v3687 = vmul.f32 %v3685, %v3659
      %v3688 = vadd.f32 %v3670, %v3686
      %v3689 = vadd.f32 %v3671, %v3687
      %s3690 = sld [smem:[#allocation5 + $0x1d5]]
      %v3691 = vstv %s3690
      %v3692 = vmul.f32 %v3691, %v3658
      %v3693 = vmul.f32 %v3691, %v3659
      %v3694 = vadd.f32 %v3676, %v3692
      %v3695 = vadd.f32 %v3677, %v3693
      %s3696 = sld [smem:[#allocation5 + $0x1d6]]
      %v3697 = vstv %s3696
      %v3698 = vmul.f32 %v3697, %v3658
      %v3699 = vmul.f32 %v3697, %v3659
      %v3700 = vadd.f32 %v3682, %v3698
      %v3701 = vadd.f32 %v3683, %v3699
      %3702 = vrot.lane.b32.xlu0 %v3658, 127
      %v3703 = vpop.permute.xlu0 %3702
      %3704 = vrot.lane.b32.xlu0 %v3659, 127
      %v3705 = vpop.permute.xlu0 %3704
      %v3706 = vsel %vm139, %v3703, 0.0
      %v3707 = vsel %vm139, %v3705, 0.0
      %s3708 = sld [smem:[#allocation5 + $0x1dd]]
      %v3709 = vstv %s3708
      %v3710 = vmul.f32 %v3709, %v3706
      %v3711 = vmul.f32 %v3709, %v3707
      %v3712 = vadd.f32 %v3688, %v3710
      %v3713 = vadd.f32 %v3689, %v3711
      %s3714 = sld [smem:[#allocation5 + $0x1de]]
      %v3715 = vstv %s3714
      %v3716 = vmul.f32 %v3715, %v3706
      %v3717 = vmul.f32 %v3715, %v3707
      %v3718 = vadd.f32 %v3694, %v3716
      %v3719 = vadd.f32 %v3695, %v3717
      %s3720 = sld [smem:[#allocation5 + $0x1df]]
      %v3721 = vstv %s3720
      %v3722 = vmul.f32 %v3721, %v3706
      %v3723 = vmul.f32 %v3721, %v3707
      %v3724 = vadd.f32 %v3700, %v3722
      %v3725 = vadd.f32 %v3701, %v3723
      %v3726 = vld [vmem:[%s804] sm:$0xff]
      %v3727 = vld [vmem:[%s804 + $0x8] sm:$0xff]
      %v3728 = vrot.slane %v3726, 7
      %v3729 = vrot.slane %v3727, 7
      %v3730 = vsel %vm150, %v3728, %v3729
      %v3731 = vsel %vm150, %v3729, %v3728
      %v3732 = vsel %vm134, %v3731, 0.0
      %v3733 = vsel %vm135, %v3730, 0.0
      %3734 = vrot.lane.b32.xlu0 %v3732, 1
      %v3735 = vpop.permute.xlu0 %3734
      %3736 = vrot.lane.b32.xlu0 %v3733, 1
      %v3737 = vpop.permute.xlu0 %3736
      %v3738 = vsel %vm138, %v3735, 0.0
      %v3739 = vsel %vm138, %v3737, 0.0
      %s3740 = sld [smem:[#allocation5 + $0x198]]
      %v3741 = vstv %s3740
      %v3742 = vmul.f32 %v3741, %v3738
      %v3743 = vmul.f32 %v3741, %v3739
      %v3744 = vadd.f32 %v3712, %v3742
      %v3745 = vadd.f32 %v3713, %v3743
      %s3746 = sld [smem:[#allocation5 + $0x199]]
      %v3747 = vstv %s3746
      %v3748 = vmul.f32 %v3747, %v3738
      %v3749 = vmul.f32 %v3747, %v3739
      %v3750 = vadd.f32 %v3718, %v3748
      %v3751 = vadd.f32 %v3719, %v3749
      %s3752 = sld [smem:[#allocation5 + $0x19a]]
      %v3753 = vstv %s3752
      %v3754 = vmul.f32 %v3753, %v3738
      %v3755 = vmul.f32 %v3753, %v3739
      %v3756 = vadd.f32 %v3724, %v3754
      %v3757 = vadd.f32 %v3725, %v3755
      %s3758 = sld [smem:[#allocation5 + $0x1a1]]
      %v3759 = vstv %s3758
      %v3760 = vmul.f32 %v3759, %v3732
      %v3761 = vmul.f32 %v3759, %v3733
      %v3762 = vadd.f32 %v3744, %v3760
      %v3763 = vadd.f32 %v3745, %v3761
      %s3764 = sld [smem:[#allocation5 + $0x1a2]]
      %v3765 = vstv %s3764
      %v3766 = vmul.f32 %v3765, %v3732
      %v3767 = vmul.f32 %v3765, %v3733
      %v3768 = vadd.f32 %v3750, %v3766
      %v3769 = vadd.f32 %v3751, %v3767
      %s3770 = sld [smem:[#allocation5 + $0x1a3]]
      %v3771 = vstv %s3770
      %v3772 = vmul.f32 %v3771, %v3732
      %v3773 = vmul.f32 %v3771, %v3733
      %v3774 = vadd.f32 %v3756, %v3772
      %v3775 = vadd.f32 %v3757, %v3773
      %3776 = vrot.lane.b32.xlu0 %v3732, 127
      %v3777 = vpop.permute.xlu0 %3776
      %3778 = vrot.lane.b32.xlu0 %v3733, 127
      %v3779 = vpop.permute.xlu0 %3778
      %v3780 = vsel %vm139, %v3777, 0.0
      %v3781 = vsel %vm139, %v3779, 0.0
      %s3782 = sld [smem:[#allocation5 + $0x1aa]]
      %v3783 = vstv %s3782
      %v3784 = vmul.f32 %v3783, %v3780
      %v3785 = vmul.f32 %v3783, %v3781
      %v3786 = vadd.f32 %v3762, %v3784
      %v3787 = vadd.f32 %v3763, %v3785
      %s3788 = sld [smem:[#allocation5 + $0x1ab]]
      %v3789 = vstv %s3788
      %v3790 = vmul.f32 %v3789, %v3780
      %v3791 = vmul.f32 %v3789, %v3781
      %v3792 = vadd.f32 %v3768, %v3790
      %v3793 = vadd.f32 %v3769, %v3791
      %s3794 = sld [smem:[#allocation5 + $0x1ac]]
      %v3795 = vstv %s3794
      %v3796 = vmul.f32 %v3795, %v3780
      %v3797 = vmul.f32 %v3795, %v3781
      %v3798 = vadd.f32 %v3774, %v3796
      %v3799 = vadd.f32 %v3775, %v3797
      %3800 = vrot.lane.b32.xlu0 %v3726, 1
      %v3801 = vpop.permute.xlu0 %3800
      %3802 = vrot.lane.b32.xlu0 %v3727, 1
      %v3803 = vpop.permute.xlu0 %3802
      %v3804 = vsel %vm138, %v3801, 0.0
      %v3805 = vsel %vm138, %v3803, 0.0
      %s3806 = sld [smem:[#allocation5 + $0x1b3]]
      %v3807 = vstv %s3806
      %v3808 = vmul.f32 %v3807, %v3804
      %v3809 = vmul.f32 %v3807, %v3805
      %v3810 = vadd.f32 %v3786, %v3808
      %v3811 = vadd.f32 %v3787, %v3809
      %s3812 = sld [smem:[#allocation5 + $0x1b4]]
      %v3813 = vstv %s3812
      %v3814 = vmul.f32 %v3813, %v3804
      %v3815 = vmul.f32 %v3813, %v3805
      %v3816 = vadd.f32 %v3792, %v3814
      %v3817 = vadd.f32 %v3793, %v3815
      %s3818 = sld [smem:[#allocation5 + $0x1b5]]
      %v3819 = vstv %s3818
      %v3820 = vmul.f32 %v3819, %v3804
      %v3821 = vmul.f32 %v3819, %v3805
      %v3822 = vadd.f32 %v3798, %v3820
      %v3823 = vadd.f32 %v3799, %v3821
      %s3824 = sld [smem:[#allocation5 + $0x1bc]]
      %v3825 = vstv %s3824
      %v3826 = vmul.f32 %v3825, %v3726
      %v3827 = vmul.f32 %v3825, %v3727
      %v3828 = vadd.f32 %v3810, %v3826
      %v3829 = vadd.f32 %v3811, %v3827
      %s3830 = sld [smem:[#allocation5 + $0x1bd]]
      %v3831 = vstv %s3830
      %v3832 = vmul.f32 %v3831, %v3726
      %v3833 = vmul.f32 %v3831, %v3727
      %v3834 = vadd.f32 %v3816, %v3832
      %v3835 = vadd.f32 %v3817, %v3833
      %s3836 = sld [smem:[#allocation5 + $0x1be]]
      %v3837 = vstv %s3836
      %v3838 = vmul.f32 %v3837, %v3726
      %v3839 = vmul.f32 %v3837, %v3727
      %v3840 = vadd.f32 %v3822, %v3838
      %v3841 = vadd.f32 %v3823, %v3839
      %3842 = vrot.lane.b32.xlu0 %v3726, 127
      %v3843 = vpop.permute.xlu0 %3842
      %3844 = vrot.lane.b32.xlu0 %v3727, 127
      %v3845 = vpop.permute.xlu0 %3844
      %v3846 = vsel %vm139, %v3843, 0.0
      %v3847 = vsel %vm139, %v3845, 0.0
      %s3848 = sld [smem:[#allocation5 + $0x1c5]]
      %v3849 = vstv %s3848
      %v3850 = vmul.f32 %v3849, %v3846
      %v3851 = vmul.f32 %v3849, %v3847
      %v3852 = vadd.f32 %v3828, %v3850
      %v3853 = vadd.f32 %v3829, %v3851
      %s3854 = sld [smem:[#allocation5 + $0x1c6]]
      %v3855 = vstv %s3854
      %v3856 = vmul.f32 %v3855, %v3846
      %v3857 = vmul.f32 %v3855, %v3847
      %v3858 = vadd.f32 %v3834, %v3856
      %v3859 = vadd.f32 %v3835, %v3857
      %s3860 = sld [smem:[#allocation5 + $0x1c7]]
      %v3861 = vstv %s3860
      %v3862 = vmul.f32 %v3861, %v3846
      %v3863 = vmul.f32 %v3861, %v3847
      %v3864 = vadd.f32 %v3840, %v3862
      %v3865 = vadd.f32 %v3841, %v3863
      %v3866 = vrot.slane %v3726, 1
      %v3867 = vrot.slane %v3727, 1
      %v3868 = vsel %vm289, %v3866, %v3867
      %v3869 = vsel %vm289, %v3867, %v3866
      %v3870 = vsel %vm136, %v3868, 0.0
      %v3871 = vsel %vm137, %v3869, 0.0
      %3872 = vrot.lane.b32.xlu0 %v3870, 1
      %v3873 = vpop.permute.xlu0 %3872
      %3874 = vrot.lane.b32.xlu0 %v3871, 1
      %v3875 = vpop.permute.xlu0 %3874
      %v3876 = vsel %vm138, %v3873, 0.0
      %v3877 = vsel %vm138, %v3875, 0.0
      %s3878 = sld [smem:[#allocation5 + $0x1ce]]
      %v3879 = vstv %s3878
      %v3880 = vmul.f32 %v3879, %v3876
      %v3881 = vmul.f32 %v3879, %v3877
      %v3882 = vadd.f32 %v3852, %v3880
      %v3883 = vadd.f32 %v3853, %v3881
      %s3884 = sld [smem:[#allocation5 + $0x1cf]]
      %v3885 = vstv %s3884
      %v3886 = vmul.f32 %v3885, %v3876
      %v3887 = vmul.f32 %v3885, %v3877
      %v3888 = vadd.f32 %v3858, %v3886
      %v3889 = vadd.f32 %v3859, %v3887
      %s3890 = sld [smem:[#allocation5 + $0x1d0]]
      %v3891 = vstv %s3890
      %v3892 = vmul.f32 %v3891, %v3876
      %v3893 = vmul.f32 %v3891, %v3877
      %v3894 = vadd.f32 %v3864, %v3892
      %v3895 = vadd.f32 %v3865, %v3893
      %s3896 = sld [smem:[#allocation5 + $0x1d7]]
      %v3897 = vstv %s3896
      %v3898 = vmul.f32 %v3897, %v3870
      %v3899 = vmul.f32 %v3897, %v3871
      %v3900 = vadd.f32 %v3882, %v3898
      %v3901 = vadd.f32 %v3883, %v3899
      %s3902 = sld [smem:[#allocation5 + $0x1d8]]
      %v3903 = vstv %s3902
      %v3904 = vmul.f32 %v3903, %v3870
      %v3905 = vmul.f32 %v3903, %v3871
      %v3906 = vadd.f32 %v3888, %v3904
      %v3907 = vadd.f32 %v3889, %v3905
      %s3908 = sld [smem:[#allocation5 + $0x1d9]]
      %v3909 = vstv %s3908
      %v3910 = vmul.f32 %v3909, %v3870
      %v3911 = vmul.f32 %v3909, %v3871
      %v3912 = vadd.f32 %v3894, %v3910
      %v3913 = vadd.f32 %v3895, %v3911
      %3914 = vrot.lane.b32.xlu0 %v3870, 127
      %v3915 = vpop.permute.xlu0 %3914
      %3916 = vrot.lane.b32.xlu0 %v3871, 127
      %v3917 = vpop.permute.xlu0 %3916
      %v3918 = vsel %vm139, %v3915, 0.0
      %v3919 = vsel %vm139, %v3917, 0.0
      %s3920 = sld [smem:[#allocation5 + $0x1e0]]
      %v3921 = vstv %s3920
      %v3922 = vmul.f32 %v3921, %v3918
      %v3923 = vmul.f32 %v3921, %v3919
      %v3924 = vadd.f32 %v3900, %v3922
      %v3925 = vadd.f32 %v3901, %v3923
      %s3926 = sld [smem:[#allocation5 + $0x1e1]]
      %v3927 = vstv %s3926
      %v3928 = vmul.f32 %v3927, %v3918
      %v3929 = vmul.f32 %v3927, %v3919
      %v3930 = vadd.f32 %v3906, %v3928
      %v3931 = vadd.f32 %v3907, %v3929
      %s3932 = sld [smem:[#allocation5 + $0x1e2]]
      %v3933 = vstv %s3932
      %v3934 = vmul.f32 %v3933, %v3918
      %v3935 = vmul.f32 %v3933, %v3919
      %v3936 = vadd.f32 %v3912, %v3934
      %v3937 = vadd.f32 %v3913, %v3935
      %v3938 = vld [vmem:[%s815] sm:$0xff]
      %v3939 = vld [vmem:[%s815 + $0x8] sm:$0xff]
      %v3940 = vrot.slane %v3938, 7
      %v3941 = vrot.slane %v3939, 7
      %v3942 = vsel %vm150, %v3940, %v3941
      %v3943 = vsel %vm150, %v3941, %v3940
      %v3944 = vsel %vm134, %v3943, 0.0
      %v3945 = vsel %vm135, %v3942, 0.0
      %3946 = vrot.lane.b32.xlu0 %v3944, 1
      %v3947 = vpop.permute.xlu0 %3946
      %3948 = vrot.lane.b32.xlu0 %v3945, 1
      %v3949 = vpop.permute.xlu0 %3948
      %v3950 = vsel %vm138, %v3947, 0.0
      %v3951 = vsel %vm138, %v3949, 0.0
      %s3952 = sld [smem:[#allocation5 + $0x19b]]
      %v3953 = vstv %s3952
      %v3954 = vmul.f32 %v3953, %v3950
      %v3955 = vmul.f32 %v3953, %v3951
      %v3956 = vadd.f32 %v3924, %v3954
      %v3957 = vadd.f32 %v3925, %v3955
      %s3958 = sld [smem:[#allocation5 + $0x19c]]
      %v3959 = vstv %s3958
      %v3960 = vmul.f32 %v3959, %v3950
      %v3961 = vmul.f32 %v3959, %v3951
      %v3962 = vadd.f32 %v3930, %v3960
      %v3963 = vadd.f32 %v3931, %v3961
      %s3964 = sld [smem:[#allocation5 + $0x19d]]
      %v3965 = vstv %s3964
      %v3966 = vmul.f32 %v3965, %v3950
      %v3967 = vmul.f32 %v3965, %v3951
      %v3968 = vadd.f32 %v3936, %v3966
      %v3969 = vadd.f32 %v3937, %v3967
      %s3970 = sld [smem:[#allocation5 + $0x1a4]]
      %v3971 = vstv %s3970
      %v3972 = vmul.f32 %v3971, %v3944
      %v3973 = vmul.f32 %v3971, %v3945
      %v3974 = vadd.f32 %v3956, %v3972
      %v3975 = vadd.f32 %v3957, %v3973
      %s3976 = sld [smem:[#allocation5 + $0x1a5]]
      %v3977 = vstv %s3976
      %v3978 = vmul.f32 %v3977, %v3944
      %v3979 = vmul.f32 %v3977, %v3945
      %v3980 = vadd.f32 %v3962, %v3978
      %v3981 = vadd.f32 %v3963, %v3979
      %s3982 = sld [smem:[#allocation5 + $0x1a6]]
      %v3983 = vstv %s3982
      %v3984 = vmul.f32 %v3983, %v3944
      %v3985 = vmul.f32 %v3983, %v3945
      %v3986 = vadd.f32 %v3968, %v3984
      %v3987 = vadd.f32 %v3969, %v3985
      %3988 = vrot.lane.b32.xlu0 %v3944, 127
      %v3989 = vpop.permute.xlu0 %3988
      %3990 = vrot.lane.b32.xlu0 %v3945, 127
      %v3991 = vpop.permute.xlu0 %3990
      %v3992 = vsel %vm139, %v3989, 0.0
      %v3993 = vsel %vm139, %v3991, 0.0
      %s3994 = sld [smem:[#allocation5 + $0x1ad]]
      %v3995 = vstv %s3994
      %v3996 = vmul.f32 %v3995, %v3992
      %v3997 = vmul.f32 %v3995, %v3993
      %v3998 = vadd.f32 %v3974, %v3996
      %v3999 = vadd.f32 %v3975, %v3997
      %s4000 = sld [smem:[#allocation5 + $0x1ae]]
      %v4001 = vstv %s4000
      %v4002 = vmul.f32 %v4001, %v3992
      %v4003 = vmul.f32 %v4001, %v3993
      %v4004 = vadd.f32 %v3980, %v4002
      %v4005 = vadd.f32 %v3981, %v4003
      %s4006 = sld [smem:[#allocation5 + $0x1af]]
      %v4007 = vstv %s4006
      %v4008 = vmul.f32 %v4007, %v3992
      %v4009 = vmul.f32 %v4007, %v3993
      %v4010 = vadd.f32 %v3986, %v4008
      %v4011 = vadd.f32 %v3987, %v4009
      %4012 = vrot.lane.b32.xlu0 %v3938, 1
      %v4013 = vpop.permute.xlu0 %4012
      %4014 = vrot.lane.b32.xlu0 %v3939, 1
      %v4015 = vpop.permute.xlu0 %4014
      %v4016 = vsel %vm138, %v4013, 0.0
      %v4017 = vsel %vm138, %v4015, 0.0
      %s4018 = sld [smem:[#allocation5 + $0x1b6]]
      %v4019 = vstv %s4018
      %v4020 = vmul.f32 %v4019, %v4016
      %v4021 = vmul.f32 %v4019, %v4017
      %v4022 = vadd.f32 %v3998, %v4020
      %v4023 = vadd.f32 %v3999, %v4021
      %s4024 = sld [smem:[#allocation5 + $0x1b7]]
      %v4025 = vstv %s4024
      %v4026 = vmul.f32 %v4025, %v4016
      %v4027 = vmul.f32 %v4025, %v4017
      %v4028 = vadd.f32 %v4004, %v4026
      %v4029 = vadd.f32 %v4005, %v4027
      %s4030 = sld [smem:[#allocation5 + $0x1b8]]
      %v4031 = vstv %s4030
      %v4032 = vmul.f32 %v4031, %v4016
      %v4033 = vmul.f32 %v4031, %v4017
      %v4034 = vadd.f32 %v4010, %v4032
      %v4035 = vadd.f32 %v4011, %v4033
      %s4036 = sld [smem:[#allocation5 + $0x1bf]]
      %v4037 = vstv %s4036
      %v4038 = vmul.f32 %v4037, %v3938
      %v4039 = vmul.f32 %v4037, %v3939
      %v4040 = vadd.f32 %v4022, %v4038
      %v4041 = vadd.f32 %v4023, %v4039
      %s4042 = sld [smem:[#allocation5 + $0x1c0]]
      %v4043 = vstv %s4042
      %v4044 = vmul.f32 %v4043, %v3938
      %v4045 = vmul.f32 %v4043, %v3939
      %v4046 = vadd.f32 %v4028, %v4044
      %v4047 = vadd.f32 %v4029, %v4045
      %s4048 = sld [smem:[#allocation5 + $0x1c1]]
      %v4049 = vstv %s4048
      %v4050 = vmul.f32 %v4049, %v3938
      %v4051 = vmul.f32 %v4049, %v3939
      %v4052 = vadd.f32 %v4034, %v4050
      %v4053 = vadd.f32 %v4035, %v4051
      %4054 = vrot.lane.b32.xlu0 %v3938, 127
      %v4055 = vpop.permute.xlu0 %4054
      %4056 = vrot.lane.b32.xlu0 %v3939, 127
      %v4057 = vpop.permute.xlu0 %4056
      %v4058 = vsel %vm139, %v4055, 0.0
      %v4059 = vsel %vm139, %v4057, 0.0
      %s4060 = sld [smem:[#allocation5 + $0x1c8]]
      %v4061 = vstv %s4060
      %v4062 = vmul.f32 %v4061, %v4058
      %v4063 = vmul.f32 %v4061, %v4059
      %v4064 = vadd.f32 %v4040, %v4062
      %v4065 = vadd.f32 %v4041, %v4063
      %s4066 = sld [smem:[#allocation5 + $0x1c9]]
      %v4067 = vstv %s4066
      %v4068 = vmul.f32 %v4067, %v4058
      %v4069 = vmul.f32 %v4067, %v4059
      %v4070 = vadd.f32 %v4046, %v4068
      %v4071 = vadd.f32 %v4047, %v4069
      %s4072 = sld [smem:[#allocation5 + $0x1ca]]
      %v4073 = vstv %s4072
      %v4074 = vmul.f32 %v4073, %v4058
      %v4075 = vmul.f32 %v4073, %v4059
      %v4076 = vadd.f32 %v4052, %v4074
      %v4077 = vadd.f32 %v4053, %v4075
      %v4078 = vrot.slane %v3938, 1
      %v4079 = vrot.slane %v3939, 1
      %v4080 = vsel %vm289, %v4078, %v4079
      %v4081 = vsel %vm289, %v4079, %v4078
      %v4082 = vsel %vm136, %v4080, 0.0
      %v4083 = vsel %vm137, %v4081, 0.0
      %4084 = vrot.lane.b32.xlu0 %v4082, 1
      %v4085 = vpop.permute.xlu0 %4084
      %4086 = vrot.lane.b32.xlu0 %v4083, 1
      %v4087 = vpop.permute.xlu0 %4086
      %v4088 = vsel %vm138, %v4085, 0.0
      %v4089 = vsel %vm138, %v4087, 0.0
      %s4090 = sld [smem:[#allocation5 + $0x1d1]]
      %v4091 = vstv %s4090
      %v4092 = vmul.f32 %v4091, %v4088
      %v4093 = vmul.f32 %v4091, %v4089
      %v4094 = vadd.f32 %v4064, %v4092
      %v4095 = vadd.f32 %v4065, %v4093
      %s4096 = sld [smem:[#allocation5 + $0x1d2]]
      %v4097 = vstv %s4096
      %v4098 = vmul.f32 %v4097, %v4088
      %v4099 = vmul.f32 %v4097, %v4089
      %v4100 = vadd.f32 %v4070, %v4098
      %v4101 = vadd.f32 %v4071, %v4099
      %s4102 = sld [smem:[#allocation5 + $0x1d3]]
      %v4103 = vstv %s4102
      %v4104 = vmul.f32 %v4103, %v4088
      %v4105 = vmul.f32 %v4103, %v4089
      %v4106 = vadd.f32 %v4076, %v4104
      %v4107 = vadd.f32 %v4077, %v4105
      %s4108 = sld [smem:[#allocation5 + $0x1da]]
      %v4109 = vstv %s4108
      %v4110 = vmul.f32 %v4109, %v4082
      %v4111 = vmul.f32 %v4109, %v4083
      %v4112 = vadd.f32 %v4094, %v4110
      %v4113 = vadd.f32 %v4095, %v4111
      %s4114 = sld [smem:[#allocation5 + $0x1db]]
      %v4115 = vstv %s4114
      %v4116 = vmul.f32 %v4115, %v4082
      %v4117 = vmul.f32 %v4115, %v4083
      %v4118 = vadd.f32 %v4100, %v4116
      %v4119 = vadd.f32 %v4101, %v4117
      %s4120 = sld [smem:[#allocation5 + $0x1dc]]
      %v4121 = vstv %s4120
      %v4122 = vmul.f32 %v4121, %v4082
      %v4123 = vmul.f32 %v4121, %v4083
      %v4124 = vadd.f32 %v4106, %v4122
      %v4125 = vadd.f32 %v4107, %v4123
      %4126 = vrot.lane.b32.xlu0 %v4082, 127
      %v4127 = vpop.permute.xlu0 %4126
      %4128 = vrot.lane.b32.xlu0 %v4083, 127
      %v4129 = vpop.permute.xlu0 %4128
      %v4130 = vsel %vm139, %v4127, 0.0
      %v4131 = vsel %vm139, %v4129, 0.0
      %s4132 = sld [smem:[#allocation5 + $0x1e3]]
      %v4133 = vstv %s4132
      %v4134 = vmul.f32 %v4133, %v4130
      %v4135 = vmul.f32 %v4133, %v4131
      %v4136 = vadd.f32 %v4112, %v4134
      %v4137 = vadd.f32 %v4113, %v4135
      %s4138 = sld [smem:[#allocation5 + $0x1e4]]
      %v4139 = vstv %s4138
      %v4140 = vmul.f32 %v4139, %v4130
      %v4141 = vmul.f32 %v4139, %v4131
      %v4142 = vadd.f32 %v4118, %v4140
      %v4143 = vadd.f32 %v4119, %v4141
      %s4144 = sld [smem:[#allocation5 + $0x1e5]]
      %v4145 = vstv %s4144
      %v4146 = vmul.f32 %v4145, %v4130
      %v4147 = vmul.f32 %v4145, %v4131
      %v4148 = vadd.f32 %v4124, %v4146
      %v4149 = vadd.f32 %v4125, %v4147
      %v4150 = vtanh.pop %v4136
      %v4151 = vtanh.pop %v4137
      %4152 = vst [vmem:[%s128] sm:$0xff] %v4150
      %4153 = vst [vmem:[%s128 + $0x8] sm:$0xff] %v4151
      %v4154 = vtanh.pop %v4142
      %v4155 = vtanh.pop %v4143
      %s4156 = scalar_lea.vmem %s128, 16
      %4157 = vst [vmem:[%s4156] sm:$0xff] %v4154
      %4158 = vst [vmem:[%s4156 + $0x8] sm:$0xff] %v4155
      %v4159 = vtanh.pop %v4148
      %v4160 = vtanh.pop %v4149
      %s4161 = scalar_lea.vmem %s128, 32
      %4162 = vst [vmem:[%s4161] sm:$0xff] %v4159
      %4163 = vst [vmem:[%s4161 + $0x8] sm:$0xff] %v4160
      %p4164 = scmp.lt.s32.totalorder %s24, 3
      %s4165 = scalar_select %p4164, %s24, 3
      %s4166 = smul.addr %s4165, 6
      %s4167 = smul.addr %s4166, 8
      %s4168 = scalar_lea.vmem %s3, %s4167
      // Predicated region
      $region25: #{adapter_forward.1} parent=23 // pred_check
        %p4169 = pneg %p68
      $region26: #{adapter_forward.1} parent=23 // pred_check_branch
        %4171 = sbr.rel (%p4169) target = $region28
      $region27: #{adapter_forward.1} parent=23 // pred_region
        _
      $region28: #{adapter_forward.1} parent=23 // pred_fallthru
        _
    $region24: #{adapter_forward.1} parent=5 // pred_fallthru
      _
    %p4172 = scmp.le.s32.totalorder 2, %s19
    // Predicated region
    $region29: #{adapter_forward.1} parent=5 // pred_check
      %p4173 = pneg %p4172
    $region30: #{adapter_forward.1} parent=5 // pred_check_branch
      %4175 = sbr.rel (%p4173) target = $region32
    $region31: #{adapter_forward.1} parent=5 // pred_region
      %s4176 = ssub.s32 %s19, 2
      // Predicated region
      $region33: #{adapter_forward.1} parent=31 // pred_check
        %p4177 = pneg %p74
      $region34: #{adapter_forward.1} parent=31 // pred_check_branch
        %4179 = sbr.rel (%p4177) target = $region36
      $region35: #{adapter_forward.1} parent=31 // pred_region
        %p4180 = scmp.lt.s32.totalorder %s25, 3
        %s4181 = scalar_select %p4180, %s25, 3
        %s4182 = smul.addr %s4181, 6
        %s4183 = smul.addr %s4182, 8
        %s4184 = scalar_lea.vmem %s3, %s4183
      $region36: #{adapter_forward.1} parent=31 // pred_fallthru
        _
    $region32: #{adapter_forward.1} parent=5 // pred_fallthru
      _
  $region6: #{adapter_forward.1} parent=0 // loop_footer
    %s23 = sadd.s32 1, %s19
  $region7: #{adapter_forward.1} parent=0 // loop_footer_branch
    %18 = sbr.rel target = $region3
  $region8: #{adapter_forward.1} parent=0 // loop_exit
    _

</llo_original>
